<compile_context>
chip_gen: v6e
topology: v6e:2x2x1
jax: 0.10.0
libtpu: 0.0.40
codegen_flags: <defaults>
</compile_context>

<pallas_src>
import functools
import math

import jax
import jax.numpy as jnp
from jax.experimental import pallas as pl
from jax.experimental.pallas import tpu as pltpu


def _round_up(x, m):
    return ((x + m - 1) // m) * m


def _pick_tile(dim, cap, gran):
    """Block size for `dim`: the full dim if dim <= cap (full-dim blocks are
    exempt from the (8,128) rule), else the largest divisor of dim that is
    <= cap and a multiple of `gran`.  Returns None if none exists."""
    if dim <= cap:
        return dim
    t = (cap // gran) * gran
    while t >= gran:
        if dim % t == 0:
            return t
        t -= gran
    return None


# ----------------------------------------------------------------------------
# Pallas kernels
# ----------------------------------------------------------------------------
def _mm_kernel(a_ref, b_ref, bias_ref, o_ref):
    # Single K block -> one MXU dot per (i, j) tile, output written exactly once.
    y = jnp.dot(a_ref[...], b_ref[...], preferred_element_type=jnp.float32)
    o_ref[...] = (y + bias_ref[...]).astype(o_ref.dtype)


def _mm_stats_kernel(a_ref, b_ref, bias_ref, o_ref, s_ref, q_ref):
    # GEMM + fused per-column sum / sum-of-squares of the output (BatchNorm
    # statistics of the produced feature map), accumulated directly into the
    # (1, tn) output blocks which stay resident across the inner row axis.
    i = pl.program_id(1)  # row-block axis (innermost, "arbitrary")
    y = jnp.dot(a_ref[...], b_ref[...],
                preferred_element_type=jnp.float32) + bias_ref[...]
    o_ref[...] = y.astype(o_ref.dtype)

    @pl.when(i == 0)
    def _():
        s_ref[...] = jnp.zeros_like(s_ref)
        q_ref[...] = jnp.zeros_like(q_ref)

    s_ref[...] += jnp.sum(y, axis=0, keepdims=True)
    q_ref[...] += jnp.sum(y * y, axis=0, keepdims=True)


def _maxpool_stats_kernel(*refs):
    # Unrolled window taps: pure VPU elementwise max over lane-dense (tm, C)
    # slabs, plus fused bn1 statistics (sum / sumsq) in the epilogue.
    x_refs = refs[:-3]
    o_ref, s_ref, q_ref = refs[-3:]
    i = pl.program_id(0)

    y = x_refs[0][...]
    for r in x_refs[1:]:
        y = jnp.maximum(y, r[...])
    o_ref[...] = y

    @pl.when(i == 0)
    def _():
        s_ref[...] = jnp.zeros_like(s_ref)
        q_ref[...] = jnp.zeros_like(q_ref)

    yf = y.astype(jnp.float32)
    s_ref[...] += jnp.sum(yf, axis=0, keepdims=True)
    q_ref[...] += jnp.sum(yf * yf, axis=0, keepdims=True)


def _avgpool_affine_kernel(x_ref, scale_ref, shift_ref, o_ref, *, window):
    # Mean over the pooling window with the last BatchNorm's affine fused in.
    x = x_ref[...].astype(jnp.float32)
    m = jnp.sum(x, axis=1) * (1.0 / window)
    o_ref[...] = m * scale_ref[...] + shift_ref[...]


# ----------------------------------------------------------------------------
# Kernel wrappers
# ----------------------------------------------------------------------------
def matmul_bias(a, b, bias=None, *, stats=False, out_dtype=jnp.bfloat16,
                tm_cap=512, tn_cap=256):
    """y = a @ b + bias on the MXU (bf16 operands, f32 accumulation).
    stats=True additionally returns per-column sum and sum-of-squares of y."""
    M, K = a.shape
    K2, N = b.shape
    assert K == K2
    if bias is None:
        bias = jnp.zeros((N,), jnp.float32)
    bias2 = jnp.asarray(bias, jnp.float32).reshape(1, N)

    a = a.astype(jnp.bfloat16)
    b = b.astype(jnp.bfloat16)
    # Align the contraction dim to bf16 sublane packing (16).  Only conv1 is
    # affected (147 -> 160, ~9% extra A bytes, everything stays bf16).
    Kp = _round_up(K, 16)
    if Kp != K:
        a = jnp.pad(a, ((0, 0), (0, Kp - K)))
        b = jnp.pad(b, ((0, Kp - K), (0, 0)))

    tm = _pick_tile(M, tm_cap, 8)
    tn = _pick_tile(N, tn_cap, 128)
    pad_m = tm is None
    pad_n = tn is None
    if pad_m:  # fallback only; not hit for this model's shapes
        tm = tm_cap
        a = jnp.pad(a, ((0, _round_up(M, tm) - M), (0, 0)))
    if pad_n:
        tn = 128
        b = jnp.pad(b, ((0, 0), (0, _round_up(N, tn) - N)))
        bias2 = jnp.pad(bias2, ((0, 0), (0, _round_up(N, tn) - N)))
    Mp, Np = a.shape[0], b.shape[1]

    if not stats:
        out = pl.pallas_call(
            _mm_kernel,
            out_shape=jax.ShapeDtypeStruct((Mp, Np), out_dtype),
            grid_spec=pltpu.PrefetchScalarGridSpec(
                num_scalar_prefetch=0,
                grid=(Mp // tm, Np // tn),
                in_specs=[
                    pl.BlockSpec((tm, Kp), lambda i, j: (i, 0)),
                    pl.BlockSpec((Kp, tn), lambda i, j: (0, j)),
                    pl.BlockSpec((1, tn), lambda i, j: (0, j)),
                ],
                out_specs=pl.BlockSpec((tm, tn), lambda i, j: (i, j)),
            ),
            compiler_params=pltpu.CompilerParams(
                dimension_semantics=("parallel", "parallel")),
        )(a, b, bias2)
        return out[:M, :N] if (pad_m or pad_n) else out

    if pad_m or pad_n:
        raise NotImplementedError("stats fusion requires divisor-aligned M/N")

    out, s, q = pl.pallas_call(
        _mm_stats_kernel,
        out_shape=(jax.ShapeDtypeStruct((M, N), out_dtype),
                   jax.ShapeDtypeStruct((1, N), jnp.float32),
                   jax.ShapeDtypeStruct((1, N), jnp.float32)),
        grid_spec=pltpu.PrefetchScalarGridSpec(
            num_scalar_prefetch=0,
            grid=(N // tn, M // tm),   # row axis innermost -> stats accumulate
            in_specs=[
                pl.BlockSpec((tm, Kp), lambda j, i: (i, 0)),
                pl.BlockSpec((Kp, tn), lambda j, i: (0, j)),
                pl.BlockSpec((1, tn), lambda j, i: (0, j)),
            ],
            out_specs=(pl.BlockSpec((tm, tn), lambda j, i: (i, j)),
                       pl.BlockSpec((1, tn), lambda j, i: (0, j)),
                       pl.BlockSpec((1, tn), lambda j, i: (0, j))),
        ),
        compiler_params=pltpu.CompilerParams(
            dimension_semantics=("parallel", "arbitrary")),
    )(a, b, bias2)
    return out, s, q


def im2col(x_nhwc, kh, kw, stride, pad, pad_value=0.0):
    N, H, W, C = x_nhwc.shape
    xp = jnp.pad(x_nhwc, ((0, 0), (pad, pad), (pad, pad), (0, 0)),
                 constant_values=pad_value)
    OH = (H + 2 * pad - kh) // stride + 1
    OW = (W + 2 * pad - kw) // stride + 1
    cols = []
    for dy in range(kh):
        for dx in range(kw):
            cols.append(xp[:, dy:dy + stride * OH:stride,
                           dx:dx + stride * OW:stride, :])
    return jnp.stack(cols, axis=3), OH, OW  # (N, OH, OW, kh*kw, C)


def first_conv(x_nhwc, w_oihw, bias, stride, pad, cout_pad):
    """7x7 conv (bias=True) via bf16 im2col + single-K-block MXU GEMM.  The
    output channel axis is zero-padded to `cout_pad` in the weights so the
    whole stem stays 128-lane dense."""
    Cout, Cin, KH, KW = w_oihw.shape
    cols, OH, OW = im2col(x_nhwc, KH, KW, stride, pad)
    N = x_nhwc.shape[0]
    a = cols.reshape(N * OH * OW, KH * KW * Cin)
    b = jnp.transpose(w_oihw, (2, 3, 1, 0)).reshape(KH * KW * Cin, Cout)
    b = b.astype(jnp.float32)
    bias = jnp.asarray(bias, jnp.float32)
    if cout_pad > Cout:
        b = jnp.pad(b, ((0, 0), (0, cout_pad - Cout)))
        bias = jnp.pad(bias, (0, cout_pad - Cout))
    y = matmul_bias(a, b, bias, out_dtype=jnp.bfloat16)
    return y.reshape(N, OH, OW, cout_pad)


def maxpool2d_with_stats(x_nhwc, ksize=3, stride=2, pad=1):
    """MaxPool2d(3, 2, 1) + fused per-channel sum/sumsq of the pooled map
    (the bn1 statistics).  Window taps are passed as 9 lane-dense 2-D slabs."""
    N, H, W, C = x_nhwc.shape
    xp = jnp.pad(x_nhwc, ((0, 0), (pad, pad), (pad, pad), (0, 0)),
                 constant_values=float("-inf"))
    OH = (H + 2 * pad - ksize) // stride + 1
    OW = (W + 2 * pad - ksize) // stride + 1
    M = N * OH * OW
    taps = [xp[:, dy:dy + stride * OH:stride, dx:dx + stride * OW:stride, :]
            .reshape(M, C)
            for dy in range(ksize) for dx in range(ksize)]

    tm = _pick_tile(M, 512, 8)
    Mp = M
    if tm is None:  # fallback: zero rows contribute 0 to max and to the stats
        tm = 512
        Mp = _round_up(M, tm)
        taps = [jnp.pad(t, ((0, Mp - M), (0, 0))) for t in taps]

    y, s, q = pl.pallas_call(
        _maxpool_stats_kernel,
        out_shape=(jax.ShapeDtypeStruct((Mp, C), x_nhwc.dtype),
                   jax.ShapeDtypeStruct((1, C), jnp.float32),
                   jax.ShapeDtypeStruct((1, C), jnp.float32)),
        grid_spec=pltpu.PrefetchScalarGridSpec(
            num_scalar_prefetch=0,
            grid=(Mp // tm,),
            in_specs=[pl.BlockSpec((tm, C), lambda i: (i, 0))] * (ksize * ksize),
            out_specs=(pl.BlockSpec((tm, C), lambda i: (i, 0)),
                       pl.BlockSpec((1, C), lambda i: (0, 0)),
                       pl.BlockSpec((1, C), lambda i: (0, 0))),
        ),
        compiler_params=pltpu.CompilerParams(
            dimension_semantics=("arbitrary",)),
    )(*taps)
    return y[:M].reshape(N, OH, OW, C), s, q, M


def avgpool_affine(x_m3, scale, shift):
    """x: (N, window, C) -> mean over window, then per-channel *scale + shift
    (the last BatchNorm's affine fused into the pooling epilogue)."""
    N, window, C = x_m3.shape
    return pl.pallas_call(
        functools.partial(_avgpool_affine_kernel, window=window),
        out_shape=jax.ShapeDtypeStruct((N, C), jnp.float32),
        grid_spec=pltpu.PrefetchScalarGridSpec(
            num_scalar_prefetch=0,
            grid=(1,),
            in_specs=[pl.BlockSpec((N, window, C), lambda i: (0, 0, 0)),
                      pl.BlockSpec((1, C), lambda i: (0, 0)),
                      pl.BlockSpec((1, C), lambda i: (0, 0))],
            out_specs=pl.BlockSpec((N, C), lambda i: (0, 0)),
        ),
        compiler_params=pltpu.CompilerParams(
            dimension_semantics=("arbitrary",)),
    )(x_m3, scale, shift)


# ----------------------------------------------------------------------------
# BatchNorm fusion helpers (tiny (1, C) scalar math stays in JAX glue)
# ----------------------------------------------------------------------------
def bn_scale_shift(s, q, count, gamma, beta, eps=1e-5):
    """Training-mode BatchNorm affine from fused per-channel sum / sumsq."""
    mean = s / count
    var = jnp.maximum(q / count - mean * mean, 0.0)  # biased variance (PyTorch fwd)
    inv = jax.lax.rsqrt(var + eps)
    scale = gamma.reshape(1, -1).astype(jnp.float32) * inv
    shift = beta.reshape(1, -1).astype(jnp.float32) - mean * scale
    return scale, shift


def fold_affine_into_1x1(scale, shift, w_oihw):
    """Fold a preceding per-channel affine (x*scale + shift) into a 1x1 conv:
       conv(x*scale + shift) = x @ (scale[:,None] * B) + shift @ B."""
    Cout, Cin = w_oihw.shape[0], w_oihw.shape[1]
    B = w_oihw.reshape(Cout, Cin).T.astype(jnp.float32)  # (Cin, Cout)
    Cin_pad = scale.shape[1]
    if Cin_pad > Cin:
        B = jnp.pad(B, ((0, Cin_pad - Cin), (0, 0)))      # padded lanes -> zero rows
    Bf = scale.reshape(-1, 1) * B
    bias = (shift @ B).reshape(-1)
    return Bf, bias


def downsample_conv_bn_stats(x_nhwc, B_folded, bias_folded, stride):
    """downsample_layer: 1x1 strided conv as a GEMM over spatially-subsampled
    rows, with its own BatchNorm statistics accumulated in the GEMM epilogue."""
    xs = x_nhwc[:, ::stride, ::stride, :]
    N, OH, OW, Cin = xs.shape
    a = xs.reshape(N * OH * OW, Cin)
    y, s, q = matmul_bias(a, B_folded, bias_folded, stats=True,
                          out_dtype=jnp.bfloat16)
    return y.reshape(N, OH, OW, -1), s, q, N * OH * OW


# ----------------------------------------------------------------------------
# ResNet forward
# ----------------------------------------------------------------------------
def resnet_forward(params, x_nchw, get_embeddings=False):
    CPAD = 128
    x = jnp.transpose(x_nchw, (0, 2, 3, 1)).astype(jnp.bfloat16)  # NCHW -> NHWC

    # stem: first_conv (7x7/s2/p3, bias) -> maxpool (3x3/s2/p1) -> bn1
    y1 = first_conv(x, params["conv1_w"], params["conv1_b"],
                    stride=2, pad=3, cout_pad=CPAD)
    y1p, s1, q1, n1 = maxpool2d_with_stats(y1)
    g1 = jnp.pad(params["bn1_g"].astype(jnp.float32),
                 (0, CPAD - params["bn1_g"].shape[0]))
    b1 = jnp.pad(params["bn1_b"].astype(jnp.float32),
                 (0, CPAD - params["bn1_b"].shape[0]))
    scale1, shift1 = bn_scale_shift(s1, q1, n1, g1, b1)
    # bn1 is never applied as a standalone pass: its affine is folded into the
    # next 1x1 conv (layer1 is identity, see TODO below).

    # TODO(synk): the expert `block` class is undefined in the source; each
    # stage uses only its defined downsample_layer (layer1 -> identity).

    B2, bias2 = fold_affine_into_1x1(scale1, shift1, params["ds2_w"])
    y2, s2, q2, n2 = downsample_conv_bn_stats(y1p, B2, bias2, stride=2)
    scale2, shift2 = bn_scale_shift(s2, q2, n2, params["ds2_g"], params["ds2_b"])

    B3, bias3 = fold_affine_into_1x1(scale2, shift2, params["ds3_w"])
    y3, s3, q3, n3 = downsample_conv_bn_stats(y2, B3, bias3, stride=2)
    scale3, shift3 = bn_scale_shift(s3, q3, n3, params["ds3_g"], params["ds3_b"])

    B4, bias4 = fold_affine_into_1x1(scale3, shift3, params["ds4_w"])
    y4, s4, q4, n4 = downsample_conv_bn_stats(y3, B4, bias4, stride=2)
    scale4, shift4 = bn_scale_shift(s4, q4, n4, params["ds4_g"], params["ds4_b"])

    # avgpool(7) on the 7x7 map with layer4's BN affine fused -> (N, 512) f32
    N4, H4, W4, C4 = y4.shape
    pooled = avgpool_affine(y4.reshape(N4, H4 * W4, C4), scale4, shift4)
    if get_embeddings:
        return pooled

    logits = matmul_bias(pooled, params["fc_w"].T, params["fc_b"],
                         out_dtype=jnp.float32)
    return {"preds": logits}


def init_params(key, num_classes=10):
    ks = jax.random.split(key, 8)

    def nrm(k, shape, scale):
        return scale * jax.random.normal(k, shape, jnp.float32)

    p = {}
    p["conv1_w"] = nrm(ks[0], (64, 3, 7, 7), 1.0 / math.sqrt(3 * 49))
    p["conv1_b"] = nrm(ks[1], (64,), 0.01)
    p["bn1_g"] = jnp.ones((64,), jnp.float32)
    p["bn1_b"] = jnp.zeros((64,), jnp.float32)
    p["ds2_w"] = nrm(ks[2], (128, 64, 1, 1), 1.0 / math.sqrt(64))
    p["ds2_g"] = jnp.ones((128,), jnp.float32)
    p["ds2_b"] = jnp.zeros((128,), jnp.float32)
    p["ds3_w"] = nrm(ks[3], (256, 128, 1, 1), 1.0 / math.sqrt(128))
    p["ds3_g"] = jnp.ones((256,), jnp.float32)
    p["ds3_b"] = jnp.zeros((256,), jnp.float32)
    p["ds4_w"] = nrm(ks[4], (512, 256, 1, 1), 1.0 / math.sqrt(256))
    p["ds4_g"] = jnp.ones((512,), jnp.float32)
    p["ds4_b"] = jnp.zeros((512,), jnp.float32)
    p["fc_w"] = nrm(ks[5], (num_classes, 512), 1.0 / math.sqrt(512))
    p["fc_b"] = jnp.zeros((num_classes,), jnp.float32)
    return p


if __name__ == "__main__":
    key = jax.random.PRNGKey(0)
    pkey, xkey = jax.random.split(key)
    params = init_params(pkey, num_classes=10)
    # Spatial 224 so AvgPool2d(7) sees the 7x7 feature map the module expects.
    x = jax.random.normal(xkey, (2, 3, 224, 224), jnp.float32)

    fwd = jax.jit(lambda p, xx: resnet_forward(p, xx))
    out = fwd(params, x)
    preds = jax.block_until_ready(out["preds"])
    assert preds.shape == (2, 10) and preds.dtype == jnp.float32
    assert bool(jnp.all(jnp.isfinite(preds)))
    print("KERNEL_OK")
</pallas_src>

<mosaic_0001>
module attributes {stable_mosaic.version = 11 : i64} {
  func.func @_mm_kernel(%arg0: i32, %arg1: i32, %arg2: memref<512x160xbf16, #tpu.memory_space<vmem>>, %arg3: memref<160x128xbf16, #tpu.memory_space<vmem>>, %arg4: memref<1x128xf32, #tpu.memory_space<vmem>>, %arg5: memref<512x128xbf16, #tpu.memory_space<vmem>>) attributes {dimension_semantics = [#tpu.dimension_semantics<parallel>, #tpu.dimension_semantics<parallel>], iteration_bounds = array<i64: 49, 1>, scalar_prefetch = 0 : i64, scratch_operands = 0 : i64, tpu.core_type = #tpu.core_type<tc>, window_params = [{transform_indices = @transform_0, window_bounds = array<i64: 512, 160>}, {transform_indices = @transform_1, window_bounds = array<i64: 160, 128>}, {transform_indices = @transform_2, window_bounds = array<i64: 1, 128>}, {transform_indices = @transform_3, window_bounds = array<i64: 512, 128>}]} {
    %c0 = arith.constant 0 : index
    %c0_0 = arith.constant 0 : index
    %0 = vector.load %arg2[%c0, %c0_0] : memref<512x160xbf16, #tpu.memory_space<vmem>>, vector<512x160xbf16>
    %c0_1 = arith.constant 0 : index
    %c0_2 = arith.constant 0 : index
    %1 = vector.load %arg3[%c0_1, %c0_2] : memref<160x128xbf16, #tpu.memory_space<vmem>>, vector<160x128xbf16>
    %cst = arith.constant dense<0.000000e+00> : vector<512x128xf32>
    %2 = tpu.matmul %0, %1, %cst {dimension_numbers = #tpu.dot_dimension_numbers<[1], [0], [0], [1], [0, 0, 1, 1], [], []>} : vector<512x160xbf16>, vector<160x128xbf16>, vector<512x128xf32> -> vector<512x128xf32>
    %c0_3 = arith.constant 0 : index
    %c0_4 = arith.constant 0 : index
    %3 = vector.load %arg4[%c0_3, %c0_4] : memref<1x128xf32, #tpu.memory_space<vmem>>, vector<1x128xf32>
    %4 = vector.broadcast %3 : vector<1x128xf32> to vector<512x128xf32>
    %5 = arith.addf %2, %4 : vector<512x128xf32>
    %6 = arith.truncf %5 : vector<512x128xf32> to vector<512x128xbf16>
    %c0_5 = arith.constant 0 : index
    %c0_6 = arith.constant 0 : index
    %7 = vector.load %arg5[%c0_5, %c0_6] : memref<512x128xbf16, #tpu.memory_space<vmem>>, vector<512x128xbf16>
    tpu.vector_store %arg5[%c0_5, %c0_6], %6 {strides = array<i32>} : memref<512x128xbf16, #tpu.memory_space<vmem>>, vector<512x128xbf16>,
    return
  }
  func.func @transform_0(%arg0: i32, %arg1: i32) -> (i32, i32) {
    %c0_i32 = arith.constant 0 : i32
    %c0_i32_0 = arith.constant 0 : i32
    return %arg0, %c0_i32 : i32, i32
  }
  func.func @transform_1(%arg0: i32, %arg1: i32) -> (i32, i32) {
    %c0_i32 = arith.constant 0 : i32
    %c0_i32_0 = arith.constant 0 : i32
    return %c0_i32, %arg1 : i32, i32
  }
  func.func @transform_2(%arg0: i32, %arg1: i32) -> (i32, i32) {
    %c0_i32 = arith.constant 0 : i32
    %c0_i32_0 = arith.constant 0 : i32
    return %c0_i32, %arg1 : i32, i32
  }
  func.func @transform_3(%arg0: i32, %arg1: i32) -> (i32, i32) {
    %c0_i32 = arith.constant 0 : i32
    return %arg0, %arg1 : i32, i32
  }
}

module attributes {stable_mosaic.version = 11 : i64} {
  func.func @_maxpool_stats_kernel(%arg0: i32, %arg1: memref<448x128xbf16, #tpu.memory_space<vmem>>, %arg2: memref<448x128xbf16, #tpu.memory_space<vmem>>, %arg3: memref<448x128xbf16, #tpu.memory_space<vmem>>, %arg4: memref<448x128xbf16, #tpu.memory_space<vmem>>, %arg5: memref<448x128xbf16, #tpu.memory_space<vmem>>, %arg6: memref<448x128xbf16, #tpu.memory_space<vmem>>, %arg7: memref<448x128xbf16, #tpu.memory_space<vmem>>, %arg8: memref<448x128xbf16, #tpu.memory_space<vmem>>, %arg9: memref<448x128xbf16, #tpu.memory_space<vmem>>, %arg10: memref<448x128xbf16, #tpu.memory_space<vmem>>, %arg11: memref<1x128xf32, #tpu.memory_space<vmem>>, %arg12: memref<1x128xf32, #tpu.memory_space<vmem>>) attributes {dimension_semantics = [#tpu.dimension_semantics<arbitrary>], iteration_bounds = array<i64: 14>, scalar_prefetch = 0 : i64, scratch_operands = 0 : i64, tpu.core_type = #tpu.core_type<tc>, window_params = [{transform_indices = @transform_0, window_bounds = array<i64: 448, 128>}, {transform_indices = @transform_1, window_bounds = array<i64: 448, 128>}, {transform_indices = @transform_2, window_bounds = array<i64: 448, 128>}, {transform_indices = @transform_3, window_bounds = array<i64: 448, 128>}, {transform_indices = @transform_4, window_bounds = array<i64: 448, 128>}, {transform_indices = @transform_5, window_bounds = array<i64: 448, 128>}, {transform_indices = @transform_6, window_bounds = array<i64: 448, 128>}, {transform_indices = @transform_7, window_bounds = array<i64: 448, 128>}, {transform_indices = @transform_8, window_bounds = array<i64: 448, 128>}, {transform_indices = @transform_9, window_bounds = array<i64: 448, 128>}, {pipeline_mode = #tpu.pipeline_mode<synchronous>, transform_indices = @transform_10, window_bounds = array<i64: 1, 128>}, {pipeline_mode = #tpu.pipeline_mode<synchronous>, transform_indices = @transform_11, window_bounds = array<i64: 1, 128>}]} {
    %c0 = arith.constant 0 : index
    %c0_0 = arith.constant 0 : index
    %0 = vector.load %arg1[%c0, %c0_0] : memref<448x128xbf16, #tpu.memory_space<vmem>>, vector<448x128xbf16>
    %c0_1 = arith.constant 0 : index
    %c0_2 = arith.constant 0 : index
    %1 = vector.load %arg2[%c0_1, %c0_2] : memref<448x128xbf16, #tpu.memory_space<vmem>>, vector<448x128xbf16>
    %2 = arith.maximumf %0, %1 : vector<448x128xbf16>
    %c0_3 = arith.constant 0 : index
    %c0_4 = arith.constant 0 : index
    %3 = vector.load %arg3[%c0_3, %c0_4] : memref<448x128xbf16, #tpu.memory_space<vmem>>, vector<448x128xbf16>
    %4 = arith.maximumf %2, %3 : vector<448x128xbf16>
    %c0_5 = arith.constant 0 : index
    %c0_6 = arith.constant 0 : index
    %5 = vector.load %arg4[%c0_5, %c0_6] : memref<448x128xbf16, #tpu.memory_space<vmem>>, vector<448x128xbf16>
    %6 = arith.maximumf %4, %5 : vector<448x128xbf16>
    %c0_7 = arith.constant 0 : index
    %c0_8 = arith.constant 0 : index
    %7 = vector.load %arg5[%c0_7, %c0_8] : memref<448x128xbf16, #tpu.memory_space<vmem>>, vector<448x128xbf16>
    %8 = arith.maximumf %6, %7 : vector<448x128xbf16>
    %c0_9 = arith.constant 0 : index
    %c0_10 = arith.constant 0 : index
    %9 = vector.load %arg6[%c0_9, %c0_10] : memref<448x128xbf16, #tpu.memory_space<vmem>>, vector<448x128xbf16>
    %10 = arith.maximumf %8, %9 : vector<448x128xbf16>
    %c0_11 = arith.constant 0 : index
    %c0_12 = arith.constant 0 : index
    %11 = vector.load %arg7[%c0_11, %c0_12] : memref<448x128xbf16, #tpu.memory_space<vmem>>, vector<448x128xbf16>
    %12 = arith.maximumf %10, %11 : vector<448x128xbf16>
    %c0_13 = arith.constant 0 : index
    %c0_14 = arith.constant 0 : index
    %13 = vector.load %arg8[%c0_13, %c0_14] : memref<448x128xbf16, #tpu.memory_space<vmem>>, vector<448x128xbf16>
    %14 = arith.maximumf %12, %13 : vector<448x128xbf16>
    %c0_15 = arith.constant 0 : index
    %c0_16 = arith.constant 0 : index
    %15 = vector.load %arg9[%c0_15, %c0_16] : memref<448x128xbf16, #tpu.memory_space<vmem>>, vector<448x128xbf16>
    %16 = arith.maximumf %14, %15 : vector<448x128xbf16>
    %c0_17 = arith.constant 0 : index
    %c0_18 = arith.constant 0 : index
    %17 = vector.load %arg10[%c0_17, %c0_18] : memref<448x128xbf16, #tpu.memory_space<vmem>>, vector<448x128xbf16>
    tpu.vector_store %arg10[%c0_17, %c0_18], %16 {strides = array<i32>} : memref<448x128xbf16, #tpu.memory_space<vmem>>, vector<448x128xbf16>,
    %c0_i32 = arith.constant 0 : i32
    %18 = arith.cmpi eq, %arg0, %c0_i32 : i32
    %19 = arith.extui %18 : i1 to i32
    %c0_i32_19 = arith.constant 0 : i32
    %20 = arith.cmpi ne, %19, %c0_i32_19 : i32
    scf.if %20 {
      %cst_29 = arith.constant 0.000000e+00 : f32
      %33 = vector.broadcast %cst_29 : f32 to vector<1x128xf32>
      %c0_30 = arith.constant 0 : index
      %c0_31 = arith.constant 0 : index
      %34 = vector.load %arg11[%c0_30, %c0_31] : memref<1x128xf32, #tpu.memory_space<vmem>>, vector<1x128xf32>
      tpu.vector_store %arg11[%c0_30, %c0_31], %33 {strides = array<i32>} : memref<1x128xf32, #tpu.memory_space<vmem>>, vector<1x128xf32>,
      %cst_32 = arith.constant 0.000000e+00 : f32
      %35 = vector.broadcast %cst_32 : f32 to vector<1x128xf32>
      %c0_33 = arith.constant 0 : index
      %c0_34 = arith.constant 0 : index
      %36 = vector.load %arg12[%c0_33, %c0_34] : memref<1x128xf32, #tpu.memory_space<vmem>>, vector<1x128xf32>
      tpu.vector_store %arg12[%c0_33, %c0_34], %35 {strides = array<i32>} : memref<1x128xf32, #tpu.memory_space<vmem>>, vector<1x128xf32>,
    } else {
    }
    %21 = arith.extf %16 : vector<448x128xbf16> to vector<448x128xf32>
    %c0_20 = arith.constant 0 : index
    %c0_21 = arith.constant 0 : index
    %22 = vector.load %arg11[%c0_20, %c0_21] : memref<1x128xf32, #tpu.memory_space<vmem>>, vector<1x128xf32>
    %cst = arith.constant dense<0.000000e+00> : vector<128xf32>
    %23 = vector.multi_reduction <add>, %21, %cst [0] : vector<448x128xf32> to vector<128xf32>
    %24 = vector.shape_cast %23 : vector<128xf32> to vector<1x128xf32>
    %25 = arith.addf %22, %24 : vector<1x128xf32>
    %c0_22 = arith.constant 0 : index
    %c0_23 = arith.constant 0 : index
    %26 = vector.load %arg11[%c0_22, %c0_23] : memref<1x128xf32, #tpu.memory_space<vmem>>, vector<1x128xf32>
    tpu.vector_store %arg11[%c0_22, %c0_23], %25 {strides = array<i32>} : memref<1x128xf32, #tpu.memory_space<vmem>>, vector<1x128xf32>,
    %c0_24 = arith.constant 0 : index
    %c0_25 = arith.constant 0 : index
    %27 = vector.load %arg12[%c0_24, %c0_25] : memref<1x128xf32, #tpu.memory_space<vmem>>, vector<1x128xf32>
    %28 = arith.mulf %21, %21 : vector<448x128xf32>
    %cst_26 = arith.constant dense<0.000000e+00> : vector<128xf32>
    %29 = vector.multi_reduction <add>, %28, %cst_26 [0] : vector<448x128xf32> to vector<128xf32>
    %30 = vector.shape_cast %29 : vector<128xf32> to vector<1x128xf32>
    %31 = arith.addf %27, %30 : vector<1x128xf32>
    %c0_27 = arith.constant 0 : index
    %c0_28 = arith.constant 0 : index
    %32 = vector.load %arg12[%c0_27, %c0_28] : memref<1x128xf32, #tpu.memory_space<vmem>>, vector<1x128xf32>
    tpu.vector_store %arg12[%c0_27, %c0_28], %31 {strides = array<i32>} : memref<1x128xf32, #tpu.memory_space<vmem>>, vector<1x128xf32>,
    return
  }
  func.func @transform_0(%arg0: i32) -> (i32, i32) {
    %c0_i32 = arith.constant 0 : i32
    %c0_i32_0 = arith.constant 0 : i32
    return %arg0, %c0_i32 : i32, i32
  }
  func.func @transform_1(%arg0: i32) -> (i32, i32) {
    %c0_i32 = arith.constant 0 : i32
    %c0_i32_0 = arith.constant 0 : i32
    return %arg0, %c0_i32 : i32, i32
  }
  func.func @transform_2(%arg0: i32) -> (i32, i32) {
    %c0_i32 = arith.constant 0 : i32
    %c0_i32_0 = arith.constant 0 : i32
    return %arg0, %c0_i32 : i32, i32
  }
  func.func @transform_3(%arg0: i32) -> (i32, i32) {
    %c0_i32 = arith.constant 0 : i32
    %c0_i32_0 = arith.constant 0 : i32
    return %arg0, %c0_i32 : i32, i32
  }
  func.func @transform_4(%arg0: i32) -> (i32, i32) {
    %c0_i32 = arith.constant 0 : i32
    %c0_i32_0 = arith.constant 0 : i32
    return %arg0, %c0_i32 : i32, i32
  }
  func.func @transform_5(%arg0: i32) -> (i32, i32) {
    %c0_i32 = arith.constant 0 : i32
    %c0_i32_0 = arith.constant 0 : i32
    return %arg0, %c0_i32 : i32, i32
  }
  func.func @transform_6(%arg0: i32) -> (i32, i32) {
    %c0_i32 = arith.constant 0 : i32
    %c0_i32_0 = arith.constant 0 : i32
    return %arg0, %c0_i32 : i32, i32
  }
  func.func @transform_7(%arg0: i32) -> (i32, i32) {
    %c0_i32 = arith.constant 0 : i32
    %c0_i32_0 = arith.constant 0 : i32
    return %arg0, %c0_i32 : i32, i32
  }
  func.func @transform_8(%arg0: i32) -> (i32, i32) {
    %c0_i32 = arith.constant 0 : i32
    %c0_i32_0 = arith.constant 0 : i32
    return %arg0, %c0_i32 : i32, i32
  }
  func.func @transform_9(%arg0: i32) -> (i32, i32) {
    %c0_i32 = arith.constant 0 : i32
    %c0_i32_0 = arith.constant 0 : i32
    return %arg0, %c0_i32 : i32, i32
  }
  func.func @transform_10(%arg0: i32) -> (i32, i32) {
    %c0_i32 = arith.constant 0 : i32
    %c0_i32_0 = arith.constant 0 : i32
    %c0_i32_1 = arith.constant 0 : i32
    return %c0_i32, %c0_i32_0 : i32, i32
  }
  func.func @transform_11(%arg0: i32) -> (i32, i32) {
    %c0_i32 = arith.constant 0 : i32
    %c0_i32_0 = arith.constant 0 : i32
    %c0_i32_1 = arith.constant 0 : i32
    return %c0_i32, %c0_i32_0 : i32, i32
  }
}

module attributes {stable_mosaic.version = 11 : i64} {
  func.func @_mm_stats_kernel(%arg0: i32, %arg1: i32, %arg2: memref<392x128xbf16, #tpu.memory_space<vmem>>, %arg3: memref<128x128xbf16, #tpu.memory_space<vmem>>, %arg4: memref<1x128xf32, #tpu.memory_space<vmem>>, %arg5: memref<392x128xbf16, #tpu.memory_space<vmem>>, %arg6: memref<1x128xf32, #tpu.memory_space<vmem>>, %arg7: memref<1x128xf32, #tpu.memory_space<vmem>>) attributes {dimension_semantics = [#tpu.dimension_semantics<parallel>, #tpu.dimension_semantics<arbitrary>], iteration_bounds = array<i64: 1, 4>, scalar_prefetch = 0 : i64, scratch_operands = 0 : i64, tpu.core_type = #tpu.core_type<tc>, window_params = [{transform_indices = @transform_0, window_bounds = array<i64: 392, 128>}, {transform_indices = @transform_1, window_bounds = array<i64: 128, 128>}, {transform_indices = @transform_2, window_bounds = array<i64: 1, 128>}, {transform_indices = @transform_3, window_bounds = array<i64: 392, 128>}, {transform_indices = @transform_4, window_bounds = array<i64: 1, 128>}, {transform_indices = @transform_5, window_bounds = array<i64: 1, 128>}]} {
    %c0 = arith.constant 0 : index
    %c0_0 = arith.constant 0 : index
    %0 = vector.load %arg2[%c0, %c0_0] : memref<392x128xbf16, #tpu.memory_space<vmem>>, vector<392x128xbf16>
    %c0_1 = arith.constant 0 : index
    %c0_2 = arith.constant 0 : index
    %1 = vector.load %arg3[%c0_1, %c0_2] : memref<128x128xbf16, #tpu.memory_space<vmem>>, vector<128x128xbf16>
    %cst = arith.constant dense<0.000000e+00> : vector<392x128xf32>
    %2 = tpu.matmul %0, %1, %cst {dimension_numbers = #tpu.dot_dimension_numbers<[1], [0], [0], [1], [0, 0, 1, 1], [], []>} : vector<392x128xbf16>, vector<128x128xbf16>, vector<392x128xf32> -> vector<392x128xf32>
    %c0_3 = arith.constant 0 : index
    %c0_4 = arith.constant 0 : index
    %3 = vector.load %arg4[%c0_3, %c0_4] : memref<1x128xf32, #tpu.memory_space<vmem>>, vector<1x128xf32>
    %4 = vector.broadcast %3 : vector<1x128xf32> to vector<392x128xf32>
    %5 = arith.addf %2, %4 : vector<392x128xf32>
    %6 = arith.truncf %5 : vector<392x128xf32> to vector<392x128xbf16>
    %c0_5 = arith.constant 0 : index
    %c0_6 = arith.constant 0 : index
    %7 = vector.load %arg5[%c0_5, %c0_6] : memref<392x128xbf16, #tpu.memory_space<vmem>>, vector<392x128xbf16>
    tpu.vector_store %arg5[%c0_5, %c0_6], %6 {strides = array<i32>} : memref<392x128xbf16, #tpu.memory_space<vmem>>, vector<392x128xbf16>,
    %c0_i32 = arith.constant 0 : i32
    %8 = arith.cmpi eq, %arg1, %c0_i32 : i32
    %9 = arith.extui %8 : i1 to i32
    %c0_i32_7 = arith.constant 0 : i32
    %10 = arith.cmpi ne, %9, %c0_i32_7 : i32
    scf.if %10 {
      %cst_18 = arith.constant 0.000000e+00 : f32
      %22 = vector.broadcast %cst_18 : f32 to vector<1x128xf32>
      %c0_19 = arith.constant 0 : index
      %c0_20 = arith.constant 0 : index
      %23 = vector.load %arg6[%c0_19, %c0_20] : memref<1x128xf32, #tpu.memory_space<vmem>>, vector<1x128xf32>
      tpu.vector_store %arg6[%c0_19, %c0_20], %22 {strides = array<i32>} : memref<1x128xf32, #tpu.memory_space<vmem>>, vector<1x128xf32>,
      %cst_21 = arith.constant 0.000000e+00 : f32
      %24 = vector.broadcast %cst_21 : f32 to vector<1x128xf32>
      %c0_22 = arith.constant 0 : index
      %c0_23 = arith.constant 0 : index
      %25 = vector.load %arg7[%c0_22, %c0_23] : memref<1x128xf32, #tpu.memory_space<vmem>>, vector<1x128xf32>
      tpu.vector_store %arg7[%c0_22, %c0_23], %24 {strides = array<i32>} : memref<1x128xf32, #tpu.memory_space<vmem>>, vector<1x128xf32>,
    } else {
    }
    %c0_8 = arith.constant 0 : index
    %c0_9 = arith.constant 0 : index
    %11 = vector.load %arg6[%c0_8, %c0_9] : memref<1x128xf32, #tpu.memory_space<vmem>>, vector<1x128xf32>
    %cst_10 = arith.constant dense<0.000000e+00> : vector<128xf32>
    %12 = vector.multi_reduction <add>, %5, %cst_10 [0] : vector<392x128xf32> to vector<128xf32>
    %13 = vector.shape_cast %12 : vector<128xf32> to vector<1x128xf32>
    %14 = arith.addf %11, %13 : vector<1x128xf32>
    %c0_11 = arith.constant 0 : index
    %c0_12 = arith.constant 0 : index
    %15 = vector.load %arg6[%c0_11, %c0_12] : memref<1x128xf32, #tpu.memory_space<vmem>>, vector<1x128xf32>
    tpu.vector_store %arg6[%c0_11, %c0_12], %14 {strides = array<i32>} : memref<1x128xf32, #tpu.memory_space<vmem>>, vector<1x128xf32>,
    %c0_13 = arith.constant 0 : index
    %c0_14 = arith.constant 0 : index
    %16 = vector.load %arg7[%c0_13, %c0_14] : memref<1x128xf32, #tpu.memory_space<vmem>>, vector<1x128xf32>
    %17 = arith.mulf %5, %5 : vector<392x128xf32>
    %cst_15 = arith.constant dense<0.000000e+00> : vector<128xf32>
    %18 = vector.multi_reduction <add>, %17, %cst_15 [0] : vector<392x128xf32> to vector<128xf32>
    %19 = vector.shape_cast %18 : vector<128xf32> to vector<1x128xf32>
    %20 = arith.addf %16, %19 : vector<1x128xf32>
    %c0_16 = arith.constant 0 : index
    %c0_17 = arith.constant 0 : index
    %21 = vector.load %arg7[%c0_16, %c0_17] : memref<1x128xf32, #tpu.memory_space<vmem>>, vector<1x128xf32>
    tpu.vector_store %arg7[%c0_16, %c0_17], %20 {strides = array<i32>} : memref<1x128xf32, #tpu.memory_space<vmem>>, vector<1x128xf32>,
    return
  }
  func.func @transform_0(%arg0: i32, %arg1: i32) -> (i32, i32) {
    %c0_i32 = arith.constant 0 : i32
    %c0_i32_0 = arith.constant 0 : i32
    return %arg1, %c0_i32 : i32, i32
  }
  func.func @transform_1(%arg0: i32, %arg1: i32) -> (i32, i32) {
    %c0_i32 = arith.constant 0 : i32
    %c0_i32_0 = arith.constant 0 : i32
    return %c0_i32, %arg0 : i32, i32
  }
  func.func @transform_2(%arg0: i32, %arg1: i32) -> (i32, i32) {
    %c0_i32 = arith.constant 0 : i32
    %c0_i32_0 = arith.constant 0 : i32
    return %c0_i32, %arg0 : i32, i32
  }
  func.func @transform_3(%arg0: i32, %arg1: i32) -> (i32, i32) {
    %c0_i32 = arith.constant 0 : i32
    return %arg1, %arg0 : i32, i32
  }
  func.func @transform_4(%arg0: i32, %arg1: i32) -> (i32, i32) {
    %c0_i32 = arith.constant 0 : i32
    %c0_i32_0 = arith.constant 0 : i32
    return %c0_i32, %arg0 : i32, i32
  }
  func.func @transform_5(%arg0: i32, %arg1: i32) -> (i32, i32) {
    %c0_i32 = arith.constant 0 : i32
    %c0_i32_0 = arith.constant 0 : i32
    return %c0_i32, %arg0 : i32, i32
  }
}

module attributes {stable_mosaic.version = 11 : i64} {
  func.func @_mm_stats_kernel(%arg0: i32, %arg1: i32, %arg2: memref<392x128xbf16, #tpu.memory_space<vmem>>, %arg3: memref<128x256xbf16, #tpu.memory_space<vmem>>, %arg4: memref<1x256xf32, #tpu.memory_space<vmem>>, %arg5: memref<392x256xbf16, #tpu.memory_space<vmem>>, %arg6: memref<1x256xf32, #tpu.memory_space<vmem>>, %arg7: memref<1x256xf32, #tpu.memory_space<vmem>>) attributes {dimension_semantics = [#tpu.dimension_semantics<parallel>, #tpu.dimension_semantics<arbitrary>], iteration_bounds = array<i64: 1, 1>, scalar_prefetch = 0 : i64, scratch_operands = 0 : i64, tpu.core_type = #tpu.core_type<tc>, window_params = [{transform_indices = @transform_0, window_bounds = array<i64: 392, 128>}, {transform_indices = @transform_1, window_bounds = array<i64: 128, 256>}, {transform_indices = @transform_2, window_bounds = array<i64: 1, 256>}, {transform_indices = @transform_3, window_bounds = array<i64: 392, 256>}, {transform_indices = @transform_4, window_bounds = array<i64: 1, 256>}, {transform_indices = @transform_5, window_bounds = array<i64: 1, 256>}]} {
    %c0 = arith.constant 0 : index
    %c0_0 = arith.constant 0 : index
    %0 = vector.load %arg2[%c0, %c0_0] : memref<392x128xbf16, #tpu.memory_space<vmem>>, vector<392x128xbf16>
    %c0_1 = arith.constant 0 : index
    %c0_2 = arith.constant 0 : index
    %1 = vector.load %arg3[%c0_1, %c0_2] : memref<128x256xbf16, #tpu.memory_space<vmem>>, vector<128x256xbf16>
    %cst = arith.constant dense<0.000000e+00> : vector<392x256xf32>
    %2 = tpu.matmul %0, %1, %cst {dimension_numbers = #tpu.dot_dimension_numbers<[1], [0], [0], [1], [0, 0, 1, 1], [], []>} : vector<392x128xbf16>, vector<128x256xbf16>, vector<392x256xf32> -> vector<392x256xf32>
    %c0_3 = arith.constant 0 : index
    %c0_4 = arith.constant 0 : index
    %3 = vector.load %arg4[%c0_3, %c0_4] : memref<1x256xf32, #tpu.memory_space<vmem>>, vector<1x256xf32>
    %4 = vector.broadcast %3 : vector<1x256xf32> to vector<392x256xf32>
    %5 = arith.addf %2, %4 : vector<392x256xf32>
    %6 = arith.truncf %5 : vector<392x256xf32> to vector<392x256xbf16>
    %c0_5 = arith.constant 0 : index
    %c0_6 = arith.constant 0 : index
    %7 = vector.load %arg5[%c0_5, %c0_6] : memref<392x256xbf16, #tpu.memory_space<vmem>>, vector<392x256xbf16>
    tpu.vector_store %arg5[%c0_5, %c0_6], %6 {strides = array<i32>} : memref<392x256xbf16, #tpu.memory_space<vmem>>, vector<392x256xbf16>,
    %c0_i32 = arith.constant 0 : i32
    %8 = arith.cmpi eq, %arg1, %c0_i32 : i32
    %9 = arith.extui %8 : i1 to i32
    %c0_i32_7 = arith.constant 0 : i32
    %10 = arith.cmpi ne, %9, %c0_i32_7 : i32
    scf.if %10 {
      %cst_18 = arith.constant 0.000000e+00 : f32
      %22 = vector.broadcast %cst_18 : f32 to vector<1x256xf32>
      %c0_19 = arith.constant 0 : index
      %c0_20 = arith.constant 0 : index
      %23 = vector.load %arg6[%c0_19, %c0_20] : memref<1x256xf32, #tpu.memory_space<vmem>>, vector<1x256xf32>
      tpu.vector_store %arg6[%c0_19, %c0_20], %22 {strides = array<i32>} : memref<1x256xf32, #tpu.memory_space<vmem>>, vector<1x256xf32>,
      %cst_21 = arith.constant 0.000000e+00 : f32
      %24 = vector.broadcast %cst_21 : f32 to vector<1x256xf32>
      %c0_22 = arith.constant 0 : index
      %c0_23 = arith.constant 0 : index
      %25 = vector.load %arg7[%c0_22, %c0_23] : memref<1x256xf32, #tpu.memory_space<vmem>>, vector<1x256xf32>
      tpu.vector_store %arg7[%c0_22, %c0_23], %24 {strides = array<i32>} : memref<1x256xf32, #tpu.memory_space<vmem>>, vector<1x256xf32>,
    } else {
    }
    %c0_8 = arith.constant 0 : index
    %c0_9 = arith.constant 0 : index
    %11 = vector.load %arg6[%c0_8, %c0_9] : memref<1x256xf32, #tpu.memory_space<vmem>>, vector<1x256xf32>
    %cst_10 = arith.constant dense<0.000000e+00> : vector<256xf32>
    %12 = vector.multi_reduction <add>, %5, %cst_10 [0] : vector<392x256xf32> to vector<256xf32>
    %13 = vector.shape_cast %12 : vector<256xf32> to vector<1x256xf32>
    %14 = arith.addf %11, %13 : vector<1x256xf32>
    %c0_11 = arith.constant 0 : index
    %c0_12 = arith.constant 0 : index
    %15 = vector.load %arg6[%c0_11, %c0_12] : memref<1x256xf32, #tpu.memory_space<vmem>>, vector<1x256xf32>
    tpu.vector_store %arg6[%c0_11, %c0_12], %14 {strides = array<i32>} : memref<1x256xf32, #tpu.memory_space<vmem>>, vector<1x256xf32>,
    %c0_13 = arith.constant 0 : index
    %c0_14 = arith.constant 0 : index
    %16 = vector.load %arg7[%c0_13, %c0_14] : memref<1x256xf32, #tpu.memory_space<vmem>>, vector<1x256xf32>
    %17 = arith.mulf %5, %5 : vector<392x256xf32>
    %cst_15 = arith.constant dense<0.000000e+00> : vector<256xf32>
    %18 = vector.multi_reduction <add>, %17, %cst_15 [0] : vector<392x256xf32> to vector<256xf32>
    %19 = vector.shape_cast %18 : vector<256xf32> to vector<1x256xf32>
    %20 = arith.addf %16, %19 : vector<1x256xf32>
    %c0_16 = arith.constant 0 : index
    %c0_17 = arith.constant 0 : index
    %21 = vector.load %arg7[%c0_16, %c0_17] : memref<1x256xf32, #tpu.memory_space<vmem>>, vector<1x256xf32>
    tpu.vector_store %arg7[%c0_16, %c0_17], %20 {strides = array<i32>} : memref<1x256xf32, #tpu.memory_space<vmem>>, vector<1x256xf32>,
    return
  }
  func.func @transform_0(%arg0: i32, %arg1: i32) -> (i32, i32) {
    %c0_i32 = arith.constant 0 : i32
    %c0_i32_0 = arith.constant 0 : i32
    return %arg1, %c0_i32 : i32, i32
  }
  func.func @transform_1(%arg0: i32, %arg1: i32) -> (i32, i32) {
    %c0_i32 = arith.constant 0 : i32
    %c0_i32_0 = arith.constant 0 : i32
    return %c0_i32, %arg0 : i32, i32
  }
  func.func @transform_2(%arg0: i32, %arg1: i32) -> (i32, i32) {
    %c0_i32 = arith.constant 0 : i32
    %c0_i32_0 = arith.constant 0 : i32
    return %c0_i32, %arg0 : i32, i32
  }
  func.func @transform_3(%arg0: i32, %arg1: i32) -> (i32, i32) {
    %c0_i32 = arith.constant 0 : i32
    return %arg1, %arg0 : i32, i32
  }
  func.func @transform_4(%arg0: i32, %arg1: i32) -> (i32, i32) {
    %c0_i32 = arith.constant 0 : i32
    %c0_i32_0 = arith.constant 0 : i32
    return %c0_i32, %arg0 : i32, i32
  }
  func.func @transform_5(%arg0: i32, %arg1: i32) -> (i32, i32) {
    %c0_i32 = arith.constant 0 : i32
    %c0_i32_0 = arith.constant 0 : i32
    return %c0_i32, %arg0 : i32, i32
  }
}

module attributes {stable_mosaic.version = 11 : i64} {
  func.func @_mm_stats_kernel(%arg0: i32, %arg1: i32, %arg2: memref<98x256xbf16, #tpu.memory_space<vmem>>, %arg3: memref<256x256xbf16, #tpu.memory_space<vmem>>, %arg4: memref<1x256xf32, #tpu.memory_space<vmem>>, %arg5: memref<98x256xbf16, #tpu.memory_space<vmem>>, %arg6: memref<1x256xf32, #tpu.memory_space<vmem>>, %arg7: memref<1x256xf32, #tpu.memory_space<vmem>>) attributes {dimension_semantics = [#tpu.dimension_semantics<parallel>, #tpu.dimension_semantics<arbitrary>], iteration_bounds = array<i64: 2, 1>, scalar_prefetch = 0 : i64, scratch_operands = 0 : i64, tpu.core_type = #tpu.core_type<tc>, window_params = [{transform_indices = @transform_0, window_bounds = array<i64: 98, 256>}, {transform_indices = @transform_1, window_bounds = array<i64: 256, 256>}, {transform_indices = @transform_2, window_bounds = array<i64: 1, 256>}, {transform_indices = @transform_3, window_bounds = array<i64: 98, 256>}, {transform_indices = @transform_4, window_bounds = array<i64: 1, 256>}, {transform_indices = @transform_5, window_bounds = array<i64: 1, 256>}]} {
    %c0 = arith.constant 0 : index
    %c0_0 = arith.constant 0 : index
    %0 = vector.load %arg2[%c0, %c0_0] : memref<98x256xbf16, #tpu.memory_space<vmem>>, vector<98x256xbf16>
    %c0_1 = arith.constant 0 : index
    %c0_2 = arith.constant 0 : index
    %1 = vector.load %arg3[%c0_1, %c0_2] : memref<256x256xbf16, #tpu.memory_space<vmem>>, vector<256x256xbf16>
    %cst = arith.constant dense<0.000000e+00> : vector<98x256xf32>
    %2 = tpu.matmul %0, %1, %cst {dimension_numbers = #tpu.dot_dimension_numbers<[1], [0], [0], [1], [0, 0, 1, 1], [], []>} : vector<98x256xbf16>, vector<256x256xbf16>, vector<98x256xf32> -> vector<98x256xf32>
    %c0_3 = arith.constant 0 : index
    %c0_4 = arith.constant 0 : index
    %3 = vector.load %arg4[%c0_3, %c0_4] : memref<1x256xf32, #tpu.memory_space<vmem>>, vector<1x256xf32>
    %4 = vector.broadcast %3 : vector<1x256xf32> to vector<98x256xf32>
    %5 = arith.addf %2, %4 : vector<98x256xf32>
    %6 = arith.truncf %5 : vector<98x256xf32> to vector<98x256xbf16>
    %c0_5 = arith.constant 0 : index
    %c0_6 = arith.constant 0 : index
    %7 = vector.load %arg5[%c0_5, %c0_6] : memref<98x256xbf16, #tpu.memory_space<vmem>>, vector<98x256xbf16>
    tpu.vector_store %arg5[%c0_5, %c0_6], %6 {strides = array<i32>} : memref<98x256xbf16, #tpu.memory_space<vmem>>, vector<98x256xbf16>,
    %c0_i32 = arith.constant 0 : i32
    %8 = arith.cmpi eq, %arg1, %c0_i32 : i32
    %9 = arith.extui %8 : i1 to i32
    %c0_i32_7 = arith.constant 0 : i32
    %10 = arith.cmpi ne, %9, %c0_i32_7 : i32
    scf.if %10 {
      %cst_18 = arith.constant 0.000000e+00 : f32
      %22 = vector.broadcast %cst_18 : f32 to vector<1x256xf32>
      %c0_19 = arith.constant 0 : index
      %c0_20 = arith.constant 0 : index
      %23 = vector.load %arg6[%c0_19, %c0_20] : memref<1x256xf32, #tpu.memory_space<vmem>>, vector<1x256xf32>
      tpu.vector_store %arg6[%c0_19, %c0_20], %22 {strides = array<i32>} : memref<1x256xf32, #tpu.memory_space<vmem>>, vector<1x256xf32>,
      %cst_21 = arith.constant 0.000000e+00 : f32
      %24 = vector.broadcast %cst_21 : f32 to vector<1x256xf32>
      %c0_22 = arith.constant 0 : index
      %c0_23 = arith.constant 0 : index
      %25 = vector.load %arg7[%c0_22, %c0_23] : memref<1x256xf32, #tpu.memory_space<vmem>>, vector<1x256xf32>
      tpu.vector_store %arg7[%c0_22, %c0_23], %24 {strides = array<i32>} : memref<1x256xf32, #tpu.memory_space<vmem>>, vector<1x256xf32>,
    } else {
    }
    %c0_8 = arith.constant 0 : index
    %c0_9 = arith.constant 0 : index
    %11 = vector.load %arg6[%c0_8, %c0_9] : memref<1x256xf32, #tpu.memory_space<vmem>>, vector<1x256xf32>
    %cst_10 = arith.constant dense<0.000000e+00> : vector<256xf32>
    %12 = vector.multi_reduction <add>, %5, %cst_10 [0] : vector<98x256xf32> to vector<256xf32>
    %13 = vector.shape_cast %12 : vector<256xf32> to vector<1x256xf32>
    %14 = arith.addf %11, %13 : vector<1x256xf32>
    %c0_11 = arith.constant 0 : index
    %c0_12 = arith.constant 0 : index
    %15 = vector.load %arg6[%c0_11, %c0_12] : memref<1x256xf32, #tpu.memory_space<vmem>>, vector<1x256xf32>
    tpu.vector_store %arg6[%c0_11, %c0_12], %14 {strides = array<i32>} : memref<1x256xf32, #tpu.memory_space<vmem>>, vector<1x256xf32>,
    %c0_13 = arith.constant 0 : index
    %c0_14 = arith.constant 0 : index
    %16 = vector.load %arg7[%c0_13, %c0_14] : memref<1x256xf32, #tpu.memory_space<vmem>>, vector<1x256xf32>
    %17 = arith.mulf %5, %5 : vector<98x256xf32>
    %cst_15 = arith.constant dense<0.000000e+00> : vector<256xf32>
    %18 = vector.multi_reduction <add>, %17, %cst_15 [0] : vector<98x256xf32> to vector<256xf32>
    %19 = vector.shape_cast %18 : vector<256xf32> to vector<1x256xf32>
    %20 = arith.addf %16, %19 : vector<1x256xf32>
    %c0_16 = arith.constant 0 : index
    %c0_17 = arith.constant 0 : index
    %21 = vector.load %arg7[%c0_16, %c0_17] : memref<1x256xf32, #tpu.memory_space<vmem>>, vector<1x256xf32>
    tpu.vector_store %arg7[%c0_16, %c0_17], %20 {strides = array<i32>} : memref<1x256xf32, #tpu.memory_space<vmem>>, vector<1x256xf32>,
    return
  }
  func.func @transform_0(%arg0: i32, %arg1: i32) -> (i32, i32) {
    %c0_i32 = arith.constant 0 : i32
    %c0_i32_0 = arith.constant 0 : i32
    return %arg1, %c0_i32 : i32, i32
  }
  func.func @transform_1(%arg0: i32, %arg1: i32) -> (i32, i32) {
    %c0_i32 = arith.constant 0 : i32
    %c0_i32_0 = arith.constant 0 : i32
    return %c0_i32, %arg0 : i32, i32
  }
  func.func @transform_2(%arg0: i32, %arg1: i32) -> (i32, i32) {
    %c0_i32 = arith.constant 0 : i32
    %c0_i32_0 = arith.constant 0 : i32
    return %c0_i32, %arg0 : i32, i32
  }
  func.func @transform_3(%arg0: i32, %arg1: i32) -> (i32, i32) {
    %c0_i32 = arith.constant 0 : i32
    return %arg1, %arg0 : i32, i32
  }
  func.func @transform_4(%arg0: i32, %arg1: i32) -> (i32, i32) {
    %c0_i32 = arith.constant 0 : i32
    %c0_i32_0 = arith.constant 0 : i32
    return %c0_i32, %arg0 : i32, i32
  }
  func.func @transform_5(%arg0: i32, %arg1: i32) -> (i32, i32) {
    %c0_i32 = arith.constant 0 : i32
    %c0_i32_0 = arith.constant 0 : i32
    return %c0_i32, %arg0 : i32, i32
  }
}

module attributes {stable_mosaic.version = 11 : i64} {
  func.func @_avgpool_affine_kernel(%arg0: i32, %arg1: memref<2x49x512xbf16, #tpu.memory_space<vmem>>, %arg2: memref<1x512xf32, #tpu.memory_space<vmem>>, %arg3: memref<1x512xf32, #tpu.memory_space<vmem>>, %arg4: memref<2x512xf32, #tpu.memory_space<vmem>>) attributes {dimension_semantics = [#tpu.dimension_semantics<arbitrary>], iteration_bounds = array<i64: 1>, scalar_prefetch = 0 : i64, scratch_operands = 0 : i64, tpu.core_type = #tpu.core_type<tc>, window_params = [{pipeline_mode = #tpu.pipeline_mode<synchronous>, transform_indices = @transform_0, window_bounds = array<i64: 2, 49, 512>}, {pipeline_mode = #tpu.pipeline_mode<synchronous>, transform_indices = @transform_1, window_bounds = array<i64: 1, 512>}, {pipeline_mode = #tpu.pipeline_mode<synchronous>, transform_indices = @transform_2, window_bounds = array<i64: 1, 512>}, {pipeline_mode = #tpu.pipeline_mode<synchronous>, transform_indices = @transform_3, window_bounds = array<i64: 2, 512>}]} {
    %c0 = arith.constant 0 : index
    %c0_0 = arith.constant 0 : index
    %c0_1 = arith.constant 0 : index
    %0 = vector.load %arg1[%c0, %c0_0, %c0_1] : memref<2x49x512xbf16, #tpu.memory_space<vmem>>, vector<2x49x512xbf16>
    %1 = arith.extf %0 : vector<2x49x512xbf16> to vector<2x49x512xf32>
    %cst = arith.constant dense<0.000000e+00> : vector<2x512xf32>
    %2 = vector.multi_reduction <add>, %1, %cst [1] : vector<2x49x512xf32> to vector<2x512xf32>
    %cst_2 = arith.constant 0.0204081628 : f32
    %3 = vector.broadcast %cst_2 : f32 to vector<2x512xf32>
    %4 = arith.mulf %2, %3 : vector<2x512xf32>
    %c0_3 = arith.constant 0 : index
    %c0_4 = arith.constant 0 : index
    %5 = vector.load %arg2[%c0_3, %c0_4] : memref<1x512xf32, #tpu.memory_space<vmem>>, vector<1x512xf32>
    %6 = vector.broadcast %5 : vector<1x512xf32> to vector<2x512xf32>
    %7 = arith.mulf %4, %6 : vector<2x512xf32>
    %c0_5 = arith.constant 0 : index
    %c0_6 = arith.constant 0 : index
    %8 = vector.load %arg3[%c0_5, %c0_6] : memref<1x512xf32, #tpu.memory_space<vmem>>, vector<1x512xf32>
    %9 = vector.broadcast %8 : vector<1x512xf32> to vector<2x512xf32>
    %10 = arith.addf %7, %9 : vector<2x512xf32>
    %c0_7 = arith.constant 0 : index
    %c0_8 = arith.constant 0 : index
    %11 = vector.load %arg4[%c0_7, %c0_8] : memref<2x512xf32, #tpu.memory_space<vmem>>, vector<2x512xf32>
    tpu.vector_store %arg4[%c0_7, %c0_8], %10 {strides = array<i32>} : memref<2x512xf32, #tpu.memory_space<vmem>>, vector<2x512xf32>,
    return
  }
  func.func @transform_0(%arg0: i32) -> (i32, i32, i32) {
    %c0_i32 = arith.constant 0 : i32
    %c0_i32_0 = arith.constant 0 : i32
    %c0_i32_1 = arith.constant 0 : i32
    %c0_i32_2 = arith.constant 0 : i32
    return %c0_i32, %c0_i32_0, %c0_i32_1 : i32, i32, i32
  }
  func.func @transform_1(%arg0: i32) -> (i32, i32) {
    %c0_i32 = arith.constant 0 : i32
    %c0_i32_0 = arith.constant 0 : i32
    %c0_i32_1 = arith.constant 0 : i32
    return %c0_i32, %c0_i32_0 : i32, i32
  }
  func.func @transform_2(%arg0: i32) -> (i32, i32) {
    %c0_i32 = arith.constant 0 : i32
    %c0_i32_0 = arith.constant 0 : i32
    %c0_i32_1 = arith.constant 0 : i32
    return %c0_i32, %c0_i32_0 : i32, i32
  }
  func.func @transform_3(%arg0: i32) -> (i32, i32) {
    %c0_i32 = arith.constant 0 : i32
    %c0_i32_0 = arith.constant 0 : i32
    %c0_i32_1 = arith.constant 0 : i32
    return %c0_i32, %c0_i32_0 : i32, i32
  }
}

module attributes {stable_mosaic.version = 11 : i64} {
  func.func @_mm_kernel(%arg0: i32, %arg1: i32, %arg2: memref<2x512xbf16, #tpu.memory_space<vmem>>, %arg3: memref<512x10xbf16, #tpu.memory_space<vmem>>, %arg4: memref<1x10xf32, #tpu.memory_space<vmem>>, %arg5: memref<2x10xf32, #tpu.memory_space<vmem>>) attributes {dimension_semantics = [#tpu.dimension_semantics<parallel>, #tpu.dimension_semantics<parallel>], iteration_bounds = array<i64: 1, 1>, scalar_prefetch = 0 : i64, scratch_operands = 0 : i64, tpu.core_type = #tpu.core_type<tc>, window_params = [{transform_indices = @transform_0, window_bounds = array<i64: 2, 512>}, {transform_indices = @transform_1, window_bounds = array<i64: 512, 10>}, {transform_indices = @transform_2, window_bounds = array<i64: 1, 10>}, {transform_indices = @transform_3, window_bounds = array<i64: 2, 10>}]} {
    %c0 = arith.constant 0 : index
    %c0_0 = arith.constant 0 : index
    %0 = vector.load %arg2[%c0, %c0_0] : memref<2x512xbf16, #tpu.memory_space<vmem>>, vector<2x512xbf16>
    %c0_1 = arith.constant 0 : index
    %c0_2 = arith.constant 0 : index
    %1 = vector.load %arg3[%c0_1, %c0_2] : memref<512x10xbf16, #tpu.memory_space<vmem>>, vector<512x10xbf16>
    %cst = arith.constant dense<0.000000e+00> : vector<2x10xf32>
    %2 = tpu.matmul %0, %1, %cst {dimension_numbers = #tpu.dot_dimension_numbers<[1], [0], [0], [1], [0, 0, 1, 1], [], []>} : vector<2x512xbf16>, vector<512x10xbf16>, vector<2x10xf32> -> vector<2x10xf32>
    %c0_3 = arith.constant 0 : index
    %c0_4 = arith.constant 0 : index
    %3 = vector.load %arg4[%c0_3, %c0_4] : memref<1x10xf32, #tpu.memory_space<vmem>>, vector<1x10xf32>
    %4 = vector.broadcast %3 : vector<1x10xf32> to vector<2x10xf32>
    %5 = arith.addf %2, %4 : vector<2x10xf32>
    %c0_5 = arith.constant 0 : index
    %c0_6 = arith.constant 0 : index
    %6 = vector.load %arg5[%c0_5, %c0_6] : memref<2x10xf32, #tpu.memory_space<vmem>>, vector<2x10xf32>
    tpu.vector_store %arg5[%c0_5, %c0_6], %5 {strides = array<i32>} : memref<2x10xf32, #tpu.memory_space<vmem>>, vector<2x10xf32>,
    return
  }
  func.func @transform_0(%arg0: i32, %arg1: i32) -> (i32, i32) {
    %c0_i32 = arith.constant 0 : i32
    %c0_i32_0 = arith.constant 0 : i32
    return %arg0, %c0_i32 : i32, i32
  }
  func.func @transform_1(%arg0: i32, %arg1: i32) -> (i32, i32) {
    %c0_i32 = arith.constant 0 : i32
    %c0_i32_0 = arith.constant 0 : i32
    return %c0_i32, %arg1 : i32, i32
  }
  func.func @transform_2(%arg0: i32, %arg1: i32) -> (i32, i32) {
    %c0_i32 = arith.constant 0 : i32
    %c0_i32_0 = arith.constant 0 : i32
    return %c0_i32, %arg1 : i32, i32
  }
  func.func @transform_3(%arg0: i32, %arg1: i32) -> (i32, i32) {
    %c0_i32 = arith.constant 0 : i32
    return %arg0, %arg1 : i32, i32
  }
}

</mosaic_0001>

<llo_original>
// kernel: _lambda_.7
$region0: #{_lambda_.7}
  #allocation0 [shape = 'u32[]', space=smem, size = 0x4, offset = 0x4, fixed_abs, tag = 'smem constant byte address 0x4 - core index']
  #allocation1 [shape = 'u32[144,128]{1,0:T(1,128)}', space=vmem, size = 0x12000, scoped, tag = 'internal scratch']
  %s0 = inlined_call_operand.vmem [shape: bf16[25088,160], index: 0, kind: input, shape index: {}]
  %s1 = inlined_call_operand.vmem [shape: bf16[160,128], index: 1, kind: input, shape index: {}]
  %s2 = inlined_call_operand.vmem [shape: f32[1,128], index: 2, kind: input, shape index: {}]
  %s3 = inlined_call_operand.vmem [shape: bf16[25088,128], index: 3, kind: output, shape index: {}]
  %s4 = sld [smem:[#allocation0]]
  $region45: #{_lambda_.7} parent=0
    _
  %s6 = ssub.s32 1, %s4
  %s7 = scalar_select 0, %s6, %s4
  loop: start=0, step=1, limit=51
  $region2: #{_lambda_.7} parent=0 // loop_pre_header
    _
  $region3: #{_lambda_.7} parent=0 // loop_header
    %s9 = sphi 0, %s13
    %p10 = scmp.ge.s32.totalorder %s9, 51
    %s16 = sphi 0, %s28
    %s17 = sphi 0, %s24
    %s18 = sphi 0, %s16
    %s19 = sphi 0, %s17
    %s20 = sphi 0, %s18
    %s21 = sphi 0, %s19
    %s31 = sphi 0, %s33
    %s34 = sphi 0, %s31
    %s35 = sphi 0, %s34
    %s51 = sphi 0, %s35
    %s57 = sphi 0, %s59
    %s60 = sphi 0, %s57
    %s61 = sphi 0, %s60
    %s77 = sphi 0, %s61
    %s83 = sphi 0, %s85
    %s86 = sphi 0, %s83
    %s87 = sphi 0, %s86
    %s103 = sphi 0, %s87
    %s111 = sphi 0, %s113
    %s114 = sphi 0, %s111
    %s115 = sphi 0, %s114
    %s131 = sphi 0, %s115
  $region4: #{_lambda_.7} parent=0 // loop_header_branch
    %12 = sbr.rel (%p10) target = $region8
  $region5: #{_lambda_.7} parent=0 // loop_body
    %s14 = ssub.s32 %s9, 1
    %s15 = ssub.s32 %s9, 2
    %s22 = sadd.s32 1, %s17
    %p23 = scmp.ge.s32.totalorder %s22, 1
    %s24 = scalar_select %p23, 0, %s22
    %s25 = sadd.s32 1, %s16
    %s26 = scalar_select %p23, %s25, %s16
    %p27 = scmp.ge.s32.totalorder %s26, 49
    %s28 = scalar_select %p27, 0, %s26
    %s29 = ssub.s32 %s16, %s28
    %p30 = scmp.eq.s32.totalorder %s29, 0
    %s32 = sadd.s32 %s31, 1
    %s33 = scalar_select %p30, %s31, %s32
    %p36 = pneg %p30
    %p37 = scmp.eq.s32.totalorder %s9, 48
    %p38 = por %p36, %p37
    %p39 = scmp.ne.s32.totalorder %s31, %s34
    %p40 = scmp.eq.s32.totalorder %s9, 0
    %p41 = por %p39, %p40
    %p42 = scmp.ne.s32.totalorder %s31, %s34
    %p43 = scmp.eq.s32.totalorder %s14, 48
    %p44 = por %p42, %p43
    %p45 = scmp.ne.s32.totalorder %s34, %s35
    %p46 = scmp.eq.s32.totalorder %s14, 0
    %p47 = por %p45, %p46
    %p48 = scmp.ne.s32.totalorder %s34, %s35
    %p49 = scmp.eq.s32.totalorder %s15, 48
    %p50 = por %p48, %p49
    %p52 = scmp.ne.s32.totalorder %s35, %s51
    %p53 = scmp.eq.s32.totalorder %s15, 0
    %p54 = por %p52, %p53
    %s55 = ssub.s32 %s17, %s24
    %p56 = scmp.eq.s32.totalorder %s55, 0
    %s58 = sadd.s32 %s57, 1
    %s59 = scalar_select %p56, %s57, %s58
    %p62 = pneg %p56
    %p63 = scmp.eq.s32.totalorder %s9, 48
    %p64 = por %p62, %p63
    %p65 = scmp.ne.s32.totalorder %s57, %s60
    %p66 = scmp.eq.s32.totalorder %s9, 0
    %p67 = por %p65, %p66
    %p68 = scmp.ne.s32.totalorder %s57, %s60
    %p69 = scmp.eq.s32.totalorder %s14, 48
    %p70 = por %p68, %p69
    %p71 = scmp.ne.s32.totalorder %s60, %s61
    %p72 = scmp.eq.s32.totalorder %s14, 0
    %p73 = por %p71, %p72
    %p74 = scmp.ne.s32.totalorder %s60, %s61
    %p75 = scmp.eq.s32.totalorder %s15, 48
    %p76 = por %p74, %p75
    %p78 = scmp.ne.s32.totalorder %s61, %s77
    %p79 = scmp.eq.s32.totalorder %s15, 0
    %p80 = por %p78, %p79
    %s81 = ssub.s32 %s17, %s24
    %p82 = scmp.eq.s32.totalorder %s81, 0
    %s84 = sadd.s32 %s83, 1
    %s85 = scalar_select %p82, %s83, %s84
    %p88 = pneg %p82
    %p89 = scmp.eq.s32.totalorder %s9, 48
    %p90 = por %p88, %p89
    %p91 = scmp.ne.s32.totalorder %s83, %s86
    %p92 = scmp.eq.s32.totalorder %s9, 0
    %p93 = por %p91, %p92
    %p94 = scmp.ne.s32.totalorder %s83, %s86
    %p95 = scmp.eq.s32.totalorder %s14, 48
    %p96 = por %p94, %p95
    %p97 = scmp.ne.s32.totalorder %s86, %s87
    %p98 = scmp.eq.s32.totalorder %s14, 0
    %p99 = por %p97, %p98
    %p100 = scmp.ne.s32.totalorder %s86, %s87
    %p101 = scmp.eq.s32.totalorder %s15, 48
    %p102 = por %p100, %p101
    %p104 = scmp.ne.s32.totalorder %s87, %s103
    %p105 = scmp.eq.s32.totalorder %s15, 0
    %p106 = por %p104, %p105
    %s107 = ssub.s32 %s16, %s28
    %s108 = ssub.s32 %s17, %s24
    %s109 = sor.u32 %s107, %s108
    %p110 = scmp.eq.s32.totalorder %s109, 0
    %s112 = sadd.s32 %s111, 1
    %s113 = scalar_select %p110, %s111, %s112
    %p116 = pneg %p110
    %p117 = scmp.eq.s32.totalorder %s9, 48
    %p118 = por %p116, %p117
    %p119 = scmp.ne.s32.totalorder %s111, %s114
    %p120 = scmp.eq.s32.totalorder %s9, 0
    %p121 = por %p119, %p120
    %p122 = scmp.ne.s32.totalorder %s111, %s114
    %p123 = scmp.eq.s32.totalorder %s14, 48
    %p124 = por %p122, %p123
    %p125 = scmp.ne.s32.totalorder %s114, %s115
    %p126 = scmp.eq.s32.totalorder %s14, 0
    %p127 = por %p125, %p126
    %p128 = scmp.ne.s32.totalorder %s114, %s115
    %p129 = scmp.eq.s32.totalorder %s15, 48
    %p130 = por %p128, %p129
    %p132 = scmp.ne.s32.totalorder %s115, %s131
    %p133 = scmp.eq.s32.totalorder %s15, 0
    %p134 = por %p132, %p133
    %p135 = scmp.le.s32.totalorder 1, %s9
    %p136 = scmp.lt.s32.totalorder %s9, 50
    %p137 = pnand %p135, %p136
    %p138 = pneg %p137
    // Predicated region
    $region9: #{_lambda_.7} parent=5 // pred_check
      _
    $region10: #{_lambda_.7} parent=5 // pred_check_branch
      %140 = sbr.rel (%p137) target = $region12
    $region11: #{_lambda_.7} parent=5 // pred_region
      %s141 = ssub.s32 %s9, 1
      // Predicated region
      $region13: #{_lambda_.7} parent=11 // pred_check
        %p142 = pneg %p73
      $region14: #{_lambda_.7} parent=11 // pred_check_branch
        %144 = sbr.rel (%p142) target = $region16
      $region15: #{_lambda_.7} parent=11 // pred_region
        %p145 = scmp.lt.s32.totalorder %s19, 0
        %s146 = scalar_select %p145, %s19, 0
        %s147 = smul.addr %s146, 4
        %s148 = scalar_lea.vmem %s1, %s147
      $region16: #{_lambda_.7} parent=11 // pred_fallthru
        _
      // Predicated region
      $region17: #{_lambda_.7} parent=11 // pred_check
        %p149 = pneg %p99
      $region18: #{_lambda_.7} parent=11 // pred_check_branch
        %151 = sbr.rel (%p149) target = $region20
      $region19: #{_lambda_.7} parent=11 // pred_region
        %p152 = scmp.lt.s32.totalorder %s19, 0
        %s153 = scalar_select %p152, %s19, 0
        %s154 = scalar_lea.vmem %s2, %s153
      $region20: #{_lambda_.7} parent=11 // pred_fallthru
        _
    $region12: #{_lambda_.7} parent=5 // pred_fallthru
      _
    %p155 = scmp.lt.s32.totalorder %s9, 49
    // Predicated region
    $region21: #{_lambda_.7} parent=5 // pred_check
      %p156 = pneg %p155
    $region22: #{_lambda_.7} parent=5 // pred_check_branch
      %158 = sbr.rel (%p156) target = $region24
    $region23: #{_lambda_.7} parent=5 // pred_region
      // Predicated region
      $region25: #{_lambda_.7} parent=23 // pred_check
        %p159 = pneg %p41
      $region26: #{_lambda_.7} parent=23 // pred_check_branch
        %161 = sbr.rel (%p159) target = $region28
      $region27: #{_lambda_.7} parent=23 // pred_region
        %s162 = smul.u32 64, %s16
        %p163 = scmp.lt.s32.totalorder %s162, 3135
        %s164 = scalar_select %p163, %s162, 3135
        %s165 = smul.addr %s164, 2
        %s166 = smul.addr %s165, 4
        %s167 = scalar_lea.vmem %s0, %s166
        %s168 = smul.u32 64, %s16
      $region28: #{_lambda_.7} parent=23 // pred_fallthru
        _
    $region24: #{_lambda_.7} parent=5 // pred_fallthru
      _
    %p169 = scmp.le.s32.totalorder 1, %s9
    %p170 = scmp.lt.s32.totalorder %s9, 50
    %p171 = pnand %p169, %p170
    %p172 = pneg %p171
    // Predicated region
    $region29: #{_lambda_.7} parent=5 // pred_check
      _
    $region30: #{_lambda_.7} parent=5 // pred_check_branch
      %174 = sbr.rel (%p171) target = $region32
    $region31: #{_lambda_.7} parent=5 // pred_region
      %s175 = ssub.s32 %s9, 1
      %s176 = smul.u32 64, %s18
      %p177 = scmp.lt.s32.totalorder %s176, 3135
      %s178 = scalar_select %p177, %s176, 3135
      %s179 = smul.addr %s178, 2
      %s180 = smul.addr %s179, 4
      %s181 = scalar_lea.vmem %s0, %s180
      %p182 = pneg %p47
      %p183 = pneg %p44
      %p184 = scmp.lt.s32.totalorder %s19, 0
      %s185 = scalar_select %p184, %s19, 0
      %s186 = smul.addr %s185, 4
      %s187 = scalar_lea.vmem %s1, %s186
      %p188 = pneg %p73
      %p189 = pneg %p70
      %p190 = scmp.lt.s32.totalorder %s19, 0
      %s191 = scalar_select %p190, %s19, 0
      %s192 = scalar_lea.vmem %s2, %s191
      %p193 = pneg %p99
      %p194 = pneg %p96
      %p195 = pneg %p127
      %p196 = pneg %p124
      %s197 = smul.u32 64, %s18
      %p198 = scmp.lt.s32.totalorder %s197, 3135
      %s199 = scalar_select %p198, %s197, 3135
      %p200 = scmp.lt.s32.totalorder %s19, 0
      %s201 = scalar_select %p200, %s19, 0
      %s202 = sadd.s32 %s201, %s199
      %s203 = smul.addr %s202, 4
      %s204 = scalar_lea.vmem %s3, %s203
      %s205 = smul.u32 64, %s18
      %p206 = scmp.lt.s32.totalorder %s205, 3135
      %s207 = scalar_select %p206, %s205, 3135
      %s208 = smul.addr %s207, 2
      %s209 = smul.addr %s208, 4
      %s210 = scalar_lea.vmem %s0, %s209
      %s211 = smul.u32 64, %s18
      %p212 = scmp.lt.s32.totalorder %s19, 0
      %s213 = scalar_select %p212, %s19, 0
      %s214 = smul.addr %s213, 4
      %s215 = scalar_lea.vmem %s1, %s214
      %p216 = scmp.lt.s32.totalorder %s19, 0
      %s217 = scalar_select %p216, %s19, 0
      %s218 = scalar_lea.vmem %s2, %s217
      %s219 = smul.u32 64, %s18
      %p220 = scmp.lt.s32.totalorder %s219, 3135
      %s221 = scalar_select %p220, %s219, 3135
      %p222 = scmp.lt.s32.totalorder %s19, 0
      %s223 = scalar_select %p222, %s19, 0
      %s224 = sadd.s32 %s223, %s221
      %s225 = smul.addr %s224, 4
      %s226 = scalar_lea.vmem %s3, %s225
      %s227 = smul.u32 64, %s18
      %v229 = vld [vmem:[%s210] sm:$0xff]
      %v230 = vld [vmem:[%s210 + $0x8] sm:$0xff]
      %v231 = vld [vmem:[%s210 + $0x10] sm:$0xff]
      %v232 = vld [vmem:[%s210 + $0x18] sm:$0xff]
      %v233 = vld [vmem:[%s210 + $0x20] sm:$0xff]
      %v234 = vld [vmem:[%s210 + $0x28] sm:$0xff]
      %v235 = vld [vmem:[%s210 + $0x30] sm:$0xff]
      %v236 = vld [vmem:[%s210 + $0x38] sm:$0xff]
      %v237 = vld [vmem:[%s210 + $0x40] sm:$0xff]
      %v238 = vld [vmem:[%s210 + $0x48] sm:$0xff]
      %v239 = vld [vmem:[%s210 + $0x50] sm:$0xff]
      %v240 = vld [vmem:[%s210 + $0x58] sm:$0xff]
      %v241 = vld [vmem:[%s210 + $0x60] sm:$0xff]
      %v242 = vld [vmem:[%s210 + $0x68] sm:$0xff]
      %v243 = vld [vmem:[%s210 + $0x70] sm:$0xff]
      %v244 = vld [vmem:[%s210 + $0x78] sm:$0xff]
      %v245 = vld [vmem:[%s210 + $0x80] sm:$0xff]
      %v246 = vld [vmem:[%s210 + $0x88] sm:$0xff]
      %v247 = vld [vmem:[%s210 + $0x90] sm:$0xff]
      %v248 = vld [vmem:[%s210 + $0x98] sm:$0xff]
      %v249 = vld [vmem:[%s210 + $0xa0] sm:$0xff]
      %v250 = vld [vmem:[%s210 + $0xa8] sm:$0xff]
      %v251 = vld [vmem:[%s210 + $0xb0] sm:$0xff]
      %v252 = vld [vmem:[%s210 + $0xb8] sm:$0xff]
      %v253 = vld [vmem:[%s210 + $0xc0] sm:$0xff]
      %v254 = vld [vmem:[%s210 + $0xc8] sm:$0xff]
      %v255 = vld [vmem:[%s210 + $0xd0] sm:$0xff]
      %v256 = vld [vmem:[%s210 + $0xd8] sm:$0xff]
      %v257 = vld [vmem:[%s210 + $0xe0] sm:$0xff]
      %v258 = vld [vmem:[%s210 + $0xe8] sm:$0xff]
      %v259 = vld [vmem:[%s210 + $0xf0] sm:$0xff]
      %v260 = vld [vmem:[%s210 + $0xf8] sm:$0xff]
      %v261 = vld [vmem:[%s210 + $0x100] sm:$0xff]
      %v262 = vld [vmem:[%s210 + $0x108] sm:$0xff]
      %v263 = vld [vmem:[%s210 + $0x110] sm:$0xff]
      %v264 = vld [vmem:[%s210 + $0x118] sm:$0xff]
      %v265 = vld [vmem:[%s210 + $0x120] sm:$0xff]
      %v266 = vld [vmem:[%s210 + $0x128] sm:$0xff]
      %v267 = vld [vmem:[%s210 + $0x130] sm:$0xff]
      %v268 = vld [vmem:[%s210 + $0x138] sm:$0xff]
      %v269 = vld [vmem:[%s210 + $0x140] sm:$0xff]
      %v270 = vld [vmem:[%s210 + $0x148] sm:$0xff]
      %v271 = vld [vmem:[%s210 + $0x150] sm:$0xff]
      %v272 = vld [vmem:[%s210 + $0x158] sm:$0xff]
      %v273 = vld [vmem:[%s210 + $0x160] sm:$0xff]
      %v274 = vld [vmem:[%s210 + $0x168] sm:$0xff]
      %v275 = vld [vmem:[%s210 + $0x170] sm:$0xff]
      %v276 = vld [vmem:[%s210 + $0x178] sm:$0xff]
      %v277 = vld [vmem:[%s210 + $0x180] sm:$0xff]
      %v278 = vld [vmem:[%s210 + $0x188] sm:$0xff]
      %v279 = vld [vmem:[%s210 + $0x190] sm:$0xff]
      %v280 = vld [vmem:[%s210 + $0x198] sm:$0xff]
      %v281 = vld [vmem:[%s210 + $0x1a0] sm:$0xff]
      %v282 = vld [vmem:[%s210 + $0x1a8] sm:$0xff]
      %v283 = vld [vmem:[%s210 + $0x1b0] sm:$0xff]
      %v284 = vld [vmem:[%s210 + $0x1b8] sm:$0xff]
      %v285 = vld [vmem:[%s210 + $0x1c0] sm:$0xff]
      %v286 = vld [vmem:[%s210 + $0x1c8] sm:$0xff]
      %v287 = vld [vmem:[%s210 + $0x1d0] sm:$0xff]
      %v288 = vld [vmem:[%s210 + $0x1d8] sm:$0xff]
      %v289 = vld [vmem:[%s210 + $0x1e0] sm:$0xff]
      %v290 = vld [vmem:[%s210 + $0x1e8] sm:$0xff]
      %v291 = vld [vmem:[%s210 + $0x1f0] sm:$0xff]
      %v292 = vld [vmem:[%s210 + $0x1f8] sm:$0xff]
      %v293 = vld [vmem:[%s215] sm:$0xf]
      %v294 = vld [vmem:[%s215 + $0x4] sm:$0xf]
      %v295 = vld [vmem:[%s215 + $0x8] sm:$0xf]
      %v296 = vld [vmem:[%s215 + $0xc] sm:$0xf]
      %v297 = vld [vmem:[%s215 + $0x10] sm:$0xf]
      %v298 = vld [vmem:[%s215 + $0x14] sm:$0xf]
      %v299 = vld [vmem:[%s215 + $0x18] sm:$0xf]
      %v300 = vld [vmem:[%s215 + $0x1c] sm:$0xf]
      %v301 = vld [vmem:[%s215 + $0x20] sm:$0xf]
      %v302 = vld [vmem:[%s215 + $0x24] sm:$0xf]
      %v303 = vld [vmem:[%s215 + $0x28] sm:$0xf]
      %v304 = vld [vmem:[%s215 + $0x2c] sm:$0xf]
      %v305 = vld [vmem:[%s215 + $0x30] sm:$0xf]
      %v306 = vld [vmem:[%s215 + $0x34] sm:$0xf]
      %v307 = vld [vmem:[%s215 + $0x38] sm:$0xf]
      %v308 = vld [vmem:[%s215 + $0x3c] sm:$0xf]
      %v309 = vld [vmem:[%s215 + $0x40] sm:$0xf]
      %v310 = vld [vmem:[%s215 + $0x44] sm:$0xf]
      %v311 = vld [vmem:[%s215 + $0x48] sm:$0xf]
      %v312 = vld [vmem:[%s215 + $0x4c] sm:$0xf]
      %v313 = vld [vmem:[%s218] sm:$0x1]
      %v315 = vlaneseq
      %v316 = vshrl.u32 %v315, 7
      %v317 = vsub.s32 0, %v316
      %v318 = vrot.slane %v313, %v317
      %v384 = vunpack.c.l.b16 %v229
      %v385 = vunpack.c.h.b16 %v229
      %v386 = vunpack.c.l.b16 %v230
      %v387 = vunpack.c.h.b16 %v230
      %v388 = vunpack.c.l.b16 %v231
      %v389 = vunpack.c.h.b16 %v231
      %v390 = vunpack.c.l.b16 %v232
      %v391 = vunpack.c.h.b16 %v232
      %v392 = vunpack.c.l.b16 %v233
      %v393 = vunpack.c.h.b16 %v233
      %v394 = vunpack.c.l.b16 %v234
      %v395 = vunpack.c.h.b16 %v234
      %v396 = vunpack.c.l.b16 %v235
      %v397 = vunpack.c.h.b16 %v235
      %v398 = vunpack.c.l.b16 %v236
      %v399 = vunpack.c.h.b16 %v236
      %v400 = vunpack.c.l.b16 %v237
      %v401 = vunpack.c.h.b16 %v237
      %v402 = vunpack.c.l.b16 %v238
      %v403 = vunpack.c.h.b16 %v238
      %v404 = vunpack.c.l.b16 %v239
      %v405 = vunpack.c.h.b16 %v239
      %v406 = vunpack.c.l.b16 %v240
      %v407 = vunpack.c.h.b16 %v240
      %v408 = vunpack.c.l.b16 %v241
      %v409 = vunpack.c.h.b16 %v241
      %v410 = vunpack.c.l.b16 %v242
      %v411 = vunpack.c.h.b16 %v242
      %v412 = vunpack.c.l.b16 %v243
      %v413 = vunpack.c.h.b16 %v243
      %v414 = vunpack.c.l.b16 %v244
      %v415 = vunpack.c.h.b16 %v244
      %v416 = vunpack.c.l.b16 %v245
      %v417 = vunpack.c.h.b16 %v245
      %v418 = vunpack.c.l.b16 %v246
      %v419 = vunpack.c.h.b16 %v246
      %v420 = vunpack.c.l.b16 %v247
      %v421 = vunpack.c.h.b16 %v247
      %v422 = vunpack.c.l.b16 %v248
      %v423 = vunpack.c.h.b16 %v248
      %v424 = vunpack.c.l.b16 %v249
      %v425 = vunpack.c.h.b16 %v249
      %v426 = vunpack.c.l.b16 %v250
      %v427 = vunpack.c.h.b16 %v250
      %v428 = vunpack.c.l.b16 %v251
      %v429 = vunpack.c.h.b16 %v251
      %v430 = vunpack.c.l.b16 %v252
      %v431 = vunpack.c.h.b16 %v252
      %v432 = vunpack.c.l.b16 %v253
      %v433 = vunpack.c.h.b16 %v253
      %v434 = vunpack.c.l.b16 %v254
      %v435 = vunpack.c.h.b16 %v254
      %v436 = vunpack.c.l.b16 %v255
      %v437 = vunpack.c.h.b16 %v255
      %v438 = vunpack.c.l.b16 %v256
      %v439 = vunpack.c.h.b16 %v256
      %v440 = vunpack.c.l.b16 %v257
      %v441 = vunpack.c.h.b16 %v257
      %v442 = vunpack.c.l.b16 %v258
      %v443 = vunpack.c.h.b16 %v258
      %v444 = vunpack.c.l.b16 %v259
      %v445 = vunpack.c.h.b16 %v259
      %v446 = vunpack.c.l.b16 %v260
      %v447 = vunpack.c.h.b16 %v260
      %v448 = vunpack.c.l.b16 %v261
      %v449 = vunpack.c.h.b16 %v261
      %v450 = vunpack.c.l.b16 %v262
      %v451 = vunpack.c.h.b16 %v262
      %v452 = vunpack.c.l.b16 %v263
      %v453 = vunpack.c.h.b16 %v263
      %v454 = vunpack.c.l.b16 %v264
      %v455 = vunpack.c.h.b16 %v264
      %v456 = vunpack.c.l.b16 %v265
      %v457 = vunpack.c.h.b16 %v265
      %v458 = vunpack.c.l.b16 %v266
      %v459 = vunpack.c.h.b16 %v266
      %v460 = vunpack.c.l.b16 %v267
      %v461 = vunpack.c.h.b16 %v267
      %v462 = vunpack.c.l.b16 %v268
      %v463 = vunpack.c.h.b16 %v268
      %v464 = vunpack.c.l.b16 %v269
      %v465 = vunpack.c.h.b16 %v269
      %v466 = vunpack.c.l.b16 %v270
      %v467 = vunpack.c.h.b16 %v270
      %v468 = vunpack.c.l.b16 %v271
      %v469 = vunpack.c.h.b16 %v271
      %v470 = vunpack.c.l.b16 %v272
      %v471 = vunpack.c.h.b16 %v272
      %v472 = vunpack.c.l.b16 %v273
      %v473 = vunpack.c.h.b16 %v273
      %v474 = vunpack.c.l.b16 %v274
      %v475 = vunpack.c.h.b16 %v274
      %v476 = vunpack.c.l.b16 %v275
      %v477 = vunpack.c.h.b16 %v275
      %v478 = vunpack.c.l.b16 %v276
      %v479 = vunpack.c.h.b16 %v276
      %v480 = vunpack.c.l.b16 %v277
      %v481 = vunpack.c.h.b16 %v277
      %v482 = vunpack.c.l.b16 %v278
      %v483 = vunpack.c.h.b16 %v278
      %v484 = vunpack.c.l.b16 %v279
      %v485 = vunpack.c.h.b16 %v279
      %v486 = vunpack.c.l.b16 %v280
      %v487 = vunpack.c.h.b16 %v280
      %v488 = vunpack.c.l.b16 %v281
      %v489 = vunpack.c.h.b16 %v281
      %v490 = vunpack.c.l.b16 %v282
      %v491 = vunpack.c.h.b16 %v282
      %v492 = vunpack.c.l.b16 %v283
      %v493 = vunpack.c.h.b16 %v283
      %v494 = vunpack.c.l.b16 %v284
      %v495 = vunpack.c.h.b16 %v284
      %v496 = vunpack.c.l.b16 %v285
      %v497 = vunpack.c.h.b16 %v285
      %v498 = vunpack.c.l.b16 %v286
      %v499 = vunpack.c.h.b16 %v286
      %v500 = vunpack.c.l.b16 %v287
      %v501 = vunpack.c.h.b16 %v287
      %v502 = vunpack.c.l.b16 %v288
      %v503 = vunpack.c.h.b16 %v288
      %v504 = vunpack.c.l.b16 %v289
      %v505 = vunpack.c.h.b16 %v289
      %v506 = vunpack.c.l.b16 %v290
      %v507 = vunpack.c.h.b16 %v290
      %v508 = vunpack.c.l.b16 %v291
      %v509 = vunpack.c.h.b16 %v291
      %v510 = vunpack.c.l.b16 %v292
      %v511 = vunpack.c.h.b16 %v292
      %v512 = vpack.c.b16 %v386, %v384
      %v513 = vpack.c.b16 %v387, %v385
      %v514 = vpack.c.b16 %v390, %v388
      %v515 = vpack.c.b16 %v391, %v389
      %v516 = vpack.c.b16 %v394, %v392
      %v517 = vpack.c.b16 %v395, %v393
      %v518 = vpack.c.b16 %v398, %v396
      %v519 = vpack.c.b16 %v399, %v397
      %v520 = vpack.c.b16 %v402, %v400
      %v521 = vpack.c.b16 %v403, %v401
      %v522 = vpack.c.b16 %v406, %v404
      %v523 = vpack.c.b16 %v407, %v405
      %v524 = vpack.c.b16 %v410, %v408
      %v525 = vpack.c.b16 %v411, %v409
      %v526 = vpack.c.b16 %v414, %v412
      %v527 = vpack.c.b16 %v415, %v413
      %v528 = vpack.c.b16 %v418, %v416
      %v529 = vpack.c.b16 %v419, %v417
      %v530 = vpack.c.b16 %v422, %v420
      %v531 = vpack.c.b16 %v423, %v421
      %v532 = vpack.c.b16 %v426, %v424
      %v533 = vpack.c.b16 %v427, %v425
      %v534 = vpack.c.b16 %v430, %v428
      %v535 = vpack.c.b16 %v431, %v429
      %v536 = vpack.c.b16 %v434, %v432
      %v537 = vpack.c.b16 %v435, %v433
      %v538 = vpack.c.b16 %v438, %v436
      %v539 = vpack.c.b16 %v439, %v437
      %v540 = vpack.c.b16 %v442, %v440
      %v541 = vpack.c.b16 %v443, %v441
      %v542 = vpack.c.b16 %v446, %v444
      %v543 = vpack.c.b16 %v447, %v445
      %v544 = vpack.c.b16 %v450, %v448
      %v545 = vpack.c.b16 %v451, %v449
      %v546 = vpack.c.b16 %v454, %v452
      %v547 = vpack.c.b16 %v455, %v453
      %v548 = vpack.c.b16 %v458, %v456
      %v549 = vpack.c.b16 %v459, %v457
      %v550 = vpack.c.b16 %v462, %v460
      %v551 = vpack.c.b16 %v463, %v461
      %v552 = vpack.c.b16 %v466, %v464
      %v553 = vpack.c.b16 %v467, %v465
      %v554 = vpack.c.b16 %v470, %v468
      %v555 = vpack.c.b16 %v471, %v469
      %v556 = vpack.c.b16 %v474, %v472
      %v557 = vpack.c.b16 %v475, %v473
      %v558 = vpack.c.b16 %v478, %v476
      %v559 = vpack.c.b16 %v479, %v477
      %v560 = vpack.c.b16 %v482, %v480
      %v561 = vpack.c.b16 %v483, %v481
      %v562 = vpack.c.b16 %v486, %v484
      %v563 = vpack.c.b16 %v487, %v485
      %v564 = vpack.c.b16 %v490, %v488
      %v565 = vpack.c.b16 %v491, %v489
      %v566 = vpack.c.b16 %v494, %v492
      %v567 = vpack.c.b16 %v495, %v493
      %v568 = vpack.c.b16 %v498, %v496
      %v569 = vpack.c.b16 %v499, %v497
      %v570 = vpack.c.b16 %v502, %v500
      %v571 = vpack.c.b16 %v503, %v501
      %v572 = vpack.c.b16 %v506, %v504
      %v573 = vpack.c.b16 %v507, %v505
      %v574 = vpack.c.b16 %v510, %v508
      %v575 = vpack.c.b16 %v511, %v509
      %v628 = vunpack.c.l.b16 %v293
      %v629 = vunpack.c.l.b16 %v294
      %v630 = vunpack.c.l.b16 %v295
      %v631 = vunpack.c.l.b16 %v296
      %v632 = vunpack.c.l.b16 %v297
      %v633 = vunpack.c.l.b16 %v298
      %v634 = vunpack.c.l.b16 %v299
      %v635 = vunpack.c.l.b16 %v300
      %v636 = vunpack.c.l.b16 %v301
      %v637 = vunpack.c.l.b16 %v302
      %v638 = vunpack.c.l.b16 %v303
      %v639 = vunpack.c.l.b16 %v304
      %v640 = vunpack.c.l.b16 %v305
      %v641 = vunpack.c.l.b16 %v306
      %v642 = vunpack.c.l.b16 %v307
      %v643 = vunpack.c.l.b16 %v308
      %v644 = vunpack.c.l.b16 %v309
      %v645 = vunpack.c.l.b16 %v310
      %v646 = vunpack.c.l.b16 %v311
      %v647 = vunpack.c.l.b16 %v312
      %v648 = vpack.c.b16 %v629, %v628
      %v649 = vpack.c.b16 %v631, %v630
      %v650 = vpack.c.b16 %v633, %v632
      %v651 = vpack.c.b16 %v635, %v634
      %v652 = vpack.c.b16 %v637, %v636
      %v653 = vpack.c.b16 %v639, %v638
      %v654 = vpack.c.b16 %v641, %v640
      %v655 = vpack.c.b16 %v643, %v642
      %v656 = vpack.c.b16 %v645, %v644
      %v657 = vpack.c.b16 %v647, %v646
      %vm668 = vcmask 261120
      %v670 = vsel %vm668, %v513, 0
      %v673 = vsel %vm668, %v515, 0
      %v676 = vsel %vm668, %v517, 0
      %v679 = vsel %vm668, %v519, 0
      %v682 = vsel %vm668, %v521, 0
      %v685 = vsel %vm668, %v523, 0
      %v688 = vsel %vm668, %v525, 0
      %v691 = vsel %vm668, %v527, 0
      %v694 = vsel %vm668, %v529, 0
      %v697 = vsel %vm668, %v531, 0
      %v700 = vsel %vm668, %v533, 0
      %v703 = vsel %vm668, %v535, 0
      %v706 = vsel %vm668, %v537, 0
      %v709 = vsel %vm668, %v539, 0
      %v712 = vsel %vm668, %v541, 0
      %v715 = vsel %vm668, %v543, 0
      %v718 = vsel %vm668, %v545, 0
      %v721 = vsel %vm668, %v547, 0
      %v724 = vsel %vm668, %v549, 0
      %v727 = vsel %vm668, %v551, 0
      %v730 = vsel %vm668, %v553, 0
      %v733 = vsel %vm668, %v555, 0
      %v736 = vsel %vm668, %v557, 0
      %v739 = vsel %vm668, %v559, 0
      %v742 = vsel %vm668, %v561, 0
      %v745 = vsel %vm668, %v563, 0
      %v748 = vsel %vm668, %v565, 0
      %v751 = vsel %vm668, %v567, 0
      %v754 = vsel %vm668, %v569, 0
      %v757 = vsel %vm668, %v571, 0
      %v760 = vsel %vm668, %v573, 0
      %v763 = vsel %vm668, %v575, 0
      %765 = vmatprep.subr.bf16.mxu0 0
      %766 = vmatpush1.bf16.msra.mxu0 %v655
      %767 = vmatprep.subr.bf16.mxu0 0
      %768 = vmatpush1.bf16.msra.mxu0 %v654
      %769 = vmatprep.subr.bf16.mxu0 0
      %770 = vmatpush1.bf16.msra.mxu0 %v653
      %771 = vmatprep.subr.bf16.mxu0 0
      %772 = vmatpush1.bf16.msra.mxu0 %v652
      %773 = vmatprep.subr.bf16.mxu0 0
      %774 = vmatpush1.bf16.msra.mxu0 %v651
      %775 = vmatprep.subr.bf16.mxu0 0
      %776 = vmatpush1.bf16.msra.mxu0 %v650
      %777 = vmatprep.subr.bf16.mxu0 0
      %778 = vmatpush1.bf16.msra.mxu0 %v649
      %779 = vmatprep.subr.bf16.mxu0 0
      %780 = vmatpush1.bf16.msra.mxu0 %v648
      %781 = vmatprep.subr.bf16.mxu0 0
      %782 = vmatpush2.bf16.msra.mxu0 0
      %783 = vmatprep.subr.bf16.mxu0 0
      %784 = vmatpush2.bf16.msra.mxu0 0
      %785 = vmatprep.subr.bf16.mxu0 0
      %786 = vmatpush2.bf16.msra.mxu0 0
      %787 = vmatprep.subr.bf16.mxu0 0
      %788 = vmatpush2.bf16.msra.mxu0 0
      %789 = vmatprep.subr.bf16.mxu0 0
      %790 = vmatpush2.bf16.msra.mxu0 0
      %791 = vmatprep.subr.bf16.mxu0 0
      %792 = vmatpush2.bf16.msra.mxu0 0
      %793 = vmatprep.subr.bf16.mxu0 0
      %794 = vmatpush2.bf16.msra.mxu0 %v657
      %795 = vmatprep.subr.bf16.mxu0 0
      %796 = vmatpush2.bf16.msra.mxu0 %v656
      %797 = vmatprep.mubr.bf16.mxu0 %v670
      %798 = vmatmul.mubr.bf16.gmra.mxu0 %v512
      %v799 = vpop.f32.mrf.mxu0
      %v800 = vadd.f32 %v318, %v799
      %v801 = vpop.f32.mrf.mxu0
      %v802 = vpop.f32.mrf.mxu0
      %v803 = vadd.f32 %v318, %v802
      %v804 = vpop.f32.mrf.mxu0
      %805 = vmatprep.mubr.bf16.mxu0 %v673
      %806 = vmatmul.mubr.bf16.gmra.mxu0 %v514
      %v807 = vpop.f32.mrf.mxu0
      %v808 = vadd.f32 %v318, %v807
      %v809 = vpop.f32.mrf.mxu0
      %v810 = vpop.f32.mrf.mxu0
      %v811 = vadd.f32 %v318, %v810
      %v812 = vpop.f32.mrf.mxu0
      %813 = vmatprep.mubr.bf16.mxu0 %v676
      %814 = vmatmul.mubr.bf16.gmra.mxu0 %v516
      %v815 = vpop.f32.mrf.mxu0
      %v816 = vadd.f32 %v318, %v815
      %v817 = vpop.f32.mrf.mxu0
      %v818 = vpop.f32.mrf.mxu0
      %v819 = vadd.f32 %v318, %v818
      %v820 = vpop.f32.mrf.mxu0
      %821 = vmatprep.mubr.bf16.mxu0 %v679
      %822 = vmatmul.mubr.bf16.gmra.mxu0 %v518
      %v823 = vpop.f32.mrf.mxu0
      %v824 = vadd.f32 %v318, %v823
      %v825 = vpop.f32.mrf.mxu0
      %v826 = vpop.f32.mrf.mxu0
      %v827 = vadd.f32 %v318, %v826
      %v828 = vpop.f32.mrf.mxu0
      %829 = vmatprep.mubr.bf16.mxu0 %v682
      %830 = vmatmul.mubr.bf16.gmra.mxu0 %v520
      %v831 = vpop.f32.mrf.mxu0
      %v832 = vadd.f32 %v318, %v831
      %v833 = vpop.f32.mrf.mxu0
      %v834 = vpop.f32.mrf.mxu0
      %v835 = vadd.f32 %v318, %v834
      %v836 = vpop.f32.mrf.mxu0
      %837 = vmatprep.mubr.bf16.mxu0 %v685
      %838 = vmatmul.mubr.bf16.gmra.mxu0 %v522
      %v839 = vpop.f32.mrf.mxu0
      %v840 = vadd.f32 %v318, %v839
      %v841 = vpop.f32.mrf.mxu0
      %v842 = vpop.f32.mrf.mxu0
      %v843 = vadd.f32 %v318, %v842
      %v844 = vpop.f32.mrf.mxu0
      %845 = vmatprep.mubr.bf16.mxu0 %v688
      %846 = vmatmul.mubr.bf16.gmra.mxu0 %v524
      %v847 = vpop.f32.mrf.mxu0
      %v848 = vadd.f32 %v318, %v847
      %v849 = vpop.f32.mrf.mxu0
      %v850 = vpop.f32.mrf.mxu0
      %v851 = vadd.f32 %v318, %v850
      %v852 = vpop.f32.mrf.mxu0
      %853 = vmatprep.mubr.bf16.mxu0 %v691
      %854 = vmatmul.mubr.bf16.gmra.mxu0 %v526
      %v855 = vpop.f32.mrf.mxu0
      %v856 = vadd.f32 %v318, %v855
      %v857 = vpop.f32.mrf.mxu0
      %v858 = vpop.f32.mrf.mxu0
      %v859 = vadd.f32 %v318, %v858
      %v860 = vpop.f32.mrf.mxu0
      %861 = vmatprep.mubr.bf16.mxu0 %v694
      %862 = vmatmul.mubr.bf16.gmra.mxu0 %v528
      %v863 = vpop.f32.mrf.mxu0
      %v864 = vadd.f32 %v318, %v863
      %v865 = vpop.f32.mrf.mxu0
      %v866 = vpop.f32.mrf.mxu0
      %v867 = vadd.f32 %v318, %v866
      %v868 = vpop.f32.mrf.mxu0
      %869 = vmatprep.mubr.bf16.mxu0 %v697
      %870 = vmatmul.mubr.bf16.gmra.mxu0 %v530
      %v871 = vpop.f32.mrf.mxu0
      %v872 = vadd.f32 %v318, %v871
      %v873 = vpop.f32.mrf.mxu0
      %v874 = vpop.f32.mrf.mxu0
      %v875 = vadd.f32 %v318, %v874
      %v876 = vpop.f32.mrf.mxu0
      %877 = vmatprep.mubr.bf16.mxu0 %v700
      %878 = vmatmul.mubr.bf16.gmra.mxu0 %v532
      %v879 = vpop.f32.mrf.mxu0
      %v880 = vadd.f32 %v318, %v879
      %v881 = vpop.f32.mrf.mxu0
      %v882 = vpop.f32.mrf.mxu0
      %v883 = vadd.f32 %v318, %v882
      %v884 = vpop.f32.mrf.mxu0
      %885 = vmatprep.mubr.bf16.mxu0 %v703
      %886 = vmatmul.mubr.bf16.gmra.mxu0 %v534
      %v887 = vpop.f32.mrf.mxu0
      %v888 = vadd.f32 %v318, %v887
      %v889 = vpop.f32.mrf.mxu0
      %v890 = vpop.f32.mrf.mxu0
      %v891 = vadd.f32 %v318, %v890
      %v892 = vpop.f32.mrf.mxu0
      %893 = vmatprep.mubr.bf16.mxu0 %v706
      %894 = vmatmul.mubr.bf16.gmra.mxu0 %v536
      %v895 = vpop.f32.mrf.mxu0
      %v896 = vadd.f32 %v318, %v895
      %v897 = vpop.f32.mrf.mxu0
      %v898 = vpop.f32.mrf.mxu0
      %v899 = vadd.f32 %v318, %v898
      %v900 = vpop.f32.mrf.mxu0
      %901 = vmatprep.mubr.bf16.mxu0 %v709
      %902 = vmatmul.mubr.bf16.gmra.mxu0 %v538
      %v903 = vpop.f32.mrf.mxu0
      %v904 = vadd.f32 %v318, %v903
      %v905 = vpop.f32.mrf.mxu0
      %v906 = vpop.f32.mrf.mxu0
      %v907 = vadd.f32 %v318, %v906
      %v908 = vpop.f32.mrf.mxu0
      %909 = vmatprep.mubr.bf16.mxu0 %v712
      %910 = vmatmul.mubr.bf16.gmra.mxu0 %v540
      %v911 = vpop.f32.mrf.mxu0
      %v912 = vadd.f32 %v318, %v911
      %v913 = vpop.f32.mrf.mxu0
      %v914 = vpop.f32.mrf.mxu0
      %v915 = vadd.f32 %v318, %v914
      %v916 = vpop.f32.mrf.mxu0
      %917 = vmatprep.mubr.bf16.mxu0 %v715
      %918 = vmatmul.mubr.bf16.gmra.mxu0 %v542
      %v919 = vpop.f32.mrf.mxu0
      %v920 = vadd.f32 %v318, %v919
      %v921 = vpop.f32.mrf.mxu0
      %v922 = vpop.f32.mrf.mxu0
      %v923 = vadd.f32 %v318, %v922
      %v924 = vpop.f32.mrf.mxu0
      %925 = vmatprep.mubr.bf16.mxu0 %v718
      %926 = vmatmul.mubr.bf16.gmra.mxu0 %v544
      %v927 = vpop.f32.mrf.mxu0
      %v928 = vadd.f32 %v318, %v927
      %v929 = vpop.f32.mrf.mxu0
      %v930 = vpop.f32.mrf.mxu0
      %v931 = vadd.f32 %v318, %v930
      %v932 = vpop.f32.mrf.mxu0
      %933 = vmatprep.mubr.bf16.mxu0 %v721
      %934 = vmatmul.mubr.bf16.gmra.mxu0 %v546
      %v935 = vpop.f32.mrf.mxu0
      %v936 = vadd.f32 %v318, %v935
      %v937 = vpop.f32.mrf.mxu0
      %v938 = vpop.f32.mrf.mxu0
      %v939 = vadd.f32 %v318, %v938
      %v940 = vpop.f32.mrf.mxu0
      %941 = vmatprep.mubr.bf16.mxu0 %v724
      %942 = vmatmul.mubr.bf16.gmra.mxu0 %v548
      %v943 = vpop.f32.mrf.mxu0
      %v944 = vadd.f32 %v318, %v943
      %v945 = vpop.f32.mrf.mxu0
      %v946 = vpop.f32.mrf.mxu0
      %v947 = vadd.f32 %v318, %v946
      %v948 = vpop.f32.mrf.mxu0
      %949 = vmatprep.mubr.bf16.mxu0 %v727
      %950 = vmatmul.mubr.bf16.gmra.mxu0 %v550
      %v951 = vpop.f32.mrf.mxu0
      %v952 = vadd.f32 %v318, %v951
      %v953 = vpop.f32.mrf.mxu0
      %v954 = vpop.f32.mrf.mxu0
      %v955 = vadd.f32 %v318, %v954
      %v956 = vpop.f32.mrf.mxu0
      %957 = vmatprep.mubr.bf16.mxu0 %v730
      %958 = vmatmul.mubr.bf16.gmra.mxu0 %v552
      %v959 = vpop.f32.mrf.mxu0
      %v960 = vadd.f32 %v318, %v959
      %v961 = vpop.f32.mrf.mxu0
      %v962 = vpop.f32.mrf.mxu0
      %v963 = vadd.f32 %v318, %v962
      %v964 = vpop.f32.mrf.mxu0
      %965 = vmatprep.mubr.bf16.mxu0 %v733
      %966 = vmatmul.mubr.bf16.gmra.mxu0 %v554
      %v967 = vpop.f32.mrf.mxu0
      %v968 = vadd.f32 %v318, %v967
      %v969 = vpop.f32.mrf.mxu0
      %v970 = vpop.f32.mrf.mxu0
      %v971 = vadd.f32 %v318, %v970
      %v972 = vpop.f32.mrf.mxu0
      %973 = vmatprep.mubr.bf16.mxu0 %v736
      %974 = vmatmul.mubr.bf16.gmra.mxu0 %v556
      %v975 = vpop.f32.mrf.mxu0
      %v976 = vadd.f32 %v318, %v975
      %v977 = vpop.f32.mrf.mxu0
      %v978 = vpop.f32.mrf.mxu0
      %v979 = vadd.f32 %v318, %v978
      %v980 = vpop.f32.mrf.mxu0
      %981 = vmatprep.mubr.bf16.mxu0 %v739
      %982 = vmatmul.mubr.bf16.gmra.mxu0 %v558
      %v983 = vpop.f32.mrf.mxu0
      %v984 = vadd.f32 %v318, %v983
      %v985 = vpop.f32.mrf.mxu0
      %v986 = vpop.f32.mrf.mxu0
      %v987 = vadd.f32 %v318, %v986
      %v988 = vpop.f32.mrf.mxu0
      %989 = vmatprep.mubr.bf16.mxu0 %v742
      %990 = vmatmul.mubr.bf16.gmra.mxu0 %v560
      %v991 = vpop.f32.mrf.mxu0
      %v992 = vadd.f32 %v318, %v991
      %v993 = vpop.f32.mrf.mxu0
      %v994 = vpop.f32.mrf.mxu0
      %v995 = vadd.f32 %v318, %v994
      %v996 = vpop.f32.mrf.mxu0
      %997 = vmatprep.mubr.bf16.mxu0 %v745
      %998 = vmatmul.mubr.bf16.gmra.mxu0 %v562
      %v999 = vpop.f32.mrf.mxu0
      %v1000 = vadd.f32 %v318, %v999
      %v1001 = vpop.f32.mrf.mxu0
      %v1002 = vpop.f32.mrf.mxu0
      %v1003 = vadd.f32 %v318, %v1002
      %v1004 = vpop.f32.mrf.mxu0
      %1005 = vmatprep.mubr.bf16.mxu0 %v748
      %1006 = vmatmul.mubr.bf16.gmra.mxu0 %v564
      %v1007 = vpop.f32.mrf.mxu0
      %v1008 = vadd.f32 %v318, %v1007
      %v1009 = vpop.f32.mrf.mxu0
      %v1010 = vpop.f32.mrf.mxu0
      %v1011 = vadd.f32 %v318, %v1010
      %v1012 = vpop.f32.mrf.mxu0
      %1013 = vmatprep.mubr.bf16.mxu0 %v751
      %1014 = vmatmul.mubr.bf16.gmra.mxu0 %v566
      %v1015 = vpop.f32.mrf.mxu0
      %v1016 = vadd.f32 %v318, %v1015
      %v1017 = vpop.f32.mrf.mxu0
      %v1018 = vpop.f32.mrf.mxu0
      %v1019 = vadd.f32 %v318, %v1018
      %v1020 = vpop.f32.mrf.mxu0
      %1021 = vmatprep.mubr.bf16.mxu0 %v754
      %1022 = vmatmul.mubr.bf16.gmra.mxu0 %v568
      %v1023 = vpop.f32.mrf.mxu0
      %v1024 = vadd.f32 %v318, %v1023
      %v1025 = vpop.f32.mrf.mxu0
      %v1026 = vpop.f32.mrf.mxu0
      %v1027 = vadd.f32 %v318, %v1026
      %v1028 = vpop.f32.mrf.mxu0
      %1029 = vmatprep.mubr.bf16.mxu0 %v757
      %1030 = vmatmul.mubr.bf16.gmra.mxu0 %v570
      %v1031 = vpop.f32.mrf.mxu0
      %v1032 = vadd.f32 %v318, %v1031
      %v1033 = vpop.f32.mrf.mxu0
      %v1034 = vpop.f32.mrf.mxu0
      %v1035 = vadd.f32 %v318, %v1034
      %v1036 = vpop.f32.mrf.mxu0
      %1037 = vmatprep.mubr.bf16.mxu0 %v760
      %1038 = vmatmul.mubr.bf16.gmra.mxu0 %v572
      %v1039 = vpop.f32.mrf.mxu0
      %v1040 = vadd.f32 %v318, %v1039
      %v1041 = vpop.f32.mrf.mxu0
      %v1042 = vpop.f32.mrf.mxu0
      %v1043 = vadd.f32 %v318, %v1042
      %v1044 = vpop.f32.mrf.mxu0
      %1045 = vmatprep.mubr.bf16.mxu0 %v763
      %1046 = vmatmul.mubr.bf16.gmra.mxu0 %v574
      %v1047 = vpop.f32.mrf.mxu0
      %v1048 = vadd.f32 %v318, %v1047
      %v1049 = vpop.f32.mrf.mxu0
      %v1050 = vpop.f32.mrf.mxu0
      %v1051 = vadd.f32 %v318, %v1050
      %v1052 = vpop.f32.mrf.mxu0
      %1053 = vdwg.mxu0
      %v1054 = vpack.c.bf16 %v803, %v800
      %v1055 = vpack.c.bf16 %v811, %v808
      %v1056 = vpack.c.bf16 %v819, %v816
      %v1057 = vpack.c.bf16 %v827, %v824
      %v1058 = vpack.c.bf16 %v835, %v832
      %v1059 = vpack.c.bf16 %v843, %v840
      %v1060 = vpack.c.bf16 %v851, %v848
      %v1061 = vpack.c.bf16 %v859, %v856
      %v1062 = vpack.c.bf16 %v867, %v864
      %v1063 = vpack.c.bf16 %v875, %v872
      %v1064 = vpack.c.bf16 %v883, %v880
      %v1065 = vpack.c.bf16 %v891, %v888
      %v1066 = vpack.c.bf16 %v899, %v896
      %v1067 = vpack.c.bf16 %v907, %v904
      %v1068 = vpack.c.bf16 %v915, %v912
      %v1069 = vpack.c.bf16 %v923, %v920
      %v1070 = vpack.c.bf16 %v931, %v928
      %v1071 = vpack.c.bf16 %v939, %v936
      %v1072 = vpack.c.bf16 %v947, %v944
      %v1073 = vpack.c.bf16 %v955, %v952
      %v1074 = vpack.c.bf16 %v963, %v960
      %v1075 = vpack.c.bf16 %v971, %v968
      %v1076 = vpack.c.bf16 %v979, %v976
      %v1077 = vpack.c.bf16 %v987, %v984
      %v1078 = vpack.c.bf16 %v995, %v992
      %v1079 = vpack.c.bf16 %v1003, %v1000
      %v1080 = vpack.c.bf16 %v1011, %v1008
      %v1081 = vpack.c.bf16 %v1019, %v1016
      %v1082 = vpack.c.bf16 %v1027, %v1024
      %v1083 = vpack.c.bf16 %v1035, %v1032
      %v1084 = vpack.c.bf16 %v1043, %v1040
      %v1085 = vpack.c.bf16 %v1051, %v1048
      %v1118 = vunpack.c.l.b16 %v1054
      %v1119 = vunpack.c.h.b16 %v1054
      %v1120 = vunpack.c.l.b16 %v1055
      %v1121 = vunpack.c.h.b16 %v1055
      %v1122 = vunpack.c.l.b16 %v1056
      %v1123 = vunpack.c.h.b16 %v1056
      %v1124 = vunpack.c.l.b16 %v1057
      %v1125 = vunpack.c.h.b16 %v1057
      %v1126 = vunpack.c.l.b16 %v1058
      %v1127 = vunpack.c.h.b16 %v1058
      %v1128 = vunpack.c.l.b16 %v1059
      %v1129 = vunpack.c.h.b16 %v1059
      %v1130 = vunpack.c.l.b16 %v1060
      %v1131 = vunpack.c.h.b16 %v1060
      %v1132 = vunpack.c.l.b16 %v1061
      %v1133 = vunpack.c.h.b16 %v1061
      %v1134 = vunpack.c.l.b16 %v1062
      %v1135 = vunpack.c.h.b16 %v1062
      %v1136 = vunpack.c.l.b16 %v1063
      %v1137 = vunpack.c.h.b16 %v1063
      %v1138 = vunpack.c.l.b16 %v1064
      %v1139 = vunpack.c.h.b16 %v1064
      %v1140 = vunpack.c.l.b16 %v1065
      %v1141 = vunpack.c.h.b16 %v1065
      %v1142 = vunpack.c.l.b16 %v1066
      %v1143 = vunpack.c.h.b16 %v1066
      %v1144 = vunpack.c.l.b16 %v1067
      %v1145 = vunpack.c.h.b16 %v1067
      %v1146 = vunpack.c.l.b16 %v1068
      %v1147 = vunpack.c.h.b16 %v1068
      %v1148 = vunpack.c.l.b16 %v1069
      %v1149 = vunpack.c.h.b16 %v1069
      %v1150 = vunpack.c.l.b16 %v1070
      %v1151 = vunpack.c.h.b16 %v1070
      %v1152 = vunpack.c.l.b16 %v1071
      %v1153 = vunpack.c.h.b16 %v1071
      %v1154 = vunpack.c.l.b16 %v1072
      %v1155 = vunpack.c.h.b16 %v1072
      %v1156 = vunpack.c.l.b16 %v1073
      %v1157 = vunpack.c.h.b16 %v1073
      %v1158 = vunpack.c.l.b16 %v1074
      %v1159 = vunpack.c.h.b16 %v1074
      %v1160 = vunpack.c.l.b16 %v1075
      %v1161 = vunpack.c.h.b16 %v1075
      %v1162 = vunpack.c.l.b16 %v1076
      %v1163 = vunpack.c.h.b16 %v1076
      %v1164 = vunpack.c.l.b16 %v1077
      %v1165 = vunpack.c.h.b16 %v1077
      %v1166 = vunpack.c.l.b16 %v1078
      %v1167 = vunpack.c.h.b16 %v1078
      %v1168 = vunpack.c.l.b16 %v1079
      %v1169 = vunpack.c.h.b16 %v1079
      %v1170 = vunpack.c.l.b16 %v1080
      %v1171 = vunpack.c.h.b16 %v1080
      %v1172 = vunpack.c.l.b16 %v1081
      %v1173 = vunpack.c.h.b16 %v1081
      %v1174 = vunpack.c.l.b16 %v1082
      %v1175 = vunpack.c.h.b16 %v1082
      %v1176 = vunpack.c.l.b16 %v1083
      %v1177 = vunpack.c.h.b16 %v1083
      %v1178 = vunpack.c.l.b16 %v1084
      %v1179 = vunpack.c.h.b16 %v1084
      %v1180 = vunpack.c.l.b16 %v1085
      %v1181 = vunpack.c.h.b16 %v1085
      %v1182 = vpack.c.b16 %v1118, %v1118
      %v1183 = vpack.c.b16 %v1119, %v1119
      %v1184 = vpack.c.b16 %v1120, %v1120
      %v1185 = vpack.c.b16 %v1121, %v1121
      %v1186 = vpack.c.b16 %v1122, %v1122
      %v1187 = vpack.c.b16 %v1123, %v1123
      %v1188 = vpack.c.b16 %v1124, %v1124
      %v1189 = vpack.c.b16 %v1125, %v1125
      %v1190 = vpack.c.b16 %v1126, %v1126
      %v1191 = vpack.c.b16 %v1127, %v1127
      %v1192 = vpack.c.b16 %v1128, %v1128
      %v1193 = vpack.c.b16 %v1129, %v1129
      %v1194 = vpack.c.b16 %v1130, %v1130
      %v1195 = vpack.c.b16 %v1131, %v1131
      %v1196 = vpack.c.b16 %v1132, %v1132
      %v1197 = vpack.c.b16 %v1133, %v1133
      %v1198 = vpack.c.b16 %v1134, %v1134
      %v1199 = vpack.c.b16 %v1135, %v1135
      %v1200 = vpack.c.b16 %v1136, %v1136
      %v1201 = vpack.c.b16 %v1137, %v1137
      %v1202 = vpack.c.b16 %v1138, %v1138
      %v1203 = vpack.c.b16 %v1139, %v1139
      %v1204 = vpack.c.b16 %v1140, %v1140
      %v1205 = vpack.c.b16 %v1141, %v1141
      %v1206 = vpack.c.b16 %v1142, %v1142
      %v1207 = vpack.c.b16 %v1143, %v1143
      %v1208 = vpack.c.b16 %v1144, %v1144
      %v1209 = vpack.c.b16 %v1145, %v1145
      %v1210 = vpack.c.b16 %v1146, %v1146
      %v1211 = vpack.c.b16 %v1147, %v1147
      %v1212 = vpack.c.b16 %v1148, %v1148
      %v1213 = vpack.c.b16 %v1149, %v1149
      %v1214 = vpack.c.b16 %v1150, %v1150
      %v1215 = vpack.c.b16 %v1151, %v1151
      %v1216 = vpack.c.b16 %v1152, %v1152
      %v1217 = vpack.c.b16 %v1153, %v1153
      %v1218 = vpack.c.b16 %v1154, %v1154
      %v1219 = vpack.c.b16 %v1155, %v1155
      %v1220 = vpack.c.b16 %v1156, %v1156
      %v1221 = vpack.c.b16 %v1157, %v1157
      %v1222 = vpack.c.b16 %v1158, %v1158
      %v1223 = vpack.c.b16 %v1159, %v1159
      %v1224 = vpack.c.b16 %v1160, %v1160
      %v1225 = vpack.c.b16 %v1161, %v1161
      %v1226 = vpack.c.b16 %v1162, %v1162
      %v1227 = vpack.c.b16 %v1163, %v1163
      %v1228 = vpack.c.b16 %v1164, %v1164
      %v1229 = vpack.c.b16 %v1165, %v1165
      %v1230 = vpack.c.b16 %v1166, %v1166
      %v1231 = vpack.c.b16 %v1167, %v1167
      %v1232 = vpack.c.b16 %v1168, %v1168
      %v1233 = vpack.c.b16 %v1169, %v1169
      %v1234 = vpack.c.b16 %v1170, %v1170
      %v1235 = vpack.c.b16 %v1171, %v1171
      %v1236 = vpack.c.b16 %v1172, %v1172
      %v1237 = vpack.c.b16 %v1173, %v1173
      %v1238 = vpack.c.b16 %v1174, %v1174
      %v1239 = vpack.c.b16 %v1175, %v1175
      %v1240 = vpack.c.b16 %v1176, %v1176
      %v1241 = vpack.c.b16 %v1177, %v1177
      %v1242 = vpack.c.b16 %v1178, %v1178
      %v1243 = vpack.c.b16 %v1179, %v1179
      %v1244 = vpack.c.b16 %v1180, %v1180
      %v1245 = vpack.c.b16 %v1181, %v1181
      %1310 = vst [vmem:[%s226] sm:$0xf] %v1182
      %1311 = vst [vmem:[%s226 + $0x4] sm:$0xf] %v1183
      %1312 = vst [vmem:[%s226 + $0x8] sm:$0xf] %v1184
      %1313 = vst [vmem:[%s226 + $0xc] sm:$0xf] %v1185
      %1314 = vst [vmem:[%s226 + $0x10] sm:$0xf] %v1186
      %1315 = vst [vmem:[%s226 + $0x14] sm:$0xf] %v1187
      %1316 = vst [vmem:[%s226 + $0x18] sm:$0xf] %v1188
      %1317 = vst [vmem:[%s226 + $0x1c] sm:$0xf] %v1189
      %1318 = vst [vmem:[%s226 + $0x20] sm:$0xf] %v1190
      %1319 = vst [vmem:[%s226 + $0x24] sm:$0xf] %v1191
      %1320 = vst [vmem:[%s226 + $0x28] sm:$0xf] %v1192
      %1321 = vst [vmem:[%s226 + $0x2c] sm:$0xf] %v1193
      %1322 = vst [vmem:[%s226 + $0x30] sm:$0xf] %v1194
      %1323 = vst [vmem:[%s226 + $0x34] sm:$0xf] %v1195
      %1324 = vst [vmem:[%s226 + $0x38] sm:$0xf] %v1196
      %1325 = vst [vmem:[%s226 + $0x3c] sm:$0xf] %v1197
      %1326 = vst [vmem:[%s226 + $0x40] sm:$0xf] %v1198
      %1327 = vst [vmem:[%s226 + $0x44] sm:$0xf] %v1199
      %1328 = vst [vmem:[%s226 + $0x48] sm:$0xf] %v1200
      %1329 = vst [vmem:[%s226 + $0x4c] sm:$0xf] %v1201
      %1330 = vst [vmem:[%s226 + $0x50] sm:$0xf] %v1202
      %1331 = vst [vmem:[%s226 + $0x54] sm:$0xf] %v1203
      %1332 = vst [vmem:[%s226 + $0x58] sm:$0xf] %v1204
      %1333 = vst [vmem:[%s226 + $0x5c] sm:$0xf] %v1205
      %1334 = vst [vmem:[%s226 + $0x60] sm:$0xf] %v1206
      %1335 = vst [vmem:[%s226 + $0x64] sm:$0xf] %v1207
      %1336 = vst [vmem:[%s226 + $0x68] sm:$0xf] %v1208
      %1337 = vst [vmem:[%s226 + $0x6c] sm:$0xf] %v1209
      %1338 = vst [vmem:[%s226 + $0x70] sm:$0xf] %v1210
      %1339 = vst [vmem:[%s226 + $0x74] sm:$0xf] %v1211
      %1340 = vst [vmem:[%s226 + $0x78] sm:$0xf] %v1212
      %1341 = vst [vmem:[%s226 + $0x7c] sm:$0xf] %v1213
      %1342 = vst [vmem:[%s226 + $0x80] sm:$0xf] %v1214
      %1343 = vst [vmem:[%s226 + $0x84] sm:$0xf] %v1215
      %1344 = vst [vmem:[%s226 + $0x88] sm:$0xf] %v1216
      %1345 = vst [vmem:[%s226 + $0x8c] sm:$0xf] %v1217
      %1346 = vst [vmem:[%s226 + $0x90] sm:$0xf] %v1218
      %1347 = vst [vmem:[%s226 + $0x94] sm:$0xf] %v1219
      %1348 = vst [vmem:[%s226 + $0x98] sm:$0xf] %v1220
      %1349 = vst [vmem:[%s226 + $0x9c] sm:$0xf] %v1221
      %1350 = vst [vmem:[%s226 + $0xa0] sm:$0xf] %v1222
      %1351 = vst [vmem:[%s226 + $0xa4] sm:$0xf] %v1223
      %1352 = vst [vmem:[%s226 + $0xa8] sm:$0xf] %v1224
      %1353 = vst [vmem:[%s226 + $0xac] sm:$0xf] %v1225
      %1354 = vst [vmem:[%s226 + $0xb0] sm:$0xf] %v1226
      %1355 = vst [vmem:[%s226 + $0xb4] sm:$0xf] %v1227
      %1356 = vst [vmem:[%s226 + $0xb8] sm:$0xf] %v1228
      %1357 = vst [vmem:[%s226 + $0xbc] sm:$0xf] %v1229
      %1358 = vst [vmem:[%s226 + $0xc0] sm:$0xf] %v1230
      %1359 = vst [vmem:[%s226 + $0xc4] sm:$0xf] %v1231
      %1360 = vst [vmem:[%s226 + $0xc8] sm:$0xf] %v1232
      %1361 = vst [vmem:[%s226 + $0xcc] sm:$0xf] %v1233
      %1362 = vst [vmem:[%s226 + $0xd0] sm:$0xf] %v1234
      %1363 = vst [vmem:[%s226 + $0xd4] sm:$0xf] %v1235
      %1364 = vst [vmem:[%s226 + $0xd8] sm:$0xf] %v1236
      %1365 = vst [vmem:[%s226 + $0xdc] sm:$0xf] %v1237
      %1366 = vst [vmem:[%s226 + $0xe0] sm:$0xf] %v1238
      %1367 = vst [vmem:[%s226 + $0xe4] sm:$0xf] %v1239
      %1368 = vst [vmem:[%s226 + $0xe8] sm:$0xf] %v1240
      %1369 = vst [vmem:[%s226 + $0xec] sm:$0xf] %v1241
      %1370 = vst [vmem:[%s226 + $0xf0] sm:$0xf] %v1242
      %1371 = vst [vmem:[%s226 + $0xf4] sm:$0xf] %v1243
      %1372 = vst [vmem:[%s226 + $0xf8] sm:$0xf] %v1244
      %1373 = vst [vmem:[%s226 + $0xfc] sm:$0xf] %v1245
      %s1374 = smul.u32 64, %s18
      %p1375 = scmp.lt.s32.totalorder %s1374, 3135
      %s1376 = scalar_select %p1375, %s1374, 3135
      %p1377 = scmp.lt.s32.totalorder %s19, 0
      %s1378 = scalar_select %p1377, %s19, 0
      %s1379 = sadd.s32 %s1378, %s1376
      %s1380 = smul.addr %s1379, 4
      %s1381 = scalar_lea.vmem %s3, %s1380
      // Predicated region
      $region33: #{_lambda_.7} parent=31 // pred_check
        %p1382 = pneg %p124
      $region34: #{_lambda_.7} parent=31 // pred_check_branch
        %1384 = sbr.rel (%p1382) target = $region36
      $region35: #{_lambda_.7} parent=31 // pred_region
        %s1385 = smul.u32 64, %s18
      $region36: #{_lambda_.7} parent=31 // pred_fallthru
        _
    $region32: #{_lambda_.7} parent=5 // pred_fallthru
      _
    %p1386 = scmp.le.s32.totalorder 2, %s9
    // Predicated region
    $region37: #{_lambda_.7} parent=5 // pred_check
      %p1387 = pneg %p1386
    $region38: #{_lambda_.7} parent=5 // pred_check_branch
      %1389 = sbr.rel (%p1387) target = $region40
    $region39: #{_lambda_.7} parent=5 // pred_region
      %s1390 = ssub.s32 %s9, 2
      // Predicated region
      $region41: #{_lambda_.7} parent=39 // pred_check
        %p1391 = pneg %p130
      $region42: #{_lambda_.7} parent=39 // pred_check_branch
        %1393 = sbr.rel (%p1391) target = $region44
      $region43: #{_lambda_.7} parent=39 // pred_region
        %s1394 = smul.u32 64, %s20
        %p1395 = scmp.lt.s32.totalorder %s1394, 3135
        %s1396 = scalar_select %p1395, %s1394, 3135
        %p1397 = scmp.lt.s32.totalorder %s21, 0
        %s1398 = scalar_select %p1397, %s21, 0
        %s1399 = sadd.s32 %s1398, %s1396
        %s1400 = smul.addr %s1399, 4
        %s1401 = scalar_lea.vmem %s3, %s1400
      $region44: #{_lambda_.7} parent=39 // pred_fallthru
        _
    $region40: #{_lambda_.7} parent=5 // pred_fallthru
      _
  $region6: #{_lambda_.7} parent=0 // loop_footer
    %s13 = sadd.s32 1, %s9
  $region7: #{_lambda_.7} parent=0 // loop_footer_branch
    %8 = sbr.rel target = $region3
  $region8: #{_lambda_.7} parent=0 // loop_exit
    _

// kernel: _lambda_.8
$region0: #{_lambda_.8}
  #allocation0 [shape = 'u32[]', space=smem, size = 0x4, offset = 0x4, fixed_abs, tag = 'smem constant byte address 0x4 - core index']
  #allocation1 [shape = 'u32[144,128]{1,0:T(1,128)}', space=vmem, size = 0x12000, scoped, tag = 'internal scratch']
  %s0 = inlined_call_operand.vmem [shape: bf16[6272,128], index: 0, kind: input, shape index: {}]
  %s1 = inlined_call_operand.vmem [shape: bf16[6272,128], index: 1, kind: input, shape index: {}]
  %s2 = inlined_call_operand.vmem [shape: bf16[6272,128], index: 2, kind: input, shape index: {}]
  %s3 = inlined_call_operand.vmem [shape: bf16[6272,128], index: 3, kind: input, shape index: {}]
  %s4 = inlined_call_operand.vmem [shape: bf16[6272,128], index: 4, kind: input, shape index: {}]
  %s5 = inlined_call_operand.vmem [shape: bf16[6272,128], index: 5, kind: input, shape index: {}]
  %s6 = inlined_call_operand.vmem [shape: bf16[6272,128], index: 6, kind: input, shape index: {}]
  %s7 = inlined_call_operand.vmem [shape: bf16[6272,128], index: 7, kind: input, shape index: {}]
  %s8 = inlined_call_operand.vmem [shape: bf16[6272,128], index: 8, kind: input, shape index: {}]
  %s9 = inlined_call_operand.vmem [shape: bf16[6272,128], index: 9, kind: output, shape index: {0}]
  %s10 = inlined_call_operand.vmem [shape: f32[1,128], index: 10, kind: output, shape index: {1}]
  %s11 = inlined_call_operand.vmem [shape: f32[1,128], index: 11, kind: output, shape index: {2}]
  %12 = xla_tuple %s9, %s10, %s11
  %s13 = sld [smem:[#allocation0]]
  $region89: #{_lambda_.8} parent=0
    _
  %s15 = ssub.s32 1, %s13
  %s16 = scalar_select 0, %s15, %s13
  loop: start=0, step=1, limit=16
  $region2: #{_lambda_.8} parent=0 // loop_pre_header
    _
  $region3: #{_lambda_.8} parent=0 // loop_header
    %s18 = sphi 0, %s22
    %p19 = scmp.ge.s32.totalorder %s18, 16
    %s28 = sphi 0, %s30
    %s31 = sphi 0, %s28
    %s32 = sphi 0, %s31
    %s48 = sphi 0, %s32
    %s54 = sphi 0, %s56
    %s57 = sphi 0, %s54
    %s58 = sphi 0, %s57
    %s74 = sphi 0, %s58
    %s80 = sphi 0, %s82
    %s83 = sphi 0, %s80
    %s84 = sphi 0, %s83
    %s100 = sphi 0, %s84
    %s106 = sphi 0, %s108
    %s109 = sphi 0, %s106
    %s110 = sphi 0, %s109
    %s126 = sphi 0, %s110
    %s132 = sphi 0, %s134
    %s135 = sphi 0, %s132
    %s136 = sphi 0, %s135
    %s152 = sphi 0, %s136
    %s158 = sphi 0, %s160
    %s161 = sphi 0, %s158
    %s162 = sphi 0, %s161
    %s178 = sphi 0, %s162
    %s184 = sphi 0, %s186
    %s187 = sphi 0, %s184
    %s188 = sphi 0, %s187
    %s204 = sphi 0, %s188
    %s210 = sphi 0, %s212
    %s213 = sphi 0, %s210
    %s214 = sphi 0, %s213
    %s230 = sphi 0, %s214
    %s236 = sphi 0, %s238
    %s239 = sphi 0, %s236
    %s240 = sphi 0, %s239
    %s256 = sphi 0, %s240
    %s262 = sphi 0, %s264
    %s265 = sphi 0, %s262
    %s266 = sphi 0, %s265
    %s282 = sphi 0, %s266
    %s286 = sphi 0, %s286
    %s288 = sphi 0, %s286
    %s289 = sphi 0, %s288
    %s303 = sphi 0, %s289
    %s307 = sphi 0, %s307
    %s309 = sphi 0, %s307
    %s310 = sphi 0, %s309
    %s324 = sphi 0, %s310
  $region4: #{_lambda_.8} parent=0 // loop_header_branch
    %21 = sbr.rel (%p19) target = $region8
  $region5: #{_lambda_.8} parent=0 // loop_body
    %s23 = ssub.s32 %s18, 1
    %s24 = ssub.s32 %s18, 2
    %s25 = sadd.s32 %s18, 1
    %s26 = ssub.s32 %s18, %s25
    %p27 = scmp.eq.s32.totalorder %s26, 0
    %s29 = sadd.s32 %s28, 1
    %s30 = scalar_select %p27, %s28, %s29
    %p33 = pneg %p27
    %p34 = scmp.eq.s32.totalorder %s18, 13
    %p35 = por %p33, %p34
    %p36 = scmp.ne.s32.totalorder %s28, %s31
    %p37 = scmp.eq.s32.totalorder %s18, 0
    %p38 = por %p36, %p37
    %p39 = scmp.ne.s32.totalorder %s28, %s31
    %p40 = scmp.eq.s32.totalorder %s23, 13
    %p41 = por %p39, %p40
    %p42 = scmp.ne.s32.totalorder %s31, %s32
    %p43 = scmp.eq.s32.totalorder %s23, 0
    %p44 = por %p42, %p43
    %p45 = scmp.ne.s32.totalorder %s31, %s32
    %p46 = scmp.eq.s32.totalorder %s24, 13
    %p47 = por %p45, %p46
    %p49 = scmp.ne.s32.totalorder %s32, %s48
    %p50 = scmp.eq.s32.totalorder %s24, 0
    %p51 = por %p49, %p50
    %s52 = ssub.s32 %s18, %s25
    %p53 = scmp.eq.s32.totalorder %s52, 0
    %s55 = sadd.s32 %s54, 1
    %s56 = scalar_select %p53, %s54, %s55
    %p59 = pneg %p53
    %p60 = scmp.eq.s32.totalorder %s18, 13
    %p61 = por %p59, %p60
    %p62 = scmp.ne.s32.totalorder %s54, %s57
    %p63 = scmp.eq.s32.totalorder %s18, 0
    %p64 = por %p62, %p63
    %p65 = scmp.ne.s32.totalorder %s54, %s57
    %p66 = scmp.eq.s32.totalorder %s23, 13
    %p67 = por %p65, %p66
    %p68 = scmp.ne.s32.totalorder %s57, %s58
    %p69 = scmp.eq.s32.totalorder %s23, 0
    %p70 = por %p68, %p69
    %p71 = scmp.ne.s32.totalorder %s57, %s58
    %p72 = scmp.eq.s32.totalorder %s24, 13
    %p73 = por %p71, %p72
    %p75 = scmp.ne.s32.totalorder %s58, %s74
    %p76 = scmp.eq.s32.totalorder %s24, 0
    %p77 = por %p75, %p76
    %s78 = ssub.s32 %s18, %s25
    %p79 = scmp.eq.s32.totalorder %s78, 0
    %s81 = sadd.s32 %s80, 1
    %s82 = scalar_select %p79, %s80, %s81
    %p85 = pneg %p79
    %p86 = scmp.eq.s32.totalorder %s18, 13
    %p87 = por %p85, %p86
    %p88 = scmp.ne.s32.totalorder %s80, %s83
    %p89 = scmp.eq.s32.totalorder %s18, 0
    %p90 = por %p88, %p89
    %p91 = scmp.ne.s32.totalorder %s80, %s83
    %p92 = scmp.eq.s32.totalorder %s23, 13
    %p93 = por %p91, %p92
    %p94 = scmp.ne.s32.totalorder %s83, %s84
    %p95 = scmp.eq.s32.totalorder %s23, 0
    %p96 = por %p94, %p95
    %p97 = scmp.ne.s32.totalorder %s83, %s84
    %p98 = scmp.eq.s32.totalorder %s24, 13
    %p99 = por %p97, %p98
    %p101 = scmp.ne.s32.totalorder %s84, %s100
    %p102 = scmp.eq.s32.totalorder %s24, 0
    %p103 = por %p101, %p102
    %s104 = ssub.s32 %s18, %s25
    %p105 = scmp.eq.s32.totalorder %s104, 0
    %s107 = sadd.s32 %s106, 1
    %s108 = scalar_select %p105, %s106, %s107
    %p111 = pneg %p105
    %p112 = scmp.eq.s32.totalorder %s18, 13
    %p113 = por %p111, %p112
    %p114 = scmp.ne.s32.totalorder %s106, %s109
    %p115 = scmp.eq.s32.totalorder %s18, 0
    %p116 = por %p114, %p115
    %p117 = scmp.ne.s32.totalorder %s106, %s109
    %p118 = scmp.eq.s32.totalorder %s23, 13
    %p119 = por %p117, %p118
    %p120 = scmp.ne.s32.totalorder %s109, %s110
    %p121 = scmp.eq.s32.totalorder %s23, 0
    %p122 = por %p120, %p121
    %p123 = scmp.ne.s32.totalorder %s109, %s110
    %p124 = scmp.eq.s32.totalorder %s24, 13
    %p125 = por %p123, %p124
    %p127 = scmp.ne.s32.totalorder %s110, %s126
    %p128 = scmp.eq.s32.totalorder %s24, 0
    %p129 = por %p127, %p128
    %s130 = ssub.s32 %s18, %s25
    %p131 = scmp.eq.s32.totalorder %s130, 0
    %s133 = sadd.s32 %s132, 1
    %s134 = scalar_select %p131, %s132, %s133
    %p137 = pneg %p131
    %p138 = scmp.eq.s32.totalorder %s18, 13
    %p139 = por %p137, %p138
    %p140 = scmp.ne.s32.totalorder %s132, %s135
    %p141 = scmp.eq.s32.totalorder %s18, 0
    %p142 = por %p140, %p141
    %p143 = scmp.ne.s32.totalorder %s132, %s135
    %p144 = scmp.eq.s32.totalorder %s23, 13
    %p145 = por %p143, %p144
    %p146 = scmp.ne.s32.totalorder %s135, %s136
    %p147 = scmp.eq.s32.totalorder %s23, 0
    %p148 = por %p146, %p147
    %p149 = scmp.ne.s32.totalorder %s135, %s136
    %p150 = scmp.eq.s32.totalorder %s24, 13
    %p151 = por %p149, %p150
    %p153 = scmp.ne.s32.totalorder %s136, %s152
    %p154 = scmp.eq.s32.totalorder %s24, 0
    %p155 = por %p153, %p154
    %s156 = ssub.s32 %s18, %s25
    %p157 = scmp.eq.s32.totalorder %s156, 0
    %s159 = sadd.s32 %s158, 1
    %s160 = scalar_select %p157, %s158, %s159
    %p163 = pneg %p157
    %p164 = scmp.eq.s32.totalorder %s18, 13
    %p165 = por %p163, %p164
    %p166 = scmp.ne.s32.totalorder %s158, %s161
    %p167 = scmp.eq.s32.totalorder %s18, 0
    %p168 = por %p166, %p167
    %p169 = scmp.ne.s32.totalorder %s158, %s161
    %p170 = scmp.eq.s32.totalorder %s23, 13
    %p171 = por %p169, %p170
    %p172 = scmp.ne.s32.totalorder %s161, %s162
    %p173 = scmp.eq.s32.totalorder %s23, 0
    %p174 = por %p172, %p173
    %p175 = scmp.ne.s32.totalorder %s161, %s162
    %p176 = scmp.eq.s32.totalorder %s24, 13
    %p177 = por %p175, %p176
    %p179 = scmp.ne.s32.totalorder %s162, %s178
    %p180 = scmp.eq.s32.totalorder %s24, 0
    %p181 = por %p179, %p180
    %s182 = ssub.s32 %s18, %s25
    %p183 = scmp.eq.s32.totalorder %s182, 0
    %s185 = sadd.s32 %s184, 1
    %s186 = scalar_select %p183, %s184, %s185
    %p189 = pneg %p183
    %p190 = scmp.eq.s32.totalorder %s18, 13
    %p191 = por %p189, %p190
    %p192 = scmp.ne.s32.totalorder %s184, %s187
    %p193 = scmp.eq.s32.totalorder %s18, 0
    %p194 = por %p192, %p193
    %p195 = scmp.ne.s32.totalorder %s184, %s187
    %p196 = scmp.eq.s32.totalorder %s23, 13
    %p197 = por %p195, %p196
    %p198 = scmp.ne.s32.totalorder %s187, %s188
    %p199 = scmp.eq.s32.totalorder %s23, 0
    %p200 = por %p198, %p199
    %p201 = scmp.ne.s32.totalorder %s187, %s188
    %p202 = scmp.eq.s32.totalorder %s24, 13
    %p203 = por %p201, %p202
    %p205 = scmp.ne.s32.totalorder %s188, %s204
    %p206 = scmp.eq.s32.totalorder %s24, 0
    %p207 = por %p205, %p206
    %s208 = ssub.s32 %s18, %s25
    %p209 = scmp.eq.s32.totalorder %s208, 0
    %s211 = sadd.s32 %s210, 1
    %s212 = scalar_select %p209, %s210, %s211
    %p215 = pneg %p209
    %p216 = scmp.eq.s32.totalorder %s18, 13
    %p217 = por %p215, %p216
    %p218 = scmp.ne.s32.totalorder %s210, %s213
    %p219 = scmp.eq.s32.totalorder %s18, 0
    %p220 = por %p218, %p219
    %p221 = scmp.ne.s32.totalorder %s210, %s213
    %p222 = scmp.eq.s32.totalorder %s23, 13
    %p223 = por %p221, %p222
    %p224 = scmp.ne.s32.totalorder %s213, %s214
    %p225 = scmp.eq.s32.totalorder %s23, 0
    %p226 = por %p224, %p225
    %p227 = scmp.ne.s32.totalorder %s213, %s214
    %p228 = scmp.eq.s32.totalorder %s24, 13
    %p229 = por %p227, %p228
    %p231 = scmp.ne.s32.totalorder %s214, %s230
    %p232 = scmp.eq.s32.totalorder %s24, 0
    %p233 = por %p231, %p232
    %s234 = ssub.s32 %s18, %s25
    %p235 = scmp.eq.s32.totalorder %s234, 0
    %s237 = sadd.s32 %s236, 1
    %s238 = scalar_select %p235, %s236, %s237
    %p241 = pneg %p235
    %p242 = scmp.eq.s32.totalorder %s18, 13
    %p243 = por %p241, %p242
    %p244 = scmp.ne.s32.totalorder %s236, %s239
    %p245 = scmp.eq.s32.totalorder %s18, 0
    %p246 = por %p244, %p245
    %p247 = scmp.ne.s32.totalorder %s236, %s239
    %p248 = scmp.eq.s32.totalorder %s23, 13
    %p249 = por %p247, %p248
    %p250 = scmp.ne.s32.totalorder %s239, %s240
    %p251 = scmp.eq.s32.totalorder %s23, 0
    %p252 = por %p250, %p251
    %p253 = scmp.ne.s32.totalorder %s239, %s240
    %p254 = scmp.eq.s32.totalorder %s24, 13
    %p255 = por %p253, %p254
    %p257 = scmp.ne.s32.totalorder %s240, %s256
    %p258 = scmp.eq.s32.totalorder %s24, 0
    %p259 = por %p257, %p258
    %s260 = ssub.s32 %s18, %s25
    %p261 = scmp.eq.s32.totalorder %s260, 0
    %s263 = sadd.s32 %s262, 1
    %s264 = scalar_select %p261, %s262, %s263
    %p267 = pneg %p261
    %p268 = scmp.eq.s32.totalorder %s18, 13
    %p269 = por %p267, %p268
    %p270 = scmp.ne.s32.totalorder %s262, %s265
    %p271 = scmp.eq.s32.totalorder %s18, 0
    %p272 = por %p270, %p271
    %p273 = scmp.ne.s32.totalorder %s262, %s265
    %p274 = scmp.eq.s32.totalorder %s23, 13
    %p275 = por %p273, %p274
    %p276 = scmp.ne.s32.totalorder %s265, %s266
    %p277 = scmp.eq.s32.totalorder %s23, 0
    %p278 = por %p276, %p277
    %p279 = scmp.ne.s32.totalorder %s265, %s266
    %p280 = scmp.eq.s32.totalorder %s24, 13
    %p281 = por %p279, %p280
    %p283 = scmp.ne.s32.totalorder %s266, %s282
    %p284 = scmp.eq.s32.totalorder %s24, 0
    %p285 = por %p283, %p284
    %s287 = sadd.s32 %s286, 1
    %p290 = scmp.eq.s32.totalorder %s18, 13
    %p291 = scmp.ne.s32.totalorder %s286, %s288
    %p292 = scmp.eq.s32.totalorder %s18, 0
    %p293 = por %p291, %p292
    %p294 = scmp.ne.s32.totalorder %s286, %s288
    %p295 = scmp.eq.s32.totalorder %s23, 13
    %p296 = por %p294, %p295
    %p297 = scmp.ne.s32.totalorder %s288, %s289
    %p298 = scmp.eq.s32.totalorder %s23, 0
    %p299 = por %p297, %p298
    %p300 = scmp.ne.s32.totalorder %s288, %s289
    %p301 = scmp.eq.s32.totalorder %s24, 13
    %p302 = por %p300, %p301
    %p304 = scmp.ne.s32.totalorder %s289, %s303
    %p305 = scmp.eq.s32.totalorder %s24, 0
    %p306 = por %p304, %p305
    %s308 = sadd.s32 %s307, 1
    %p311 = scmp.eq.s32.totalorder %s18, 13
    %p312 = scmp.ne.s32.totalorder %s307, %s309
    %p313 = scmp.eq.s32.totalorder %s18, 0
    %p314 = por %p312, %p313
    %p315 = scmp.ne.s32.totalorder %s307, %s309
    %p316 = scmp.eq.s32.totalorder %s23, 13
    %p317 = por %p315, %p316
    %p318 = scmp.ne.s32.totalorder %s309, %s310
    %p319 = scmp.eq.s32.totalorder %s23, 0
    %p320 = por %p318, %p319
    %p321 = scmp.ne.s32.totalorder %s309, %s310
    %p322 = scmp.eq.s32.totalorder %s24, 13
    %p323 = por %p321, %p322
    %p325 = scmp.ne.s32.totalorder %s310, %s324
    %p326 = scmp.eq.s32.totalorder %s24, 0
    %p327 = por %p325, %p326
    %p328 = scmp.le.s32.totalorder 1, %s18
    %p329 = scmp.lt.s32.totalorder %s18, 15
    %p330 = pnand %p328, %p329
    %p331 = pneg %p330
    // Predicated region
    $region9: #{_lambda_.8} parent=5 // pred_check
      _
    $region10: #{_lambda_.8} parent=5 // pred_check_branch
      %333 = sbr.rel (%p330) target = $region12
    $region11: #{_lambda_.8} parent=5 // pred_region
      %s334 = ssub.s32 %s18, 1
    $region12: #{_lambda_.8} parent=5 // pred_fallthru
      _
    %p335 = scmp.lt.s32.totalorder %s18, 14
    // Predicated region
    $region13: #{_lambda_.8} parent=5 // pred_check
      %p336 = pneg %p335
    $region14: #{_lambda_.8} parent=5 // pred_check_branch
      %338 = sbr.rel (%p336) target = $region16
    $region15: #{_lambda_.8} parent=5 // pred_region
      // Predicated region
      $region17: #{_lambda_.8} parent=15 // pred_check
        %p339 = pneg %p38
      $region18: #{_lambda_.8} parent=15 // pred_check_branch
        %341 = sbr.rel (%p339) target = $region20
      $region19: #{_lambda_.8} parent=15 // pred_region
        %s342 = smul.u32 56, %s18
        %p343 = scmp.lt.s32.totalorder %s342, 783
        %s344 = scalar_select %p343, %s342, 783
        %s345 = smul.addr %s344, 4
        %s346 = scalar_lea.vmem %s0, %s345
        %s347 = smul.u32 56, %s18
      $region20: #{_lambda_.8} parent=15 // pred_fallthru
        _
      // Predicated region
      $region21: #{_lambda_.8} parent=15 // pred_check
        %p348 = pneg %p64
      $region22: #{_lambda_.8} parent=15 // pred_check_branch
        %350 = sbr.rel (%p348) target = $region24
      $region23: #{_lambda_.8} parent=15 // pred_region
        %s351 = smul.u32 56, %s18
        %p352 = scmp.lt.s32.totalorder %s351, 783
        %s353 = scalar_select %p352, %s351, 783
        %s354 = smul.addr %s353, 4
        %s355 = scalar_lea.vmem %s1, %s354
        %s356 = smul.u32 56, %s18
      $region24: #{_lambda_.8} parent=15 // pred_fallthru
        _
      // Predicated region
      $region25: #{_lambda_.8} parent=15 // pred_check
        %p357 = pneg %p90
      $region26: #{_lambda_.8} parent=15 // pred_check_branch
        %359 = sbr.rel (%p357) target = $region28
      $region27: #{_lambda_.8} parent=15 // pred_region
        %s360 = smul.u32 56, %s18
        %p361 = scmp.lt.s32.totalorder %s360, 783
        %s362 = scalar_select %p361, %s360, 783
        %s363 = smul.addr %s362, 4
        %s364 = scalar_lea.vmem %s2, %s363
        %s365 = smul.u32 56, %s18
      $region28: #{_lambda_.8} parent=15 // pred_fallthru
        _
      // Predicated region
      $region29: #{_lambda_.8} parent=15 // pred_check
        %p366 = pneg %p116
      $region30: #{_lambda_.8} parent=15 // pred_check_branch
        %368 = sbr.rel (%p366) target = $region32
      $region31: #{_lambda_.8} parent=15 // pred_region
        %s369 = smul.u32 56, %s18
        %p370 = scmp.lt.s32.totalorder %s369, 783
        %s371 = scalar_select %p370, %s369, 783
        %s372 = smul.addr %s371, 4
        %s373 = scalar_lea.vmem %s3, %s372
        %s374 = smul.u32 56, %s18
      $region32: #{_lambda_.8} parent=15 // pred_fallthru
        _
      // Predicated region
      $region33: #{_lambda_.8} parent=15 // pred_check
        %p375 = pneg %p142
      $region34: #{_lambda_.8} parent=15 // pred_check_branch
        %377 = sbr.rel (%p375) target = $region36
      $region35: #{_lambda_.8} parent=15 // pred_region
        %s378 = smul.u32 56, %s18
        %p379 = scmp.lt.s32.totalorder %s378, 783
        %s380 = scalar_select %p379, %s378, 783
        %s381 = smul.addr %s380, 4
        %s382 = scalar_lea.vmem %s4, %s381
        %s383 = smul.u32 56, %s18
      $region36: #{_lambda_.8} parent=15 // pred_fallthru
        _
      // Predicated region
      $region37: #{_lambda_.8} parent=15 // pred_check
        %p384 = pneg %p168
      $region38: #{_lambda_.8} parent=15 // pred_check_branch
        %386 = sbr.rel (%p384) target = $region40
      $region39: #{_lambda_.8} parent=15 // pred_region
        %s387 = smul.u32 56, %s18
        %p388 = scmp.lt.s32.totalorder %s387, 783
        %s389 = scalar_select %p388, %s387, 783
        %s390 = smul.addr %s389, 4
        %s391 = scalar_lea.vmem %s5, %s390
        %s392 = smul.u32 56, %s18
      $region40: #{_lambda_.8} parent=15 // pred_fallthru
        _
      // Predicated region
      $region41: #{_lambda_.8} parent=15 // pred_check
        %p393 = pneg %p194
      $region42: #{_lambda_.8} parent=15 // pred_check_branch
        %395 = sbr.rel (%p393) target = $region44
      $region43: #{_lambda_.8} parent=15 // pred_region
        %s396 = smul.u32 56, %s18
        %p397 = scmp.lt.s32.totalorder %s396, 783
        %s398 = scalar_select %p397, %s396, 783
        %s399 = smul.addr %s398, 4
        %s400 = scalar_lea.vmem %s6, %s399
        %s401 = smul.u32 56, %s18
      $region44: #{_lambda_.8} parent=15 // pred_fallthru
        _
      // Predicated region
      $region45: #{_lambda_.8} parent=15 // pred_check
        %p402 = pneg %p220
      $region46: #{_lambda_.8} parent=15 // pred_check_branch
        %404 = sbr.rel (%p402) target = $region48
      $region47: #{_lambda_.8} parent=15 // pred_region
        %s405 = smul.u32 56, %s18
        %p406 = scmp.lt.s32.totalorder %s405, 783
        %s407 = scalar_select %p406, %s405, 783
        %s408 = smul.addr %s407, 4
        %s409 = scalar_lea.vmem %s7, %s408
        %s410 = smul.u32 56, %s18
      $region48: #{_lambda_.8} parent=15 // pred_fallthru
        _
      // Predicated region
      $region49: #{_lambda_.8} parent=15 // pred_check
        %p411 = pneg %p246
      $region50: #{_lambda_.8} parent=15 // pred_check_branch
        %413 = sbr.rel (%p411) target = $region52
      $region51: #{_lambda_.8} parent=15 // pred_region
        %s414 = smul.u32 56, %s18
        %p415 = scmp.lt.s32.totalorder %s414, 783
        %s416 = scalar_select %p415, %s414, 783
        %s417 = smul.addr %s416, 4
        %s418 = scalar_lea.vmem %s8, %s417
        %s419 = smul.u32 56, %s18
      $region52: #{_lambda_.8} parent=15 // pred_fallthru
        _
    $region16: #{_lambda_.8} parent=5 // pred_fallthru
      _
    %p420 = scmp.le.s32.totalorder 1, %s18
    %p421 = scmp.lt.s32.totalorder %s18, 15
    %p422 = pnand %p420, %p421
    %p423 = pneg %p422
    // Predicated region
    $region53: #{_lambda_.8} parent=5 // pred_check
      _
    $region54: #{_lambda_.8} parent=5 // pred_check_branch
      %425 = sbr.rel (%p422) target = $region56
    $region55: #{_lambda_.8} parent=5 // pred_region
      %s426 = ssub.s32 %s18, 1
      %s427 = smul.u32 56, %s23
      %p428 = scmp.lt.s32.totalorder %s427, 783
      %s429 = scalar_select %p428, %s427, 783
      %s430 = smul.addr %s429, 4
      %s431 = scalar_lea.vmem %s0, %s430
      %p432 = pneg %p44
      %p433 = pneg %p41
      %s434 = smul.u32 56, %s23
      %p435 = scmp.lt.s32.totalorder %s434, 783
      %s436 = scalar_select %p435, %s434, 783
      %s437 = smul.addr %s436, 4
      %s438 = scalar_lea.vmem %s1, %s437
      %p439 = pneg %p70
      %p440 = pneg %p67
      %s441 = smul.u32 56, %s23
      %p442 = scmp.lt.s32.totalorder %s441, 783
      %s443 = scalar_select %p442, %s441, 783
      %s444 = smul.addr %s443, 4
      %s445 = scalar_lea.vmem %s2, %s444
      %p446 = pneg %p96
      %p447 = pneg %p93
      %s448 = smul.u32 56, %s23
      %p449 = scmp.lt.s32.totalorder %s448, 783
      %s450 = scalar_select %p449, %s448, 783
      %s451 = smul.addr %s450, 4
      %s452 = scalar_lea.vmem %s3, %s451
      %p453 = pneg %p122
      %p454 = pneg %p119
      %s455 = smul.u32 56, %s23
      %p456 = scmp.lt.s32.totalorder %s455, 783
      %s457 = scalar_select %p456, %s455, 783
      %s458 = smul.addr %s457, 4
      %s459 = scalar_lea.vmem %s4, %s458
      %p460 = pneg %p148
      %p461 = pneg %p145
      %s462 = smul.u32 56, %s23
      %p463 = scmp.lt.s32.totalorder %s462, 783
      %s464 = scalar_select %p463, %s462, 783
      %s465 = smul.addr %s464, 4
      %s466 = scalar_lea.vmem %s5, %s465
      %p467 = pneg %p174
      %p468 = pneg %p171
      %s469 = smul.u32 56, %s23
      %p470 = scmp.lt.s32.totalorder %s469, 783
      %s471 = scalar_select %p470, %s469, 783
      %s472 = smul.addr %s471, 4
      %s473 = scalar_lea.vmem %s6, %s472
      %p474 = pneg %p200
      %p475 = pneg %p197
      %s476 = smul.u32 56, %s23
      %p477 = scmp.lt.s32.totalorder %s476, 783
      %s478 = scalar_select %p477, %s476, 783
      %s479 = smul.addr %s478, 4
      %s480 = scalar_lea.vmem %s7, %s479
      %p481 = pneg %p226
      %p482 = pneg %p223
      %s483 = smul.u32 56, %s23
      %p484 = scmp.lt.s32.totalorder %s483, 783
      %s485 = scalar_select %p484, %s483, 783
      %s486 = smul.addr %s485, 4
      %s487 = scalar_lea.vmem %s8, %s486
      %p488 = pneg %p252
      %p489 = pneg %p249
      %p490 = pneg %p278
      %p491 = pneg %p275
      %s492 = smul.u32 56, %s23
      %p493 = scmp.lt.s32.totalorder %s492, 783
      %s494 = scalar_select %p493, %s492, 783
      %s495 = smul.addr %s494, 4
      %s496 = scalar_lea.vmem %s9, %s495
      %p497 = pneg %p299
      %p498 = pneg %p296
      %p499 = pneg %p320
      %p500 = pneg %p317
      %s501 = smul.u32 56, %s23
      %p502 = scmp.lt.s32.totalorder %s501, 783
      %s503 = scalar_select %p502, %s501, 783
      %s504 = smul.addr %s503, 4
      %s505 = scalar_lea.vmem %s0, %s504
      %s506 = smul.u32 56, %s23
      %s507 = smul.u32 56, %s23
      %p508 = scmp.lt.s32.totalorder %s507, 783
      %s509 = scalar_select %p508, %s507, 783
      %s510 = smul.addr %s509, 4
      %s511 = scalar_lea.vmem %s1, %s510
      %s512 = smul.u32 56, %s23
      %s513 = smul.u32 56, %s23
      %p514 = scmp.lt.s32.totalorder %s513, 783
      %s515 = scalar_select %p514, %s513, 783
      %s516 = smul.addr %s515, 4
      %s517 = scalar_lea.vmem %s2, %s516
      %s518 = smul.u32 56, %s23
      %s519 = smul.u32 56, %s23
      %p520 = scmp.lt.s32.totalorder %s519, 783
      %s521 = scalar_select %p520, %s519, 783
      %s522 = smul.addr %s521, 4
      %s523 = scalar_lea.vmem %s3, %s522
      %s524 = smul.u32 56, %s23
      %s525 = smul.u32 56, %s23
      %p526 = scmp.lt.s32.totalorder %s525, 783
      %s527 = scalar_select %p526, %s525, 783
      %s528 = smul.addr %s527, 4
      %s529 = scalar_lea.vmem %s4, %s528
      %s530 = smul.u32 56, %s23
      %s531 = smul.u32 56, %s23
      %p532 = scmp.lt.s32.totalorder %s531, 783
      %s533 = scalar_select %p532, %s531, 783
      %s534 = smul.addr %s533, 4
      %s535 = scalar_lea.vmem %s5, %s534
      %s536 = smul.u32 56, %s23
      %s537 = smul.u32 56, %s23
      %p538 = scmp.lt.s32.totalorder %s537, 783
      %s539 = scalar_select %p538, %s537, 783
      %s540 = smul.addr %s539, 4
      %s541 = scalar_lea.vmem %s6, %s540
      %s542 = smul.u32 56, %s23
      %s543 = smul.u32 56, %s23
      %p544 = scmp.lt.s32.totalorder %s543, 783
      %s545 = scalar_select %p544, %s543, 783
      %s546 = smul.addr %s545, 4
      %s547 = scalar_lea.vmem %s7, %s546
      %s548 = smul.u32 56, %s23
      %s549 = smul.u32 56, %s23
      %p550 = scmp.lt.s32.totalorder %s549, 783
      %s551 = scalar_select %p550, %s549, 783
      %s552 = smul.addr %s551, 4
      %s553 = scalar_lea.vmem %s8, %s552
      %s554 = smul.u32 56, %s23
      %s555 = smul.u32 56, %s23
      %p556 = scmp.lt.s32.totalorder %s555, 783
      %s557 = scalar_select %p556, %s555, 783
      %s558 = smul.addr %s557, 4
      %s559 = scalar_lea.vmem %s9, %s558
      %s560 = smul.u32 56, %s23
      %v561 = vld [vmem:[%s505] sm:$0xf]
      %v562 = vld [vmem:[%s505 + $0x4] sm:$0xf]
      %v563 = vld [vmem:[%s505 + $0x8] sm:$0xf]
      %v564 = vld [vmem:[%s505 + $0xc] sm:$0xf]
      %v565 = vld [vmem:[%s505 + $0x10] sm:$0xf]
      %v566 = vld [vmem:[%s505 + $0x14] sm:$0xf]
      %v567 = vld [vmem:[%s505 + $0x18] sm:$0xf]
      %v568 = vld [vmem:[%s505 + $0x1c] sm:$0xf]
      %v569 = vld [vmem:[%s505 + $0x20] sm:$0xf]
      %v570 = vld [vmem:[%s505 + $0x24] sm:$0xf]
      %v571 = vld [vmem:[%s505 + $0x28] sm:$0xf]
      %v572 = vld [vmem:[%s505 + $0x2c] sm:$0xf]
      %v573 = vld [vmem:[%s505 + $0x30] sm:$0xf]
      %v574 = vld [vmem:[%s505 + $0x34] sm:$0xf]
      %v575 = vld [vmem:[%s505 + $0x38] sm:$0xf]
      %v576 = vld [vmem:[%s505 + $0x3c] sm:$0xf]
      %v577 = vld [vmem:[%s505 + $0x40] sm:$0xf]
      %v578 = vld [vmem:[%s505 + $0x44] sm:$0xf]
      %v579 = vld [vmem:[%s505 + $0x48] sm:$0xf]
      %v580 = vld [vmem:[%s505 + $0x4c] sm:$0xf]
      %v581 = vld [vmem:[%s505 + $0x50] sm:$0xf]
      %v582 = vld [vmem:[%s505 + $0x54] sm:$0xf]
      %v583 = vld [vmem:[%s505 + $0x58] sm:$0xf]
      %v584 = vld [vmem:[%s505 + $0x5c] sm:$0xf]
      %v585 = vld [vmem:[%s505 + $0x60] sm:$0xf]
      %v586 = vld [vmem:[%s505 + $0x64] sm:$0xf]
      %v587 = vld [vmem:[%s505 + $0x68] sm:$0xf]
      %v588 = vld [vmem:[%s505 + $0x6c] sm:$0xf]
      %v589 = vld [vmem:[%s505 + $0x70] sm:$0xf]
      %v590 = vld [vmem:[%s505 + $0x74] sm:$0xf]
      %v591 = vld [vmem:[%s505 + $0x78] sm:$0xf]
      %v592 = vld [vmem:[%s505 + $0x7c] sm:$0xf]
      %v593 = vld [vmem:[%s505 + $0x80] sm:$0xf]
      %v594 = vld [vmem:[%s505 + $0x84] sm:$0xf]
      %v595 = vld [vmem:[%s505 + $0x88] sm:$0xf]
      %v596 = vld [vmem:[%s505 + $0x8c] sm:$0xf]
      %v597 = vld [vmem:[%s505 + $0x90] sm:$0xf]
      %v598 = vld [vmem:[%s505 + $0x94] sm:$0xf]
      %v599 = vld [vmem:[%s505 + $0x98] sm:$0xf]
      %v600 = vld [vmem:[%s505 + $0x9c] sm:$0xf]
      %v601 = vld [vmem:[%s505 + $0xa0] sm:$0xf]
      %v602 = vld [vmem:[%s505 + $0xa4] sm:$0xf]
      %v603 = vld [vmem:[%s505 + $0xa8] sm:$0xf]
      %v604 = vld [vmem:[%s505 + $0xac] sm:$0xf]
      %v605 = vld [vmem:[%s505 + $0xb0] sm:$0xf]
      %v606 = vld [vmem:[%s505 + $0xb4] sm:$0xf]
      %v607 = vld [vmem:[%s505 + $0xb8] sm:$0xf]
      %v608 = vld [vmem:[%s505 + $0xbc] sm:$0xf]
      %v609 = vld [vmem:[%s505 + $0xc0] sm:$0xf]
      %v610 = vld [vmem:[%s505 + $0xc4] sm:$0xf]
      %v611 = vld [vmem:[%s505 + $0xc8] sm:$0xf]
      %v612 = vld [vmem:[%s505 + $0xcc] sm:$0xf]
      %v613 = vld [vmem:[%s505 + $0xd0] sm:$0xf]
      %v614 = vld [vmem:[%s505 + $0xd4] sm:$0xf]
      %v615 = vld [vmem:[%s505 + $0xd8] sm:$0xf]
      %v616 = vld [vmem:[%s505 + $0xdc] sm:$0xf]
      %v617 = vld [vmem:[%s511] sm:$0xf]
      %v618 = vld [vmem:[%s511 + $0x4] sm:$0xf]
      %v619 = vld [vmem:[%s511 + $0x8] sm:$0xf]
      %v620 = vld [vmem:[%s511 + $0xc] sm:$0xf]
      %v621 = vld [vmem:[%s511 + $0x10] sm:$0xf]
      %v622 = vld [vmem:[%s511 + $0x14] sm:$0xf]
      %v623 = vld [vmem:[%s511 + $0x18] sm:$0xf]
      %v624 = vld [vmem:[%s511 + $0x1c] sm:$0xf]
      %v625 = vld [vmem:[%s511 + $0x20] sm:$0xf]
      %v626 = vld [vmem:[%s511 + $0x24] sm:$0xf]
      %v627 = vld [vmem:[%s511 + $0x28] sm:$0xf]
      %v628 = vld [vmem:[%s511 + $0x2c] sm:$0xf]
      %v629 = vld [vmem:[%s511 + $0x30] sm:$0xf]
      %v630 = vld [vmem:[%s511 + $0x34] sm:$0xf]
      %v631 = vld [vmem:[%s511 + $0x38] sm:$0xf]
      %v632 = vld [vmem:[%s511 + $0x3c] sm:$0xf]
      %v633 = vld [vmem:[%s511 + $0x40] sm:$0xf]
      %v634 = vld [vmem:[%s511 + $0x44] sm:$0xf]
      %v635 = vld [vmem:[%s511 + $0x48] sm:$0xf]
      %v636 = vld [vmem:[%s511 + $0x4c] sm:$0xf]
      %v637 = vld [vmem:[%s511 + $0x50] sm:$0xf]
      %v638 = vld [vmem:[%s511 + $0x54] sm:$0xf]
      %v639 = vld [vmem:[%s511 + $0x58] sm:$0xf]
      %v640 = vld [vmem:[%s511 + $0x5c] sm:$0xf]
      %v641 = vld [vmem:[%s511 + $0x60] sm:$0xf]
      %v642 = vld [vmem:[%s511 + $0x64] sm:$0xf]
      %v643 = vld [vmem:[%s511 + $0x68] sm:$0xf]
      %v644 = vld [vmem:[%s511 + $0x6c] sm:$0xf]
      %v645 = vld [vmem:[%s511 + $0x70] sm:$0xf]
      %v646 = vld [vmem:[%s511 + $0x74] sm:$0xf]
      %v647 = vld [vmem:[%s511 + $0x78] sm:$0xf]
      %v648 = vld [vmem:[%s511 + $0x7c] sm:$0xf]
      %v649 = vld [vmem:[%s511 + $0x80] sm:$0xf]
      %v650 = vld [vmem:[%s511 + $0x84] sm:$0xf]
      %v651 = vld [vmem:[%s511 + $0x88] sm:$0xf]
      %v652 = vld [vmem:[%s511 + $0x8c] sm:$0xf]
      %v653 = vld [vmem:[%s511 + $0x90] sm:$0xf]
      %v654 = vld [vmem:[%s511 + $0x94] sm:$0xf]
      %v655 = vld [vmem:[%s511 + $0x98] sm:$0xf]
      %v656 = vld [vmem:[%s511 + $0x9c] sm:$0xf]
      %v657 = vld [vmem:[%s511 + $0xa0] sm:$0xf]
      %v658 = vld [vmem:[%s511 + $0xa4] sm:$0xf]
      %v659 = vld [vmem:[%s511 + $0xa8] sm:$0xf]
      %v660 = vld [vmem:[%s511 + $0xac] sm:$0xf]
      %v661 = vld [vmem:[%s511 + $0xb0] sm:$0xf]
      %v662 = vld [vmem:[%s511 + $0xb4] sm:$0xf]
      %v663 = vld [vmem:[%s511 + $0xb8] sm:$0xf]
      %v664 = vld [vmem:[%s511 + $0xbc] sm:$0xf]
      %v665 = vld [vmem:[%s511 + $0xc0] sm:$0xf]
      %v666 = vld [vmem:[%s511 + $0xc4] sm:$0xf]
      %v667 = vld [vmem:[%s511 + $0xc8] sm:$0xf]
      %v668 = vld [vmem:[%s511 + $0xcc] sm:$0xf]
      %v669 = vld [vmem:[%s511 + $0xd0] sm:$0xf]
      %v670 = vld [vmem:[%s511 + $0xd4] sm:$0xf]
      %v671 = vld [vmem:[%s511 + $0xd8] sm:$0xf]
      %v672 = vld [vmem:[%s511 + $0xdc] sm:$0xf]
      %v673 = vmax.bf16 %v561, %v617
      %v674 = vmax.bf16 %v562, %v618
      %v675 = vmax.bf16 %v563, %v619
      %v676 = vmax.bf16 %v564, %v620
      %v677 = vmax.bf16 %v565, %v621
      %v678 = vmax.bf16 %v566, %v622
      %v679 = vmax.bf16 %v567, %v623
      %v680 = vmax.bf16 %v568, %v624
      %v681 = vmax.bf16 %v569, %v625
      %v682 = vmax.bf16 %v570, %v626
      %v683 = vmax.bf16 %v571, %v627
      %v684 = vmax.bf16 %v572, %v628
      %v685 = vmax.bf16 %v573, %v629
      %v686 = vmax.bf16 %v574, %v630
      %v687 = vmax.bf16 %v575, %v631
      %v688 = vmax.bf16 %v576, %v632
      %v689 = vmax.bf16 %v577, %v633
      %v690 = vmax.bf16 %v578, %v634
      %v691 = vmax.bf16 %v579, %v635
      %v692 = vmax.bf16 %v580, %v636
      %v693 = vmax.bf16 %v581, %v637
      %v694 = vmax.bf16 %v582, %v638
      %v695 = vmax.bf16 %v583, %v639
      %v696 = vmax.bf16 %v584, %v640
      %v697 = vmax.bf16 %v585, %v641
      %v698 = vmax.bf16 %v586, %v642
      %v699 = vmax.bf16 %v587, %v643
      %v700 = vmax.bf16 %v588, %v644
      %v701 = vmax.bf16 %v589, %v645
      %v702 = vmax.bf16 %v590, %v646
      %v703 = vmax.bf16 %v591, %v647
      %v704 = vmax.bf16 %v592, %v648
      %v705 = vmax.bf16 %v593, %v649
      %v706 = vmax.bf16 %v594, %v650
      %v707 = vmax.bf16 %v595, %v651
      %v708 = vmax.bf16 %v596, %v652
      %v709 = vmax.bf16 %v597, %v653
      %v710 = vmax.bf16 %v598, %v654
      %v711 = vmax.bf16 %v599, %v655
      %v712 = vmax.bf16 %v600, %v656
      %v713 = vmax.bf16 %v601, %v657
      %v714 = vmax.bf16 %v602, %v658
      %v715 = vmax.bf16 %v603, %v659
      %v716 = vmax.bf16 %v604, %v660
      %v717 = vmax.bf16 %v605, %v661
      %v718 = vmax.bf16 %v606, %v662
      %v719 = vmax.bf16 %v607, %v663
      %v720 = vmax.bf16 %v608, %v664
      %v721 = vmax.bf16 %v609, %v665
      %v722 = vmax.bf16 %v610, %v666
      %v723 = vmax.bf16 %v611, %v667
      %v724 = vmax.bf16 %v612, %v668
      %v725 = vmax.bf16 %v613, %v669
      %v726 = vmax.bf16 %v614, %v670
      %v727 = vmax.bf16 %v615, %v671
      %v728 = vmax.bf16 %v616, %v672
      %v729 = vld [vmem:[%s517] sm:$0xf]
      %v730 = vld [vmem:[%s517 + $0x4] sm:$0xf]
      %v731 = vld [vmem:[%s517 + $0x8] sm:$0xf]
      %v732 = vld [vmem:[%s517 + $0xc] sm:$0xf]
      %v733 = vld [vmem:[%s517 + $0x10] sm:$0xf]
      %v734 = vld [vmem:[%s517 + $0x14] sm:$0xf]
      %v735 = vld [vmem:[%s517 + $0x18] sm:$0xf]
      %v736 = vld [vmem:[%s517 + $0x1c] sm:$0xf]
      %v737 = vld [vmem:[%s517 + $0x20] sm:$0xf]
      %v738 = vld [vmem:[%s517 + $0x24] sm:$0xf]
      %v739 = vld [vmem:[%s517 + $0x28] sm:$0xf]
      %v740 = vld [vmem:[%s517 + $0x2c] sm:$0xf]
      %v741 = vld [vmem:[%s517 + $0x30] sm:$0xf]
      %v742 = vld [vmem:[%s517 + $0x34] sm:$0xf]
      %v743 = vld [vmem:[%s517 + $0x38] sm:$0xf]
      %v744 = vld [vmem:[%s517 + $0x3c] sm:$0xf]
      %v745 = vld [vmem:[%s517 + $0x40] sm:$0xf]
      %v746 = vld [vmem:[%s517 + $0x44] sm:$0xf]
      %v747 = vld [vmem:[%s517 + $0x48] sm:$0xf]
      %v748 = vld [vmem:[%s517 + $0x4c] sm:$0xf]
      %v749 = vld [vmem:[%s517 + $0x50] sm:$0xf]
      %v750 = vld [vmem:[%s517 + $0x54] sm:$0xf]
      %v751 = vld [vmem:[%s517 + $0x58] sm:$0xf]
      %v752 = vld [vmem:[%s517 + $0x5c] sm:$0xf]
      %v753 = vld [vmem:[%s517 + $0x60] sm:$0xf]
      %v754 = vld [vmem:[%s517 + $0x64] sm:$0xf]
      %v755 = vld [vmem:[%s517 + $0x68] sm:$0xf]
      %v756 = vld [vmem:[%s517 + $0x6c] sm:$0xf]
      %v757 = vld [vmem:[%s517 + $0x70] sm:$0xf]
      %v758 = vld [vmem:[%s517 + $0x74] sm:$0xf]
      %v759 = vld [vmem:[%s517 + $0x78] sm:$0xf]
      %v760 = vld [vmem:[%s517 + $0x7c] sm:$0xf]
      %v761 = vld [vmem:[%s517 + $0x80] sm:$0xf]
      %v762 = vld [vmem:[%s517 + $0x84] sm:$0xf]
      %v763 = vld [vmem:[%s517 + $0x88] sm:$0xf]
      %v764 = vld [vmem:[%s517 + $0x8c] sm:$0xf]
      %v765 = vld [vmem:[%s517 + $0x90] sm:$0xf]
      %v766 = vld [vmem:[%s517 + $0x94] sm:$0xf]
      %v767 = vld [vmem:[%s517 + $0x98] sm:$0xf]
      %v768 = vld [vmem:[%s517 + $0x9c] sm:$0xf]
      %v769 = vld [vmem:[%s517 + $0xa0] sm:$0xf]
      %v770 = vld [vmem:[%s517 + $0xa4] sm:$0xf]
      %v771 = vld [vmem:[%s517 + $0xa8] sm:$0xf]
      %v772 = vld [vmem:[%s517 + $0xac] sm:$0xf]
      %v773 = vld [vmem:[%s517 + $0xb0] sm:$0xf]
      %v774 = vld [vmem:[%s517 + $0xb4] sm:$0xf]
      %v775 = vld [vmem:[%s517 + $0xb8] sm:$0xf]
      %v776 = vld [vmem:[%s517 + $0xbc] sm:$0xf]
      %v777 = vld [vmem:[%s517 + $0xc0] sm:$0xf]
      %v778 = vld [vmem:[%s517 + $0xc4] sm:$0xf]
      %v779 = vld [vmem:[%s517 + $0xc8] sm:$0xf]
      %v780 = vld [vmem:[%s517 + $0xcc] sm:$0xf]
      %v781 = vld [vmem:[%s517 + $0xd0] sm:$0xf]
      %v782 = vld [vmem:[%s517 + $0xd4] sm:$0xf]
      %v783 = vld [vmem:[%s517 + $0xd8] sm:$0xf]
      %v784 = vld [vmem:[%s517 + $0xdc] sm:$0xf]
      %v785 = vmax.bf16 %v673, %v729
      %v786 = vmax.bf16 %v674, %v730
      %v787 = vmax.bf16 %v675, %v731
      %v788 = vmax.bf16 %v676, %v732
      %v789 = vmax.bf16 %v677, %v733
      %v790 = vmax.bf16 %v678, %v734
      %v791 = vmax.bf16 %v679, %v735
      %v792 = vmax.bf16 %v680, %v736
      %v793 = vmax.bf16 %v681, %v737
      %v794 = vmax.bf16 %v682, %v738
      %v795 = vmax.bf16 %v683, %v739
      %v796 = vmax.bf16 %v684, %v740
      %v797 = vmax.bf16 %v685, %v741
      %v798 = vmax.bf16 %v686, %v742
      %v799 = vmax.bf16 %v687, %v743
      %v800 = vmax.bf16 %v688, %v744
      %v801 = vmax.bf16 %v689, %v745
      %v802 = vmax.bf16 %v690, %v746
      %v803 = vmax.bf16 %v691, %v747
      %v804 = vmax.bf16 %v692, %v748
      %v805 = vmax.bf16 %v693, %v749
      %v806 = vmax.bf16 %v694, %v750
      %v807 = vmax.bf16 %v695, %v751
      %v808 = vmax.bf16 %v696, %v752
      %v809 = vmax.bf16 %v697, %v753
      %v810 = vmax.bf16 %v698, %v754
      %v811 = vmax.bf16 %v699, %v755
      %v812 = vmax.bf16 %v700, %v756
      %v813 = vmax.bf16 %v701, %v757
      %v814 = vmax.bf16 %v702, %v758
      %v815 = vmax.bf16 %v703, %v759
      %v816 = vmax.bf16 %v704, %v760
      %v817 = vmax.bf16 %v705, %v761
      %v818 = vmax.bf16 %v706, %v762
      %v819 = vmax.bf16 %v707, %v763
      %v820 = vmax.bf16 %v708, %v764
      %v821 = vmax.bf16 %v709, %v765
      %v822 = vmax.bf16 %v710, %v766
      %v823 = vmax.bf16 %v711, %v767
      %v824 = vmax.bf16 %v712, %v768
      %v825 = vmax.bf16 %v713, %v769
      %v826 = vmax.bf16 %v714, %v770
      %v827 = vmax.bf16 %v715, %v771
      %v828 = vmax.bf16 %v716, %v772
      %v829 = vmax.bf16 %v717, %v773
      %v830 = vmax.bf16 %v718, %v774
      %v831 = vmax.bf16 %v719, %v775
      %v832 = vmax.bf16 %v720, %v776
      %v833 = vmax.bf16 %v721, %v777
      %v834 = vmax.bf16 %v722, %v778
      %v835 = vmax.bf16 %v723, %v779
      %v836 = vmax.bf16 %v724, %v780
      %v837 = vmax.bf16 %v725, %v781
      %v838 = vmax.bf16 %v726, %v782
      %v839 = vmax.bf16 %v727, %v783
      %v840 = vmax.bf16 %v728, %v784
      %v841 = vld [vmem:[%s523] sm:$0xf]
      %v842 = vld [vmem:[%s523 + $0x4] sm:$0xf]
      %v843 = vld [vmem:[%s523 + $0x8] sm:$0xf]
      %v844 = vld [vmem:[%s523 + $0xc] sm:$0xf]
      %v845 = vld [vmem:[%s523 + $0x10] sm:$0xf]
      %v846 = vld [vmem:[%s523 + $0x14] sm:$0xf]
      %v847 = vld [vmem:[%s523 + $0x18] sm:$0xf]
      %v848 = vld [vmem:[%s523 + $0x1c] sm:$0xf]
      %v849 = vld [vmem:[%s523 + $0x20] sm:$0xf]
      %v850 = vld [vmem:[%s523 + $0x24] sm:$0xf]
      %v851 = vld [vmem:[%s523 + $0x28] sm:$0xf]
      %v852 = vld [vmem:[%s523 + $0x2c] sm:$0xf]
      %v853 = vld [vmem:[%s523 + $0x30] sm:$0xf]
      %v854 = vld [vmem:[%s523 + $0x34] sm:$0xf]
      %v855 = vld [vmem:[%s523 + $0x38] sm:$0xf]
      %v856 = vld [vmem:[%s523 + $0x3c] sm:$0xf]
      %v857 = vld [vmem:[%s523 + $0x40] sm:$0xf]
      %v858 = vld [vmem:[%s523 + $0x44] sm:$0xf]
      %v859 = vld [vmem:[%s523 + $0x48] sm:$0xf]
      %v860 = vld [vmem:[%s523 + $0x4c] sm:$0xf]
      %v861 = vld [vmem:[%s523 + $0x50] sm:$0xf]
      %v862 = vld [vmem:[%s523 + $0x54] sm:$0xf]
      %v863 = vld [vmem:[%s523 + $0x58] sm:$0xf]
      %v864 = vld [vmem:[%s523 + $0x5c] sm:$0xf]
      %v865 = vld [vmem:[%s523 + $0x60] sm:$0xf]
      %v866 = vld [vmem:[%s523 + $0x64] sm:$0xf]
      %v867 = vld [vmem:[%s523 + $0x68] sm:$0xf]
      %v868 = vld [vmem:[%s523 + $0x6c] sm:$0xf]
      %v869 = vld [vmem:[%s523 + $0x70] sm:$0xf]
      %v870 = vld [vmem:[%s523 + $0x74] sm:$0xf]
      %v871 = vld [vmem:[%s523 + $0x78] sm:$0xf]
      %v872 = vld [vmem:[%s523 + $0x7c] sm:$0xf]
      %v873 = vld [vmem:[%s523 + $0x80] sm:$0xf]
      %v874 = vld [vmem:[%s523 + $0x84] sm:$0xf]
      %v875 = vld [vmem:[%s523 + $0x88] sm:$0xf]
      %v876 = vld [vmem:[%s523 + $0x8c] sm:$0xf]
      %v877 = vld [vmem:[%s523 + $0x90] sm:$0xf]
      %v878 = vld [vmem:[%s523 + $0x94] sm:$0xf]
      %v879 = vld [vmem:[%s523 + $0x98] sm:$0xf]
      %v880 = vld [vmem:[%s523 + $0x9c] sm:$0xf]
      %v881 = vld [vmem:[%s523 + $0xa0] sm:$0xf]
      %v882 = vld [vmem:[%s523 + $0xa4] sm:$0xf]
      %v883 = vld [vmem:[%s523 + $0xa8] sm:$0xf]
      %v884 = vld [vmem:[%s523 + $0xac] sm:$0xf]
      %v885 = vld [vmem:[%s523 + $0xb0] sm:$0xf]
      %v886 = vld [vmem:[%s523 + $0xb4] sm:$0xf]
      %v887 = vld [vmem:[%s523 + $0xb8] sm:$0xf]
      %v888 = vld [vmem:[%s523 + $0xbc] sm:$0xf]
      %v889 = vld [vmem:[%s523 + $0xc0] sm:$0xf]
      %v890 = vld [vmem:[%s523 + $0xc4] sm:$0xf]
      %v891 = vld [vmem:[%s523 + $0xc8] sm:$0xf]
      %v892 = vld [vmem:[%s523 + $0xcc] sm:$0xf]
      %v893 = vld [vmem:[%s523 + $0xd0] sm:$0xf]
      %v894 = vld [vmem:[%s523 + $0xd4] sm:$0xf]
      %v895 = vld [vmem:[%s523 + $0xd8] sm:$0xf]
      %v896 = vld [vmem:[%s523 + $0xdc] sm:$0xf]
      %v897 = vmax.bf16 %v785, %v841
      %v898 = vmax.bf16 %v786, %v842
      %v899 = vmax.bf16 %v787, %v843
      %v900 = vmax.bf16 %v788, %v844
      %v901 = vmax.bf16 %v789, %v845
      %v902 = vmax.bf16 %v790, %v846
      %v903 = vmax.bf16 %v791, %v847
      %v904 = vmax.bf16 %v792, %v848
      %v905 = vmax.bf16 %v793, %v849
      %v906 = vmax.bf16 %v794, %v850
      %v907 = vmax.bf16 %v795, %v851
      %v908 = vmax.bf16 %v796, %v852
      %v909 = vmax.bf16 %v797, %v853
      %v910 = vmax.bf16 %v798, %v854
      %v911 = vmax.bf16 %v799, %v855
      %v912 = vmax.bf16 %v800, %v856
      %v913 = vmax.bf16 %v801, %v857
      %v914 = vmax.bf16 %v802, %v858
      %v915 = vmax.bf16 %v803, %v859
      %v916 = vmax.bf16 %v804, %v860
      %v917 = vmax.bf16 %v805, %v861
      %v918 = vmax.bf16 %v806, %v862
      %v919 = vmax.bf16 %v807, %v863
      %v920 = vmax.bf16 %v808, %v864
      %v921 = vmax.bf16 %v809, %v865
      %v922 = vmax.bf16 %v810, %v866
      %v923 = vmax.bf16 %v811, %v867
      %v924 = vmax.bf16 %v812, %v868
      %v925 = vmax.bf16 %v813, %v869
      %v926 = vmax.bf16 %v814, %v870
      %v927 = vmax.bf16 %v815, %v871
      %v928 = vmax.bf16 %v816, %v872
      %v929 = vmax.bf16 %v817, %v873
      %v930 = vmax.bf16 %v818, %v874
      %v931 = vmax.bf16 %v819, %v875
      %v932 = vmax.bf16 %v820, %v876
      %v933 = vmax.bf16 %v821, %v877
      %v934 = vmax.bf16 %v822, %v878
      %v935 = vmax.bf16 %v823, %v879
      %v936 = vmax.bf16 %v824, %v880
      %v937 = vmax.bf16 %v825, %v881
      %v938 = vmax.bf16 %v826, %v882
      %v939 = vmax.bf16 %v827, %v883
      %v940 = vmax.bf16 %v828, %v884
      %v941 = vmax.bf16 %v829, %v885
      %v942 = vmax.bf16 %v830, %v886
      %v943 = vmax.bf16 %v831, %v887
      %v944 = vmax.bf16 %v832, %v888
      %v945 = vmax.bf16 %v833, %v889
      %v946 = vmax.bf16 %v834, %v890
      %v947 = vmax.bf16 %v835, %v891
      %v948 = vmax.bf16 %v836, %v892
      %v949 = vmax.bf16 %v837, %v893
      %v950 = vmax.bf16 %v838, %v894
      %v951 = vmax.bf16 %v839, %v895
      %v952 = vmax.bf16 %v840, %v896
      %v953 = vld [vmem:[%s529] sm:$0xf]
      %v954 = vld [vmem:[%s529 + $0x4] sm:$0xf]
      %v955 = vld [vmem:[%s529 + $0x8] sm:$0xf]
      %v956 = vld [vmem:[%s529 + $0xc] sm:$0xf]
      %v957 = vld [vmem:[%s529 + $0x10] sm:$0xf]
      %v958 = vld [vmem:[%s529 + $0x14] sm:$0xf]
      %v959 = vld [vmem:[%s529 + $0x18] sm:$0xf]
      %v960 = vld [vmem:[%s529 + $0x1c] sm:$0xf]
      %v961 = vld [vmem:[%s529 + $0x20] sm:$0xf]
      %v962 = vld [vmem:[%s529 + $0x24] sm:$0xf]
      %v963 = vld [vmem:[%s529 + $0x28] sm:$0xf]
      %v964 = vld [vmem:[%s529 + $0x2c] sm:$0xf]
      %v965 = vld [vmem:[%s529 + $0x30] sm:$0xf]
      %v966 = vld [vmem:[%s529 + $0x34] sm:$0xf]
      %v967 = vld [vmem:[%s529 + $0x38] sm:$0xf]
      %v968 = vld [vmem:[%s529 + $0x3c] sm:$0xf]
      %v969 = vld [vmem:[%s529 + $0x40] sm:$0xf]
      %v970 = vld [vmem:[%s529 + $0x44] sm:$0xf]
      %v971 = vld [vmem:[%s529 + $0x48] sm:$0xf]
      %v972 = vld [vmem:[%s529 + $0x4c] sm:$0xf]
      %v973 = vld [vmem:[%s529 + $0x50] sm:$0xf]
      %v974 = vld [vmem:[%s529 + $0x54] sm:$0xf]
      %v975 = vld [vmem:[%s529 + $0x58] sm:$0xf]
      %v976 = vld [vmem:[%s529 + $0x5c] sm:$0xf]
      %v977 = vld [vmem:[%s529 + $0x60] sm:$0xf]
      %v978 = vld [vmem:[%s529 + $0x64] sm:$0xf]
      %v979 = vld [vmem:[%s529 + $0x68] sm:$0xf]
      %v980 = vld [vmem:[%s529 + $0x6c] sm:$0xf]
      %v981 = vld [vmem:[%s529 + $0x70] sm:$0xf]
      %v982 = vld [vmem:[%s529 + $0x74] sm:$0xf]
      %v983 = vld [vmem:[%s529 + $0x78] sm:$0xf]
      %v984 = vld [vmem:[%s529 + $0x7c] sm:$0xf]
      %v985 = vld [vmem:[%s529 + $0x80] sm:$0xf]
      %v986 = vld [vmem:[%s529 + $0x84] sm:$0xf]
      %v987 = vld [vmem:[%s529 + $0x88] sm:$0xf]
      %v988 = vld [vmem:[%s529 + $0x8c] sm:$0xf]
      %v989 = vld [vmem:[%s529 + $0x90] sm:$0xf]
      %v990 = vld [vmem:[%s529 + $0x94] sm:$0xf]
      %v991 = vld [vmem:[%s529 + $0x98] sm:$0xf]
      %v992 = vld [vmem:[%s529 + $0x9c] sm:$0xf]
      %v993 = vld [vmem:[%s529 + $0xa0] sm:$0xf]
      %v994 = vld [vmem:[%s529 + $0xa4] sm:$0xf]
      %v995 = vld [vmem:[%s529 + $0xa8] sm:$0xf]
      %v996 = vld [vmem:[%s529 + $0xac] sm:$0xf]
      %v997 = vld [vmem:[%s529 + $0xb0] sm:$0xf]
      %v998 = vld [vmem:[%s529 + $0xb4] sm:$0xf]
      %v999 = vld [vmem:[%s529 + $0xb8] sm:$0xf]
      %v1000 = vld [vmem:[%s529 + $0xbc] sm:$0xf]
      %v1001 = vld [vmem:[%s529 + $0xc0] sm:$0xf]
      %v1002 = vld [vmem:[%s529 + $0xc4] sm:$0xf]
      %v1003 = vld [vmem:[%s529 + $0xc8] sm:$0xf]
      %v1004 = vld [vmem:[%s529 + $0xcc] sm:$0xf]
      %v1005 = vld [vmem:[%s529 + $0xd0] sm:$0xf]
      %v1006 = vld [vmem:[%s529 + $0xd4] sm:$0xf]
      %v1007 = vld [vmem:[%s529 + $0xd8] sm:$0xf]
      %v1008 = vld [vmem:[%s529 + $0xdc] sm:$0xf]
      %v1009 = vmax.bf16 %v897, %v953
      %v1010 = vmax.bf16 %v898, %v954
      %v1011 = vmax.bf16 %v899, %v955
      %v1012 = vmax.bf16 %v900, %v956
      %v1013 = vmax.bf16 %v901, %v957
      %v1014 = vmax.bf16 %v902, %v958
      %v1015 = vmax.bf16 %v903, %v959
      %v1016 = vmax.bf16 %v904, %v960
      %v1017 = vmax.bf16 %v905, %v961
      %v1018 = vmax.bf16 %v906, %v962
      %v1019 = vmax.bf16 %v907, %v963
      %v1020 = vmax.bf16 %v908, %v964
      %v1021 = vmax.bf16 %v909, %v965
      %v1022 = vmax.bf16 %v910, %v966
      %v1023 = vmax.bf16 %v911, %v967
      %v1024 = vmax.bf16 %v912, %v968
      %v1025 = vmax.bf16 %v913, %v969
      %v1026 = vmax.bf16 %v914, %v970
      %v1027 = vmax.bf16 %v915, %v971
      %v1028 = vmax.bf16 %v916, %v972
      %v1029 = vmax.bf16 %v917, %v973
      %v1030 = vmax.bf16 %v918, %v974
      %v1031 = vmax.bf16 %v919, %v975
      %v1032 = vmax.bf16 %v920, %v976
      %v1033 = vmax.bf16 %v921, %v977
      %v1034 = vmax.bf16 %v922, %v978
      %v1035 = vmax.bf16 %v923, %v979
      %v1036 = vmax.bf16 %v924, %v980
      %v1037 = vmax.bf16 %v925, %v981
      %v1038 = vmax.bf16 %v926, %v982
      %v1039 = vmax.bf16 %v927, %v983
      %v1040 = vmax.bf16 %v928, %v984
      %v1041 = vmax.bf16 %v929, %v985
      %v1042 = vmax.bf16 %v930, %v986
      %v1043 = vmax.bf16 %v931, %v987
      %v1044 = vmax.bf16 %v932, %v988
      %v1045 = vmax.bf16 %v933, %v989
      %v1046 = vmax.bf16 %v934, %v990
      %v1047 = vmax.bf16 %v935, %v991
      %v1048 = vmax.bf16 %v936, %v992
      %v1049 = vmax.bf16 %v937, %v993
      %v1050 = vmax.bf16 %v938, %v994
      %v1051 = vmax.bf16 %v939, %v995
      %v1052 = vmax.bf16 %v940, %v996
      %v1053 = vmax.bf16 %v941, %v997
      %v1054 = vmax.bf16 %v942, %v998
      %v1055 = vmax.bf16 %v943, %v999
      %v1056 = vmax.bf16 %v944, %v1000
      %v1057 = vmax.bf16 %v945, %v1001
      %v1058 = vmax.bf16 %v946, %v1002
      %v1059 = vmax.bf16 %v947, %v1003
      %v1060 = vmax.bf16 %v948, %v1004
      %v1061 = vmax.bf16 %v949, %v1005
      %v1062 = vmax.bf16 %v950, %v1006
      %v1063 = vmax.bf16 %v951, %v1007
      %v1064 = vmax.bf16 %v952, %v1008
      %v1065 = vld [vmem:[%s535] sm:$0xf]
      %v1066 = vld [vmem:[%s535 + $0x4] sm:$0xf]
      %v1067 = vld [vmem:[%s535 + $0x8] sm:$0xf]
      %v1068 = vld [vmem:[%s535 + $0xc] sm:$0xf]
      %v1069 = vld [vmem:[%s535 + $0x10] sm:$0xf]
      %v1070 = vld [vmem:[%s535 + $0x14] sm:$0xf]
      %v1071 = vld [vmem:[%s535 + $0x18] sm:$0xf]
      %v1072 = vld [vmem:[%s535 + $0x1c] sm:$0xf]
      %v1073 = vld [vmem:[%s535 + $0x20] sm:$0xf]
      %v1074 = vld [vmem:[%s535 + $0x24] sm:$0xf]
      %v1075 = vld [vmem:[%s535 + $0x28] sm:$0xf]
      %v1076 = vld [vmem:[%s535 + $0x2c] sm:$0xf]
      %v1077 = vld [vmem:[%s535 + $0x30] sm:$0xf]
      %v1078 = vld [vmem:[%s535 + $0x34] sm:$0xf]
      %v1079 = vld [vmem:[%s535 + $0x38] sm:$0xf]
      %v1080 = vld [vmem:[%s535 + $0x3c] sm:$0xf]
      %v1081 = vld [vmem:[%s535 + $0x40] sm:$0xf]
      %v1082 = vld [vmem:[%s535 + $0x44] sm:$0xf]
      %v1083 = vld [vmem:[%s535 + $0x48] sm:$0xf]
      %v1084 = vld [vmem:[%s535 + $0x4c] sm:$0xf]
      %v1085 = vld [vmem:[%s535 + $0x50] sm:$0xf]
      %v1086 = vld [vmem:[%s535 + $0x54] sm:$0xf]
      %v1087 = vld [vmem:[%s535 + $0x58] sm:$0xf]
      %v1088 = vld [vmem:[%s535 + $0x5c] sm:$0xf]
      %v1089 = vld [vmem:[%s535 + $0x60] sm:$0xf]
      %v1090 = vld [vmem:[%s535 + $0x64] sm:$0xf]
      %v1091 = vld [vmem:[%s535 + $0x68] sm:$0xf]
      %v1092 = vld [vmem:[%s535 + $0x6c] sm:$0xf]
      %v1093 = vld [vmem:[%s535 + $0x70] sm:$0xf]
      %v1094 = vld [vmem:[%s535 + $0x74] sm:$0xf]
      %v1095 = vld [vmem:[%s535 + $0x78] sm:$0xf]
      %v1096 = vld [vmem:[%s535 + $0x7c] sm:$0xf]
      %v1097 = vld [vmem:[%s535 + $0x80] sm:$0xf]
      %v1098 = vld [vmem:[%s535 + $0x84] sm:$0xf]
      %v1099 = vld [vmem:[%s535 + $0x88] sm:$0xf]
      %v1100 = vld [vmem:[%s535 + $0x8c] sm:$0xf]
      %v1101 = vld [vmem:[%s535 + $0x90] sm:$0xf]
      %v1102 = vld [vmem:[%s535 + $0x94] sm:$0xf]
      %v1103 = vld [vmem:[%s535 + $0x98] sm:$0xf]
      %v1104 = vld [vmem:[%s535 + $0x9c] sm:$0xf]
      %v1105 = vld [vmem:[%s535 + $0xa0] sm:$0xf]
      %v1106 = vld [vmem:[%s535 + $0xa4] sm:$0xf]
      %v1107 = vld [vmem:[%s535 + $0xa8] sm:$0xf]
      %v1108 = vld [vmem:[%s535 + $0xac] sm:$0xf]
      %v1109 = vld [vmem:[%s535 + $0xb0] sm:$0xf]
      %v1110 = vld [vmem:[%s535 + $0xb4] sm:$0xf]
      %v1111 = vld [vmem:[%s535 + $0xb8] sm:$0xf]
      %v1112 = vld [vmem:[%s535 + $0xbc] sm:$0xf]
      %v1113 = vld [vmem:[%s535 + $0xc0] sm:$0xf]
      %v1114 = vld [vmem:[%s535 + $0xc4] sm:$0xf]
      %v1115 = vld [vmem:[%s535 + $0xc8] sm:$0xf]
      %v1116 = vld [vmem:[%s535 + $0xcc] sm:$0xf]
      %v1117 = vld [vmem:[%s535 + $0xd0] sm:$0xf]
      %v1118 = vld [vmem:[%s535 + $0xd4] sm:$0xf]
      %v1119 = vld [vmem:[%s535 + $0xd8] sm:$0xf]
      %v1120 = vld [vmem:[%s535 + $0xdc] sm:$0xf]
      %v1121 = vmax.bf16 %v1009, %v1065
      %v1122 = vmax.bf16 %v1010, %v1066
      %v1123 = vmax.bf16 %v1011, %v1067
      %v1124 = vmax.bf16 %v1012, %v1068
      %v1125 = vmax.bf16 %v1013, %v1069
      %v1126 = vmax.bf16 %v1014, %v1070
      %v1127 = vmax.bf16 %v1015, %v1071
      %v1128 = vmax.bf16 %v1016, %v1072
      %v1129 = vmax.bf16 %v1017, %v1073
      %v1130 = vmax.bf16 %v1018, %v1074
      %v1131 = vmax.bf16 %v1019, %v1075
      %v1132 = vmax.bf16 %v1020, %v1076
      %v1133 = vmax.bf16 %v1021, %v1077
      %v1134 = vmax.bf16 %v1022, %v1078
      %v1135 = vmax.bf16 %v1023, %v1079
      %v1136 = vmax.bf16 %v1024, %v1080
      %v1137 = vmax.bf16 %v1025, %v1081
      %v1138 = vmax.bf16 %v1026, %v1082
      %v1139 = vmax.bf16 %v1027, %v1083
      %v1140 = vmax.bf16 %v1028, %v1084
      %v1141 = vmax.bf16 %v1029, %v1085
      %v1142 = vmax.bf16 %v1030, %v1086
      %v1143 = vmax.bf16 %v1031, %v1087
      %v1144 = vmax.bf16 %v1032, %v1088
      %v1145 = vmax.bf16 %v1033, %v1089
      %v1146 = vmax.bf16 %v1034, %v1090
      %v1147 = vmax.bf16 %v1035, %v1091
      %v1148 = vmax.bf16 %v1036, %v1092
      %v1149 = vmax.bf16 %v1037, %v1093
      %v1150 = vmax.bf16 %v1038, %v1094
      %v1151 = vmax.bf16 %v1039, %v1095
      %v1152 = vmax.bf16 %v1040, %v1096
      %v1153 = vmax.bf16 %v1041, %v1097
      %v1154 = vmax.bf16 %v1042, %v1098
      %v1155 = vmax.bf16 %v1043, %v1099
      %v1156 = vmax.bf16 %v1044, %v1100
      %v1157 = vmax.bf16 %v1045, %v1101
      %v1158 = vmax.bf16 %v1046, %v1102
      %v1159 = vmax.bf16 %v1047, %v1103
      %v1160 = vmax.bf16 %v1048, %v1104
      %v1161 = vmax.bf16 %v1049, %v1105
      %v1162 = vmax.bf16 %v1050, %v1106
      %v1163 = vmax.bf16 %v1051, %v1107
      %v1164 = vmax.bf16 %v1052, %v1108
      %v1165 = vmax.bf16 %v1053, %v1109
      %v1166 = vmax.bf16 %v1054, %v1110
      %v1167 = vmax.bf16 %v1055, %v1111
      %v1168 = vmax.bf16 %v1056, %v1112
      %v1169 = vmax.bf16 %v1057, %v1113
      %v1170 = vmax.bf16 %v1058, %v1114
      %v1171 = vmax.bf16 %v1059, %v1115
      %v1172 = vmax.bf16 %v1060, %v1116
      %v1173 = vmax.bf16 %v1061, %v1117
      %v1174 = vmax.bf16 %v1062, %v1118
      %v1175 = vmax.bf16 %v1063, %v1119
      %v1176 = vmax.bf16 %v1064, %v1120
      %v1177 = vld [vmem:[%s541] sm:$0xf]
      %v1178 = vld [vmem:[%s541 + $0x4] sm:$0xf]
      %v1179 = vld [vmem:[%s541 + $0x8] sm:$0xf]
      %v1180 = vld [vmem:[%s541 + $0xc] sm:$0xf]
      %v1181 = vld [vmem:[%s541 + $0x10] sm:$0xf]
      %v1182 = vld [vmem:[%s541 + $0x14] sm:$0xf]
      %v1183 = vld [vmem:[%s541 + $0x18] sm:$0xf]
      %v1184 = vld [vmem:[%s541 + $0x1c] sm:$0xf]
      %v1185 = vld [vmem:[%s541 + $0x20] sm:$0xf]
      %v1186 = vld [vmem:[%s541 + $0x24] sm:$0xf]
      %v1187 = vld [vmem:[%s541 + $0x28] sm:$0xf]
      %v1188 = vld [vmem:[%s541 + $0x2c] sm:$0xf]
      %v1189 = vld [vmem:[%s541 + $0x30] sm:$0xf]
      %v1190 = vld [vmem:[%s541 + $0x34] sm:$0xf]
      %v1191 = vld [vmem:[%s541 + $0x38] sm:$0xf]
      %v1192 = vld [vmem:[%s541 + $0x3c] sm:$0xf]
      %v1193 = vld [vmem:[%s541 + $0x40] sm:$0xf]
      %v1194 = vld [vmem:[%s541 + $0x44] sm:$0xf]
      %v1195 = vld [vmem:[%s541 + $0x48] sm:$0xf]
      %v1196 = vld [vmem:[%s541 + $0x4c] sm:$0xf]
      %v1197 = vld [vmem:[%s541 + $0x50] sm:$0xf]
      %v1198 = vld [vmem:[%s541 + $0x54] sm:$0xf]
      %v1199 = vld [vmem:[%s541 + $0x58] sm:$0xf]
      %v1200 = vld [vmem:[%s541 + $0x5c] sm:$0xf]
      %v1201 = vld [vmem:[%s541 + $0x60] sm:$0xf]
      %v1202 = vld [vmem:[%s541 + $0x64] sm:$0xf]
      %v1203 = vld [vmem:[%s541 + $0x68] sm:$0xf]
      %v1204 = vld [vmem:[%s541 + $0x6c] sm:$0xf]
      %v1205 = vld [vmem:[%s541 + $0x70] sm:$0xf]
      %v1206 = vld [vmem:[%s541 + $0x74] sm:$0xf]
      %v1207 = vld [vmem:[%s541 + $0x78] sm:$0xf]
      %v1208 = vld [vmem:[%s541 + $0x7c] sm:$0xf]
      %v1209 = vld [vmem:[%s541 + $0x80] sm:$0xf]
      %v1210 = vld [vmem:[%s541 + $0x84] sm:$0xf]
      %v1211 = vld [vmem:[%s541 + $0x88] sm:$0xf]
      %v1212 = vld [vmem:[%s541 + $0x8c] sm:$0xf]
      %v1213 = vld [vmem:[%s541 + $0x90] sm:$0xf]
      %v1214 = vld [vmem:[%s541 + $0x94] sm:$0xf]
      %v1215 = vld [vmem:[%s541 + $0x98] sm:$0xf]
      %v1216 = vld [vmem:[%s541 + $0x9c] sm:$0xf]
      %v1217 = vld [vmem:[%s541 + $0xa0] sm:$0xf]
      %v1218 = vld [vmem:[%s541 + $0xa4] sm:$0xf]
      %v1219 = vld [vmem:[%s541 + $0xa8] sm:$0xf]
      %v1220 = vld [vmem:[%s541 + $0xac] sm:$0xf]
      %v1221 = vld [vmem:[%s541 + $0xb0] sm:$0xf]
      %v1222 = vld [vmem:[%s541 + $0xb4] sm:$0xf]
      %v1223 = vld [vmem:[%s541 + $0xb8] sm:$0xf]
      %v1224 = vld [vmem:[%s541 + $0xbc] sm:$0xf]
      %v1225 = vld [vmem:[%s541 + $0xc0] sm:$0xf]
      %v1226 = vld [vmem:[%s541 + $0xc4] sm:$0xf]
      %v1227 = vld [vmem:[%s541 + $0xc8] sm:$0xf]
      %v1228 = vld [vmem:[%s541 + $0xcc] sm:$0xf]
      %v1229 = vld [vmem:[%s541 + $0xd0] sm:$0xf]
      %v1230 = vld [vmem:[%s541 + $0xd4] sm:$0xf]
      %v1231 = vld [vmem:[%s541 + $0xd8] sm:$0xf]
      %v1232 = vld [vmem:[%s541 + $0xdc] sm:$0xf]
      %v1233 = vmax.bf16 %v1121, %v1177
      %v1234 = vmax.bf16 %v1122, %v1178
      %v1235 = vmax.bf16 %v1123, %v1179
      %v1236 = vmax.bf16 %v1124, %v1180
      %v1237 = vmax.bf16 %v1125, %v1181
      %v1238 = vmax.bf16 %v1126, %v1182
      %v1239 = vmax.bf16 %v1127, %v1183
      %v1240 = vmax.bf16 %v1128, %v1184
      %v1241 = vmax.bf16 %v1129, %v1185
      %v1242 = vmax.bf16 %v1130, %v1186
      %v1243 = vmax.bf16 %v1131, %v1187
      %v1244 = vmax.bf16 %v1132, %v1188
      %v1245 = vmax.bf16 %v1133, %v1189
      %v1246 = vmax.bf16 %v1134, %v1190
      %v1247 = vmax.bf16 %v1135, %v1191
      %v1248 = vmax.bf16 %v1136, %v1192
      %v1249 = vmax.bf16 %v1137, %v1193
      %v1250 = vmax.bf16 %v1138, %v1194
      %v1251 = vmax.bf16 %v1139, %v1195
      %v1252 = vmax.bf16 %v1140, %v1196
      %v1253 = vmax.bf16 %v1141, %v1197
      %v1254 = vmax.bf16 %v1142, %v1198
      %v1255 = vmax.bf16 %v1143, %v1199
      %v1256 = vmax.bf16 %v1144, %v1200
      %v1257 = vmax.bf16 %v1145, %v1201
      %v1258 = vmax.bf16 %v1146, %v1202
      %v1259 = vmax.bf16 %v1147, %v1203
      %v1260 = vmax.bf16 %v1148, %v1204
      %v1261 = vmax.bf16 %v1149, %v1205
      %v1262 = vmax.bf16 %v1150, %v1206
      %v1263 = vmax.bf16 %v1151, %v1207
      %v1264 = vmax.bf16 %v1152, %v1208
      %v1265 = vmax.bf16 %v1153, %v1209
      %v1266 = vmax.bf16 %v1154, %v1210
      %v1267 = vmax.bf16 %v1155, %v1211
      %v1268 = vmax.bf16 %v1156, %v1212
      %v1269 = vmax.bf16 %v1157, %v1213
      %v1270 = vmax.bf16 %v1158, %v1214
      %v1271 = vmax.bf16 %v1159, %v1215
      %v1272 = vmax.bf16 %v1160, %v1216
      %v1273 = vmax.bf16 %v1161, %v1217
      %v1274 = vmax.bf16 %v1162, %v1218
      %v1275 = vmax.bf16 %v1163, %v1219
      %v1276 = vmax.bf16 %v1164, %v1220
      %v1277 = vmax.bf16 %v1165, %v1221
      %v1278 = vmax.bf16 %v1166, %v1222
      %v1279 = vmax.bf16 %v1167, %v1223
      %v1280 = vmax.bf16 %v1168, %v1224
      %v1281 = vmax.bf16 %v1169, %v1225
      %v1282 = vmax.bf16 %v1170, %v1226
      %v1283 = vmax.bf16 %v1171, %v1227
      %v1284 = vmax.bf16 %v1172, %v1228
      %v1285 = vmax.bf16 %v1173, %v1229
      %v1286 = vmax.bf16 %v1174, %v1230
      %v1287 = vmax.bf16 %v1175, %v1231
      %v1288 = vmax.bf16 %v1176, %v1232
      %v1289 = vld [vmem:[%s547] sm:$0xf]
      %v1290 = vld [vmem:[%s547 + $0x4] sm:$0xf]
      %v1291 = vld [vmem:[%s547 + $0x8] sm:$0xf]
      %v1292 = vld [vmem:[%s547 + $0xc] sm:$0xf]
      %v1293 = vld [vmem:[%s547 + $0x10] sm:$0xf]
      %v1294 = vld [vmem:[%s547 + $0x14] sm:$0xf]
      %v1295 = vld [vmem:[%s547 + $0x18] sm:$0xf]
      %v1296 = vld [vmem:[%s547 + $0x1c] sm:$0xf]
      %v1297 = vld [vmem:[%s547 + $0x20] sm:$0xf]
      %v1298 = vld [vmem:[%s547 + $0x24] sm:$0xf]
      %v1299 = vld [vmem:[%s547 + $0x28] sm:$0xf]
      %v1300 = vld [vmem:[%s547 + $0x2c] sm:$0xf]
      %v1301 = vld [vmem:[%s547 + $0x30] sm:$0xf]
      %v1302 = vld [vmem:[%s547 + $0x34] sm:$0xf]
      %v1303 = vld [vmem:[%s547 + $0x38] sm:$0xf]
      %v1304 = vld [vmem:[%s547 + $0x3c] sm:$0xf]
      %v1305 = vld [vmem:[%s547 + $0x40] sm:$0xf]
      %v1306 = vld [vmem:[%s547 + $0x44] sm:$0xf]
      %v1307 = vld [vmem:[%s547 + $0x48] sm:$0xf]
      %v1308 = vld [vmem:[%s547 + $0x4c] sm:$0xf]
      %v1309 = vld [vmem:[%s547 + $0x50] sm:$0xf]
      %v1310 = vld [vmem:[%s547 + $0x54] sm:$0xf]
      %v1311 = vld [vmem:[%s547 + $0x58] sm:$0xf]
      %v1312 = vld [vmem:[%s547 + $0x5c] sm:$0xf]
      %v1313 = vld [vmem:[%s547 + $0x60] sm:$0xf]
      %v1314 = vld [vmem:[%s547 + $0x64] sm:$0xf]
      %v1315 = vld [vmem:[%s547 + $0x68] sm:$0xf]
      %v1316 = vld [vmem:[%s547 + $0x6c] sm:$0xf]
      %v1317 = vld [vmem:[%s547 + $0x70] sm:$0xf]
      %v1318 = vld [vmem:[%s547 + $0x74] sm:$0xf]
      %v1319 = vld [vmem:[%s547 + $0x78] sm:$0xf]
      %v1320 = vld [vmem:[%s547 + $0x7c] sm:$0xf]
      %v1321 = vld [vmem:[%s547 + $0x80] sm:$0xf]
      %v1322 = vld [vmem:[%s547 + $0x84] sm:$0xf]
      %v1323 = vld [vmem:[%s547 + $0x88] sm:$0xf]
      %v1324 = vld [vmem:[%s547 + $0x8c] sm:$0xf]
      %v1325 = vld [vmem:[%s547 + $0x90] sm:$0xf]
      %v1326 = vld [vmem:[%s547 + $0x94] sm:$0xf]
      %v1327 = vld [vmem:[%s547 + $0x98] sm:$0xf]
      %v1328 = vld [vmem:[%s547 + $0x9c] sm:$0xf]
      %v1329 = vld [vmem:[%s547 + $0xa0] sm:$0xf]
      %v1330 = vld [vmem:[%s547 + $0xa4] sm:$0xf]
      %v1331 = vld [vmem:[%s547 + $0xa8] sm:$0xf]
      %v1332 = vld [vmem:[%s547 + $0xac] sm:$0xf]
      %v1333 = vld [vmem:[%s547 + $0xb0] sm:$0xf]
      %v1334 = vld [vmem:[%s547 + $0xb4] sm:$0xf]
      %v1335 = vld [vmem:[%s547 + $0xb8] sm:$0xf]
      %v1336 = vld [vmem:[%s547 + $0xbc] sm:$0xf]
      %v1337 = vld [vmem:[%s547 + $0xc0] sm:$0xf]
      %v1338 = vld [vmem:[%s547 + $0xc4] sm:$0xf]
      %v1339 = vld [vmem:[%s547 + $0xc8] sm:$0xf]
      %v1340 = vld [vmem:[%s547 + $0xcc] sm:$0xf]
      %v1341 = vld [vmem:[%s547 + $0xd0] sm:$0xf]
      %v1342 = vld [vmem:[%s547 + $0xd4] sm:$0xf]
      %v1343 = vld [vmem:[%s547 + $0xd8] sm:$0xf]
      %v1344 = vld [vmem:[%s547 + $0xdc] sm:$0xf]
      %v1345 = vmax.bf16 %v1233, %v1289
      %v1346 = vmax.bf16 %v1234, %v1290
      %v1347 = vmax.bf16 %v1235, %v1291
      %v1348 = vmax.bf16 %v1236, %v1292
      %v1349 = vmax.bf16 %v1237, %v1293
      %v1350 = vmax.bf16 %v1238, %v1294
      %v1351 = vmax.bf16 %v1239, %v1295
      %v1352 = vmax.bf16 %v1240, %v1296
      %v1353 = vmax.bf16 %v1241, %v1297
      %v1354 = vmax.bf16 %v1242, %v1298
      %v1355 = vmax.bf16 %v1243, %v1299
      %v1356 = vmax.bf16 %v1244, %v1300
      %v1357 = vmax.bf16 %v1245, %v1301
      %v1358 = vmax.bf16 %v1246, %v1302
      %v1359 = vmax.bf16 %v1247, %v1303
      %v1360 = vmax.bf16 %v1248, %v1304
      %v1361 = vmax.bf16 %v1249, %v1305
      %v1362 = vmax.bf16 %v1250, %v1306
      %v1363 = vmax.bf16 %v1251, %v1307
      %v1364 = vmax.bf16 %v1252, %v1308
      %v1365 = vmax.bf16 %v1253, %v1309
      %v1366 = vmax.bf16 %v1254, %v1310
      %v1367 = vmax.bf16 %v1255, %v1311
      %v1368 = vmax.bf16 %v1256, %v1312
      %v1369 = vmax.bf16 %v1257, %v1313
      %v1370 = vmax.bf16 %v1258, %v1314
      %v1371 = vmax.bf16 %v1259, %v1315
      %v1372 = vmax.bf16 %v1260, %v1316
      %v1373 = vmax.bf16 %v1261, %v1317
      %v1374 = vmax.bf16 %v1262, %v1318
      %v1375 = vmax.bf16 %v1263, %v1319
      %v1376 = vmax.bf16 %v1264, %v1320
      %v1377 = vmax.bf16 %v1265, %v1321
      %v1378 = vmax.bf16 %v1266, %v1322
      %v1379 = vmax.bf16 %v1267, %v1323
      %v1380 = vmax.bf16 %v1268, %v1324
      %v1381 = vmax.bf16 %v1269, %v1325
      %v1382 = vmax.bf16 %v1270, %v1326
      %v1383 = vmax.bf16 %v1271, %v1327
      %v1384 = vmax.bf16 %v1272, %v1328
      %v1385 = vmax.bf16 %v1273, %v1329
      %v1386 = vmax.bf16 %v1274, %v1330
      %v1387 = vmax.bf16 %v1275, %v1331
      %v1388 = vmax.bf16 %v1276, %v1332
      %v1389 = vmax.bf16 %v1277, %v1333
      %v1390 = vmax.bf16 %v1278, %v1334
      %v1391 = vmax.bf16 %v1279, %v1335
      %v1392 = vmax.bf16 %v1280, %v1336
      %v1393 = vmax.bf16 %v1281, %v1337
      %v1394 = vmax.bf16 %v1282, %v1338
      %v1395 = vmax.bf16 %v1283, %v1339
      %v1396 = vmax.bf16 %v1284, %v1340
      %v1397 = vmax.bf16 %v1285, %v1341
      %v1398 = vmax.bf16 %v1286, %v1342
      %v1399 = vmax.bf16 %v1287, %v1343
      %v1400 = vmax.bf16 %v1288, %v1344
      %v1401 = vld [vmem:[%s553] sm:$0xf]
      %v1402 = vld [vmem:[%s553 + $0x4] sm:$0xf]
      %v1403 = vld [vmem:[%s553 + $0x8] sm:$0xf]
      %v1404 = vld [vmem:[%s553 + $0xc] sm:$0xf]
      %v1405 = vld [vmem:[%s553 + $0x10] sm:$0xf]
      %v1406 = vld [vmem:[%s553 + $0x14] sm:$0xf]
      %v1407 = vld [vmem:[%s553 + $0x18] sm:$0xf]
      %v1408 = vld [vmem:[%s553 + $0x1c] sm:$0xf]
      %v1409 = vld [vmem:[%s553 + $0x20] sm:$0xf]
      %v1410 = vld [vmem:[%s553 + $0x24] sm:$0xf]
      %v1411 = vld [vmem:[%s553 + $0x28] sm:$0xf]
      %v1412 = vld [vmem:[%s553 + $0x2c] sm:$0xf]
      %v1413 = vld [vmem:[%s553 + $0x30] sm:$0xf]
      %v1414 = vld [vmem:[%s553 + $0x34] sm:$0xf]
      %v1415 = vld [vmem:[%s553 + $0x38] sm:$0xf]
      %v1416 = vld [vmem:[%s553 + $0x3c] sm:$0xf]
      %v1417 = vld [vmem:[%s553 + $0x40] sm:$0xf]
      %v1418 = vld [vmem:[%s553 + $0x44] sm:$0xf]
      %v1419 = vld [vmem:[%s553 + $0x48] sm:$0xf]
      %v1420 = vld [vmem:[%s553 + $0x4c] sm:$0xf]
      %v1421 = vld [vmem:[%s553 + $0x50] sm:$0xf]
      %v1422 = vld [vmem:[%s553 + $0x54] sm:$0xf]
      %v1423 = vld [vmem:[%s553 + $0x58] sm:$0xf]
      %v1424 = vld [vmem:[%s553 + $0x5c] sm:$0xf]
      %v1425 = vld [vmem:[%s553 + $0x60] sm:$0xf]
      %v1426 = vld [vmem:[%s553 + $0x64] sm:$0xf]
      %v1427 = vld [vmem:[%s553 + $0x68] sm:$0xf]
      %v1428 = vld [vmem:[%s553 + $0x6c] sm:$0xf]
      %v1429 = vld [vmem:[%s553 + $0x70] sm:$0xf]
      %v1430 = vld [vmem:[%s553 + $0x74] sm:$0xf]
      %v1431 = vld [vmem:[%s553 + $0x78] sm:$0xf]
      %v1432 = vld [vmem:[%s553 + $0x7c] sm:$0xf]
      %v1433 = vld [vmem:[%s553 + $0x80] sm:$0xf]
      %v1434 = vld [vmem:[%s553 + $0x84] sm:$0xf]
      %v1435 = vld [vmem:[%s553 + $0x88] sm:$0xf]
      %v1436 = vld [vmem:[%s553 + $0x8c] sm:$0xf]
      %v1437 = vld [vmem:[%s553 + $0x90] sm:$0xf]
      %v1438 = vld [vmem:[%s553 + $0x94] sm:$0xf]
      %v1439 = vld [vmem:[%s553 + $0x98] sm:$0xf]
      %v1440 = vld [vmem:[%s553 + $0x9c] sm:$0xf]
      %v1441 = vld [vmem:[%s553 + $0xa0] sm:$0xf]
      %v1442 = vld [vmem:[%s553 + $0xa4] sm:$0xf]
      %v1443 = vld [vmem:[%s553 + $0xa8] sm:$0xf]
      %v1444 = vld [vmem:[%s553 + $0xac] sm:$0xf]
      %v1445 = vld [vmem:[%s553 + $0xb0] sm:$0xf]
      %v1446 = vld [vmem:[%s553 + $0xb4] sm:$0xf]
      %v1447 = vld [vmem:[%s553 + $0xb8] sm:$0xf]
      %v1448 = vld [vmem:[%s553 + $0xbc] sm:$0xf]
      %v1449 = vld [vmem:[%s553 + $0xc0] sm:$0xf]
      %v1450 = vld [vmem:[%s553 + $0xc4] sm:$0xf]
      %v1451 = vld [vmem:[%s553 + $0xc8] sm:$0xf]
      %v1452 = vld [vmem:[%s553 + $0xcc] sm:$0xf]
      %v1453 = vld [vmem:[%s553 + $0xd0] sm:$0xf]
      %v1454 = vld [vmem:[%s553 + $0xd4] sm:$0xf]
      %v1455 = vld [vmem:[%s553 + $0xd8] sm:$0xf]
      %v1456 = vld [vmem:[%s553 + $0xdc] sm:$0xf]
      %v1457 = vmax.bf16 %v1345, %v1401
      %v1458 = vmax.bf16 %v1346, %v1402
      %v1459 = vmax.bf16 %v1347, %v1403
      %v1460 = vmax.bf16 %v1348, %v1404
      %v1461 = vmax.bf16 %v1349, %v1405
      %v1462 = vmax.bf16 %v1350, %v1406
      %v1463 = vmax.bf16 %v1351, %v1407
      %v1464 = vmax.bf16 %v1352, %v1408
      %v1465 = vmax.bf16 %v1353, %v1409
      %v1466 = vmax.bf16 %v1354, %v1410
      %v1467 = vmax.bf16 %v1355, %v1411
      %v1468 = vmax.bf16 %v1356, %v1412
      %v1469 = vmax.bf16 %v1357, %v1413
      %v1470 = vmax.bf16 %v1358, %v1414
      %v1471 = vmax.bf16 %v1359, %v1415
      %v1472 = vmax.bf16 %v1360, %v1416
      %v1473 = vmax.bf16 %v1361, %v1417
      %v1474 = vmax.bf16 %v1362, %v1418
      %v1475 = vmax.bf16 %v1363, %v1419
      %v1476 = vmax.bf16 %v1364, %v1420
      %v1477 = vmax.bf16 %v1365, %v1421
      %v1478 = vmax.bf16 %v1366, %v1422
      %v1479 = vmax.bf16 %v1367, %v1423
      %v1480 = vmax.bf16 %v1368, %v1424
      %v1481 = vmax.bf16 %v1369, %v1425
      %v1482 = vmax.bf16 %v1370, %v1426
      %v1483 = vmax.bf16 %v1371, %v1427
      %v1484 = vmax.bf16 %v1372, %v1428
      %v1485 = vmax.bf16 %v1373, %v1429
      %v1486 = vmax.bf16 %v1374, %v1430
      %v1487 = vmax.bf16 %v1375, %v1431
      %v1488 = vmax.bf16 %v1376, %v1432
      %v1489 = vmax.bf16 %v1377, %v1433
      %v1490 = vmax.bf16 %v1378, %v1434
      %v1491 = vmax.bf16 %v1379, %v1435
      %v1492 = vmax.bf16 %v1380, %v1436
      %v1493 = vmax.bf16 %v1381, %v1437
      %v1494 = vmax.bf16 %v1382, %v1438
      %v1495 = vmax.bf16 %v1383, %v1439
      %v1496 = vmax.bf16 %v1384, %v1440
      %v1497 = vmax.bf16 %v1385, %v1441
      %v1498 = vmax.bf16 %v1386, %v1442
      %v1499 = vmax.bf16 %v1387, %v1443
      %v1500 = vmax.bf16 %v1388, %v1444
      %v1501 = vmax.bf16 %v1389, %v1445
      %v1502 = vmax.bf16 %v1390, %v1446
      %v1503 = vmax.bf16 %v1391, %v1447
      %v1504 = vmax.bf16 %v1392, %v1448
      %v1505 = vmax.bf16 %v1393, %v1449
      %v1506 = vmax.bf16 %v1394, %v1450
      %v1507 = vmax.bf16 %v1395, %v1451
      %v1508 = vmax.bf16 %v1396, %v1452
      %v1509 = vmax.bf16 %v1397, %v1453
      %v1510 = vmax.bf16 %v1398, %v1454
      %v1511 = vmax.bf16 %v1399, %v1455
      %v1512 = vmax.bf16 %v1400, %v1456
      %1513 = vst [vmem:[%s559] sm:$0xf] %v1457
      %1514 = vst [vmem:[%s559 + $0x4] sm:$0xf] %v1458
      %1515 = vst [vmem:[%s559 + $0x8] sm:$0xf] %v1459
      %1516 = vst [vmem:[%s559 + $0xc] sm:$0xf] %v1460
      %1517 = vst [vmem:[%s559 + $0x10] sm:$0xf] %v1461
      %1518 = vst [vmem:[%s559 + $0x14] sm:$0xf] %v1462
      %1519 = vst [vmem:[%s559 + $0x18] sm:$0xf] %v1463
      %1520 = vst [vmem:[%s559 + $0x1c] sm:$0xf] %v1464
      %1521 = vst [vmem:[%s559 + $0x20] sm:$0xf] %v1465
      %1522 = vst [vmem:[%s559 + $0x24] sm:$0xf] %v1466
      %1523 = vst [vmem:[%s559 + $0x28] sm:$0xf] %v1467
      %1524 = vst [vmem:[%s559 + $0x2c] sm:$0xf] %v1468
      %1525 = vst [vmem:[%s559 + $0x30] sm:$0xf] %v1469
      %1526 = vst [vmem:[%s559 + $0x34] sm:$0xf] %v1470
      %1527 = vst [vmem:[%s559 + $0x38] sm:$0xf] %v1471
      %1528 = vst [vmem:[%s559 + $0x3c] sm:$0xf] %v1472
      %1529 = vst [vmem:[%s559 + $0x40] sm:$0xf] %v1473
      %1530 = vst [vmem:[%s559 + $0x44] sm:$0xf] %v1474
      %1531 = vst [vmem:[%s559 + $0x48] sm:$0xf] %v1475
      %1532 = vst [vmem:[%s559 + $0x4c] sm:$0xf] %v1476
      %1533 = vst [vmem:[%s559 + $0x50] sm:$0xf] %v1477
      %1534 = vst [vmem:[%s559 + $0x54] sm:$0xf] %v1478
      %1535 = vst [vmem:[%s559 + $0x58] sm:$0xf] %v1479
      %1536 = vst [vmem:[%s559 + $0x5c] sm:$0xf] %v1480
      %1537 = vst [vmem:[%s559 + $0x60] sm:$0xf] %v1481
      %1538 = vst [vmem:[%s559 + $0x64] sm:$0xf] %v1482
      %1539 = vst [vmem:[%s559 + $0x68] sm:$0xf] %v1483
      %1540 = vst [vmem:[%s559 + $0x6c] sm:$0xf] %v1484
      %1541 = vst [vmem:[%s559 + $0x70] sm:$0xf] %v1485
      %1542 = vst [vmem:[%s559 + $0x74] sm:$0xf] %v1486
      %1543 = vst [vmem:[%s559 + $0x78] sm:$0xf] %v1487
      %1544 = vst [vmem:[%s559 + $0x7c] sm:$0xf] %v1488
      %1545 = vst [vmem:[%s559 + $0x80] sm:$0xf] %v1489
      %1546 = vst [vmem:[%s559 + $0x84] sm:$0xf] %v1490
      %1547 = vst [vmem:[%s559 + $0x88] sm:$0xf] %v1491
      %1548 = vst [vmem:[%s559 + $0x8c] sm:$0xf] %v1492
      %1549 = vst [vmem:[%s559 + $0x90] sm:$0xf] %v1493
      %1550 = vst [vmem:[%s559 + $0x94] sm:$0xf] %v1494
      %1551 = vst [vmem:[%s559 + $0x98] sm:$0xf] %v1495
      %1552 = vst [vmem:[%s559 + $0x9c] sm:$0xf] %v1496
      %1553 = vst [vmem:[%s559 + $0xa0] sm:$0xf] %v1497
      %1554 = vst [vmem:[%s559 + $0xa4] sm:$0xf] %v1498
      %1555 = vst [vmem:[%s559 + $0xa8] sm:$0xf] %v1499
      %1556 = vst [vmem:[%s559 + $0xac] sm:$0xf] %v1500
      %1557 = vst [vmem:[%s559 + $0xb0] sm:$0xf] %v1501
      %1558 = vst [vmem:[%s559 + $0xb4] sm:$0xf] %v1502
      %1559 = vst [vmem:[%s559 + $0xb8] sm:$0xf] %v1503
      %1560 = vst [vmem:[%s559 + $0xbc] sm:$0xf] %v1504
      %1561 = vst [vmem:[%s559 + $0xc0] sm:$0xf] %v1505
      %1562 = vst [vmem:[%s559 + $0xc4] sm:$0xf] %v1506
      %1563 = vst [vmem:[%s559 + $0xc8] sm:$0xf] %v1507
      %1564 = vst [vmem:[%s559 + $0xcc] sm:$0xf] %v1508
      %1565 = vst [vmem:[%s559 + $0xd0] sm:$0xf] %v1509
      %1566 = vst [vmem:[%s559 + $0xd4] sm:$0xf] %v1510
      %1567 = vst [vmem:[%s559 + $0xd8] sm:$0xf] %v1511
      %1568 = vst [vmem:[%s559 + $0xdc] sm:$0xf] %v1512
      %p1569 = scmp.eq.s32.totalorder %s23, 0
      // Predicated region
      $region57: #{_lambda_.8} parent=55 // pred_check
        %p1570 = pneg %p1569
      $region58: #{_lambda_.8} parent=55 // pred_check_branch
        %1572 = sbr.rel (%p1570) target = $region60
      $region59: #{_lambda_.8} parent=55 // pred_region
        %1573 = vst [vmem:[%s10] sm:$0x1] 0.0
        %1574 = vst [vmem:[%s11] sm:$0x1] 0.0
      $region60: #{_lambda_.8} parent=55 // pred_fallthru
        _
      %v1575 = vunpack.c.l.bf16 %v1457
      %v1576 = vunpack.c.l.bf16 %v1458
      %v1577 = vunpack.c.l.bf16 %v1459
      %v1578 = vunpack.c.l.bf16 %v1460
      %v1579 = vunpack.c.l.bf16 %v1461
      %v1580 = vunpack.c.l.bf16 %v1462
      %v1581 = vunpack.c.l.bf16 %v1463
      %v1582 = vunpack.c.l.bf16 %v1464
      %v1583 = vunpack.c.l.bf16 %v1465
      %v1584 = vunpack.c.l.bf16 %v1466
      %v1585 = vunpack.c.l.bf16 %v1467
      %v1586 = vunpack.c.l.bf16 %v1468
      %v1587 = vunpack.c.l.bf16 %v1469
      %v1588 = vunpack.c.l.bf16 %v1470
      %v1589 = vunpack.c.l.bf16 %v1471
      %v1590 = vunpack.c.l.bf16 %v1472
      %v1591 = vunpack.c.l.bf16 %v1473
      %v1592 = vunpack.c.l.bf16 %v1474
      %v1593 = vunpack.c.l.bf16 %v1475
      %v1594 = vunpack.c.l.bf16 %v1476
      %v1595 = vunpack.c.l.bf16 %v1477
      %v1596 = vunpack.c.l.bf16 %v1478
      %v1597 = vunpack.c.l.bf16 %v1479
      %v1598 = vunpack.c.l.bf16 %v1480
      %v1599 = vunpack.c.l.bf16 %v1481
      %v1600 = vunpack.c.l.bf16 %v1482
      %v1601 = vunpack.c.l.bf16 %v1483
      %v1602 = vunpack.c.l.bf16 %v1484
      %v1603 = vunpack.c.l.bf16 %v1485
      %v1604 = vunpack.c.l.bf16 %v1486
      %v1605 = vunpack.c.l.bf16 %v1487
      %v1606 = vunpack.c.l.bf16 %v1488
      %v1607 = vunpack.c.l.bf16 %v1489
      %v1608 = vunpack.c.l.bf16 %v1490
      %v1609 = vunpack.c.l.bf16 %v1491
      %v1610 = vunpack.c.l.bf16 %v1492
      %v1611 = vunpack.c.l.bf16 %v1493
      %v1612 = vunpack.c.l.bf16 %v1494
      %v1613 = vunpack.c.l.bf16 %v1495
      %v1614 = vunpack.c.l.bf16 %v1496
      %v1615 = vunpack.c.l.bf16 %v1497
      %v1616 = vunpack.c.l.bf16 %v1498
      %v1617 = vunpack.c.l.bf16 %v1499
      %v1618 = vunpack.c.l.bf16 %v1500
      %v1619 = vunpack.c.l.bf16 %v1501
      %v1620 = vunpack.c.l.bf16 %v1502
      %v1621 = vunpack.c.l.bf16 %v1503
      %v1622 = vunpack.c.l.bf16 %v1504
      %v1623 = vunpack.c.l.bf16 %v1505
      %v1624 = vunpack.c.l.bf16 %v1506
      %v1625 = vunpack.c.l.bf16 %v1507
      %v1626 = vunpack.c.l.bf16 %v1508
      %v1627 = vunpack.c.l.bf16 %v1509
      %v1628 = vunpack.c.l.bf16 %v1510
      %v1629 = vunpack.c.l.bf16 %v1511
      %v1630 = vunpack.c.l.bf16 %v1512
      %v1631 = vld [vmem:[%s10] sm:$0x1]
      %v1632 = vadd.f32 %v1575, %v1576
      %v1633 = vadd.f32 %v1632, %v1577
      %v1634 = vadd.f32 %v1633, %v1578
      %v1635 = vadd.f32 %v1634, %v1579
      %v1636 = vadd.f32 %v1635, %v1580
      %v1637 = vadd.f32 %v1636, %v1581
      %v1638 = vadd.f32 %v1637, %v1582
      %v1639 = vadd.f32 %v1638, %v1583
      %v1640 = vadd.f32 %v1639, %v1584
      %v1641 = vadd.f32 %v1640, %v1585
      %v1642 = vadd.f32 %v1641, %v1586
      %v1643 = vadd.f32 %v1642, %v1587
      %v1644 = vadd.f32 %v1643, %v1588
      %v1645 = vadd.f32 %v1644, %v1589
      %v1646 = vadd.f32 %v1645, %v1590
      %v1647 = vadd.f32 %v1646, %v1591
      %v1648 = vadd.f32 %v1647, %v1592
      %v1649 = vadd.f32 %v1648, %v1593
      %v1650 = vadd.f32 %v1649, %v1594
      %v1651 = vadd.f32 %v1650, %v1595
      %v1652 = vadd.f32 %v1651, %v1596
      %v1653 = vadd.f32 %v1652, %v1597
      %v1654 = vadd.f32 %v1653, %v1598
      %v1655 = vadd.f32 %v1654, %v1599
      %v1656 = vadd.f32 %v1655, %v1600
      %v1657 = vadd.f32 %v1656, %v1601
      %v1658 = vadd.f32 %v1657, %v1602
      %v1659 = vadd.f32 %v1658, %v1603
      %v1660 = vadd.f32 %v1659, %v1604
      %v1661 = vadd.f32 %v1660, %v1605
      %v1662 = vadd.f32 %v1661, %v1606
      %v1663 = vadd.f32 %v1662, %v1607
      %v1664 = vadd.f32 %v1663, %v1608
      %v1665 = vadd.f32 %v1664, %v1609
      %v1666 = vadd.f32 %v1665, %v1610
      %v1667 = vadd.f32 %v1666, %v1611
      %v1668 = vadd.f32 %v1667, %v1612
      %v1669 = vadd.f32 %v1668, %v1613
      %v1670 = vadd.f32 %v1669, %v1614
      %v1671 = vadd.f32 %v1670, %v1615
      %v1672 = vadd.f32 %v1671, %v1616
      %v1673 = vadd.f32 %v1672, %v1617
      %v1674 = vadd.f32 %v1673, %v1618
      %v1675 = vadd.f32 %v1674, %v1619
      %v1676 = vadd.f32 %v1675, %v1620
      %v1677 = vadd.f32 %v1676, %v1621
      %v1678 = vadd.f32 %v1677, %v1622
      %v1679 = vadd.f32 %v1678, %v1623
      %v1680 = vadd.f32 %v1679, %v1624
      %v1681 = vadd.f32 %v1680, %v1625
      %v1682 = vadd.f32 %v1681, %v1626
      %v1683 = vadd.f32 %v1682, %v1627
      %v1684 = vadd.f32 %v1683, %v1628
      %v1685 = vadd.f32 %v1684, %v1629
      %v1686 = vadd.f32 %v1685, %v1630
      %v1687 = vrot.slane %v1686, 4
      %v1688 = vadd.f32 %v1686, %v1687
      %v1689 = vrot.slane %v1688, 2
      %v1690 = vadd.f32 %v1688, %v1689
      %v1691 = vrot.slane %v1690, 1
      %v1692 = vadd.f32 %v1690, %v1691
      %v1693 = vadd.f32 %v1631, %v1692
      %1694 = vst [vmem:[%s10] sm:$0x1] %v1693
      %v1695 = vld [vmem:[%s11] sm:$0x1]
      %v1696 = vmul.f32 %v1575, %v1575
      %v1697 = vmul.f32 %v1576, %v1576
      %v1698 = vmul.f32 %v1577, %v1577
      %v1699 = vmul.f32 %v1578, %v1578
      %v1700 = vmul.f32 %v1579, %v1579
      %v1701 = vmul.f32 %v1580, %v1580
      %v1702 = vmul.f32 %v1581, %v1581
      %v1703 = vmul.f32 %v1582, %v1582
      %v1704 = vmul.f32 %v1583, %v1583
      %v1705 = vmul.f32 %v1584, %v1584
      %v1706 = vmul.f32 %v1585, %v1585
      %v1707 = vmul.f32 %v1586, %v1586
      %v1708 = vmul.f32 %v1587, %v1587
      %v1709 = vmul.f32 %v1588, %v1588
      %v1710 = vmul.f32 %v1589, %v1589
      %v1711 = vmul.f32 %v1590, %v1590
      %v1712 = vmul.f32 %v1591, %v1591
      %v1713 = vmul.f32 %v1592, %v1592
      %v1714 = vmul.f32 %v1593, %v1593
      %v1715 = vmul.f32 %v1594, %v1594
      %v1716 = vmul.f32 %v1595, %v1595
      %v1717 = vmul.f32 %v1596, %v1596
      %v1718 = vmul.f32 %v1597, %v1597
      %v1719 = vmul.f32 %v1598, %v1598
      %v1720 = vmul.f32 %v1599, %v1599
      %v1721 = vmul.f32 %v1600, %v1600
      %v1722 = vmul.f32 %v1601, %v1601
      %v1723 = vmul.f32 %v1602, %v1602
      %v1724 = vmul.f32 %v1603, %v1603
      %v1725 = vmul.f32 %v1604, %v1604
      %v1726 = vmul.f32 %v1605, %v1605
      %v1727 = vmul.f32 %v1606, %v1606
      %v1728 = vmul.f32 %v1607, %v1607
      %v1729 = vmul.f32 %v1608, %v1608
      %v1730 = vmul.f32 %v1609, %v1609
      %v1731 = vmul.f32 %v1610, %v1610
      %v1732 = vmul.f32 %v1611, %v1611
      %v1733 = vmul.f32 %v1612, %v1612
      %v1734 = vmul.f32 %v1613, %v1613
      %v1735 = vmul.f32 %v1614, %v1614
      %v1736 = vmul.f32 %v1615, %v1615
      %v1737 = vmul.f32 %v1616, %v1616
      %v1738 = vmul.f32 %v1617, %v1617
      %v1739 = vmul.f32 %v1618, %v1618
      %v1740 = vmul.f32 %v1619, %v1619
      %v1741 = vmul.f32 %v1620, %v1620
      %v1742 = vmul.f32 %v1621, %v1621
      %v1743 = vmul.f32 %v1622, %v1622
      %v1744 = vmul.f32 %v1623, %v1623
      %v1745 = vmul.f32 %v1624, %v1624
      %v1746 = vmul.f32 %v1625, %v1625
      %v1747 = vmul.f32 %v1626, %v1626
      %v1748 = vmul.f32 %v1627, %v1627
      %v1749 = vmul.f32 %v1628, %v1628
      %v1750 = vmul.f32 %v1629, %v1629
      %v1751 = vmul.f32 %v1630, %v1630
      %v1752 = vadd.f32 %v1696, %v1697
      %v1753 = vadd.f32 %v1752, %v1698
      %v1754 = vadd.f32 %v1753, %v1699
      %v1755 = vadd.f32 %v1754, %v1700
      %v1756 = vadd.f32 %v1755, %v1701
      %v1757 = vadd.f32 %v1756, %v1702
      %v1758 = vadd.f32 %v1757, %v1703
      %v1759 = vadd.f32 %v1758, %v1704
      %v1760 = vadd.f32 %v1759, %v1705
      %v1761 = vadd.f32 %v1760, %v1706
      %v1762 = vadd.f32 %v1761, %v1707
      %v1763 = vadd.f32 %v1762, %v1708
      %v1764 = vadd.f32 %v1763, %v1709
      %v1765 = vadd.f32 %v1764, %v1710
      %v1766 = vadd.f32 %v1765, %v1711
      %v1767 = vadd.f32 %v1766, %v1712
      %v1768 = vadd.f32 %v1767, %v1713
      %v1769 = vadd.f32 %v1768, %v1714
      %v1770 = vadd.f32 %v1769, %v1715
      %v1771 = vadd.f32 %v1770, %v1716
      %v1772 = vadd.f32 %v1771, %v1717
      %v1773 = vadd.f32 %v1772, %v1718
      %v1774 = vadd.f32 %v1773, %v1719
      %v1775 = vadd.f32 %v1774, %v1720
      %v1776 = vadd.f32 %v1775, %v1721
      %v1777 = vadd.f32 %v1776, %v1722
      %v1778 = vadd.f32 %v1777, %v1723
      %v1779 = vadd.f32 %v1778, %v1724
      %v1780 = vadd.f32 %v1779, %v1725
      %v1781 = vadd.f32 %v1780, %v1726
      %v1782 = vadd.f32 %v1781, %v1727
      %v1783 = vadd.f32 %v1782, %v1728
      %v1784 = vadd.f32 %v1783, %v1729
      %v1785 = vadd.f32 %v1784, %v1730
      %v1786 = vadd.f32 %v1785, %v1731
      %v1787 = vadd.f32 %v1786, %v1732
      %v1788 = vadd.f32 %v1787, %v1733
      %v1789 = vadd.f32 %v1788, %v1734
      %v1790 = vadd.f32 %v1789, %v1735
      %v1791 = vadd.f32 %v1790, %v1736
      %v1792 = vadd.f32 %v1791, %v1737
      %v1793 = vadd.f32 %v1792, %v1738
      %v1794 = vadd.f32 %v1793, %v1739
      %v1795 = vadd.f32 %v1794, %v1740
      %v1796 = vadd.f32 %v1795, %v1741
      %v1797 = vadd.f32 %v1796, %v1742
      %v1798 = vadd.f32 %v1797, %v1743
      %v1799 = vadd.f32 %v1798, %v1744
      %v1800 = vadd.f32 %v1799, %v1745
      %v1801 = vadd.f32 %v1800, %v1746
      %v1802 = vadd.f32 %v1801, %v1747
      %v1803 = vadd.f32 %v1802, %v1748
      %v1804 = vadd.f32 %v1803, %v1749
      %v1805 = vadd.f32 %v1804, %v1750
      %v1806 = vadd.f32 %v1805, %v1751
      %v1807 = vrot.slane %v1806, 4
      %v1808 = vadd.f32 %v1806, %v1807
      %v1809 = vrot.slane %v1808, 2
      %v1810 = vadd.f32 %v1808, %v1809
      %v1811 = vrot.slane %v1810, 1
      %v1812 = vadd.f32 %v1810, %v1811
      %v1813 = vadd.f32 %v1695, %v1812
      %1814 = vst [vmem:[%s11] sm:$0x1] %v1813
      %s1815 = smul.u32 56, %s23
      %p1816 = scmp.lt.s32.totalorder %s1815, 783
      %s1817 = scalar_select %p1816, %s1815, 783
      %s1818 = smul.addr %s1817, 4
      %s1819 = scalar_lea.vmem %s9, %s1818
      // Predicated region
      $region61: #{_lambda_.8} parent=55 // pred_check
        %p1820 = pneg %p275
      $region62: #{_lambda_.8} parent=55 // pred_check_branch
        %1822 = sbr.rel (%p1820) target = $region64
      $region63: #{_lambda_.8} parent=55 // pred_region
        %s1823 = smul.u32 56, %s23
      $region64: #{_lambda_.8} parent=55 // pred_fallthru
        _
      // Predicated region
      $region65: #{_lambda_.8} parent=55 // pred_check
        %p1824 = pneg %p296
      $region66: #{_lambda_.8} parent=55 // pred_check_branch
        %1826 = sbr.rel (%p1824) target = $region68
      $region67: #{_lambda_.8} parent=55 // pred_region
        _
      $region68: #{_lambda_.8} parent=55 // pred_fallthru
        _
      // Predicated region
      $region69: #{_lambda_.8} parent=55 // pred_check
        %p1827 = pneg %p317
      $region70: #{_lambda_.8} parent=55 // pred_check_branch
        %1829 = sbr.rel (%p1827) target = $region72
      $region71: #{_lambda_.8} parent=55 // pred_region
        _
      $region72: #{_lambda_.8} parent=55 // pred_fallthru
        _
      // Predicated region
      $region73: #{_lambda_.8} parent=55 // pred_check
        %p1830 = pneg %p296
      $region74: #{_lambda_.8} parent=55 // pred_check_branch
        %1832 = sbr.rel (%p1830) target = $region76
      $region75: #{_lambda_.8} parent=55 // pred_region
        _
      $region76: #{_lambda_.8} parent=55 // pred_fallthru
        _
      // Predicated region
      $region77: #{_lambda_.8} parent=55 // pred_check
        %p1833 = pneg %p317
      $region78: #{_lambda_.8} parent=55 // pred_check_branch
        %1835 = sbr.rel (%p1833) target = $region80
      $region79: #{_lambda_.8} parent=55 // pred_region
        _
      $region80: #{_lambda_.8} parent=55 // pred_fallthru
        _
    $region56: #{_lambda_.8} parent=5 // pred_fallthru
      _
    %p1836 = scmp.le.s32.totalorder 2, %s18
    // Predicated region
    $region81: #{_lambda_.8} parent=5 // pred_check
      %p1837 = pneg %p1836
    $region82: #{_lambda_.8} parent=5 // pred_check_branch
      %1839 = sbr.rel (%p1837) target = $region84
    $region83: #{_lambda_.8} parent=5 // pred_region
      %s1840 = ssub.s32 %s18, 2
      // Predicated region
      $region85: #{_lambda_.8} parent=83 // pred_check
        %p1841 = pneg %p281
      $region86: #{_lambda_.8} parent=83 // pred_check_branch
        %1843 = sbr.rel (%p1841) target = $region88
      $region87: #{_lambda_.8} parent=83 // pred_region
        %s1844 = smul.u32 56, %s24
        %p1845 = scmp.lt.s32.totalorder %s1844, 783
        %s1846 = scalar_select %p1845, %s1844, 783
        %s1847 = smul.addr %s1846, 4
        %s1848 = scalar_lea.vmem %s9, %s1847
      $region88: #{_lambda_.8} parent=83 // pred_fallthru
        _
    $region84: #{_lambda_.8} parent=5 // pred_fallthru
      _
  $region6: #{_lambda_.8} parent=0 // loop_footer
    %s22 = sadd.s32 1, %s18
  $region7: #{_lambda_.8} parent=0 // loop_footer_branch
    %17 = sbr.rel target = $region3
  $region8: #{_lambda_.8} parent=0 // loop_exit
    _

// kernel: _lambda_.9
$region0: #{_lambda_.9}
  #allocation0 [shape = 'u32[]', space=smem, size = 0x4, offset = 0x4, fixed_abs, tag = 'smem constant byte address 0x4 - core index']
  #allocation1 [shape = 'u32[144,128]{1,0:T(1,128)}', space=vmem, size = 0x12000, scoped, tag = 'internal scratch']
  %s0 = inlined_call_operand.vmem [shape: bf16[1568,128], index: 0, kind: input, shape index: {}]
  %s1 = inlined_call_operand.vmem [shape: bf16[128,128], index: 1, kind: input, shape index: {}]
  %s2 = inlined_call_operand.vmem [shape: f32[1,128], index: 2, kind: input, shape index: {}]
  %s3 = inlined_call_operand.vmem [shape: bf16[1568,128], index: 3, kind: output, shape index: {0}]
  %s4 = inlined_call_operand.vmem [shape: f32[1,128], index: 4, kind: output, shape index: {1}]
  %s5 = inlined_call_operand.vmem [shape: f32[1,128], index: 5, kind: output, shape index: {2}]
  %6 = xla_tuple %s3, %s4, %s5
  %s7 = sld [smem:[#allocation0]]
  $region65: #{_lambda_.9} parent=0
    _
  %s9 = ssub.s32 1, %s7
  %s10 = scalar_select 0, %s9, %s7
  loop: start=0, step=1, limit=6
  $region2: #{_lambda_.9} parent=0 // loop_pre_header
    _
  $region3: #{_lambda_.9} parent=0 // loop_header
    %s12 = sphi 0, %s16
    %p13 = scmp.ge.s32.totalorder %s12, 6
    %s19 = sphi 0, %s31
    %s20 = sphi 0, %s27
    %s21 = sphi 0, %s19
    %s22 = sphi 0, %s20
    %s23 = sphi 0, %s21
    %s24 = sphi 0, %s22
    %s34 = sphi 0, %s36
    %s37 = sphi 0, %s34
    %s38 = sphi 0, %s37
    %s54 = sphi 0, %s38
    %s60 = sphi 0, %s62
    %s63 = sphi 0, %s60
    %s64 = sphi 0, %s63
    %s80 = sphi 0, %s64
    %s86 = sphi 0, %s88
    %s89 = sphi 0, %s86
    %s90 = sphi 0, %s89
    %s106 = sphi 0, %s90
    %s114 = sphi 0, %s116
    %s117 = sphi 0, %s114
    %s118 = sphi 0, %s117
    %s134 = sphi 0, %s118
    %s140 = sphi 0, %s142
    %s143 = sphi 0, %s140
    %s144 = sphi 0, %s143
    %s160 = sphi 0, %s144
    %s166 = sphi 0, %s168
    %s169 = sphi 0, %s166
    %s170 = sphi 0, %s169
    %s186 = sphi 0, %s170
  $region4: #{_lambda_.9} parent=0 // loop_header_branch
    %15 = sbr.rel (%p13) target = $region8
  $region5: #{_lambda_.9} parent=0 // loop_body
    %s17 = ssub.s32 %s12, 1
    %s18 = ssub.s32 %s12, 2
    %s25 = sadd.s32 1, %s20
    %p26 = scmp.ge.s32.totalorder %s25, 4
    %s27 = scalar_select %p26, 0, %s25
    %s28 = sadd.s32 1, %s19
    %s29 = scalar_select %p26, %s28, %s19
    %p30 = scmp.ge.s32.totalorder %s29, 1
    %s31 = scalar_select %p30, 0, %s29
    %s32 = ssub.s32 %s20, %s27
    %p33 = scmp.eq.s32.totalorder %s32, 0
    %s35 = sadd.s32 %s34, 1
    %s36 = scalar_select %p33, %s34, %s35
    %p39 = pneg %p33
    %p40 = scmp.eq.s32.totalorder %s12, 3
    %p41 = por %p39, %p40
    %p42 = scmp.ne.s32.totalorder %s34, %s37
    %p43 = scmp.eq.s32.totalorder %s12, 0
    %p44 = por %p42, %p43
    %p45 = scmp.ne.s32.totalorder %s34, %s37
    %p46 = scmp.eq.s32.totalorder %s17, 3
    %p47 = por %p45, %p46
    %p48 = scmp.ne.s32.totalorder %s37, %s38
    %p49 = scmp.eq.s32.totalorder %s17, 0
    %p50 = por %p48, %p49
    %p51 = scmp.ne.s32.totalorder %s37, %s38
    %p52 = scmp.eq.s32.totalorder %s18, 3
    %p53 = por %p51, %p52
    %p55 = scmp.ne.s32.totalorder %s38, %s54
    %p56 = scmp.eq.s32.totalorder %s18, 0
    %p57 = por %p55, %p56
    %s58 = ssub.s32 %s19, %s31
    %p59 = scmp.eq.s32.totalorder %s58, 0
    %s61 = sadd.s32 %s60, 1
    %s62 = scalar_select %p59, %s60, %s61
    %p65 = pneg %p59
    %p66 = scmp.eq.s32.totalorder %s12, 3
    %p67 = por %p65, %p66
    %p68 = scmp.ne.s32.totalorder %s60, %s63
    %p69 = scmp.eq.s32.totalorder %s12, 0
    %p70 = por %p68, %p69
    %p71 = scmp.ne.s32.totalorder %s60, %s63
    %p72 = scmp.eq.s32.totalorder %s17, 3
    %p73 = por %p71, %p72
    %p74 = scmp.ne.s32.totalorder %s63, %s64
    %p75 = scmp.eq.s32.totalorder %s17, 0
    %p76 = por %p74, %p75
    %p77 = scmp.ne.s32.totalorder %s63, %s64
    %p78 = scmp.eq.s32.totalorder %s18, 3
    %p79 = por %p77, %p78
    %p81 = scmp.ne.s32.totalorder %s64, %s80
    %p82 = scmp.eq.s32.totalorder %s18, 0
    %p83 = por %p81, %p82
    %s84 = ssub.s32 %s19, %s31
    %p85 = scmp.eq.s32.totalorder %s84, 0
    %s87 = sadd.s32 %s86, 1
    %s88 = scalar_select %p85, %s86, %s87
    %p91 = pneg %p85
    %p92 = scmp.eq.s32.totalorder %s12, 3
    %p93 = por %p91, %p92
    %p94 = scmp.ne.s32.totalorder %s86, %s89
    %p95 = scmp.eq.s32.totalorder %s12, 0
    %p96 = por %p94, %p95
    %p97 = scmp.ne.s32.totalorder %s86, %s89
    %p98 = scmp.eq.s32.totalorder %s17, 3
    %p99 = por %p97, %p98
    %p100 = scmp.ne.s32.totalorder %s89, %s90
    %p101 = scmp.eq.s32.totalorder %s17, 0
    %p102 = por %p100, %p101
    %p103 = scmp.ne.s32.totalorder %s89, %s90
    %p104 = scmp.eq.s32.totalorder %s18, 3
    %p105 = por %p103, %p104
    %p107 = scmp.ne.s32.totalorder %s90, %s106
    %p108 = scmp.eq.s32.totalorder %s18, 0
    %p109 = por %p107, %p108
    %s110 = ssub.s32 %s20, %s27
    %s111 = ssub.s32 %s19, %s31
    %s112 = sor.u32 %s110, %s111
    %p113 = scmp.eq.s32.totalorder %s112, 0
    %s115 = sadd.s32 %s114, 1
    %s116 = scalar_select %p113, %s114, %s115
    %p119 = pneg %p113
    %p120 = scmp.eq.s32.totalorder %s12, 3
    %p121 = por %p119, %p120
    %p122 = scmp.ne.s32.totalorder %s114, %s117
    %p123 = scmp.eq.s32.totalorder %s12, 0
    %p124 = por %p122, %p123
    %p125 = scmp.ne.s32.totalorder %s114, %s117
    %p126 = scmp.eq.s32.totalorder %s17, 3
    %p127 = por %p125, %p126
    %p128 = scmp.ne.s32.totalorder %s117, %s118
    %p129 = scmp.eq.s32.totalorder %s17, 0
    %p130 = por %p128, %p129
    %p131 = scmp.ne.s32.totalorder %s117, %s118
    %p132 = scmp.eq.s32.totalorder %s18, 3
    %p133 = por %p131, %p132
    %p135 = scmp.ne.s32.totalorder %s118, %s134
    %p136 = scmp.eq.s32.totalorder %s18, 0
    %p137 = por %p135, %p136
    %s138 = ssub.s32 %s19, %s31
    %p139 = scmp.eq.s32.totalorder %s138, 0
    %s141 = sadd.s32 %s140, 1
    %s142 = scalar_select %p139, %s140, %s141
    %p145 = pneg %p139
    %p146 = scmp.eq.s32.totalorder %s12, 3
    %p147 = por %p145, %p146
    %p148 = scmp.ne.s32.totalorder %s140, %s143
    %p149 = scmp.eq.s32.totalorder %s12, 0
    %p150 = por %p148, %p149
    %p151 = scmp.ne.s32.totalorder %s140, %s143
    %p152 = scmp.eq.s32.totalorder %s17, 3
    %p153 = por %p151, %p152
    %p154 = scmp.ne.s32.totalorder %s143, %s144
    %p155 = scmp.eq.s32.totalorder %s17, 0
    %p156 = por %p154, %p155
    %p157 = scmp.ne.s32.totalorder %s143, %s144
    %p158 = scmp.eq.s32.totalorder %s18, 3
    %p159 = por %p157, %p158
    %p161 = scmp.ne.s32.totalorder %s144, %s160
    %p162 = scmp.eq.s32.totalorder %s18, 0
    %p163 = por %p161, %p162
    %s164 = ssub.s32 %s19, %s31
    %p165 = scmp.eq.s32.totalorder %s164, 0
    %s167 = sadd.s32 %s166, 1
    %s168 = scalar_select %p165, %s166, %s167
    %p171 = pneg %p165
    %p172 = scmp.eq.s32.totalorder %s12, 3
    %p173 = por %p171, %p172
    %p174 = scmp.ne.s32.totalorder %s166, %s169
    %p175 = scmp.eq.s32.totalorder %s12, 0
    %p176 = por %p174, %p175
    %p177 = scmp.ne.s32.totalorder %s166, %s169
    %p178 = scmp.eq.s32.totalorder %s17, 3
    %p179 = por %p177, %p178
    %p180 = scmp.ne.s32.totalorder %s169, %s170
    %p181 = scmp.eq.s32.totalorder %s17, 0
    %p182 = por %p180, %p181
    %p183 = scmp.ne.s32.totalorder %s169, %s170
    %p184 = scmp.eq.s32.totalorder %s18, 3
    %p185 = por %p183, %p184
    %p187 = scmp.ne.s32.totalorder %s170, %s186
    %p188 = scmp.eq.s32.totalorder %s18, 0
    %p189 = por %p187, %p188
    %p190 = scmp.le.s32.totalorder 1, %s12
    %p191 = scmp.lt.s32.totalorder %s12, 5
    %p192 = pnand %p190, %p191
    %p193 = pneg %p192
    // Predicated region
    $region9: #{_lambda_.9} parent=5 // pred_check
      _
    $region10: #{_lambda_.9} parent=5 // pred_check_branch
      %195 = sbr.rel (%p192) target = $region12
    $region11: #{_lambda_.9} parent=5 // pred_region
      %s196 = ssub.s32 %s12, 1
      // Predicated region
      $region13: #{_lambda_.9} parent=11 // pred_check
        %p197 = pneg %p76
      $region14: #{_lambda_.9} parent=11 // pred_check_branch
        %199 = sbr.rel (%p197) target = $region16
      $region15: #{_lambda_.9} parent=11 // pred_region
        %p200 = scmp.lt.s32.totalorder %s21, 0
        %s201 = scalar_select %p200, %s21, 0
        %s202 = smul.addr %s201, 4
        %s203 = scalar_lea.vmem %s1, %s202
      $region16: #{_lambda_.9} parent=11 // pred_fallthru
        _
      // Predicated region
      $region17: #{_lambda_.9} parent=11 // pred_check
        %p204 = pneg %p102
      $region18: #{_lambda_.9} parent=11 // pred_check_branch
        %206 = sbr.rel (%p204) target = $region20
      $region19: #{_lambda_.9} parent=11 // pred_region
        %p207 = scmp.lt.s32.totalorder %s21, 0
        %s208 = scalar_select %p207, %s21, 0
        %s209 = scalar_lea.vmem %s2, %s208
      $region20: #{_lambda_.9} parent=11 // pred_fallthru
        _
    $region12: #{_lambda_.9} parent=5 // pred_fallthru
      _
    %p210 = scmp.lt.s32.totalorder %s12, 4
    // Predicated region
    $region21: #{_lambda_.9} parent=5 // pred_check
      %p211 = pneg %p210
    $region22: #{_lambda_.9} parent=5 // pred_check_branch
      %213 = sbr.rel (%p211) target = $region24
    $region23: #{_lambda_.9} parent=5 // pred_region
      // Predicated region
      $region25: #{_lambda_.9} parent=23 // pred_check
        %p214 = pneg %p44
      $region26: #{_lambda_.9} parent=23 // pred_check_branch
        %216 = sbr.rel (%p214) target = $region28
      $region27: #{_lambda_.9} parent=23 // pred_region
        %s217 = smul.u32 49, %s20
        %p218 = scmp.lt.s32.totalorder %s217, 195
        %s219 = scalar_select %p218, %s217, 195
        %s220 = smul.addr %s219, 4
        %s221 = scalar_lea.vmem %s0, %s220
        %s222 = smul.u32 49, %s20
      $region28: #{_lambda_.9} parent=23 // pred_fallthru
        _
    $region24: #{_lambda_.9} parent=5 // pred_fallthru
      _
    %p223 = scmp.le.s32.totalorder 1, %s12
    %p224 = scmp.lt.s32.totalorder %s12, 5
    %p225 = pnand %p223, %p224
    %p226 = pneg %p225
    // Predicated region
    $region29: #{_lambda_.9} parent=5 // pred_check
      _
    $region30: #{_lambda_.9} parent=5 // pred_check_branch
      %228 = sbr.rel (%p225) target = $region32
    $region31: #{_lambda_.9} parent=5 // pred_region
      %s229 = ssub.s32 %s12, 1
      %s230 = smul.u32 49, %s22
      %p231 = scmp.lt.s32.totalorder %s230, 195
      %s232 = scalar_select %p231, %s230, 195
      %s233 = smul.addr %s232, 4
      %s234 = scalar_lea.vmem %s0, %s233
      %p235 = pneg %p50
      %p236 = pneg %p47
      %p237 = scmp.lt.s32.totalorder %s21, 0
      %s238 = scalar_select %p237, %s21, 0
      %s239 = smul.addr %s238, 4
      %s240 = scalar_lea.vmem %s1, %s239
      %p241 = pneg %p76
      %p242 = pneg %p73
      %p243 = scmp.lt.s32.totalorder %s21, 0
      %s244 = scalar_select %p243, %s21, 0
      %s245 = scalar_lea.vmem %s2, %s244
      %p246 = pneg %p102
      %p247 = pneg %p99
      %p248 = pneg %p130
      %p249 = pneg %p127
      %s250 = smul.u32 49, %s22
      %p251 = scmp.lt.s32.totalorder %s250, 195
      %s252 = scalar_select %p251, %s250, 195
      %p253 = scmp.lt.s32.totalorder %s21, 0
      %s254 = scalar_select %p253, %s21, 0
      %s255 = sadd.s32 %s254, %s252
      %s256 = smul.addr %s255, 4
      %s257 = scalar_lea.vmem %s3, %s256
      %p258 = pneg %p156
      %p259 = pneg %p153
      %p260 = scmp.lt.s32.totalorder %s21, 0
      %s261 = scalar_select %p260, %s21, 0
      %s262 = scalar_lea.vmem %s4, %s261
      %p263 = pneg %p182
      %p264 = pneg %p179
      %p265 = scmp.lt.s32.totalorder %s21, 0
      %s266 = scalar_select %p265, %s21, 0
      %s267 = scalar_lea.vmem %s5, %s266
      %s268 = smul.u32 49, %s22
      %p269 = scmp.lt.s32.totalorder %s268, 195
      %s270 = scalar_select %p269, %s268, 195
      %s271 = smul.addr %s270, 4
      %s272 = scalar_lea.vmem %s0, %s271
      %s273 = smul.u32 49, %s22
      %p274 = scmp.lt.s32.totalorder %s21, 0
      %s275 = scalar_select %p274, %s21, 0
      %s276 = smul.addr %s275, 4
      %s277 = scalar_lea.vmem %s1, %s276
      %p278 = scmp.lt.s32.totalorder %s21, 0
      %s279 = scalar_select %p278, %s21, 0
      %s280 = scalar_lea.vmem %s2, %s279
      %s281 = smul.u32 49, %s22
      %p282 = scmp.lt.s32.totalorder %s281, 195
      %s283 = scalar_select %p282, %s281, 195
      %p284 = scmp.lt.s32.totalorder %s21, 0
      %s285 = scalar_select %p284, %s21, 0
      %s286 = sadd.s32 %s285, %s283
      %s287 = smul.addr %s286, 4
      %s288 = scalar_lea.vmem %s3, %s287
      %s289 = smul.u32 49, %s22
      %p290 = scmp.lt.s32.totalorder %s21, 0
      %s291 = scalar_select %p290, %s21, 0
      %s292 = scalar_lea.vmem %s4, %s291
      %p293 = scmp.lt.s32.totalorder %s21, 0
      %s294 = scalar_select %p293, %s21, 0
      %s295 = scalar_lea.vmem %s5, %s294
      %v297 = vld [vmem:[%s272] sm:$0xf]
      %v298 = vld [vmem:[%s272 + $0x4] sm:$0xf]
      %v299 = vld [vmem:[%s272 + $0x8] sm:$0xf]
      %v300 = vld [vmem:[%s272 + $0xc] sm:$0xf]
      %v301 = vld [vmem:[%s272 + $0x10] sm:$0xf]
      %v302 = vld [vmem:[%s272 + $0x14] sm:$0xf]
      %v303 = vld [vmem:[%s272 + $0x18] sm:$0xf]
      %v304 = vld [vmem:[%s272 + $0x1c] sm:$0xf]
      %v305 = vld [vmem:[%s272 + $0x20] sm:$0xf]
      %v306 = vld [vmem:[%s272 + $0x24] sm:$0xf]
      %v307 = vld [vmem:[%s272 + $0x28] sm:$0xf]
      %v308 = vld [vmem:[%s272 + $0x2c] sm:$0xf]
      %v309 = vld [vmem:[%s272 + $0x30] sm:$0xf]
      %v310 = vld [vmem:[%s272 + $0x34] sm:$0xf]
      %v311 = vld [vmem:[%s272 + $0x38] sm:$0xf]
      %v312 = vld [vmem:[%s272 + $0x3c] sm:$0xf]
      %v313 = vld [vmem:[%s272 + $0x40] sm:$0xf]
      %v314 = vld [vmem:[%s272 + $0x44] sm:$0xf]
      %v315 = vld [vmem:[%s272 + $0x48] sm:$0xf]
      %v316 = vld [vmem:[%s272 + $0x4c] sm:$0xf]
      %v317 = vld [vmem:[%s272 + $0x50] sm:$0xf]
      %v318 = vld [vmem:[%s272 + $0x54] sm:$0xf]
      %v319 = vld [vmem:[%s272 + $0x58] sm:$0xf]
      %v320 = vld [vmem:[%s272 + $0x5c] sm:$0xf]
      %v321 = vld [vmem:[%s272 + $0x60] sm:$0xf]
      %v322 = vld [vmem:[%s272 + $0x64] sm:$0xf]
      %v323 = vld [vmem:[%s272 + $0x68] sm:$0xf]
      %v324 = vld [vmem:[%s272 + $0x6c] sm:$0xf]
      %v325 = vld [vmem:[%s272 + $0x70] sm:$0xf]
      %v326 = vld [vmem:[%s272 + $0x74] sm:$0xf]
      %v327 = vld [vmem:[%s272 + $0x78] sm:$0xf]
      %v328 = vld [vmem:[%s272 + $0x7c] sm:$0xf]
      %v329 = vld [vmem:[%s272 + $0x80] sm:$0xf]
      %v330 = vld [vmem:[%s272 + $0x84] sm:$0xf]
      %v331 = vld [vmem:[%s272 + $0x88] sm:$0xf]
      %v332 = vld [vmem:[%s272 + $0x8c] sm:$0xf]
      %v333 = vld [vmem:[%s272 + $0x90] sm:$0xf]
      %v334 = vld [vmem:[%s272 + $0x94] sm:$0xf]
      %v335 = vld [vmem:[%s272 + $0x98] sm:$0xf]
      %v336 = vld [vmem:[%s272 + $0x9c] sm:$0xf]
      %v337 = vld [vmem:[%s272 + $0xa0] sm:$0xf]
      %v338 = vld [vmem:[%s272 + $0xa4] sm:$0xf]
      %v339 = vld [vmem:[%s272 + $0xa8] sm:$0xf]
      %v340 = vld [vmem:[%s272 + $0xac] sm:$0xf]
      %v341 = vld [vmem:[%s272 + $0xb0] sm:$0xf]
      %v342 = vld [vmem:[%s272 + $0xb4] sm:$0xf]
      %v343 = vld [vmem:[%s272 + $0xb8] sm:$0xf]
      %v344 = vld [vmem:[%s272 + $0xbc] sm:$0xf]
      %v345 = vld [vmem:[%s272 + $0xc0] sm:$0xf]
      %v346 = vld [vmem:[%s277] sm:$0xf]
      %v347 = vld [vmem:[%s277 + $0x4] sm:$0xf]
      %v348 = vld [vmem:[%s277 + $0x8] sm:$0xf]
      %v349 = vld [vmem:[%s277 + $0xc] sm:$0xf]
      %v350 = vld [vmem:[%s277 + $0x10] sm:$0xf]
      %v351 = vld [vmem:[%s277 + $0x14] sm:$0xf]
      %v352 = vld [vmem:[%s277 + $0x18] sm:$0xf]
      %v353 = vld [vmem:[%s277 + $0x1c] sm:$0xf]
      %v354 = vld [vmem:[%s277 + $0x20] sm:$0xf]
      %v355 = vld [vmem:[%s277 + $0x24] sm:$0xf]
      %v356 = vld [vmem:[%s277 + $0x28] sm:$0xf]
      %v357 = vld [vmem:[%s277 + $0x2c] sm:$0xf]
      %v358 = vld [vmem:[%s277 + $0x30] sm:$0xf]
      %v359 = vld [vmem:[%s277 + $0x34] sm:$0xf]
      %v360 = vld [vmem:[%s277 + $0x38] sm:$0xf]
      %v361 = vld [vmem:[%s277 + $0x3c] sm:$0xf]
      %v362 = vld [vmem:[%s280] sm:$0x1]
      %v364 = vlaneseq
      %v365 = vshrl.u32 %v364, 7
      %v366 = vsub.s32 0, %v365
      %v367 = vrot.slane %v362, %v366
      %v418 = vunpack.c.l.b16 %v297
      %v419 = vunpack.c.l.b16 %v298
      %v420 = vunpack.c.l.b16 %v299
      %v421 = vunpack.c.l.b16 %v300
      %v422 = vunpack.c.l.b16 %v301
      %v423 = vunpack.c.l.b16 %v302
      %v424 = vunpack.c.l.b16 %v303
      %v425 = vunpack.c.l.b16 %v304
      %v426 = vunpack.c.l.b16 %v305
      %v427 = vunpack.c.l.b16 %v306
      %v428 = vunpack.c.l.b16 %v307
      %v429 = vunpack.c.l.b16 %v308
      %v430 = vunpack.c.l.b16 %v309
      %v431 = vunpack.c.l.b16 %v310
      %v432 = vunpack.c.l.b16 %v311
      %v433 = vunpack.c.l.b16 %v312
      %v434 = vunpack.c.l.b16 %v313
      %v435 = vunpack.c.l.b16 %v314
      %v436 = vunpack.c.l.b16 %v315
      %v437 = vunpack.c.l.b16 %v316
      %v438 = vunpack.c.l.b16 %v317
      %v439 = vunpack.c.l.b16 %v318
      %v440 = vunpack.c.l.b16 %v319
      %v441 = vunpack.c.l.b16 %v320
      %v442 = vunpack.c.l.b16 %v321
      %v443 = vunpack.c.l.b16 %v322
      %v444 = vunpack.c.l.b16 %v323
      %v445 = vunpack.c.l.b16 %v324
      %v446 = vunpack.c.l.b16 %v325
      %v447 = vunpack.c.l.b16 %v326
      %v448 = vunpack.c.l.b16 %v327
      %v449 = vunpack.c.l.b16 %v328
      %v450 = vunpack.c.l.b16 %v329
      %v451 = vunpack.c.l.b16 %v330
      %v452 = vunpack.c.l.b16 %v331
      %v453 = vunpack.c.l.b16 %v332
      %v454 = vunpack.c.l.b16 %v333
      %v455 = vunpack.c.l.b16 %v334
      %v456 = vunpack.c.l.b16 %v335
      %v457 = vunpack.c.l.b16 %v336
      %v458 = vunpack.c.l.b16 %v337
      %v459 = vunpack.c.l.b16 %v338
      %v460 = vunpack.c.l.b16 %v339
      %v461 = vunpack.c.l.b16 %v340
      %v462 = vunpack.c.l.b16 %v341
      %v463 = vunpack.c.l.b16 %v342
      %v464 = vunpack.c.l.b16 %v343
      %v465 = vunpack.c.l.b16 %v344
      %v466 = vunpack.c.l.b16 %v345
      %v467 = vpack.c.b16 %v419, %v418
      %v468 = vpack.c.b16 %v421, %v420
      %v469 = vpack.c.b16 %v423, %v422
      %v470 = vpack.c.b16 %v425, %v424
      %v471 = vpack.c.b16 %v427, %v426
      %v472 = vpack.c.b16 %v429, %v428
      %v473 = vpack.c.b16 %v431, %v430
      %v474 = vpack.c.b16 %v433, %v432
      %v475 = vpack.c.b16 %v435, %v434
      %v476 = vpack.c.b16 %v437, %v436
      %v477 = vpack.c.b16 %v439, %v438
      %v478 = vpack.c.b16 %v441, %v440
      %v479 = vpack.c.b16 %v443, %v442
      %v480 = vpack.c.b16 %v445, %v444
      %v481 = vpack.c.b16 %v447, %v446
      %v482 = vpack.c.b16 %v449, %v448
      %v483 = vpack.c.b16 %v451, %v450
      %v484 = vpack.c.b16 %v453, %v452
      %v485 = vpack.c.b16 %v455, %v454
      %v486 = vpack.c.b16 %v457, %v456
      %v487 = vpack.c.b16 %v459, %v458
      %v488 = vpack.c.b16 %v461, %v460
      %v489 = vpack.c.b16 %v463, %v462
      %v490 = vpack.c.b16 %v465, %v464
      %v491 = vpack.c.b16 %v466, %v466
      %v533 = vunpack.c.l.b16 %v346
      %v534 = vunpack.c.l.b16 %v347
      %v535 = vunpack.c.l.b16 %v348
      %v536 = vunpack.c.l.b16 %v349
      %v537 = vunpack.c.l.b16 %v350
      %v538 = vunpack.c.l.b16 %v351
      %v539 = vunpack.c.l.b16 %v352
      %v540 = vunpack.c.l.b16 %v353
      %v541 = vunpack.c.l.b16 %v354
      %v542 = vunpack.c.l.b16 %v355
      %v543 = vunpack.c.l.b16 %v356
      %v544 = vunpack.c.l.b16 %v357
      %v545 = vunpack.c.l.b16 %v358
      %v546 = vunpack.c.l.b16 %v359
      %v547 = vunpack.c.l.b16 %v360
      %v548 = vunpack.c.l.b16 %v361
      %v549 = vpack.c.b16 %v534, %v533
      %v550 = vpack.c.b16 %v536, %v535
      %v551 = vpack.c.b16 %v538, %v537
      %v552 = vpack.c.b16 %v540, %v539
      %v553 = vpack.c.b16 %v542, %v541
      %v554 = vpack.c.b16 %v544, %v543
      %v555 = vpack.c.b16 %v546, %v545
      %v556 = vpack.c.b16 %v548, %v547
      %565 = vmatprep.subr.bf16.mxu0 0
      %566 = vmatpush1.bf16.msra.mxu0 %v556
      %567 = vmatprep.subr.bf16.mxu0 0
      %568 = vmatpush1.bf16.msra.mxu0 %v555
      %569 = vmatprep.subr.bf16.mxu0 0
      %570 = vmatpush1.bf16.msra.mxu0 %v554
      %571 = vmatprep.subr.bf16.mxu0 0
      %572 = vmatpush1.bf16.msra.mxu0 %v553
      %573 = vmatprep.subr.bf16.mxu0 0
      %574 = vmatpush1.bf16.msra.mxu0 %v552
      %575 = vmatprep.subr.bf16.mxu0 0
      %576 = vmatpush1.bf16.msra.mxu0 %v551
      %577 = vmatprep.subr.bf16.mxu0 0
      %578 = vmatpush1.bf16.msra.mxu0 %v550
      %579 = vmatprep.subr.bf16.mxu0 0
      %580 = vmatpush1.bf16.msra.mxu0 %v549
      %581 = vmatprep.subr.bf16.mxu0 0
      %582 = vmatpush2.bf16.msra.mxu0 0
      %583 = vmatprep.subr.bf16.mxu0 0
      %584 = vmatpush2.bf16.msra.mxu0 0
      %585 = vmatprep.subr.bf16.mxu0 0
      %586 = vmatpush2.bf16.msra.mxu0 0
      %587 = vmatprep.subr.bf16.mxu0 0
      %588 = vmatpush2.bf16.msra.mxu0 0
      %589 = vmatprep.subr.bf16.mxu0 0
      %590 = vmatpush2.bf16.msra.mxu0 0
      %591 = vmatprep.subr.bf16.mxu0 0
      %592 = vmatpush2.bf16.msra.mxu0 0
      %593 = vmatprep.subr.bf16.mxu0 0
      %594 = vmatpush2.bf16.msra.mxu0 0
      %595 = vmatprep.subr.bf16.mxu0 0
      %596 = vmatpush2.bf16.msra.mxu0 0
      %597 = vmatprep.mubr.bf16.mxu0 0
      %598 = vmatmul.mubr.bf16.gmra.mxu0 %v467
      %v599 = vpop.f32.mrf.mxu0
      %v600 = vadd.f32 %v367, %v599
      %v601 = vpop.f32.mrf.mxu0
      %v602 = vpop.f32.mrf.mxu0
      %v603 = vadd.f32 %v367, %v602
      %v604 = vpop.f32.mrf.mxu0
      %605 = vmatprep.mubr.bf16.mxu0 0
      %606 = vmatmul.mubr.bf16.gmra.mxu0 %v468
      %v607 = vpop.f32.mrf.mxu0
      %v608 = vadd.f32 %v367, %v607
      %v609 = vpop.f32.mrf.mxu0
      %v610 = vpop.f32.mrf.mxu0
      %v611 = vadd.f32 %v367, %v610
      %v612 = vpop.f32.mrf.mxu0
      %613 = vmatprep.mubr.bf16.mxu0 0
      %614 = vmatmul.mubr.bf16.gmra.mxu0 %v469
      %v615 = vpop.f32.mrf.mxu0
      %v616 = vadd.f32 %v367, %v615
      %v617 = vpop.f32.mrf.mxu0
      %v618 = vpop.f32.mrf.mxu0
      %v619 = vadd.f32 %v367, %v618
      %v620 = vpop.f32.mrf.mxu0
      %621 = vmatprep.mubr.bf16.mxu0 0
      %622 = vmatmul.mubr.bf16.gmra.mxu0 %v470
      %v623 = vpop.f32.mrf.mxu0
      %v624 = vadd.f32 %v367, %v623
      %v625 = vpop.f32.mrf.mxu0
      %v626 = vpop.f32.mrf.mxu0
      %v627 = vadd.f32 %v367, %v626
      %v628 = vpop.f32.mrf.mxu0
      %629 = vmatprep.mubr.bf16.mxu0 0
      %630 = vmatmul.mubr.bf16.gmra.mxu0 %v471
      %v631 = vpop.f32.mrf.mxu0
      %v632 = vadd.f32 %v367, %v631
      %v633 = vpop.f32.mrf.mxu0
      %v634 = vpop.f32.mrf.mxu0
      %v635 = vadd.f32 %v367, %v634
      %v636 = vpop.f32.mrf.mxu0
      %637 = vmatprep.mubr.bf16.mxu0 0
      %638 = vmatmul.mubr.bf16.gmra.mxu0 %v472
      %v639 = vpop.f32.mrf.mxu0
      %v640 = vadd.f32 %v367, %v639
      %v641 = vpop.f32.mrf.mxu0
      %v642 = vpop.f32.mrf.mxu0
      %v643 = vadd.f32 %v367, %v642
      %v644 = vpop.f32.mrf.mxu0
      %645 = vmatprep.mubr.bf16.mxu0 0
      %646 = vmatmul.mubr.bf16.gmra.mxu0 %v473
      %v647 = vpop.f32.mrf.mxu0
      %v648 = vadd.f32 %v367, %v647
      %v649 = vpop.f32.mrf.mxu0
      %v650 = vpop.f32.mrf.mxu0
      %v651 = vadd.f32 %v367, %v650
      %v652 = vpop.f32.mrf.mxu0
      %653 = vmatprep.mubr.bf16.mxu0 0
      %654 = vmatmul.mubr.bf16.gmra.mxu0 %v474
      %v655 = vpop.f32.mrf.mxu0
      %v656 = vadd.f32 %v367, %v655
      %v657 = vpop.f32.mrf.mxu0
      %v658 = vpop.f32.mrf.mxu0
      %v659 = vadd.f32 %v367, %v658
      %v660 = vpop.f32.mrf.mxu0
      %661 = vmatprep.mubr.bf16.mxu0 0
      %662 = vmatmul.mubr.bf16.gmra.mxu0 %v475
      %v663 = vpop.f32.mrf.mxu0
      %v664 = vadd.f32 %v367, %v663
      %v665 = vpop.f32.mrf.mxu0
      %v666 = vpop.f32.mrf.mxu0
      %v667 = vadd.f32 %v367, %v666
      %v668 = vpop.f32.mrf.mxu0
      %669 = vmatprep.mubr.bf16.mxu0 0
      %670 = vmatmul.mubr.bf16.gmra.mxu0 %v476
      %v671 = vpop.f32.mrf.mxu0
      %v672 = vadd.f32 %v367, %v671
      %v673 = vpop.f32.mrf.mxu0
      %v674 = vpop.f32.mrf.mxu0
      %v675 = vadd.f32 %v367, %v674
      %v676 = vpop.f32.mrf.mxu0
      %677 = vmatprep.mubr.bf16.mxu0 0
      %678 = vmatmul.mubr.bf16.gmra.mxu0 %v477
      %v679 = vpop.f32.mrf.mxu0
      %v680 = vadd.f32 %v367, %v679
      %v681 = vpop.f32.mrf.mxu0
      %v682 = vpop.f32.mrf.mxu0
      %v683 = vadd.f32 %v367, %v682
      %v684 = vpop.f32.mrf.mxu0
      %685 = vmatprep.mubr.bf16.mxu0 0
      %686 = vmatmul.mubr.bf16.gmra.mxu0 %v478
      %v687 = vpop.f32.mrf.mxu0
      %v688 = vadd.f32 %v367, %v687
      %v689 = vpop.f32.mrf.mxu0
      %v690 = vpop.f32.mrf.mxu0
      %v691 = vadd.f32 %v367, %v690
      %v692 = vpop.f32.mrf.mxu0
      %693 = vmatprep.mubr.bf16.mxu0 0
      %694 = vmatmul.mubr.bf16.gmra.mxu0 %v479
      %v695 = vpop.f32.mrf.mxu0
      %v696 = vadd.f32 %v367, %v695
      %v697 = vpop.f32.mrf.mxu0
      %v698 = vpop.f32.mrf.mxu0
      %v699 = vadd.f32 %v367, %v698
      %v700 = vpop.f32.mrf.mxu0
      %701 = vmatprep.mubr.bf16.mxu0 0
      %702 = vmatmul.mubr.bf16.gmra.mxu0 %v480
      %v703 = vpop.f32.mrf.mxu0
      %v704 = vadd.f32 %v367, %v703
      %v705 = vpop.f32.mrf.mxu0
      %v706 = vpop.f32.mrf.mxu0
      %v707 = vadd.f32 %v367, %v706
      %v708 = vpop.f32.mrf.mxu0
      %709 = vmatprep.mubr.bf16.mxu0 0
      %710 = vmatmul.mubr.bf16.gmra.mxu0 %v481
      %v711 = vpop.f32.mrf.mxu0
      %v712 = vadd.f32 %v367, %v711
      %v713 = vpop.f32.mrf.mxu0
      %v714 = vpop.f32.mrf.mxu0
      %v715 = vadd.f32 %v367, %v714
      %v716 = vpop.f32.mrf.mxu0
      %717 = vmatprep.mubr.bf16.mxu0 0
      %718 = vmatmul.mubr.bf16.gmra.mxu0 %v482
      %v719 = vpop.f32.mrf.mxu0
      %v720 = vadd.f32 %v367, %v719
      %v721 = vpop.f32.mrf.mxu0
      %v722 = vpop.f32.mrf.mxu0
      %v723 = vadd.f32 %v367, %v722
      %v724 = vpop.f32.mrf.mxu0
      %725 = vmatprep.mubr.bf16.mxu0 0
      %726 = vmatmul.mubr.bf16.gmra.mxu0 %v483
      %v727 = vpop.f32.mrf.mxu0
      %v728 = vadd.f32 %v367, %v727
      %v729 = vpop.f32.mrf.mxu0
      %v730 = vpop.f32.mrf.mxu0
      %v731 = vadd.f32 %v367, %v730
      %v732 = vpop.f32.mrf.mxu0
      %733 = vmatprep.mubr.bf16.mxu0 0
      %734 = vmatmul.mubr.bf16.gmra.mxu0 %v484
      %v735 = vpop.f32.mrf.mxu0
      %v736 = vadd.f32 %v367, %v735
      %v737 = vpop.f32.mrf.mxu0
      %v738 = vpop.f32.mrf.mxu0
      %v739 = vadd.f32 %v367, %v738
      %v740 = vpop.f32.mrf.mxu0
      %741 = vmatprep.mubr.bf16.mxu0 0
      %742 = vmatmul.mubr.bf16.gmra.mxu0 %v485
      %v743 = vpop.f32.mrf.mxu0
      %v744 = vadd.f32 %v367, %v743
      %v745 = vpop.f32.mrf.mxu0
      %v746 = vpop.f32.mrf.mxu0
      %v747 = vadd.f32 %v367, %v746
      %v748 = vpop.f32.mrf.mxu0
      %749 = vmatprep.mubr.bf16.mxu0 0
      %750 = vmatmul.mubr.bf16.gmra.mxu0 %v486
      %v751 = vpop.f32.mrf.mxu0
      %v752 = vadd.f32 %v367, %v751
      %v753 = vpop.f32.mrf.mxu0
      %v754 = vpop.f32.mrf.mxu0
      %v755 = vadd.f32 %v367, %v754
      %v756 = vpop.f32.mrf.mxu0
      %757 = vmatprep.mubr.bf16.mxu0 0
      %758 = vmatmul.mubr.bf16.gmra.mxu0 %v487
      %v759 = vpop.f32.mrf.mxu0
      %v760 = vadd.f32 %v367, %v759
      %v761 = vpop.f32.mrf.mxu0
      %v762 = vpop.f32.mrf.mxu0
      %v763 = vadd.f32 %v367, %v762
      %v764 = vpop.f32.mrf.mxu0
      %765 = vmatprep.mubr.bf16.mxu0 0
      %766 = vmatmul.mubr.bf16.gmra.mxu0 %v488
      %v767 = vpop.f32.mrf.mxu0
      %v768 = vadd.f32 %v367, %v767
      %v769 = vpop.f32.mrf.mxu0
      %v770 = vpop.f32.mrf.mxu0
      %v771 = vadd.f32 %v367, %v770
      %v772 = vpop.f32.mrf.mxu0
      %773 = vmatprep.mubr.bf16.mxu0 0
      %774 = vmatmul.mubr.bf16.gmra.mxu0 %v489
      %v775 = vpop.f32.mrf.mxu0
      %v776 = vadd.f32 %v367, %v775
      %v777 = vpop.f32.mrf.mxu0
      %v778 = vpop.f32.mrf.mxu0
      %v779 = vadd.f32 %v367, %v778
      %v780 = vpop.f32.mrf.mxu0
      %781 = vmatprep.mubr.bf16.mxu0 0
      %782 = vmatmul.mubr.bf16.gmra.mxu0 %v490
      %v783 = vpop.f32.mrf.mxu0
      %v784 = vadd.f32 %v367, %v783
      %v785 = vpop.f32.mrf.mxu0
      %v786 = vpop.f32.mrf.mxu0
      %v787 = vadd.f32 %v367, %v786
      %v788 = vpop.f32.mrf.mxu0
      %789 = vmatprep.mubr.bf16.mxu0 0
      %790 = vmatmul.mubr.bf16.gmra.mxu0 %v491
      %v791 = vpop.f32.mrf.mxu0
      %v792 = vadd.f32 %v367, %v791
      %v793 = vpop.f32.mrf.mxu0
      %v794 = vpop.f32.mrf.mxu0
      %v795 = vpop.f32.mrf.mxu0
      %796 = vdwg.mxu0
      %v797 = vpack.c.bf16 %v603, %v600
      %v798 = vpack.c.bf16 %v611, %v608
      %v799 = vpack.c.bf16 %v619, %v616
      %v800 = vpack.c.bf16 %v627, %v624
      %v801 = vpack.c.bf16 %v635, %v632
      %v802 = vpack.c.bf16 %v643, %v640
      %v803 = vpack.c.bf16 %v651, %v648
      %v804 = vpack.c.bf16 %v659, %v656
      %v805 = vpack.c.bf16 %v667, %v664
      %v806 = vpack.c.bf16 %v675, %v672
      %v807 = vpack.c.bf16 %v683, %v680
      %v808 = vpack.c.bf16 %v691, %v688
      %v809 = vpack.c.bf16 %v699, %v696
      %v810 = vpack.c.bf16 %v707, %v704
      %v811 = vpack.c.bf16 %v715, %v712
      %v812 = vpack.c.bf16 %v723, %v720
      %v813 = vpack.c.bf16 %v731, %v728
      %v814 = vpack.c.bf16 %v739, %v736
      %v815 = vpack.c.bf16 %v747, %v744
      %v816 = vpack.c.bf16 %v755, %v752
      %v817 = vpack.c.bf16 %v763, %v760
      %v818 = vpack.c.bf16 %v771, %v768
      %v819 = vpack.c.bf16 %v779, %v776
      %v820 = vpack.c.bf16 %v787, %v784
      %v821 = vpack.c.bf16 %v792, %v792
      %v847 = vunpack.c.l.b16 %v797
      %v848 = vunpack.c.h.b16 %v797
      %v849 = vunpack.c.l.b16 %v798
      %v850 = vunpack.c.h.b16 %v798
      %v851 = vunpack.c.l.b16 %v799
      %v852 = vunpack.c.h.b16 %v799
      %v853 = vunpack.c.l.b16 %v800
      %v854 = vunpack.c.h.b16 %v800
      %v855 = vunpack.c.l.b16 %v801
      %v856 = vunpack.c.h.b16 %v801
      %v857 = vunpack.c.l.b16 %v802
      %v858 = vunpack.c.h.b16 %v802
      %v859 = vunpack.c.l.b16 %v803
      %v860 = vunpack.c.h.b16 %v803
      %v861 = vunpack.c.l.b16 %v804
      %v862 = vunpack.c.h.b16 %v804
      %v863 = vunpack.c.l.b16 %v805
      %v864 = vunpack.c.h.b16 %v805
      %v865 = vunpack.c.l.b16 %v806
      %v866 = vunpack.c.h.b16 %v806
      %v867 = vunpack.c.l.b16 %v807
      %v868 = vunpack.c.h.b16 %v807
      %v869 = vunpack.c.l.b16 %v808
      %v870 = vunpack.c.h.b16 %v808
      %v871 = vunpack.c.l.b16 %v809
      %v872 = vunpack.c.h.b16 %v809
      %v873 = vunpack.c.l.b16 %v810
      %v874 = vunpack.c.h.b16 %v810
      %v875 = vunpack.c.l.b16 %v811
      %v876 = vunpack.c.h.b16 %v811
      %v877 = vunpack.c.l.b16 %v812
      %v878 = vunpack.c.h.b16 %v812
      %v879 = vunpack.c.l.b16 %v813
      %v880 = vunpack.c.h.b16 %v813
      %v881 = vunpack.c.l.b16 %v814
      %v882 = vunpack.c.h.b16 %v814
      %v883 = vunpack.c.l.b16 %v815
      %v884 = vunpack.c.h.b16 %v815
      %v885 = vunpack.c.l.b16 %v816
      %v886 = vunpack.c.h.b16 %v816
      %v887 = vunpack.c.l.b16 %v817
      %v888 = vunpack.c.h.b16 %v817
      %v889 = vunpack.c.l.b16 %v818
      %v890 = vunpack.c.h.b16 %v818
      %v891 = vunpack.c.l.b16 %v819
      %v892 = vunpack.c.h.b16 %v819
      %v893 = vunpack.c.l.b16 %v820
      %v894 = vunpack.c.h.b16 %v820
      %v895 = vunpack.c.l.b16 %v821
      %v896 = vpack.c.b16 %v847, %v847
      %v897 = vpack.c.b16 %v848, %v848
      %v898 = vpack.c.b16 %v849, %v849
      %v899 = vpack.c.b16 %v850, %v850
      %v900 = vpack.c.b16 %v851, %v851
      %v901 = vpack.c.b16 %v852, %v852
      %v902 = vpack.c.b16 %v853, %v853
      %v903 = vpack.c.b16 %v854, %v854
      %v904 = vpack.c.b16 %v855, %v855
      %v905 = vpack.c.b16 %v856, %v856
      %v906 = vpack.c.b16 %v857, %v857
      %v907 = vpack.c.b16 %v858, %v858
      %v908 = vpack.c.b16 %v859, %v859
      %v909 = vpack.c.b16 %v860, %v860
      %v910 = vpack.c.b16 %v861, %v861
      %v911 = vpack.c.b16 %v862, %v862
      %v912 = vpack.c.b16 %v863, %v863
      %v913 = vpack.c.b16 %v864, %v864
      %v914 = vpack.c.b16 %v865, %v865
      %v915 = vpack.c.b16 %v866, %v866
      %v916 = vpack.c.b16 %v867, %v867
      %v917 = vpack.c.b16 %v868, %v868
      %v918 = vpack.c.b16 %v869, %v869
      %v919 = vpack.c.b16 %v870, %v870
      %v920 = vpack.c.b16 %v871, %v871
      %v921 = vpack.c.b16 %v872, %v872
      %v922 = vpack.c.b16 %v873, %v873
      %v923 = vpack.c.b16 %v874, %v874
      %v924 = vpack.c.b16 %v875, %v875
      %v925 = vpack.c.b16 %v876, %v876
      %v926 = vpack.c.b16 %v877, %v877
      %v927 = vpack.c.b16 %v878, %v878
      %v928 = vpack.c.b16 %v879, %v879
      %v929 = vpack.c.b16 %v880, %v880
      %v930 = vpack.c.b16 %v881, %v881
      %v931 = vpack.c.b16 %v882, %v882
      %v932 = vpack.c.b16 %v883, %v883
      %v933 = vpack.c.b16 %v884, %v884
      %v934 = vpack.c.b16 %v885, %v885
      %v935 = vpack.c.b16 %v886, %v886
      %v936 = vpack.c.b16 %v887, %v887
      %v937 = vpack.c.b16 %v888, %v888
      %v938 = vpack.c.b16 %v889, %v889
      %v939 = vpack.c.b16 %v890, %v890
      %v940 = vpack.c.b16 %v891, %v891
      %v941 = vpack.c.b16 %v892, %v892
      %v942 = vpack.c.b16 %v893, %v893
      %v943 = vpack.c.b16 %v894, %v894
      %v944 = vpack.c.b16 %v895, %v895
      %994 = vst [vmem:[%s288] sm:$0xf] %v896
      %995 = vst [vmem:[%s288 + $0x4] sm:$0xf] %v897
      %996 = vst [vmem:[%s288 + $0x8] sm:$0xf] %v898
      %997 = vst [vmem:[%s288 + $0xc] sm:$0xf] %v899
      %998 = vst [vmem:[%s288 + $0x10] sm:$0xf] %v900
      %999 = vst [vmem:[%s288 + $0x14] sm:$0xf] %v901
      %1000 = vst [vmem:[%s288 + $0x18] sm:$0xf] %v902
      %1001 = vst [vmem:[%s288 + $0x1c] sm:$0xf] %v903
      %1002 = vst [vmem:[%s288 + $0x20] sm:$0xf] %v904
      %1003 = vst [vmem:[%s288 + $0x24] sm:$0xf] %v905
      %1004 = vst [vmem:[%s288 + $0x28] sm:$0xf] %v906
      %1005 = vst [vmem:[%s288 + $0x2c] sm:$0xf] %v907
      %1006 = vst [vmem:[%s288 + $0x30] sm:$0xf] %v908
      %1007 = vst [vmem:[%s288 + $0x34] sm:$0xf] %v909
      %1008 = vst [vmem:[%s288 + $0x38] sm:$0xf] %v910
      %1009 = vst [vmem:[%s288 + $0x3c] sm:$0xf] %v911
      %1010 = vst [vmem:[%s288 + $0x40] sm:$0xf] %v912
      %1011 = vst [vmem:[%s288 + $0x44] sm:$0xf] %v913
      %1012 = vst [vmem:[%s288 + $0x48] sm:$0xf] %v914
      %1013 = vst [vmem:[%s288 + $0x4c] sm:$0xf] %v915
      %1014 = vst [vmem:[%s288 + $0x50] sm:$0xf] %v916
      %1015 = vst [vmem:[%s288 + $0x54] sm:$0xf] %v917
      %1016 = vst [vmem:[%s288 + $0x58] sm:$0xf] %v918
      %1017 = vst [vmem:[%s288 + $0x5c] sm:$0xf] %v919
      %1018 = vst [vmem:[%s288 + $0x60] sm:$0xf] %v920
      %1019 = vst [vmem:[%s288 + $0x64] sm:$0xf] %v921
      %1020 = vst [vmem:[%s288 + $0x68] sm:$0xf] %v922
      %1021 = vst [vmem:[%s288 + $0x6c] sm:$0xf] %v923
      %1022 = vst [vmem:[%s288 + $0x70] sm:$0xf] %v924
      %1023 = vst [vmem:[%s288 + $0x74] sm:$0xf] %v925
      %1024 = vst [vmem:[%s288 + $0x78] sm:$0xf] %v926
      %1025 = vst [vmem:[%s288 + $0x7c] sm:$0xf] %v927
      %1026 = vst [vmem:[%s288 + $0x80] sm:$0xf] %v928
      %1027 = vst [vmem:[%s288 + $0x84] sm:$0xf] %v929
      %1028 = vst [vmem:[%s288 + $0x88] sm:$0xf] %v930
      %1029 = vst [vmem:[%s288 + $0x8c] sm:$0xf] %v931
      %1030 = vst [vmem:[%s288 + $0x90] sm:$0xf] %v932
      %1031 = vst [vmem:[%s288 + $0x94] sm:$0xf] %v933
      %1032 = vst [vmem:[%s288 + $0x98] sm:$0xf] %v934
      %1033 = vst [vmem:[%s288 + $0x9c] sm:$0xf] %v935
      %1034 = vst [vmem:[%s288 + $0xa0] sm:$0xf] %v936
      %1035 = vst [vmem:[%s288 + $0xa4] sm:$0xf] %v937
      %1036 = vst [vmem:[%s288 + $0xa8] sm:$0xf] %v938
      %1037 = vst [vmem:[%s288 + $0xac] sm:$0xf] %v939
      %1038 = vst [vmem:[%s288 + $0xb0] sm:$0xf] %v940
      %1039 = vst [vmem:[%s288 + $0xb4] sm:$0xf] %v941
      %1040 = vst [vmem:[%s288 + $0xb8] sm:$0xf] %v942
      %1041 = vst [vmem:[%s288 + $0xbc] sm:$0xf] %v943
      %1042 = vst [vmem:[%s288 + $0xc0] sm:$0xf] %v944
      %p1043 = scmp.eq.s32.totalorder %s22, 0
      // Predicated region
      $region33: #{_lambda_.9} parent=31 // pred_check
        %p1044 = pneg %p1043
      $region34: #{_lambda_.9} parent=31 // pred_check_branch
        %1046 = sbr.rel (%p1044) target = $region36
      $region35: #{_lambda_.9} parent=31 // pred_region
        %1047 = vst [vmem:[%s292] sm:$0x1] 0.0
        %1048 = vst [vmem:[%s295] sm:$0x1] 0.0
      $region36: #{_lambda_.9} parent=31 // pred_fallthru
        _
      %v1049 = vld [vmem:[%s292] sm:$0x1]
      %v1050 = vadd.f32 %v600, %v603
      %v1051 = vadd.f32 %v1050, %v608
      %v1052 = vadd.f32 %v1051, %v611
      %v1053 = vadd.f32 %v1052, %v616
      %v1054 = vadd.f32 %v1053, %v619
      %v1055 = vadd.f32 %v1054, %v624
      %v1056 = vadd.f32 %v1055, %v627
      %v1057 = vadd.f32 %v1056, %v632
      %v1058 = vadd.f32 %v1057, %v635
      %v1059 = vadd.f32 %v1058, %v640
      %v1060 = vadd.f32 %v1059, %v643
      %v1061 = vadd.f32 %v1060, %v648
      %v1062 = vadd.f32 %v1061, %v651
      %v1063 = vadd.f32 %v1062, %v656
      %v1064 = vadd.f32 %v1063, %v659
      %v1065 = vadd.f32 %v1064, %v664
      %v1066 = vadd.f32 %v1065, %v667
      %v1067 = vadd.f32 %v1066, %v672
      %v1068 = vadd.f32 %v1067, %v675
      %v1069 = vadd.f32 %v1068, %v680
      %v1070 = vadd.f32 %v1069, %v683
      %v1071 = vadd.f32 %v1070, %v688
      %v1072 = vadd.f32 %v1071, %v691
      %v1073 = vadd.f32 %v1072, %v696
      %v1074 = vadd.f32 %v1073, %v699
      %v1075 = vadd.f32 %v1074, %v704
      %v1076 = vadd.f32 %v1075, %v707
      %v1077 = vadd.f32 %v1076, %v712
      %v1078 = vadd.f32 %v1077, %v715
      %v1079 = vadd.f32 %v1078, %v720
      %v1080 = vadd.f32 %v1079, %v723
      %v1081 = vadd.f32 %v1080, %v728
      %v1082 = vadd.f32 %v1081, %v731
      %v1083 = vadd.f32 %v1082, %v736
      %v1084 = vadd.f32 %v1083, %v739
      %v1085 = vadd.f32 %v1084, %v744
      %v1086 = vadd.f32 %v1085, %v747
      %v1087 = vadd.f32 %v1086, %v752
      %v1088 = vadd.f32 %v1087, %v755
      %v1089 = vadd.f32 %v1088, %v760
      %v1090 = vadd.f32 %v1089, %v763
      %v1091 = vadd.f32 %v1090, %v768
      %v1092 = vadd.f32 %v1091, %v771
      %v1093 = vadd.f32 %v1092, %v776
      %v1094 = vadd.f32 %v1093, %v779
      %v1095 = vadd.f32 %v1094, %v784
      %v1096 = vadd.f32 %v1095, %v787
      %v1097 = vadd.f32 %v1096, %v792
      %v1098 = vrot.slane %v1097, 4
      %v1099 = vadd.f32 %v1097, %v1098
      %v1100 = vrot.slane %v1099, 2
      %v1101 = vadd.f32 %v1099, %v1100
      %v1102 = vrot.slane %v1101, 1
      %v1103 = vadd.f32 %v1101, %v1102
      %v1104 = vadd.f32 %v1049, %v1103
      %1105 = vst [vmem:[%s292] sm:$0x1] %v1104
      %v1106 = vld [vmem:[%s295] sm:$0x1]
      %v1107 = vmul.f32 %v600, %v600
      %v1108 = vmul.f32 %v603, %v603
      %v1109 = vmul.f32 %v608, %v608
      %v1110 = vmul.f32 %v611, %v611
      %v1111 = vmul.f32 %v616, %v616
      %v1112 = vmul.f32 %v619, %v619
      %v1113 = vmul.f32 %v624, %v624
      %v1114 = vmul.f32 %v627, %v627
      %v1115 = vmul.f32 %v632, %v632
      %v1116 = vmul.f32 %v635, %v635
      %v1117 = vmul.f32 %v640, %v640
      %v1118 = vmul.f32 %v643, %v643
      %v1119 = vmul.f32 %v648, %v648
      %v1120 = vmul.f32 %v651, %v651
      %v1121 = vmul.f32 %v656, %v656
      %v1122 = vmul.f32 %v659, %v659
      %v1123 = vmul.f32 %v664, %v664
      %v1124 = vmul.f32 %v667, %v667
      %v1125 = vmul.f32 %v672, %v672
      %v1126 = vmul.f32 %v675, %v675
      %v1127 = vmul.f32 %v680, %v680
      %v1128 = vmul.f32 %v683, %v683
      %v1129 = vmul.f32 %v688, %v688
      %v1130 = vmul.f32 %v691, %v691
      %v1131 = vmul.f32 %v696, %v696
      %v1132 = vmul.f32 %v699, %v699
      %v1133 = vmul.f32 %v704, %v704
      %v1134 = vmul.f32 %v707, %v707
      %v1135 = vmul.f32 %v712, %v712
      %v1136 = vmul.f32 %v715, %v715
      %v1137 = vmul.f32 %v720, %v720
      %v1138 = vmul.f32 %v723, %v723
      %v1139 = vmul.f32 %v728, %v728
      %v1140 = vmul.f32 %v731, %v731
      %v1141 = vmul.f32 %v736, %v736
      %v1142 = vmul.f32 %v739, %v739
      %v1143 = vmul.f32 %v744, %v744
      %v1144 = vmul.f32 %v747, %v747
      %v1145 = vmul.f32 %v752, %v752
      %v1146 = vmul.f32 %v755, %v755
      %v1147 = vmul.f32 %v760, %v760
      %v1148 = vmul.f32 %v763, %v763
      %v1149 = vmul.f32 %v768, %v768
      %v1150 = vmul.f32 %v771, %v771
      %v1151 = vmul.f32 %v776, %v776
      %v1152 = vmul.f32 %v779, %v779
      %v1153 = vmul.f32 %v784, %v784
      %v1154 = vmul.f32 %v787, %v787
      %v1155 = vmul.f32 %v792, %v792
      %v1156 = vadd.f32 %v1107, %v1108
      %v1157 = vadd.f32 %v1156, %v1109
      %v1158 = vadd.f32 %v1157, %v1110
      %v1159 = vadd.f32 %v1158, %v1111
      %v1160 = vadd.f32 %v1159, %v1112
      %v1161 = vadd.f32 %v1160, %v1113
      %v1162 = vadd.f32 %v1161, %v1114
      %v1163 = vadd.f32 %v1162, %v1115
      %v1164 = vadd.f32 %v1163, %v1116
      %v1165 = vadd.f32 %v1164, %v1117
      %v1166 = vadd.f32 %v1165, %v1118
      %v1167 = vadd.f32 %v1166, %v1119
      %v1168 = vadd.f32 %v1167, %v1120
      %v1169 = vadd.f32 %v1168, %v1121
      %v1170 = vadd.f32 %v1169, %v1122
      %v1171 = vadd.f32 %v1170, %v1123
      %v1172 = vadd.f32 %v1171, %v1124
      %v1173 = vadd.f32 %v1172, %v1125
      %v1174 = vadd.f32 %v1173, %v1126
      %v1175 = vadd.f32 %v1174, %v1127
      %v1176 = vadd.f32 %v1175, %v1128
      %v1177 = vadd.f32 %v1176, %v1129
      %v1178 = vadd.f32 %v1177, %v1130
      %v1179 = vadd.f32 %v1178, %v1131
      %v1180 = vadd.f32 %v1179, %v1132
      %v1181 = vadd.f32 %v1180, %v1133
      %v1182 = vadd.f32 %v1181, %v1134
      %v1183 = vadd.f32 %v1182, %v1135
      %v1184 = vadd.f32 %v1183, %v1136
      %v1185 = vadd.f32 %v1184, %v1137
      %v1186 = vadd.f32 %v1185, %v1138
      %v1187 = vadd.f32 %v1186, %v1139
      %v1188 = vadd.f32 %v1187, %v1140
      %v1189 = vadd.f32 %v1188, %v1141
      %v1190 = vadd.f32 %v1189, %v1142
      %v1191 = vadd.f32 %v1190, %v1143
      %v1192 = vadd.f32 %v1191, %v1144
      %v1193 = vadd.f32 %v1192, %v1145
      %v1194 = vadd.f32 %v1193, %v1146
      %v1195 = vadd.f32 %v1194, %v1147
      %v1196 = vadd.f32 %v1195, %v1148
      %v1197 = vadd.f32 %v1196, %v1149
      %v1198 = vadd.f32 %v1197, %v1150
      %v1199 = vadd.f32 %v1198, %v1151
      %v1200 = vadd.f32 %v1199, %v1152
      %v1201 = vadd.f32 %v1200, %v1153
      %v1202 = vadd.f32 %v1201, %v1154
      %v1203 = vadd.f32 %v1202, %v1155
      %v1204 = vrot.slane %v1203, 4
      %v1205 = vadd.f32 %v1203, %v1204
      %v1206 = vrot.slane %v1205, 2
      %v1207 = vadd.f32 %v1205, %v1206
      %v1208 = vrot.slane %v1207, 1
      %v1209 = vadd.f32 %v1207, %v1208
      %v1210 = vadd.f32 %v1106, %v1209
      %1211 = vst [vmem:[%s295] sm:$0x1] %v1210
      %s1212 = smul.u32 49, %s22
      %p1213 = scmp.lt.s32.totalorder %s1212, 195
      %s1214 = scalar_select %p1213, %s1212, 195
      %p1215 = scmp.lt.s32.totalorder %s21, 0
      %s1216 = scalar_select %p1215, %s21, 0
      %s1217 = sadd.s32 %s1216, %s1214
      %s1218 = smul.addr %s1217, 4
      %s1219 = scalar_lea.vmem %s3, %s1218
      %p1220 = scmp.lt.s32.totalorder %s21, 0
      %s1221 = scalar_select %p1220, %s21, 0
      %s1222 = scalar_lea.vmem %s4, %s1221
      %p1223 = scmp.lt.s32.totalorder %s21, 0
      %s1224 = scalar_select %p1223, %s21, 0
      %s1225 = scalar_lea.vmem %s5, %s1224
      // Predicated region
      $region37: #{_lambda_.9} parent=31 // pred_check
        %p1226 = pneg %p127
      $region38: #{_lambda_.9} parent=31 // pred_check_branch
        %1228 = sbr.rel (%p1226) target = $region40
      $region39: #{_lambda_.9} parent=31 // pred_region
        %s1229 = smul.u32 49, %s22
      $region40: #{_lambda_.9} parent=31 // pred_fallthru
        _
      // Predicated region
      $region41: #{_lambda_.9} parent=31 // pred_check
        %p1230 = pneg %p153
      $region42: #{_lambda_.9} parent=31 // pred_check_branch
        %1232 = sbr.rel (%p1230) target = $region44
      $region43: #{_lambda_.9} parent=31 // pred_region
        _
      $region44: #{_lambda_.9} parent=31 // pred_fallthru
        _
      // Predicated region
      $region45: #{_lambda_.9} parent=31 // pred_check
        %p1233 = pneg %p179
      $region46: #{_lambda_.9} parent=31 // pred_check_branch
        %1235 = sbr.rel (%p1233) target = $region48
      $region47: #{_lambda_.9} parent=31 // pred_region
        _
      $region48: #{_lambda_.9} parent=31 // pred_fallthru
        _
      // Predicated region
      $region49: #{_lambda_.9} parent=31 // pred_check
        %p1236 = pneg %p153
      $region50: #{_lambda_.9} parent=31 // pred_check_branch
        %1238 = sbr.rel (%p1236) target = $region52
      $region51: #{_lambda_.9} parent=31 // pred_region
        %p1239 = scmp.lt.s32.totalorder %s21, 0
        %s1240 = scalar_select %p1239, %s21, 0
        %s1241 = scalar_lea.vmem %s4, %s1240
      $region52: #{_lambda_.9} parent=31 // pred_fallthru
        _
      // Predicated region
      $region53: #{_lambda_.9} parent=31 // pred_check
        %p1242 = pneg %p179
      $region54: #{_lambda_.9} parent=31 // pred_check_branch
        %1244 = sbr.rel (%p1242) target = $region56
      $region55: #{_lambda_.9} parent=31 // pred_region
        %p1245 = scmp.lt.s32.totalorder %s21, 0
        %s1246 = scalar_select %p1245, %s21, 0
        %s1247 = scalar_lea.vmem %s5, %s1246
      $region56: #{_lambda_.9} parent=31 // pred_fallthru
        _
    $region32: #{_lambda_.9} parent=5 // pred_fallthru
      _
    %p1248 = scmp.le.s32.totalorder 2, %s12
    // Predicated region
    $region57: #{_lambda_.9} parent=5 // pred_check
      %p1249 = pneg %p1248
    $region58: #{_lambda_.9} parent=5 // pred_check_branch
      %1251 = sbr.rel (%p1249) target = $region60
    $region59: #{_lambda_.9} parent=5 // pred_region
      %s1252 = ssub.s32 %s12, 2
      // Predicated region
      $region61: #{_lambda_.9} parent=59 // pred_check
        %p1253 = pneg %p133
      $region62: #{_lambda_.9} parent=59 // pred_check_branch
        %1255 = sbr.rel (%p1253) target = $region64
      $region63: #{_lambda_.9} parent=59 // pred_region
        %s1256 = smul.u32 49, %s24
        %p1257 = scmp.lt.s32.totalorder %s1256, 195
        %s1258 = scalar_select %p1257, %s1256, 195
        %p1259 = scmp.lt.s32.totalorder %s23, 0
        %s1260 = scalar_select %p1259, %s23, 0
        %s1261 = sadd.s32 %s1260, %s1258
        %s1262 = smul.addr %s1261, 4
        %s1263 = scalar_lea.vmem %s3, %s1262
      $region64: #{_lambda_.9} parent=59 // pred_fallthru
        _
    $region60: #{_lambda_.9} parent=5 // pred_fallthru
      _
  $region6: #{_lambda_.9} parent=0 // loop_footer
    %s16 = sadd.s32 1, %s12
  $region7: #{_lambda_.9} parent=0 // loop_footer_branch
    %11 = sbr.rel target = $region3
  $region8: #{_lambda_.9} parent=0 // loop_exit
    _

// kernel: _lambda_.10
$region0: #{_lambda_.10}
  #allocation0 [shape = 'u32[]', space=smem, size = 0x4, offset = 0x4, fixed_abs, tag = 'smem constant byte address 0x4 - core index']
  #allocation1 [shape = 'u32[144,128]{1,0:T(1,128)}', space=vmem, size = 0x12000, scoped, tag = 'internal scratch']
  %s0 = inlined_call_operand.vmem [shape: bf16[392,128], index: 0, kind: input, shape index: {}]
  %s1 = inlined_call_operand.vmem [shape: bf16[128,256], index: 1, kind: input, shape index: {}]
  %s2 = inlined_call_operand.vmem [shape: f32[1,256], index: 2, kind: input, shape index: {}]
  %s3 = inlined_call_operand.vmem [shape: bf16[392,256], index: 3, kind: output, shape index: {0}]
  %s4 = inlined_call_operand.vmem [shape: f32[1,256], index: 4, kind: output, shape index: {1}]
  %s5 = inlined_call_operand.vmem [shape: f32[1,256], index: 5, kind: output, shape index: {2}]
  %6 = xla_tuple %s3, %s4, %s5
  %s7 = sld [smem:[#allocation0]]
  $region42: #{_lambda_.10} parent=0
    _
  %s9 = ssub.s32 1, %s7
  %s10 = scalar_select 0, %s9, %s7
  // Predicated region
  $region2: #{_lambda_.10} parent=0 // pred_check
    _
  $region3: #{_lambda_.10} parent=0 // pred_check_branch
    %12 = sbr.rel (0) target = $region5
  $region4: #{_lambda_.10} parent=0 // pred_region
    _
  $region5: #{_lambda_.10} parent=0 // pred_fallthru
    _
  // Predicated region
  $region6: #{_lambda_.10} parent=0 // pred_check
    _
  $region7: #{_lambda_.10} parent=0 // pred_check_branch
    %14 = sbr.rel (0) target = $region9
  $region8: #{_lambda_.10} parent=0 // pred_region
    _
  $region9: #{_lambda_.10} parent=0 // pred_fallthru
    _
  // Predicated region
  $region10: #{_lambda_.10} parent=0 // pred_check
    _
  $region11: #{_lambda_.10} parent=0 // pred_check_branch
    %16 = sbr.rel (0) target = $region13
  $region12: #{_lambda_.10} parent=0 // pred_region
    _
  $region13: #{_lambda_.10} parent=0 // pred_fallthru
    _
  %v18 = vld [vmem:[%s0] sm:$0xf]
  %v19 = vld [vmem:[%s0 + $0x4] sm:$0xf]
  %v20 = vld [vmem:[%s0 + $0x8] sm:$0xf]
  %v21 = vld [vmem:[%s0 + $0xc] sm:$0xf]
  %v22 = vld [vmem:[%s0 + $0x10] sm:$0xf]
  %v23 = vld [vmem:[%s0 + $0x14] sm:$0xf]
  %v24 = vld [vmem:[%s0 + $0x18] sm:$0xf]
  %v25 = vld [vmem:[%s0 + $0x1c] sm:$0xf]
  %v26 = vld [vmem:[%s0 + $0x20] sm:$0xf]
  %v27 = vld [vmem:[%s0 + $0x24] sm:$0xf]
  %v28 = vld [vmem:[%s0 + $0x28] sm:$0xf]
  %v29 = vld [vmem:[%s0 + $0x2c] sm:$0xf]
  %v30 = vld [vmem:[%s0 + $0x30] sm:$0xf]
  %v31 = vld [vmem:[%s0 + $0x34] sm:$0xf]
  %v32 = vld [vmem:[%s0 + $0x38] sm:$0xf]
  %v33 = vld [vmem:[%s0 + $0x3c] sm:$0xf]
  %v34 = vld [vmem:[%s0 + $0x40] sm:$0xf]
  %v35 = vld [vmem:[%s0 + $0x44] sm:$0xf]
  %v36 = vld [vmem:[%s0 + $0x48] sm:$0xf]
  %v37 = vld [vmem:[%s0 + $0x4c] sm:$0xf]
  %v38 = vld [vmem:[%s0 + $0x50] sm:$0xf]
  %v39 = vld [vmem:[%s0 + $0x54] sm:$0xf]
  %v40 = vld [vmem:[%s0 + $0x58] sm:$0xf]
  %v41 = vld [vmem:[%s0 + $0x5c] sm:$0xf]
  %v42 = vld [vmem:[%s0 + $0x60] sm:$0xf]
  %v43 = vld [vmem:[%s0 + $0x64] sm:$0xf]
  %v44 = vld [vmem:[%s0 + $0x68] sm:$0xf]
  %v45 = vld [vmem:[%s0 + $0x6c] sm:$0xf]
  %v46 = vld [vmem:[%s0 + $0x70] sm:$0xf]
  %v47 = vld [vmem:[%s0 + $0x74] sm:$0xf]
  %v48 = vld [vmem:[%s0 + $0x78] sm:$0xf]
  %v49 = vld [vmem:[%s0 + $0x7c] sm:$0xf]
  %v50 = vld [vmem:[%s0 + $0x80] sm:$0xf]
  %v51 = vld [vmem:[%s0 + $0x84] sm:$0xf]
  %v52 = vld [vmem:[%s0 + $0x88] sm:$0xf]
  %v53 = vld [vmem:[%s0 + $0x8c] sm:$0xf]
  %v54 = vld [vmem:[%s0 + $0x90] sm:$0xf]
  %v55 = vld [vmem:[%s0 + $0x94] sm:$0xf]
  %v56 = vld [vmem:[%s0 + $0x98] sm:$0xf]
  %v57 = vld [vmem:[%s0 + $0x9c] sm:$0xf]
  %v58 = vld [vmem:[%s0 + $0xa0] sm:$0xf]
  %v59 = vld [vmem:[%s0 + $0xa4] sm:$0xf]
  %v60 = vld [vmem:[%s0 + $0xa8] sm:$0xf]
  %v61 = vld [vmem:[%s0 + $0xac] sm:$0xf]
  %v62 = vld [vmem:[%s0 + $0xb0] sm:$0xf]
  %v63 = vld [vmem:[%s0 + $0xb4] sm:$0xf]
  %v64 = vld [vmem:[%s0 + $0xb8] sm:$0xf]
  %v65 = vld [vmem:[%s0 + $0xbc] sm:$0xf]
  %v66 = vld [vmem:[%s0 + $0xc0] sm:$0xf]
  %v67 = vld [vmem:[%s1] sm:$0xff]
  %v68 = vld [vmem:[%s1 + $0x8] sm:$0xff]
  %v69 = vld [vmem:[%s1 + $0x10] sm:$0xff]
  %v70 = vld [vmem:[%s1 + $0x18] sm:$0xff]
  %v71 = vld [vmem:[%s1 + $0x20] sm:$0xff]
  %v72 = vld [vmem:[%s1 + $0x28] sm:$0xff]
  %v73 = vld [vmem:[%s1 + $0x30] sm:$0xff]
  %v74 = vld [vmem:[%s1 + $0x38] sm:$0xff]
  %v75 = vld [vmem:[%s1 + $0x40] sm:$0xff]
  %v76 = vld [vmem:[%s1 + $0x48] sm:$0xff]
  %v77 = vld [vmem:[%s1 + $0x50] sm:$0xff]
  %v78 = vld [vmem:[%s1 + $0x58] sm:$0xff]
  %v79 = vld [vmem:[%s1 + $0x60] sm:$0xff]
  %v80 = vld [vmem:[%s1 + $0x68] sm:$0xff]
  %v81 = vld [vmem:[%s1 + $0x70] sm:$0xff]
  %v82 = vld [vmem:[%s1 + $0x78] sm:$0xff]
  %v83 = vld [vmem:[%s2] sm:$0x3]
  %v85 = vlaneseq
  %v86 = vshrl.u32 %v85, 7
  %v87 = vsub.s32 0, %v86
  %v88 = vrot.slane %v83, %v87
  %v89 = vlaneseq
  %v90 = vshrl.u32 %v89, 7
  %v91 = vsub.s32 1, %v90
  %v92 = vrot.slane %v83, %v91
  %v144 = vunpack.c.l.b16 %v18
  %v145 = vunpack.c.l.b16 %v19
  %v146 = vunpack.c.l.b16 %v20
  %v147 = vunpack.c.l.b16 %v21
  %v148 = vunpack.c.l.b16 %v22
  %v149 = vunpack.c.l.b16 %v23
  %v150 = vunpack.c.l.b16 %v24
  %v151 = vunpack.c.l.b16 %v25
  %v152 = vunpack.c.l.b16 %v26
  %v153 = vunpack.c.l.b16 %v27
  %v154 = vunpack.c.l.b16 %v28
  %v155 = vunpack.c.l.b16 %v29
  %v156 = vunpack.c.l.b16 %v30
  %v157 = vunpack.c.l.b16 %v31
  %v158 = vunpack.c.l.b16 %v32
  %v159 = vunpack.c.l.b16 %v33
  %v160 = vunpack.c.l.b16 %v34
  %v161 = vunpack.c.l.b16 %v35
  %v162 = vunpack.c.l.b16 %v36
  %v163 = vunpack.c.l.b16 %v37
  %v164 = vunpack.c.l.b16 %v38
  %v165 = vunpack.c.l.b16 %v39
  %v166 = vunpack.c.l.b16 %v40
  %v167 = vunpack.c.l.b16 %v41
  %v168 = vunpack.c.l.b16 %v42
  %v169 = vunpack.c.l.b16 %v43
  %v170 = vunpack.c.l.b16 %v44
  %v171 = vunpack.c.l.b16 %v45
  %v172 = vunpack.c.l.b16 %v46
  %v173 = vunpack.c.l.b16 %v47
  %v174 = vunpack.c.l.b16 %v48
  %v175 = vunpack.c.l.b16 %v49
  %v176 = vunpack.c.l.b16 %v50
  %v177 = vunpack.c.l.b16 %v51
  %v178 = vunpack.c.l.b16 %v52
  %v179 = vunpack.c.l.b16 %v53
  %v180 = vunpack.c.l.b16 %v54
  %v181 = vunpack.c.l.b16 %v55
  %v182 = vunpack.c.l.b16 %v56
  %v183 = vunpack.c.l.b16 %v57
  %v184 = vunpack.c.l.b16 %v58
  %v185 = vunpack.c.l.b16 %v59
  %v186 = vunpack.c.l.b16 %v60
  %v187 = vunpack.c.l.b16 %v61
  %v188 = vunpack.c.l.b16 %v62
  %v189 = vunpack.c.l.b16 %v63
  %v190 = vunpack.c.l.b16 %v64
  %v191 = vunpack.c.l.b16 %v65
  %v192 = vunpack.c.l.b16 %v66
  %v193 = vpack.c.b16 %v145, %v144
  %v194 = vpack.c.b16 %v147, %v146
  %v195 = vpack.c.b16 %v149, %v148
  %v196 = vpack.c.b16 %v151, %v150
  %v197 = vpack.c.b16 %v153, %v152
  %v198 = vpack.c.b16 %v155, %v154
  %v199 = vpack.c.b16 %v157, %v156
  %v200 = vpack.c.b16 %v159, %v158
  %v201 = vpack.c.b16 %v161, %v160
  %v202 = vpack.c.b16 %v163, %v162
  %v203 = vpack.c.b16 %v165, %v164
  %v204 = vpack.c.b16 %v167, %v166
  %v205 = vpack.c.b16 %v169, %v168
  %v206 = vpack.c.b16 %v171, %v170
  %v207 = vpack.c.b16 %v173, %v172
  %v208 = vpack.c.b16 %v175, %v174
  %v209 = vpack.c.b16 %v177, %v176
  %v210 = vpack.c.b16 %v179, %v178
  %v211 = vpack.c.b16 %v181, %v180
  %v212 = vpack.c.b16 %v183, %v182
  %v213 = vpack.c.b16 %v185, %v184
  %v214 = vpack.c.b16 %v187, %v186
  %v215 = vpack.c.b16 %v189, %v188
  %v216 = vpack.c.b16 %v191, %v190
  %v217 = vpack.c.b16 %v192, %v192
  %v259 = vunpack.c.l.b16 %v67
  %v260 = vunpack.c.h.b16 %v67
  %v261 = vunpack.c.l.b16 %v68
  %v262 = vunpack.c.h.b16 %v68
  %v263 = vunpack.c.l.b16 %v69
  %v264 = vunpack.c.h.b16 %v69
  %v265 = vunpack.c.l.b16 %v70
  %v266 = vunpack.c.h.b16 %v70
  %v267 = vunpack.c.l.b16 %v71
  %v268 = vunpack.c.h.b16 %v71
  %v269 = vunpack.c.l.b16 %v72
  %v270 = vunpack.c.h.b16 %v72
  %v271 = vunpack.c.l.b16 %v73
  %v272 = vunpack.c.h.b16 %v73
  %v273 = vunpack.c.l.b16 %v74
  %v274 = vunpack.c.h.b16 %v74
  %v275 = vunpack.c.l.b16 %v75
  %v276 = vunpack.c.h.b16 %v75
  %v277 = vunpack.c.l.b16 %v76
  %v278 = vunpack.c.h.b16 %v76
  %v279 = vunpack.c.l.b16 %v77
  %v280 = vunpack.c.h.b16 %v77
  %v281 = vunpack.c.l.b16 %v78
  %v282 = vunpack.c.h.b16 %v78
  %v283 = vunpack.c.l.b16 %v79
  %v284 = vunpack.c.h.b16 %v79
  %v285 = vunpack.c.l.b16 %v80
  %v286 = vunpack.c.h.b16 %v80
  %v287 = vunpack.c.l.b16 %v81
  %v288 = vunpack.c.h.b16 %v81
  %v289 = vunpack.c.l.b16 %v82
  %v290 = vunpack.c.h.b16 %v82
  %v291 = vpack.c.b16 %v261, %v259
  %v292 = vpack.c.b16 %v262, %v260
  %v293 = vpack.c.b16 %v265, %v263
  %v294 = vpack.c.b16 %v266, %v264
  %v295 = vpack.c.b16 %v269, %v267
  %v296 = vpack.c.b16 %v270, %v268
  %v297 = vpack.c.b16 %v273, %v271
  %v298 = vpack.c.b16 %v274, %v272
  %v299 = vpack.c.b16 %v277, %v275
  %v300 = vpack.c.b16 %v278, %v276
  %v301 = vpack.c.b16 %v281, %v279
  %v302 = vpack.c.b16 %v282, %v280
  %v303 = vpack.c.b16 %v285, %v283
  %v304 = vpack.c.b16 %v286, %v284
  %v305 = vpack.c.b16 %v289, %v287
  %v306 = vpack.c.b16 %v290, %v288
  %323 = vmatprep.subr.bf16.mxu0 %v306
  %324 = vmatpush1.bf16.msra.mxu0 %v305
  %325 = vmatprep.subr.bf16.mxu0 %v304
  %326 = vmatpush1.bf16.msra.mxu0 %v303
  %327 = vmatprep.subr.bf16.mxu0 %v302
  %328 = vmatpush1.bf16.msra.mxu0 %v301
  %329 = vmatprep.subr.bf16.mxu0 %v300
  %330 = vmatpush1.bf16.msra.mxu0 %v299
  %331 = vmatprep.subr.bf16.mxu0 %v298
  %332 = vmatpush1.bf16.msra.mxu0 %v297
  %333 = vmatprep.subr.bf16.mxu0 %v296
  %334 = vmatpush1.bf16.msra.mxu0 %v295
  %335 = vmatprep.subr.bf16.mxu0 %v294
  %336 = vmatpush1.bf16.msra.mxu0 %v293
  %337 = vmatprep.subr.bf16.mxu0 %v292
  %338 = vmatpush1.bf16.msra.mxu0 %v291
  %339 = vmatprep.subr.bf16.mxu0 0
  %340 = vmatpush2.bf16.msra.mxu0 0
  %341 = vmatprep.subr.bf16.mxu0 0
  %342 = vmatpush2.bf16.msra.mxu0 0
  %343 = vmatprep.subr.bf16.mxu0 0
  %344 = vmatpush2.bf16.msra.mxu0 0
  %345 = vmatprep.subr.bf16.mxu0 0
  %346 = vmatpush2.bf16.msra.mxu0 0
  %347 = vmatprep.subr.bf16.mxu0 0
  %348 = vmatpush2.bf16.msra.mxu0 0
  %349 = vmatprep.subr.bf16.mxu0 0
  %350 = vmatpush2.bf16.msra.mxu0 0
  %351 = vmatprep.subr.bf16.mxu0 0
  %352 = vmatpush2.bf16.msra.mxu0 0
  %353 = vmatprep.subr.bf16.mxu0 0
  %354 = vmatpush2.bf16.msra.mxu0 0
  %355 = vmatprep.mubr.bf16.mxu0 0
  %356 = vmatmul.mubr.bf16.gmra.mxu0 %v193
  %v357 = vpop.f32.mrf.mxu0
  %v358 = vadd.f32 %v88, %v357
  %v359 = vpop.f32.mrf.mxu0
  %v360 = vadd.f32 %v92, %v359
  %v361 = vpop.f32.mrf.mxu0
  %v362 = vadd.f32 %v88, %v361
  %v363 = vpop.f32.mrf.mxu0
  %v364 = vadd.f32 %v92, %v363
  %365 = vmatprep.mubr.bf16.mxu0 0
  %366 = vmatmul.mubr.bf16.gmra.mxu0 %v194
  %v367 = vpop.f32.mrf.mxu0
  %v368 = vadd.f32 %v88, %v367
  %v369 = vpop.f32.mrf.mxu0
  %v370 = vadd.f32 %v92, %v369
  %v371 = vpop.f32.mrf.mxu0
  %v372 = vadd.f32 %v88, %v371
  %v373 = vpop.f32.mrf.mxu0
  %v374 = vadd.f32 %v92, %v373
  %375 = vmatprep.mubr.bf16.mxu0 0
  %376 = vmatmul.mubr.bf16.gmra.mxu0 %v195
  %v377 = vpop.f32.mrf.mxu0
  %v378 = vadd.f32 %v88, %v377
  %v379 = vpop.f32.mrf.mxu0
  %v380 = vadd.f32 %v92, %v379
  %v381 = vpop.f32.mrf.mxu0
  %v382 = vadd.f32 %v88, %v381
  %v383 = vpop.f32.mrf.mxu0
  %v384 = vadd.f32 %v92, %v383
  %385 = vmatprep.mubr.bf16.mxu0 0
  %386 = vmatmul.mubr.bf16.gmra.mxu0 %v196
  %v387 = vpop.f32.mrf.mxu0
  %v388 = vadd.f32 %v88, %v387
  %v389 = vpop.f32.mrf.mxu0
  %v390 = vadd.f32 %v92, %v389
  %v391 = vpop.f32.mrf.mxu0
  %v392 = vadd.f32 %v88, %v391
  %v393 = vpop.f32.mrf.mxu0
  %v394 = vadd.f32 %v92, %v393
  %395 = vmatprep.mubr.bf16.mxu0 0
  %396 = vmatmul.mubr.bf16.gmra.mxu0 %v197
  %v397 = vpop.f32.mrf.mxu0
  %v398 = vadd.f32 %v88, %v397
  %v399 = vpop.f32.mrf.mxu0
  %v400 = vadd.f32 %v92, %v399
  %v401 = vpop.f32.mrf.mxu0
  %v402 = vadd.f32 %v88, %v401
  %v403 = vpop.f32.mrf.mxu0
  %v404 = vadd.f32 %v92, %v403
  %405 = vmatprep.mubr.bf16.mxu0 0
  %406 = vmatmul.mubr.bf16.gmra.mxu0 %v198
  %v407 = vpop.f32.mrf.mxu0
  %v408 = vadd.f32 %v88, %v407
  %v409 = vpop.f32.mrf.mxu0
  %v410 = vadd.f32 %v92, %v409
  %v411 = vpop.f32.mrf.mxu0
  %v412 = vadd.f32 %v88, %v411
  %v413 = vpop.f32.mrf.mxu0
  %v414 = vadd.f32 %v92, %v413
  %415 = vmatprep.mubr.bf16.mxu0 0
  %416 = vmatmul.mubr.bf16.gmra.mxu0 %v199
  %v417 = vpop.f32.mrf.mxu0
  %v418 = vadd.f32 %v88, %v417
  %v419 = vpop.f32.mrf.mxu0
  %v420 = vadd.f32 %v92, %v419
  %v421 = vpop.f32.mrf.mxu0
  %v422 = vadd.f32 %v88, %v421
  %v423 = vpop.f32.mrf.mxu0
  %v424 = vadd.f32 %v92, %v423
  %425 = vmatprep.mubr.bf16.mxu0 0
  %426 = vmatmul.mubr.bf16.gmra.mxu0 %v200
  %v427 = vpop.f32.mrf.mxu0
  %v428 = vadd.f32 %v88, %v427
  %v429 = vpop.f32.mrf.mxu0
  %v430 = vadd.f32 %v92, %v429
  %v431 = vpop.f32.mrf.mxu0
  %v432 = vadd.f32 %v88, %v431
  %v433 = vpop.f32.mrf.mxu0
  %v434 = vadd.f32 %v92, %v433
  %435 = vmatprep.mubr.bf16.mxu0 0
  %436 = vmatmul.mubr.bf16.gmra.mxu0 %v201
  %v437 = vpop.f32.mrf.mxu0
  %v438 = vadd.f32 %v88, %v437
  %v439 = vpop.f32.mrf.mxu0
  %v440 = vadd.f32 %v92, %v439
  %v441 = vpop.f32.mrf.mxu0
  %v442 = vadd.f32 %v88, %v441
  %v443 = vpop.f32.mrf.mxu0
  %v444 = vadd.f32 %v92, %v443
  %445 = vmatprep.mubr.bf16.mxu0 0
  %446 = vmatmul.mubr.bf16.gmra.mxu0 %v202
  %v447 = vpop.f32.mrf.mxu0
  %v448 = vadd.f32 %v88, %v447
  %v449 = vpop.f32.mrf.mxu0
  %v450 = vadd.f32 %v92, %v449
  %v451 = vpop.f32.mrf.mxu0
  %v452 = vadd.f32 %v88, %v451
  %v453 = vpop.f32.mrf.mxu0
  %v454 = vadd.f32 %v92, %v453
  %455 = vmatprep.mubr.bf16.mxu0 0
  %456 = vmatmul.mubr.bf16.gmra.mxu0 %v203
  %v457 = vpop.f32.mrf.mxu0
  %v458 = vadd.f32 %v88, %v457
  %v459 = vpop.f32.mrf.mxu0
  %v460 = vadd.f32 %v92, %v459
  %v461 = vpop.f32.mrf.mxu0
  %v462 = vadd.f32 %v88, %v461
  %v463 = vpop.f32.mrf.mxu0
  %v464 = vadd.f32 %v92, %v463
  %465 = vmatprep.mubr.bf16.mxu0 0
  %466 = vmatmul.mubr.bf16.gmra.mxu0 %v204
  %v467 = vpop.f32.mrf.mxu0
  %v468 = vadd.f32 %v88, %v467
  %v469 = vpop.f32.mrf.mxu0
  %v470 = vadd.f32 %v92, %v469
  %v471 = vpop.f32.mrf.mxu0
  %v472 = vadd.f32 %v88, %v471
  %v473 = vpop.f32.mrf.mxu0
  %v474 = vadd.f32 %v92, %v473
  %475 = vmatprep.mubr.bf16.mxu0 0
  %476 = vmatmul.mubr.bf16.gmra.mxu0 %v205
  %v477 = vpop.f32.mrf.mxu0
  %v478 = vadd.f32 %v88, %v477
  %v479 = vpop.f32.mrf.mxu0
  %v480 = vadd.f32 %v92, %v479
  %v481 = vpop.f32.mrf.mxu0
  %v482 = vadd.f32 %v88, %v481
  %v483 = vpop.f32.mrf.mxu0
  %v484 = vadd.f32 %v92, %v483
  %485 = vmatprep.mubr.bf16.mxu0 0
  %486 = vmatmul.mubr.bf16.gmra.mxu0 %v206
  %v487 = vpop.f32.mrf.mxu0
  %v488 = vadd.f32 %v88, %v487
  %v489 = vpop.f32.mrf.mxu0
  %v490 = vadd.f32 %v92, %v489
  %v491 = vpop.f32.mrf.mxu0
  %v492 = vadd.f32 %v88, %v491
  %v493 = vpop.f32.mrf.mxu0
  %v494 = vadd.f32 %v92, %v493
  %495 = vmatprep.mubr.bf16.mxu0 0
  %496 = vmatmul.mubr.bf16.gmra.mxu0 %v207
  %v497 = vpop.f32.mrf.mxu0
  %v498 = vadd.f32 %v88, %v497
  %v499 = vpop.f32.mrf.mxu0
  %v500 = vadd.f32 %v92, %v499
  %v501 = vpop.f32.mrf.mxu0
  %v502 = vadd.f32 %v88, %v501
  %v503 = vpop.f32.mrf.mxu0
  %v504 = vadd.f32 %v92, %v503
  %505 = vmatprep.mubr.bf16.mxu0 0
  %506 = vmatmul.mubr.bf16.gmra.mxu0 %v208
  %v507 = vpop.f32.mrf.mxu0
  %v508 = vadd.f32 %v88, %v507
  %v509 = vpop.f32.mrf.mxu0
  %v510 = vadd.f32 %v92, %v509
  %v511 = vpop.f32.mrf.mxu0
  %v512 = vadd.f32 %v88, %v511
  %v513 = vpop.f32.mrf.mxu0
  %v514 = vadd.f32 %v92, %v513
  %515 = vmatprep.mubr.bf16.mxu0 0
  %516 = vmatmul.mubr.bf16.gmra.mxu0 %v209
  %v517 = vpop.f32.mrf.mxu0
  %v518 = vadd.f32 %v88, %v517
  %v519 = vpop.f32.mrf.mxu0
  %v520 = vadd.f32 %v92, %v519
  %v521 = vpop.f32.mrf.mxu0
  %v522 = vadd.f32 %v88, %v521
  %v523 = vpop.f32.mrf.mxu0
  %v524 = vadd.f32 %v92, %v523
  %525 = vmatprep.mubr.bf16.mxu0 0
  %526 = vmatmul.mubr.bf16.gmra.mxu0 %v210
  %v527 = vpop.f32.mrf.mxu0
  %v528 = vadd.f32 %v88, %v527
  %v529 = vpop.f32.mrf.mxu0
  %v530 = vadd.f32 %v92, %v529
  %v531 = vpop.f32.mrf.mxu0
  %v532 = vadd.f32 %v88, %v531
  %v533 = vpop.f32.mrf.mxu0
  %v534 = vadd.f32 %v92, %v533
  %535 = vmatprep.mubr.bf16.mxu0 0
  %536 = vmatmul.mubr.bf16.gmra.mxu0 %v211
  %v537 = vpop.f32.mrf.mxu0
  %v538 = vadd.f32 %v88, %v537
  %v539 = vpop.f32.mrf.mxu0
  %v540 = vadd.f32 %v92, %v539
  %v541 = vpop.f32.mrf.mxu0
  %v542 = vadd.f32 %v88, %v541
  %v543 = vpop.f32.mrf.mxu0
  %v544 = vadd.f32 %v92, %v543
  %545 = vmatprep.mubr.bf16.mxu0 0
  %546 = vmatmul.mubr.bf16.gmra.mxu0 %v212
  %v547 = vpop.f32.mrf.mxu0
  %v548 = vadd.f32 %v88, %v547
  %v549 = vpop.f32.mrf.mxu0
  %v550 = vadd.f32 %v92, %v549
  %v551 = vpop.f32.mrf.mxu0
  %v552 = vadd.f32 %v88, %v551
  %v553 = vpop.f32.mrf.mxu0
  %v554 = vadd.f32 %v92, %v553
  %555 = vmatprep.mubr.bf16.mxu0 0
  %556 = vmatmul.mubr.bf16.gmra.mxu0 %v213
  %v557 = vpop.f32.mrf.mxu0
  %v558 = vadd.f32 %v88, %v557
  %v559 = vpop.f32.mrf.mxu0
  %v560 = vadd.f32 %v92, %v559
  %v561 = vpop.f32.mrf.mxu0
  %v562 = vadd.f32 %v88, %v561
  %v563 = vpop.f32.mrf.mxu0
  %v564 = vadd.f32 %v92, %v563
  %565 = vmatprep.mubr.bf16.mxu0 0
  %566 = vmatmul.mubr.bf16.gmra.mxu0 %v214
  %v567 = vpop.f32.mrf.mxu0
  %v568 = vadd.f32 %v88, %v567
  %v569 = vpop.f32.mrf.mxu0
  %v570 = vadd.f32 %v92, %v569
  %v571 = vpop.f32.mrf.mxu0
  %v572 = vadd.f32 %v88, %v571
  %v573 = vpop.f32.mrf.mxu0
  %v574 = vadd.f32 %v92, %v573
  %575 = vmatprep.mubr.bf16.mxu0 0
  %576 = vmatmul.mubr.bf16.gmra.mxu0 %v215
  %v577 = vpop.f32.mrf.mxu0
  %v578 = vadd.f32 %v88, %v577
  %v579 = vpop.f32.mrf.mxu0
  %v580 = vadd.f32 %v92, %v579
  %v581 = vpop.f32.mrf.mxu0
  %v582 = vadd.f32 %v88, %v581
  %v583 = vpop.f32.mrf.mxu0
  %v584 = vadd.f32 %v92, %v583
  %585 = vmatprep.mubr.bf16.mxu0 0
  %586 = vmatmul.mubr.bf16.gmra.mxu0 %v216
  %v587 = vpop.f32.mrf.mxu0
  %v588 = vadd.f32 %v88, %v587
  %v589 = vpop.f32.mrf.mxu0
  %v590 = vadd.f32 %v92, %v589
  %v591 = vpop.f32.mrf.mxu0
  %v592 = vadd.f32 %v88, %v591
  %v593 = vpop.f32.mrf.mxu0
  %v594 = vadd.f32 %v92, %v593
  %595 = vmatprep.mubr.bf16.mxu0 0
  %596 = vmatmul.mubr.bf16.gmra.mxu0 %v217
  %v597 = vpop.f32.mrf.mxu0
  %v598 = vadd.f32 %v88, %v597
  %v599 = vpop.f32.mrf.mxu0
  %v600 = vadd.f32 %v92, %v599
  %v601 = vpop.f32.mrf.mxu0
  %v602 = vpop.f32.mrf.mxu0
  %603 = vdwg.mxu0
  %v604 = vpack.c.bf16 %v362, %v358
  %v605 = vpack.c.bf16 %v364, %v360
  %v606 = vpack.c.bf16 %v372, %v368
  %v607 = vpack.c.bf16 %v374, %v370
  %v608 = vpack.c.bf16 %v382, %v378
  %v609 = vpack.c.bf16 %v384, %v380
  %v610 = vpack.c.bf16 %v392, %v388
  %v611 = vpack.c.bf16 %v394, %v390
  %v612 = vpack.c.bf16 %v402, %v398
  %v613 = vpack.c.bf16 %v404, %v400
  %v614 = vpack.c.bf16 %v412, %v408
  %v615 = vpack.c.bf16 %v414, %v410
  %v616 = vpack.c.bf16 %v422, %v418
  %v617 = vpack.c.bf16 %v424, %v420
  %v618 = vpack.c.bf16 %v432, %v428
  %v619 = vpack.c.bf16 %v434, %v430
  %v620 = vpack.c.bf16 %v442, %v438
  %v621 = vpack.c.bf16 %v444, %v440
  %v622 = vpack.c.bf16 %v452, %v448
  %v623 = vpack.c.bf16 %v454, %v450
  %v624 = vpack.c.bf16 %v462, %v458
  %v625 = vpack.c.bf16 %v464, %v460
  %v626 = vpack.c.bf16 %v472, %v468
  %v627 = vpack.c.bf16 %v474, %v470
  %v628 = vpack.c.bf16 %v482, %v478
  %v629 = vpack.c.bf16 %v484, %v480
  %v630 = vpack.c.bf16 %v492, %v488
  %v631 = vpack.c.bf16 %v494, %v490
  %v632 = vpack.c.bf16 %v502, %v498
  %v633 = vpack.c.bf16 %v504, %v500
  %v634 = vpack.c.bf16 %v512, %v508
  %v635 = vpack.c.bf16 %v514, %v510
  %v636 = vpack.c.bf16 %v522, %v518
  %v637 = vpack.c.bf16 %v524, %v520
  %v638 = vpack.c.bf16 %v532, %v528
  %v639 = vpack.c.bf16 %v534, %v530
  %v640 = vpack.c.bf16 %v542, %v538
  %v641 = vpack.c.bf16 %v544, %v540
  %v642 = vpack.c.bf16 %v552, %v548
  %v643 = vpack.c.bf16 %v554, %v550
  %v644 = vpack.c.bf16 %v562, %v558
  %v645 = vpack.c.bf16 %v564, %v560
  %v646 = vpack.c.bf16 %v572, %v568
  %v647 = vpack.c.bf16 %v574, %v570
  %v648 = vpack.c.bf16 %v582, %v578
  %v649 = vpack.c.bf16 %v584, %v580
  %v650 = vpack.c.bf16 %v592, %v588
  %v651 = vpack.c.bf16 %v594, %v590
  %v652 = vpack.c.bf16 %v598, %v598
  %v653 = vpack.c.bf16 %v600, %v600
  %v704 = vunpack.c.l.b16 %v604
  %v705 = vunpack.c.l.b16 %v605
  %v706 = vunpack.c.h.b16 %v604
  %v707 = vunpack.c.h.b16 %v605
  %v708 = vunpack.c.l.b16 %v606
  %v709 = vunpack.c.l.b16 %v607
  %v710 = vunpack.c.h.b16 %v606
  %v711 = vunpack.c.h.b16 %v607
  %v712 = vunpack.c.l.b16 %v608
  %v713 = vunpack.c.l.b16 %v609
  %v714 = vunpack.c.h.b16 %v608
  %v715 = vunpack.c.h.b16 %v609
  %v716 = vunpack.c.l.b16 %v610
  %v717 = vunpack.c.l.b16 %v611
  %v718 = vunpack.c.h.b16 %v610
  %v719 = vunpack.c.h.b16 %v611
  %v720 = vunpack.c.l.b16 %v612
  %v721 = vunpack.c.l.b16 %v613
  %v722 = vunpack.c.h.b16 %v612
  %v723 = vunpack.c.h.b16 %v613
  %v724 = vunpack.c.l.b16 %v614
  %v725 = vunpack.c.l.b16 %v615
  %v726 = vunpack.c.h.b16 %v614
  %v727 = vunpack.c.h.b16 %v615
  %v728 = vunpack.c.l.b16 %v616
  %v729 = vunpack.c.l.b16 %v617
  %v730 = vunpack.c.h.b16 %v616
  %v731 = vunpack.c.h.b16 %v617
  %v732 = vunpack.c.l.b16 %v618
  %v733 = vunpack.c.l.b16 %v619
  %v734 = vunpack.c.h.b16 %v618
  %v735 = vunpack.c.h.b16 %v619
  %v736 = vunpack.c.l.b16 %v620
  %v737 = vunpack.c.l.b16 %v621
  %v738 = vunpack.c.h.b16 %v620
  %v739 = vunpack.c.h.b16 %v621
  %v740 = vunpack.c.l.b16 %v622
  %v741 = vunpack.c.l.b16 %v623
  %v742 = vunpack.c.h.b16 %v622
  %v743 = vunpack.c.h.b16 %v623
  %v744 = vunpack.c.l.b16 %v624
  %v745 = vunpack.c.l.b16 %v625
  %v746 = vunpack.c.h.b16 %v624
  %v747 = vunpack.c.h.b16 %v625
  %v748 = vunpack.c.l.b16 %v626
  %v749 = vunpack.c.l.b16 %v627
  %v750 = vunpack.c.h.b16 %v626
  %v751 = vunpack.c.h.b16 %v627
  %v752 = vunpack.c.l.b16 %v628
  %v753 = vunpack.c.l.b16 %v629
  %v754 = vunpack.c.h.b16 %v628
  %v755 = vunpack.c.h.b16 %v629
  %v756 = vunpack.c.l.b16 %v630
  %v757 = vunpack.c.l.b16 %v631
  %v758 = vunpack.c.h.b16 %v630
  %v759 = vunpack.c.h.b16 %v631
  %v760 = vunpack.c.l.b16 %v632
  %v761 = vunpack.c.l.b16 %v633
  %v762 = vunpack.c.h.b16 %v632
  %v763 = vunpack.c.h.b16 %v633
  %v764 = vunpack.c.l.b16 %v634
  %v765 = vunpack.c.l.b16 %v635
  %v766 = vunpack.c.h.b16 %v634
  %v767 = vunpack.c.h.b16 %v635
  %v768 = vunpack.c.l.b16 %v636
  %v769 = vunpack.c.l.b16 %v637
  %v770 = vunpack.c.h.b16 %v636
  %v771 = vunpack.c.h.b16 %v637
  %v772 = vunpack.c.l.b16 %v638
  %v773 = vunpack.c.l.b16 %v639
  %v774 = vunpack.c.h.b16 %v638
  %v775 = vunpack.c.h.b16 %v639
  %v776 = vunpack.c.l.b16 %v640
  %v777 = vunpack.c.l.b16 %v641
  %v778 = vunpack.c.h.b16 %v640
  %v779 = vunpack.c.h.b16 %v641
  %v780 = vunpack.c.l.b16 %v642
  %v781 = vunpack.c.l.b16 %v643
  %v782 = vunpack.c.h.b16 %v642
  %v783 = vunpack.c.h.b16 %v643
  %v784 = vunpack.c.l.b16 %v644
  %v785 = vunpack.c.l.b16 %v645
  %v786 = vunpack.c.h.b16 %v644
  %v787 = vunpack.c.h.b16 %v645
  %v788 = vunpack.c.l.b16 %v646
  %v789 = vunpack.c.l.b16 %v647
  %v790 = vunpack.c.h.b16 %v646
  %v791 = vunpack.c.h.b16 %v647
  %v792 = vunpack.c.l.b16 %v648
  %v793 = vunpack.c.l.b16 %v649
  %v794 = vunpack.c.h.b16 %v648
  %v795 = vunpack.c.h.b16 %v649
  %v796 = vunpack.c.l.b16 %v650
  %v797 = vunpack.c.l.b16 %v651
  %v798 = vunpack.c.h.b16 %v650
  %v799 = vunpack.c.h.b16 %v651
  %v800 = vunpack.c.l.b16 %v652
  %v801 = vunpack.c.l.b16 %v653
  %v802 = vpack.c.b16 %v705, %v704
  %v803 = vpack.c.b16 %v707, %v706
  %v804 = vpack.c.b16 %v709, %v708
  %v805 = vpack.c.b16 %v711, %v710
  %v806 = vpack.c.b16 %v713, %v712
  %v807 = vpack.c.b16 %v715, %v714
  %v808 = vpack.c.b16 %v717, %v716
  %v809 = vpack.c.b16 %v719, %v718
  %v810 = vpack.c.b16 %v721, %v720
  %v811 = vpack.c.b16 %v723, %v722
  %v812 = vpack.c.b16 %v725, %v724
  %v813 = vpack.c.b16 %v727, %v726
  %v814 = vpack.c.b16 %v729, %v728
  %v815 = vpack.c.b16 %v731, %v730
  %v816 = vpack.c.b16 %v733, %v732
  %v817 = vpack.c.b16 %v735, %v734
  %v818 = vpack.c.b16 %v737, %v736
  %v819 = vpack.c.b16 %v739, %v738
  %v820 = vpack.c.b16 %v741, %v740
  %v821 = vpack.c.b16 %v743, %v742
  %v822 = vpack.c.b16 %v745, %v744
  %v823 = vpack.c.b16 %v747, %v746
  %v824 = vpack.c.b16 %v749, %v748
  %v825 = vpack.c.b16 %v751, %v750
  %v826 = vpack.c.b16 %v753, %v752
  %v827 = vpack.c.b16 %v755, %v754
  %v828 = vpack.c.b16 %v757, %v756
  %v829 = vpack.c.b16 %v759, %v758
  %v830 = vpack.c.b16 %v761, %v760
  %v831 = vpack.c.b16 %v763, %v762
  %v832 = vpack.c.b16 %v765, %v764
  %v833 = vpack.c.b16 %v767, %v766
  %v834 = vpack.c.b16 %v769, %v768
  %v835 = vpack.c.b16 %v771, %v770
  %v836 = vpack.c.b16 %v773, %v772
  %v837 = vpack.c.b16 %v775, %v774
  %v838 = vpack.c.b16 %v777, %v776
  %v839 = vpack.c.b16 %v779, %v778
  %v840 = vpack.c.b16 %v781, %v780
  %v841 = vpack.c.b16 %v783, %v782
  %v842 = vpack.c.b16 %v785, %v784
  %v843 = vpack.c.b16 %v787, %v786
  %v844 = vpack.c.b16 %v789, %v788
  %v845 = vpack.c.b16 %v791, %v790
  %v846 = vpack.c.b16 %v793, %v792
  %v847 = vpack.c.b16 %v795, %v794
  %v848 = vpack.c.b16 %v797, %v796
  %v849 = vpack.c.b16 %v799, %v798
  %v850 = vpack.c.b16 %v801, %v800
  %900 = vst [vmem:[%s3] sm:$0xff] %v802
  %901 = vst [vmem:[%s3 + $0x8] sm:$0xff] %v803
  %902 = vst [vmem:[%s3 + $0x10] sm:$0xff] %v804
  %903 = vst [vmem:[%s3 + $0x18] sm:$0xff] %v805
  %904 = vst [vmem:[%s3 + $0x20] sm:$0xff] %v806
  %905 = vst [vmem:[%s3 + $0x28] sm:$0xff] %v807
  %906 = vst [vmem:[%s3 + $0x30] sm:$0xff] %v808
  %907 = vst [vmem:[%s3 + $0x38] sm:$0xff] %v809
  %908 = vst [vmem:[%s3 + $0x40] sm:$0xff] %v810
  %909 = vst [vmem:[%s3 + $0x48] sm:$0xff] %v811
  %910 = vst [vmem:[%s3 + $0x50] sm:$0xff] %v812
  %911 = vst [vmem:[%s3 + $0x58] sm:$0xff] %v813
  %912 = vst [vmem:[%s3 + $0x60] sm:$0xff] %v814
  %913 = vst [vmem:[%s3 + $0x68] sm:$0xff] %v815
  %914 = vst [vmem:[%s3 + $0x70] sm:$0xff] %v816
  %915 = vst [vmem:[%s3 + $0x78] sm:$0xff] %v817
  %916 = vst [vmem:[%s3 + $0x80] sm:$0xff] %v818
  %917 = vst [vmem:[%s3 + $0x88] sm:$0xff] %v819
  %918 = vst [vmem:[%s3 + $0x90] sm:$0xff] %v820
  %919 = vst [vmem:[%s3 + $0x98] sm:$0xff] %v821
  %920 = vst [vmem:[%s3 + $0xa0] sm:$0xff] %v822
  %921 = vst [vmem:[%s3 + $0xa8] sm:$0xff] %v823
  %922 = vst [vmem:[%s3 + $0xb0] sm:$0xff] %v824
  %923 = vst [vmem:[%s3 + $0xb8] sm:$0xff] %v825
  %924 = vst [vmem:[%s3 + $0xc0] sm:$0xff] %v826
  %925 = vst [vmem:[%s3 + $0xc8] sm:$0xff] %v827
  %926 = vst [vmem:[%s3 + $0xd0] sm:$0xff] %v828
  %927 = vst [vmem:[%s3 + $0xd8] sm:$0xff] %v829
  %928 = vst [vmem:[%s3 + $0xe0] sm:$0xff] %v830
  %929 = vst [vmem:[%s3 + $0xe8] sm:$0xff] %v831
  %930 = vst [vmem:[%s3 + $0xf0] sm:$0xff] %v832
  %931 = vst [vmem:[%s3 + $0xf8] sm:$0xff] %v833
  %932 = vst [vmem:[%s3 + $0x100] sm:$0xff] %v834
  %933 = vst [vmem:[%s3 + $0x108] sm:$0xff] %v835
  %934 = vst [vmem:[%s3 + $0x110] sm:$0xff] %v836
  %935 = vst [vmem:[%s3 + $0x118] sm:$0xff] %v837
  %936 = vst [vmem:[%s3 + $0x120] sm:$0xff] %v838
  %937 = vst [vmem:[%s3 + $0x128] sm:$0xff] %v839
  %938 = vst [vmem:[%s3 + $0x130] sm:$0xff] %v840
  %939 = vst [vmem:[%s3 + $0x138] sm:$0xff] %v841
  %940 = vst [vmem:[%s3 + $0x140] sm:$0xff] %v842
  %941 = vst [vmem:[%s3 + $0x148] sm:$0xff] %v843
  %942 = vst [vmem:[%s3 + $0x150] sm:$0xff] %v844
  %943 = vst [vmem:[%s3 + $0x158] sm:$0xff] %v845
  %944 = vst [vmem:[%s3 + $0x160] sm:$0xff] %v846
  %945 = vst [vmem:[%s3 + $0x168] sm:$0xff] %v847
  %946 = vst [vmem:[%s3 + $0x170] sm:$0xff] %v848
  %947 = vst [vmem:[%s3 + $0x178] sm:$0xff] %v849
  %948 = vst [vmem:[%s3 + $0x180] sm:$0xff] %v850
  %p949 = scmp.eq.s32.totalorder 0, 0
  // Predicated region
  $region14: #{_lambda_.10} parent=0 // pred_check
    %p950 = pneg %p949
  $region15: #{_lambda_.10} parent=0 // pred_check_branch
    %952 = sbr.rel (%p950) target = $region17
  $region16: #{_lambda_.10} parent=0 // pred_region
    %v953 = vlaneseq
    %vm954 = vcmp.ge.s32.totalorder %v953, 0
    %vm955 = vcmp.lt.s32.totalorder %v953, 256
    %vm956 = vmand %vm954, %vm955
    %957 = vst.msk [vmem:[%s4] sm:$0x3] %vm956, 0.0
    %958 = vst.msk [vmem:[%s5] sm:$0x3] %vm956, 0.0
  $region17: #{_lambda_.10} parent=0 // pred_fallthru
    _
  %v959 = vld [vmem:[%s4] sm:$0x3]
  %v960 = vadd.f32 %v358, %v362
  %v961 = vadd.f32 %v960, %v368
  %v962 = vadd.f32 %v961, %v372
  %v963 = vadd.f32 %v962, %v378
  %v964 = vadd.f32 %v963, %v382
  %v965 = vadd.f32 %v964, %v388
  %v966 = vadd.f32 %v965, %v392
  %v967 = vadd.f32 %v966, %v398
  %v968 = vadd.f32 %v967, %v402
  %v969 = vadd.f32 %v968, %v408
  %v970 = vadd.f32 %v969, %v412
  %v971 = vadd.f32 %v970, %v418
  %v972 = vadd.f32 %v971, %v422
  %v973 = vadd.f32 %v972, %v428
  %v974 = vadd.f32 %v973, %v432
  %v975 = vadd.f32 %v974, %v438
  %v976 = vadd.f32 %v975, %v442
  %v977 = vadd.f32 %v976, %v448
  %v978 = vadd.f32 %v977, %v452
  %v979 = vadd.f32 %v978, %v458
  %v980 = vadd.f32 %v979, %v462
  %v981 = vadd.f32 %v980, %v468
  %v982 = vadd.f32 %v981, %v472
  %v983 = vadd.f32 %v982, %v478
  %v984 = vadd.f32 %v983, %v482
  %v985 = vadd.f32 %v984, %v488
  %v986 = vadd.f32 %v985, %v492
  %v987 = vadd.f32 %v986, %v498
  %v988 = vadd.f32 %v987, %v502
  %v989 = vadd.f32 %v988, %v508
  %v990 = vadd.f32 %v989, %v512
  %v991 = vadd.f32 %v990, %v518
  %v992 = vadd.f32 %v991, %v522
  %v993 = vadd.f32 %v992, %v528
  %v994 = vadd.f32 %v993, %v532
  %v995 = vadd.f32 %v994, %v538
  %v996 = vadd.f32 %v995, %v542
  %v997 = vadd.f32 %v996, %v548
  %v998 = vadd.f32 %v997, %v552
  %v999 = vadd.f32 %v998, %v558
  %v1000 = vadd.f32 %v999, %v562
  %v1001 = vadd.f32 %v1000, %v568
  %v1002 = vadd.f32 %v1001, %v572
  %v1003 = vadd.f32 %v1002, %v578
  %v1004 = vadd.f32 %v1003, %v582
  %v1005 = vadd.f32 %v1004, %v588
  %v1006 = vadd.f32 %v1005, %v592
  %v1007 = vadd.f32 %v1006, %v598
  %v1008 = vrot.slane %v1007, 4
  %v1009 = vadd.f32 %v1007, %v1008
  %v1010 = vrot.slane %v1009, 2
  %v1011 = vadd.f32 %v1009, %v1010
  %v1012 = vrot.slane %v1011, 1
  %v1013 = vadd.f32 %v1011, %v1012
  %v1014 = vadd.f32 %v360, %v364
  %v1015 = vadd.f32 %v1014, %v370
  %v1016 = vadd.f32 %v1015, %v374
  %v1017 = vadd.f32 %v1016, %v380
  %v1018 = vadd.f32 %v1017, %v384
  %v1019 = vadd.f32 %v1018, %v390
  %v1020 = vadd.f32 %v1019, %v394
  %v1021 = vadd.f32 %v1020, %v400
  %v1022 = vadd.f32 %v1021, %v404
  %v1023 = vadd.f32 %v1022, %v410
  %v1024 = vadd.f32 %v1023, %v414
  %v1025 = vadd.f32 %v1024, %v420
  %v1026 = vadd.f32 %v1025, %v424
  %v1027 = vadd.f32 %v1026, %v430
  %v1028 = vadd.f32 %v1027, %v434
  %v1029 = vadd.f32 %v1028, %v440
  %v1030 = vadd.f32 %v1029, %v444
  %v1031 = vadd.f32 %v1030, %v450
  %v1032 = vadd.f32 %v1031, %v454
  %v1033 = vadd.f32 %v1032, %v460
  %v1034 = vadd.f32 %v1033, %v464
  %v1035 = vadd.f32 %v1034, %v470
  %v1036 = vadd.f32 %v1035, %v474
  %v1037 = vadd.f32 %v1036, %v480
  %v1038 = vadd.f32 %v1037, %v484
  %v1039 = vadd.f32 %v1038, %v490
  %v1040 = vadd.f32 %v1039, %v494
  %v1041 = vadd.f32 %v1040, %v500
  %v1042 = vadd.f32 %v1041, %v504
  %v1043 = vadd.f32 %v1042, %v510
  %v1044 = vadd.f32 %v1043, %v514
  %v1045 = vadd.f32 %v1044, %v520
  %v1046 = vadd.f32 %v1045, %v524
  %v1047 = vadd.f32 %v1046, %v530
  %v1048 = vadd.f32 %v1047, %v534
  %v1049 = vadd.f32 %v1048, %v540
  %v1050 = vadd.f32 %v1049, %v544
  %v1051 = vadd.f32 %v1050, %v550
  %v1052 = vadd.f32 %v1051, %v554
  %v1053 = vadd.f32 %v1052, %v560
  %v1054 = vadd.f32 %v1053, %v564
  %v1055 = vadd.f32 %v1054, %v570
  %v1056 = vadd.f32 %v1055, %v574
  %v1057 = vadd.f32 %v1056, %v580
  %v1058 = vadd.f32 %v1057, %v584
  %v1059 = vadd.f32 %v1058, %v590
  %v1060 = vadd.f32 %v1059, %v594
  %v1061 = vadd.f32 %v1060, %v600
  %v1062 = vrot.slane %v1061, 4
  %v1063 = vadd.f32 %v1061, %v1062
  %v1064 = vrot.slane %v1063, 2
  %v1065 = vadd.f32 %v1063, %v1064
  %v1066 = vrot.slane %v1065, 1
  %v1067 = vadd.f32 %v1065, %v1066
  %v1070 = vcombine.low %v1013, %v1067
  %v1072 = vunpack.c.l.s4 1966171168
  %v1073 = vunpack.c.0.s8 %v1072
  %v1074 = vlaneseq
  %v1075 = vshrl.u32 %v1074, 7
  %v1076 = vsub.s32 %v1073, %v1075
  %v1077 = vrot.slane %v1070, %v1076
  %v1079 = vunpack.c.l.s4 1966171168
  %v1080 = vunpack.c.0.s8 %v1079
  %v1081 = vlaneseq
  %v1082 = vshrl.u32 %v1081, 7
  %v1083 = vsub.s32 %v1080, %v1082
  %v1084 = vrot.slane %v1077, %v1083
  %v1086 = vadd.f32 %v959, %v1084
  %v1087 = vlaneseq
  %vm1088 = vcmp.ge.s32.totalorder %v1087, 0
  %vm1089 = vcmp.lt.s32.totalorder %v1087, 256
  %vm1090 = vmand %vm1088, %vm1089
  %1091 = vst.msk [vmem:[%s4] sm:$0x3] %vm1090, %v1086
  %v1092 = vld [vmem:[%s5] sm:$0x3]
  %v1093 = vmul.f32 %v358, %v358
  %v1094 = vmul.f32 %v360, %v360
  %v1095 = vmul.f32 %v362, %v362
  %v1096 = vmul.f32 %v364, %v364
  %v1097 = vmul.f32 %v368, %v368
  %v1098 = vmul.f32 %v370, %v370
  %v1099 = vmul.f32 %v372, %v372
  %v1100 = vmul.f32 %v374, %v374
  %v1101 = vmul.f32 %v378, %v378
  %v1102 = vmul.f32 %v380, %v380
  %v1103 = vmul.f32 %v382, %v382
  %v1104 = vmul.f32 %v384, %v384
  %v1105 = vmul.f32 %v388, %v388
  %v1106 = vmul.f32 %v390, %v390
  %v1107 = vmul.f32 %v392, %v392
  %v1108 = vmul.f32 %v394, %v394
  %v1109 = vmul.f32 %v398, %v398
  %v1110 = vmul.f32 %v400, %v400
  %v1111 = vmul.f32 %v402, %v402
  %v1112 = vmul.f32 %v404, %v404
  %v1113 = vmul.f32 %v408, %v408
  %v1114 = vmul.f32 %v410, %v410
  %v1115 = vmul.f32 %v412, %v412
  %v1116 = vmul.f32 %v414, %v414
  %v1117 = vmul.f32 %v418, %v418
  %v1118 = vmul.f32 %v420, %v420
  %v1119 = vmul.f32 %v422, %v422
  %v1120 = vmul.f32 %v424, %v424
  %v1121 = vmul.f32 %v428, %v428
  %v1122 = vmul.f32 %v430, %v430
  %v1123 = vmul.f32 %v432, %v432
  %v1124 = vmul.f32 %v434, %v434
  %v1125 = vmul.f32 %v438, %v438
  %v1126 = vmul.f32 %v440, %v440
  %v1127 = vmul.f32 %v442, %v442
  %v1128 = vmul.f32 %v444, %v444
  %v1129 = vmul.f32 %v448, %v448
  %v1130 = vmul.f32 %v450, %v450
  %v1131 = vmul.f32 %v452, %v452
  %v1132 = vmul.f32 %v454, %v454
  %v1133 = vmul.f32 %v458, %v458
  %v1134 = vmul.f32 %v460, %v460
  %v1135 = vmul.f32 %v462, %v462
  %v1136 = vmul.f32 %v464, %v464
  %v1137 = vmul.f32 %v468, %v468
  %v1138 = vmul.f32 %v470, %v470
  %v1139 = vmul.f32 %v472, %v472
  %v1140 = vmul.f32 %v474, %v474
  %v1141 = vmul.f32 %v478, %v478
  %v1142 = vmul.f32 %v480, %v480
  %v1143 = vmul.f32 %v482, %v482
  %v1144 = vmul.f32 %v484, %v484
  %v1145 = vmul.f32 %v488, %v488
  %v1146 = vmul.f32 %v490, %v490
  %v1147 = vmul.f32 %v492, %v492
  %v1148 = vmul.f32 %v494, %v494
  %v1149 = vmul.f32 %v498, %v498
  %v1150 = vmul.f32 %v500, %v500
  %v1151 = vmul.f32 %v502, %v502
  %v1152 = vmul.f32 %v504, %v504
  %v1153 = vmul.f32 %v508, %v508
  %v1154 = vmul.f32 %v510, %v510
  %v1155 = vmul.f32 %v512, %v512
  %v1156 = vmul.f32 %v514, %v514
  %v1157 = vmul.f32 %v518, %v518
  %v1158 = vmul.f32 %v520, %v520
  %v1159 = vmul.f32 %v522, %v522
  %v1160 = vmul.f32 %v524, %v524
  %v1161 = vmul.f32 %v528, %v528
  %v1162 = vmul.f32 %v530, %v530
  %v1163 = vmul.f32 %v532, %v532
  %v1164 = vmul.f32 %v534, %v534
  %v1165 = vmul.f32 %v538, %v538
  %v1166 = vmul.f32 %v540, %v540
  %v1167 = vmul.f32 %v542, %v542
  %v1168 = vmul.f32 %v544, %v544
  %v1169 = vmul.f32 %v548, %v548
  %v1170 = vmul.f32 %v550, %v550
  %v1171 = vmul.f32 %v552, %v552
  %v1172 = vmul.f32 %v554, %v554
  %v1173 = vmul.f32 %v558, %v558
  %v1174 = vmul.f32 %v560, %v560
  %v1175 = vmul.f32 %v562, %v562
  %v1176 = vmul.f32 %v564, %v564
  %v1177 = vmul.f32 %v568, %v568
  %v1178 = vmul.f32 %v570, %v570
  %v1179 = vmul.f32 %v572, %v572
  %v1180 = vmul.f32 %v574, %v574
  %v1181 = vmul.f32 %v578, %v578
  %v1182 = vmul.f32 %v580, %v580
  %v1183 = vmul.f32 %v582, %v582
  %v1184 = vmul.f32 %v584, %v584
  %v1185 = vmul.f32 %v588, %v588
  %v1186 = vmul.f32 %v590, %v590
  %v1187 = vmul.f32 %v592, %v592
  %v1188 = vmul.f32 %v594, %v594
  %v1189 = vmul.f32 %v598, %v598
  %v1190 = vmul.f32 %v600, %v600
  %v1191 = vadd.f32 %v1093, %v1095
  %v1192 = vadd.f32 %v1191, %v1097
  %v1193 = vadd.f32 %v1192, %v1099
  %v1194 = vadd.f32 %v1193, %v1101
  %v1195 = vadd.f32 %v1194, %v1103
  %v1196 = vadd.f32 %v1195, %v1105
  %v1197 = vadd.f32 %v1196, %v1107
  %v1198 = vadd.f32 %v1197, %v1109
  %v1199 = vadd.f32 %v1198, %v1111
  %v1200 = vadd.f32 %v1199, %v1113
  %v1201 = vadd.f32 %v1200, %v1115
  %v1202 = vadd.f32 %v1201, %v1117
  %v1203 = vadd.f32 %v1202, %v1119
  %v1204 = vadd.f32 %v1203, %v1121
  %v1205 = vadd.f32 %v1204, %v1123
  %v1206 = vadd.f32 %v1205, %v1125
  %v1207 = vadd.f32 %v1206, %v1127
  %v1208 = vadd.f32 %v1207, %v1129
  %v1209 = vadd.f32 %v1208, %v1131
  %v1210 = vadd.f32 %v1209, %v1133
  %v1211 = vadd.f32 %v1210, %v1135
  %v1212 = vadd.f32 %v1211, %v1137
  %v1213 = vadd.f32 %v1212, %v1139
  %v1214 = vadd.f32 %v1213, %v1141
  %v1215 = vadd.f32 %v1214, %v1143
  %v1216 = vadd.f32 %v1215, %v1145
  %v1217 = vadd.f32 %v1216, %v1147
  %v1218 = vadd.f32 %v1217, %v1149
  %v1219 = vadd.f32 %v1218, %v1151
  %v1220 = vadd.f32 %v1219, %v1153
  %v1221 = vadd.f32 %v1220, %v1155
  %v1222 = vadd.f32 %v1221, %v1157
  %v1223 = vadd.f32 %v1222, %v1159
  %v1224 = vadd.f32 %v1223, %v1161
  %v1225 = vadd.f32 %v1224, %v1163
  %v1226 = vadd.f32 %v1225, %v1165
  %v1227 = vadd.f32 %v1226, %v1167
  %v1228 = vadd.f32 %v1227, %v1169
  %v1229 = vadd.f32 %v1228, %v1171
  %v1230 = vadd.f32 %v1229, %v1173
  %v1231 = vadd.f32 %v1230, %v1175
  %v1232 = vadd.f32 %v1231, %v1177
  %v1233 = vadd.f32 %v1232, %v1179
  %v1234 = vadd.f32 %v1233, %v1181
  %v1235 = vadd.f32 %v1234, %v1183
  %v1236 = vadd.f32 %v1235, %v1185
  %v1237 = vadd.f32 %v1236, %v1187
  %v1238 = vadd.f32 %v1237, %v1189
  %v1239 = vrot.slane %v1238, 4
  %v1240 = vadd.f32 %v1238, %v1239
  %v1241 = vrot.slane %v1240, 2
  %v1242 = vadd.f32 %v1240, %v1241
  %v1243 = vrot.slane %v1242, 1
  %v1244 = vadd.f32 %v1242, %v1243
  %v1245 = vadd.f32 %v1094, %v1096
  %v1246 = vadd.f32 %v1245, %v1098
  %v1247 = vadd.f32 %v1246, %v1100
  %v1248 = vadd.f32 %v1247, %v1102
  %v1249 = vadd.f32 %v1248, %v1104
  %v1250 = vadd.f32 %v1249, %v1106
  %v1251 = vadd.f32 %v1250, %v1108
  %v1252 = vadd.f32 %v1251, %v1110
  %v1253 = vadd.f32 %v1252, %v1112
  %v1254 = vadd.f32 %v1253, %v1114
  %v1255 = vadd.f32 %v1254, %v1116
  %v1256 = vadd.f32 %v1255, %v1118
  %v1257 = vadd.f32 %v1256, %v1120
  %v1258 = vadd.f32 %v1257, %v1122
  %v1259 = vadd.f32 %v1258, %v1124
  %v1260 = vadd.f32 %v1259, %v1126
  %v1261 = vadd.f32 %v1260, %v1128
  %v1262 = vadd.f32 %v1261, %v1130
  %v1263 = vadd.f32 %v1262, %v1132
  %v1264 = vadd.f32 %v1263, %v1134
  %v1265 = vadd.f32 %v1264, %v1136
  %v1266 = vadd.f32 %v1265, %v1138
  %v1267 = vadd.f32 %v1266, %v1140
  %v1268 = vadd.f32 %v1267, %v1142
  %v1269 = vadd.f32 %v1268, %v1144
  %v1270 = vadd.f32 %v1269, %v1146
  %v1271 = vadd.f32 %v1270, %v1148
  %v1272 = vadd.f32 %v1271, %v1150
  %v1273 = vadd.f32 %v1272, %v1152
  %v1274 = vadd.f32 %v1273, %v1154
  %v1275 = vadd.f32 %v1274, %v1156
  %v1276 = vadd.f32 %v1275, %v1158
  %v1277 = vadd.f32 %v1276, %v1160
  %v1278 = vadd.f32 %v1277, %v1162
  %v1279 = vadd.f32 %v1278, %v1164
  %v1280 = vadd.f32 %v1279, %v1166
  %v1281 = vadd.f32 %v1280, %v1168
  %v1282 = vadd.f32 %v1281, %v1170
  %v1283 = vadd.f32 %v1282, %v1172
  %v1284 = vadd.f32 %v1283, %v1174
  %v1285 = vadd.f32 %v1284, %v1176
  %v1286 = vadd.f32 %v1285, %v1178
  %v1287 = vadd.f32 %v1286, %v1180
  %v1288 = vadd.f32 %v1287, %v1182
  %v1289 = vadd.f32 %v1288, %v1184
  %v1290 = vadd.f32 %v1289, %v1186
  %v1291 = vadd.f32 %v1290, %v1188
  %v1292 = vadd.f32 %v1291, %v1190
  %v1293 = vrot.slane %v1292, 4
  %v1294 = vadd.f32 %v1292, %v1293
  %v1295 = vrot.slane %v1294, 2
  %v1296 = vadd.f32 %v1294, %v1295
  %v1297 = vrot.slane %v1296, 1
  %v1298 = vadd.f32 %v1296, %v1297
  %v1301 = vcombine.low %v1244, %v1298
  %v1303 = vunpack.c.l.s4 1966171168
  %v1304 = vunpack.c.0.s8 %v1303
  %v1305 = vlaneseq
  %v1306 = vshrl.u32 %v1305, 7
  %v1307 = vsub.s32 %v1304, %v1306
  %v1308 = vrot.slane %v1301, %v1307
  %v1310 = vunpack.c.l.s4 1966171168
  %v1311 = vunpack.c.0.s8 %v1310
  %v1312 = vlaneseq
  %v1313 = vshrl.u32 %v1312, 7
  %v1314 = vsub.s32 %v1311, %v1313
  %v1315 = vrot.slane %v1308, %v1314
  %v1317 = vadd.f32 %v1092, %v1315
  %1318 = vst.msk [vmem:[%s5] sm:$0x3] %vm1090, %v1317
  // Predicated region
  $region18: #{_lambda_.10} parent=0 // pred_check
    _
  $region19: #{_lambda_.10} parent=0 // pred_check_branch
    %1320 = sbr.rel (0) target = $region21
  $region20: #{_lambda_.10} parent=0 // pred_region
    _
  $region21: #{_lambda_.10} parent=0 // pred_fallthru
    _
  // Predicated region
  $region22: #{_lambda_.10} parent=0 // pred_check
    _
  $region23: #{_lambda_.10} parent=0 // pred_check_branch
    %1322 = sbr.rel (0) target = $region25
  $region24: #{_lambda_.10} parent=0 // pred_region
    _
  $region25: #{_lambda_.10} parent=0 // pred_fallthru
    _
  // Predicated region
  $region26: #{_lambda_.10} parent=0 // pred_check
    _
  $region27: #{_lambda_.10} parent=0 // pred_check_branch
    %1324 = sbr.rel (0) target = $region29
  $region28: #{_lambda_.10} parent=0 // pred_region
    _
  $region29: #{_lambda_.10} parent=0 // pred_fallthru
    _
  // Predicated region
  $region30: #{_lambda_.10} parent=0 // pred_check
    _
  $region31: #{_lambda_.10} parent=0 // pred_check_branch
    %1326 = sbr.rel (0) target = $region33
  $region32: #{_lambda_.10} parent=0 // pred_region
    _
  $region33: #{_lambda_.10} parent=0 // pred_fallthru
    _
  // Predicated region
  $region34: #{_lambda_.10} parent=0 // pred_check
    _
  $region35: #{_lambda_.10} parent=0 // pred_check_branch
    %1328 = sbr.rel (0) target = $region37
  $region36: #{_lambda_.10} parent=0 // pred_region
    _
  $region37: #{_lambda_.10} parent=0 // pred_fallthru
    _
  // Predicated region
  $region38: #{_lambda_.10} parent=0 // pred_check
    _
  $region39: #{_lambda_.10} parent=0 // pred_check_branch
    %1330 = sbr.rel (0) target = $region41
  $region40: #{_lambda_.10} parent=0 // pred_region
    _
  $region41: #{_lambda_.10} parent=0 // pred_fallthru
    _

// kernel: _lambda_.11
$region0: #{_lambda_.11}
  #allocation0 [shape = 'u32[]', space=smem, size = 0x4, offset = 0x4, fixed_abs, tag = 'smem constant byte address 0x4 - core index']
  #allocation1 [shape = 'u32[144,128]{1,0:T(1,128)}', space=vmem, size = 0x12000, scoped, tag = 'internal scratch']
  %s0 = inlined_call_operand.vmem [shape: bf16[98,256], index: 0, kind: input, shape index: {}]
  %s1 = inlined_call_operand.vmem [shape: bf16[256,512], index: 1, kind: input, shape index: {}]
  %s2 = inlined_call_operand.vmem [shape: f32[1,512], index: 2, kind: input, shape index: {}]
  %s3 = inlined_call_operand.vmem [shape: bf16[98,512], index: 3, kind: output, shape index: {0}]
  %s4 = inlined_call_operand.vmem [shape: f32[1,512], index: 4, kind: output, shape index: {1}]
  %s5 = inlined_call_operand.vmem [shape: f32[1,512], index: 5, kind: output, shape index: {2}]
  %6 = xla_tuple %s3, %s4, %s5
  %s7 = sld [smem:[#allocation0]]
  $region137: #{_lambda_.11} parent=0
    _
  %s9 = ssub.s32 1, %s7
  %s10 = scalar_select 0, %s9, %s7
  $region1: #{_lambda_.11} parent=0
    #allocation2 [shape = 'u8[262144]{0}', space=vmem, size = 0x40000, scoped, tag = 'input window, operand 1']
    #allocation3 [shape = 'u8[106496]{0}', space=vmem, size = 0x1a000, scoped, tag = 'output window, operand 0']
    loop: start=0, step=1, limit=4
    $region2: #{_lambda_.11} parent=1 // loop_pre_header
      _
    $region3: #{_lambda_.11} parent=1 // loop_header
      %s12 = sphi 0, %s16
      %p13 = scmp.ge.s32.totalorder %s12, 4
      %s19 = sphi 0, %s31
      %s20 = sphi 0, %s27
      %s21 = sphi 0, %s19
      %s22 = sphi 0, %s20
      %s23 = sphi 0, %s21
      %s24 = sphi 0, %s22
      %s34 = sphi 0, %s36
      %s37 = sphi 0, %s34
      %s38 = sphi 0, %s37
      %s54 = sphi 0, %s38
      %s60 = sphi 0, %s62
      %s63 = sphi 0, %s60
      %s64 = sphi 0, %s63
      %s80 = sphi 0, %s64
      %s86 = sphi 0, %s88
      %s89 = sphi 0, %s86
      %s90 = sphi 0, %s89
      %s106 = sphi 0, %s90
      %s114 = sphi 0, %s116
      %s117 = sphi 0, %s114
      %s118 = sphi 0, %s117
      %s134 = sphi 0, %s118
      %s140 = sphi 0, %s142
      %s143 = sphi 0, %s140
      %s144 = sphi 0, %s143
      %s160 = sphi 0, %s144
      %s166 = sphi 0, %s168
      %s169 = sphi 0, %s166
      %s170 = sphi 0, %s169
      %s186 = sphi 0, %s170
    $region4: #{_lambda_.11} parent=1 // loop_header_branch
      %15 = sbr.rel (%p13) target = $region8
    $region5: #{_lambda_.11} parent=1 // loop_body
      %s17 = ssub.s32 %s12, 1
      %s18 = ssub.s32 %s12, 2
      %s25 = sadd.s32 1, %s20
      %p26 = scmp.ge.s32.totalorder %s25, 1
      %s27 = scalar_select %p26, 0, %s25
      %s28 = sadd.s32 1, %s19
      %s29 = scalar_select %p26, %s28, %s19
      %p30 = scmp.ge.s32.totalorder %s29, 2
      %s31 = scalar_select %p30, 0, %s29
      %s32 = ssub.s32 %s20, %s27
      %p33 = scmp.eq.s32.totalorder %s32, 0
      %s35 = sadd.s32 %s34, 1
      %s36 = scalar_select %p33, %s34, %s35
      %p39 = pneg %p33
      %p40 = scmp.eq.s32.totalorder %s12, 1
      %p41 = por %p39, %p40
      %p42 = scmp.ne.s32.totalorder %s34, %s37
      %p43 = scmp.eq.s32.totalorder %s12, 0
      %p44 = por %p42, %p43
      %p45 = scmp.ne.s32.totalorder %s34, %s37
      %p46 = scmp.eq.s32.totalorder %s17, 1
      %p47 = por %p45, %p46
      %p48 = scmp.ne.s32.totalorder %s37, %s38
      %p49 = scmp.eq.s32.totalorder %s17, 0
      %p50 = por %p48, %p49
      %p51 = scmp.ne.s32.totalorder %s37, %s38
      %p52 = scmp.eq.s32.totalorder %s18, 1
      %p53 = por %p51, %p52
      %p55 = scmp.ne.s32.totalorder %s38, %s54
      %p56 = scmp.eq.s32.totalorder %s18, 0
      %p57 = por %p55, %p56
      %s58 = ssub.s32 %s19, %s31
      %p59 = scmp.eq.s32.totalorder %s58, 0
      %s61 = sadd.s32 %s60, 1
      %s62 = scalar_select %p59, %s60, %s61
      %p65 = pneg %p59
      %p66 = scmp.eq.s32.totalorder %s12, 1
      %p67 = por %p65, %p66
      %p68 = scmp.ne.s32.totalorder %s60, %s63
      %p69 = scmp.eq.s32.totalorder %s12, 0
      %p70 = por %p68, %p69
      %p71 = scmp.ne.s32.totalorder %s60, %s63
      %p72 = scmp.eq.s32.totalorder %s17, 1
      %p73 = por %p71, %p72
      %p74 = scmp.ne.s32.totalorder %s63, %s64
      %p75 = scmp.eq.s32.totalorder %s17, 0
      %p76 = por %p74, %p75
      %p77 = scmp.ne.s32.totalorder %s63, %s64
      %p78 = scmp.eq.s32.totalorder %s18, 1
      %p79 = por %p77, %p78
      %p81 = scmp.ne.s32.totalorder %s64, %s80
      %p82 = scmp.eq.s32.totalorder %s18, 0
      %p83 = por %p81, %p82
      %s84 = ssub.s32 %s19, %s31
      %p85 = scmp.eq.s32.totalorder %s84, 0
      %s87 = sadd.s32 %s86, 1
      %s88 = scalar_select %p85, %s86, %s87
      %p91 = pneg %p85
      %p92 = scmp.eq.s32.totalorder %s12, 1
      %p93 = por %p91, %p92
      %p94 = scmp.ne.s32.totalorder %s86, %s89
      %p95 = scmp.eq.s32.totalorder %s12, 0
      %p96 = por %p94, %p95
      %p97 = scmp.ne.s32.totalorder %s86, %s89
      %p98 = scmp.eq.s32.totalorder %s17, 1
      %p99 = por %p97, %p98
      %p100 = scmp.ne.s32.totalorder %s89, %s90
      %p101 = scmp.eq.s32.totalorder %s17, 0
      %p102 = por %p100, %p101
      %p103 = scmp.ne.s32.totalorder %s89, %s90
      %p104 = scmp.eq.s32.totalorder %s18, 1
      %p105 = por %p103, %p104
      %p107 = scmp.ne.s32.totalorder %s90, %s106
      %p108 = scmp.eq.s32.totalorder %s18, 0
      %p109 = por %p107, %p108
      %s110 = ssub.s32 %s20, %s27
      %s111 = ssub.s32 %s19, %s31
      %s112 = sor.u32 %s110, %s111
      %p113 = scmp.eq.s32.totalorder %s112, 0
      %s115 = sadd.s32 %s114, 1
      %s116 = scalar_select %p113, %s114, %s115
      %p119 = pneg %p113
      %p120 = scmp.eq.s32.totalorder %s12, 1
      %p121 = por %p119, %p120
      %p122 = scmp.ne.s32.totalorder %s114, %s117
      %p123 = scmp.eq.s32.totalorder %s12, 0
      %p124 = por %p122, %p123
      %p125 = scmp.ne.s32.totalorder %s114, %s117
      %p126 = scmp.eq.s32.totalorder %s17, 1
      %p127 = por %p125, %p126
      %p128 = scmp.ne.s32.totalorder %s117, %s118
      %p129 = scmp.eq.s32.totalorder %s17, 0
      %p130 = por %p128, %p129
      %p131 = scmp.ne.s32.totalorder %s117, %s118
      %p132 = scmp.eq.s32.totalorder %s18, 1
      %p133 = por %p131, %p132
      %p135 = scmp.ne.s32.totalorder %s118, %s134
      %p136 = scmp.eq.s32.totalorder %s18, 0
      %p137 = por %p135, %p136
      %s138 = ssub.s32 %s19, %s31
      %p139 = scmp.eq.s32.totalorder %s138, 0
      %s141 = sadd.s32 %s140, 1
      %s142 = scalar_select %p139, %s140, %s141
      %p145 = pneg %p139
      %p146 = scmp.eq.s32.totalorder %s12, 1
      %p147 = por %p145, %p146
      %p148 = scmp.ne.s32.totalorder %s140, %s143
      %p149 = scmp.eq.s32.totalorder %s12, 0
      %p150 = por %p148, %p149
      %p151 = scmp.ne.s32.totalorder %s140, %s143
      %p152 = scmp.eq.s32.totalorder %s17, 1
      %p153 = por %p151, %p152
      %p154 = scmp.ne.s32.totalorder %s143, %s144
      %p155 = scmp.eq.s32.totalorder %s17, 0
      %p156 = por %p154, %p155
      %p157 = scmp.ne.s32.totalorder %s143, %s144
      %p158 = scmp.eq.s32.totalorder %s18, 1
      %p159 = por %p157, %p158
      %p161 = scmp.ne.s32.totalorder %s144, %s160
      %p162 = scmp.eq.s32.totalorder %s18, 0
      %p163 = por %p161, %p162
      %s164 = ssub.s32 %s19, %s31
      %p165 = scmp.eq.s32.totalorder %s164, 0
      %s167 = sadd.s32 %s166, 1
      %s168 = scalar_select %p165, %s166, %s167
      %p171 = pneg %p165
      %p172 = scmp.eq.s32.totalorder %s12, 1
      %p173 = por %p171, %p172
      %p174 = scmp.ne.s32.totalorder %s166, %s169
      %p175 = scmp.eq.s32.totalorder %s12, 0
      %p176 = por %p174, %p175
      %p177 = scmp.ne.s32.totalorder %s166, %s169
      %p178 = scmp.eq.s32.totalorder %s17, 1
      %p179 = por %p177, %p178
      %p180 = scmp.ne.s32.totalorder %s169, %s170
      %p181 = scmp.eq.s32.totalorder %s17, 0
      %p182 = por %p180, %p181
      %p183 = scmp.ne.s32.totalorder %s169, %s170
      %p184 = scmp.eq.s32.totalorder %s18, 1
      %p185 = por %p183, %p184
      %p187 = scmp.ne.s32.totalorder %s170, %s186
      %p188 = scmp.eq.s32.totalorder %s18, 0
      %p189 = por %p187, %p188
      %p190 = scmp.le.s32.totalorder 1, %s12
      %p191 = scmp.lt.s32.totalorder %s12, 3
      %p192 = pnand %p190, %p191
      %p193 = pneg %p192
      // Predicated region
      $region9: #{_lambda_.11} parent=5 // pred_check
        _
      $region10: #{_lambda_.11} parent=5 // pred_check_branch
        %195 = sbr.rel (%p192) target = $region12
      $region11: #{_lambda_.11} parent=5 // pred_region
        %s196 = ssub.s32 %s12, 1
        // Predicated region
        $region13: #{_lambda_.11} parent=11 // pred_check
          %p197 = pneg %p50
        $region14: #{_lambda_.11} parent=11 // pred_check_branch
          %199 = sbr.rel (%p197) target = $region16
        $region15: #{_lambda_.11} parent=11 // pred_region
          %s200 = smul.u32 13, %s22
          %p201 = scmp.lt.s32.totalorder %s200, 12
          %s202 = scalar_select %p201, %s200, 12
          %s203 = smul.addr %s202, 2
          %s204 = smul.addr %s203, 4
          %s205 = scalar_lea.vmem %s0, %s204
          %s206 = smul.u32 13, %s22
        $region16: #{_lambda_.11} parent=11 // pred_fallthru
          _
      $region12: #{_lambda_.11} parent=5 // pred_fallthru
        _
      %p207 = scmp.lt.s32.totalorder %s12, 2
      // Predicated region
      $region17: #{_lambda_.11} parent=5 // pred_check
        %p208 = pneg %p207
      $region18: #{_lambda_.11} parent=5 // pred_check_branch
        %210 = sbr.rel (%p208) target = $region20
      $region19: #{_lambda_.11} parent=5 // pred_region
        // Predicated region
        $region21: #{_lambda_.11} parent=19 // pred_check
          %p211 = pneg %p70
        $region22: #{_lambda_.11} parent=19 // pred_check_branch
          %213 = sbr.rel (%p211) target = $region24
        $region23: #{_lambda_.11} parent=19 // pred_region
          %s214 = sand.u32 %s60, 1
          %s215 = sand.u32 %s60, 1
          %s216 = smul.addr %s215, 256
          %s217 = scalar_lea.vmem [#allocation2], %s216
          %s218 = smul.u32 2, %s19
          %s219 = smul.addr %s218, 4
          %s220 = scalar_lea.vmem %s1, %s219
          // Predicated region
          $region25: #{_lambda_.11} parent=23 // pred_check
            _
          $region26: #{_lambda_.11} parent=23 // pred_check_branch
            %222 = sbr.rel (0) target = $region28
          $region27: #{_lambda_.11} parent=23 // pred_region
            // Predicated region
            $region29: #{_lambda_.11} parent=27 // pred_check
              _
            $region30: #{_lambda_.11} parent=27 // pred_check_branch
              %224 = sbr.rel (0) target = $region32
            $region31: #{_lambda_.11} parent=27 // pred_region
              // Predicated region
              $region44: #{_lambda_.11} parent=31 // pred_check
                _
              $region45: #{_lambda_.11} parent=31 // pred_check_branch
                %302 = sbr.rel (0) target = $region47
              $region46: #{_lambda_.11} parent=31 // pred_region
                loop: start=0, step=1, limit=1
                $region48: #{_lambda_.11} parent=46 // loop_pre_header
                  _
                $region49: #{_lambda_.11} parent=46 // loop_header
                  %s304 = sphi 0, %s308
                  %p305 = scmp.ge.s32.totalorder %s304, 1
                  %s309 = sphi %s220, %s220
                  %s310 = sphi %s217, %s217
                $region50: #{_lambda_.11} parent=46 // loop_header_branch
                  %307 = sbr.rel (%p305) target = $region54
                $region51: #{_lambda_.11} parent=46 // loop_body
                  %v311 = vld [vmem:[%s309] sm:$0xff]
                  %312 = vst [vmem:[%s310] sm:$0xff] %v311
                  %v313 = vld [vmem:[%s309 + $0x10] sm:$0xff]
                  %314 = vst [vmem:[%s310 + $0x8] sm:$0xff] %v313
                  %v315 = vld [vmem:[%s309 + $0x20] sm:$0xff]
                  %316 = vst [vmem:[%s310 + $0x10] sm:$0xff] %v315
                  %v317 = vld [vmem:[%s309 + $0x30] sm:$0xff]
                  %318 = vst [vmem:[%s310 + $0x18] sm:$0xff] %v317
                  %v319 = vld [vmem:[%s309 + $0x40] sm:$0xff]
                  %320 = vst [vmem:[%s310 + $0x20] sm:$0xff] %v319
                  %v321 = vld [vmem:[%s309 + $0x50] sm:$0xff]
                  %322 = vst [vmem:[%s310 + $0x28] sm:$0xff] %v321
                  %v323 = vld [vmem:[%s309 + $0x60] sm:$0xff]
                  %324 = vst [vmem:[%s310 + $0x30] sm:$0xff] %v323
                  %v325 = vld [vmem:[%s309 + $0x70] sm:$0xff]
                  %326 = vst [vmem:[%s310 + $0x38] sm:$0xff] %v325
                  %v327 = vld [vmem:[%s309 + $0x80] sm:$0xff]
                  %328 = vst [vmem:[%s310 + $0x40] sm:$0xff] %v327
                  %v329 = vld [vmem:[%s309 + $0x90] sm:$0xff]
                  %330 = vst [vmem:[%s310 + $0x48] sm:$0xff] %v329
                  %v331 = vld [vmem:[%s309 + $0xa0] sm:$0xff]
                  %332 = vst [vmem:[%s310 + $0x50] sm:$0xff] %v331
                  %v333 = vld [vmem:[%s309 + $0xb0] sm:$0xff]
                  %334 = vst [vmem:[%s310 + $0x58] sm:$0xff] %v333
                  %v335 = vld [vmem:[%s309 + $0xc0] sm:$0xff]
                  %336 = vst [vmem:[%s310 + $0x60] sm:$0xff] %v335
                  %v337 = vld [vmem:[%s309 + $0xd0] sm:$0xff]
                  %338 = vst [vmem:[%s310 + $0x68] sm:$0xff] %v337
                  %v339 = vld [vmem:[%s309 + $0xe0] sm:$0xff]
                  %340 = vst [vmem:[%s310 + $0x70] sm:$0xff] %v339
                  %v341 = vld [vmem:[%s309 + $0xf0] sm:$0xff]
                  %342 = vst [vmem:[%s310 + $0x78] sm:$0xff] %v341
                  %v343 = vld [vmem:[%s309 + $0x100] sm:$0xff]
                  %344 = vst [vmem:[%s310 + $0x80] sm:$0xff] %v343
                  %v345 = vld [vmem:[%s309 + $0x110] sm:$0xff]
                  %346 = vst [vmem:[%s310 + $0x88] sm:$0xff] %v345
                  %v347 = vld [vmem:[%s309 + $0x120] sm:$0xff]
                  %348 = vst [vmem:[%s310 + $0x90] sm:$0xff] %v347
                  %v349 = vld [vmem:[%s309 + $0x130] sm:$0xff]
                  %350 = vst [vmem:[%s310 + $0x98] sm:$0xff] %v349
                  %v351 = vld [vmem:[%s309 + $0x140] sm:$0xff]
                  %352 = vst [vmem:[%s310 + $0xa0] sm:$0xff] %v351
                  %v353 = vld [vmem:[%s309 + $0x150] sm:$0xff]
                  %354 = vst [vmem:[%s310 + $0xa8] sm:$0xff] %v353
                  %v355 = vld [vmem:[%s309 + $0x160] sm:$0xff]
                  %356 = vst [vmem:[%s310 + $0xb0] sm:$0xff] %v355
                  %v357 = vld [vmem:[%s309 + $0x170] sm:$0xff]
                  %358 = vst [vmem:[%s310 + $0xb8] sm:$0xff] %v357
                  %v359 = vld [vmem:[%s309 + $0x180] sm:$0xff]
                  %360 = vst [vmem:[%s310 + $0xc0] sm:$0xff] %v359
                  %v361 = vld [vmem:[%s309 + $0x190] sm:$0xff]
                  %362 = vst [vmem:[%s310 + $0xc8] sm:$0xff] %v361
                  %v363 = vld [vmem:[%s309 + $0x1a0] sm:$0xff]
                  %364 = vst [vmem:[%s310 + $0xd0] sm:$0xff] %v363
                  %v365 = vld [vmem:[%s309 + $0x1b0] sm:$0xff]
                  %366 = vst [vmem:[%s310 + $0xd8] sm:$0xff] %v365
                  %v367 = vld [vmem:[%s309 + $0x1c0] sm:$0xff]
                  %368 = vst [vmem:[%s310 + $0xe0] sm:$0xff] %v367
                  %v369 = vld [vmem:[%s309 + $0x1d0] sm:$0xff]
                  %370 = vst [vmem:[%s310 + $0xe8] sm:$0xff] %v369
                  %v371 = vld [vmem:[%s309 + $0x1e0] sm:$0xff]
                  %372 = vst [vmem:[%s310 + $0xf0] sm:$0xff] %v371
                  %v373 = vld [vmem:[%s309 + $0x1f0] sm:$0xff]
                  %374 = vst [vmem:[%s310 + $0xf8] sm:$0xff] %v373
                $region52: #{_lambda_.11} parent=46 // loop_footer
                  %s308 = sadd.s32 1, %s304
                $region53: #{_lambda_.11} parent=46 // loop_footer_branch
                  %303 = sbr.rel target = $region49
                $region54: #{_lambda_.11} parent=46 // loop_exit
                  _
              $region47: #{_lambda_.11} parent=31 // pred_fallthru
                _
              // Predicated region
              $region55: #{_lambda_.11} parent=31 // pred_check
                _
              $region56: #{_lambda_.11} parent=31 // pred_check_branch
                %376 = sbr.rel target = $region58
              $region57: #{_lambda_.11} parent=31 // pred_region
                _
              $region58: #{_lambda_.11} parent=31 // pred_fallthru
                _
            $region32: #{_lambda_.11} parent=27 // pred_fallthru
              _
            // Predicated region
            $region33: #{_lambda_.11} parent=27 // pred_check
              _
            $region34: #{_lambda_.11} parent=27 // pred_check_branch
              %226 = sbr.rel target = $region36
            $region35: #{_lambda_.11} parent=27 // pred_region
              %s228 = ssub.s32 256, 1
              loop: start=0, step=1, limit=1
              $region37: #{_lambda_.11} parent=35 // loop_pre_header
                _
              $region38: #{_lambda_.11} parent=35 // loop_header
                %s230 = sphi 0, %s234
                %p231 = scmp.ge.s32.totalorder %s230, 1
                %s235 = sphi %s220, %s220
                %s236 = sphi %s217, %s217
              $region39: #{_lambda_.11} parent=35 // loop_header_branch
                %233 = sbr.rel (%p231) target = $region43
              $region40: #{_lambda_.11} parent=35 // loop_body
                %v237 = vld [vmem:[%s235] sm:%s228]
                %238 = vst [vmem:[%s236] sm:%s228] %v237
                %v239 = vld [vmem:[%s235 + $0x10] sm:%s228]
                %240 = vst [vmem:[%s236 + $0x8] sm:%s228] %v239
                %v241 = vld [vmem:[%s235 + $0x20] sm:%s228]
                %242 = vst [vmem:[%s236 + $0x10] sm:%s228] %v241
                %v243 = vld [vmem:[%s235 + $0x30] sm:%s228]
                %244 = vst [vmem:[%s236 + $0x18] sm:%s228] %v243
                %v245 = vld [vmem:[%s235 + $0x40] sm:%s228]
                %246 = vst [vmem:[%s236 + $0x20] sm:%s228] %v245
                %v247 = vld [vmem:[%s235 + $0x50] sm:%s228]
                %248 = vst [vmem:[%s236 + $0x28] sm:%s228] %v247
                %v249 = vld [vmem:[%s235 + $0x60] sm:%s228]
                %250 = vst [vmem:[%s236 + $0x30] sm:%s228] %v249
                %v251 = vld [vmem:[%s235 + $0x70] sm:%s228]
                %252 = vst [vmem:[%s236 + $0x38] sm:%s228] %v251
                %v253 = vld [vmem:[%s235 + $0x80] sm:%s228]
                %254 = vst [vmem:[%s236 + $0x40] sm:%s228] %v253
                %v255 = vld [vmem:[%s235 + $0x90] sm:%s228]
                %256 = vst [vmem:[%s236 + $0x48] sm:%s228] %v255
                %v257 = vld [vmem:[%s235 + $0xa0] sm:%s228]
                %258 = vst [vmem:[%s236 + $0x50] sm:%s228] %v257
                %v259 = vld [vmem:[%s235 + $0xb0] sm:%s228]
                %260 = vst [vmem:[%s236 + $0x58] sm:%s228] %v259
                %v261 = vld [vmem:[%s235 + $0xc0] sm:%s228]
                %262 = vst [vmem:[%s236 + $0x60] sm:%s228] %v261
                %v263 = vld [vmem:[%s235 + $0xd0] sm:%s228]
                %264 = vst [vmem:[%s236 + $0x68] sm:%s228] %v263
                %v265 = vld [vmem:[%s235 + $0xe0] sm:%s228]
                %266 = vst [vmem:[%s236 + $0x70] sm:%s228] %v265
                %v267 = vld [vmem:[%s235 + $0xf0] sm:%s228]
                %268 = vst [vmem:[%s236 + $0x78] sm:%s228] %v267
                %v269 = vld [vmem:[%s235 + $0x100] sm:%s228]
                %270 = vst [vmem:[%s236 + $0x80] sm:%s228] %v269
                %v271 = vld [vmem:[%s235 + $0x110] sm:%s228]
                %272 = vst [vmem:[%s236 + $0x88] sm:%s228] %v271
                %v273 = vld [vmem:[%s235 + $0x120] sm:%s228]
                %274 = vst [vmem:[%s236 + $0x90] sm:%s228] %v273
                %v275 = vld [vmem:[%s235 + $0x130] sm:%s228]
                %276 = vst [vmem:[%s236 + $0x98] sm:%s228] %v275
                %v277 = vld [vmem:[%s235 + $0x140] sm:%s228]
                %278 = vst [vmem:[%s236 + $0xa0] sm:%s228] %v277
                %v279 = vld [vmem:[%s235 + $0x150] sm:%s228]
                %280 = vst [vmem:[%s236 + $0xa8] sm:%s228] %v279
                %v281 = vld [vmem:[%s235 + $0x160] sm:%s228]
                %282 = vst [vmem:[%s236 + $0xb0] sm:%s228] %v281
                %v283 = vld [vmem:[%s235 + $0x170] sm:%s228]
                %284 = vst [vmem:[%s236 + $0xb8] sm:%s228] %v283
                %v285 = vld [vmem:[%s235 + $0x180] sm:%s228]
                %286 = vst [vmem:[%s236 + $0xc0] sm:%s228] %v285
                %v287 = vld [vmem:[%s235 + $0x190] sm:%s228]
                %288 = vst [vmem:[%s236 + $0xc8] sm:%s228] %v287
                %v289 = vld [vmem:[%s235 + $0x1a0] sm:%s228]
                %290 = vst [vmem:[%s236 + $0xd0] sm:%s228] %v289
                %v291 = vld [vmem:[%s235 + $0x1b0] sm:%s228]
                %292 = vst [vmem:[%s236 + $0xd8] sm:%s228] %v291
                %v293 = vld [vmem:[%s235 + $0x1c0] sm:%s228]
                %294 = vst [vmem:[%s236 + $0xe0] sm:%s228] %v293
                %v295 = vld [vmem:[%s235 + $0x1d0] sm:%s228]
                %296 = vst [vmem:[%s236 + $0xe8] sm:%s228] %v295
                %v297 = vld [vmem:[%s235 + $0x1e0] sm:%s228]
                %298 = vst [vmem:[%s236 + $0xf0] sm:%s228] %v297
                %v299 = vld [vmem:[%s235 + $0x1f0] sm:%s228]
                %300 = vst [vmem:[%s236 + $0xf8] sm:%s228] %v299
              $region41: #{_lambda_.11} parent=35 // loop_footer
                %s234 = sadd.s32 1, %s230
              $region42: #{_lambda_.11} parent=35 // loop_footer_branch
                %229 = sbr.rel target = $region38
              $region43: #{_lambda_.11} parent=35 // loop_exit
                _
            $region36: #{_lambda_.11} parent=27 // pred_fallthru
              _
          $region28: #{_lambda_.11} parent=23 // pred_fallthru
            _
          %377 = vnop
        $region24: #{_lambda_.11} parent=19 // pred_fallthru
          _
        // Predicated region
        $region59: #{_lambda_.11} parent=19 // pred_check
          %p378 = pneg %p96
        $region60: #{_lambda_.11} parent=19 // pred_check_branch
          %380 = sbr.rel (%p378) target = $region62
        $region61: #{_lambda_.11} parent=19 // pred_region
          %s381 = smul.u32 2, %s19
          %p382 = scmp.lt.s32.totalorder %s381, 3
          %s383 = scalar_select %p382, %s381, 3
          %s384 = scalar_lea.vmem %s2, %s383
          %s385 = smul.u32 2, %s19
        $region62: #{_lambda_.11} parent=19 // pred_fallthru
          _
      $region20: #{_lambda_.11} parent=5 // pred_fallthru
        _
      %p386 = scmp.le.s32.totalorder 1, %s12
      %p387 = scmp.lt.s32.totalorder %s12, 3
      %p388 = pnand %p386, %p387
      %p389 = pneg %p388
      // Predicated region
      $region63: #{_lambda_.11} parent=5 // pred_check
        _
      $region64: #{_lambda_.11} parent=5 // pred_check_branch
        %391 = sbr.rel (%p388) target = $region66
      $region65: #{_lambda_.11} parent=5 // pred_region
        %s392 = ssub.s32 %s12, 1
        %s393 = sand.u32 %s63, 1
        %s394 = sand.u32 %s63, 1
        %s395 = smul.addr %s394, 256
        %s396 = scalar_lea.vmem [#allocation2], %s395
        // Predicated region
        $region67: #{_lambda_.11} parent=65 // pred_check
          %p397 = pneg %p76
        $region68: #{_lambda_.11} parent=65 // pred_check_branch
          %399 = sbr.rel (%p397) target = $region70
        $region69: #{_lambda_.11} parent=65 // pred_region
          _
        $region70: #{_lambda_.11} parent=65 // pred_fallthru
          _
        %s400 = smul.u32 13, %s22
        %p401 = scmp.lt.s32.totalorder %s400, 12
        %s402 = scalar_select %p401, %s400, 12
        %s403 = smul.addr %s402, 2
        %s404 = smul.addr %s403, 4
        %s405 = scalar_lea.vmem %s0, %s404
        %p406 = pneg %p50
        %p407 = pneg %p47
        %s408 = sand.u32 %s63, 1
        %s409 = sand.u32 %s63, 1
        %s410 = smul.addr %s409, 256
        %s411 = scalar_lea.vmem [#allocation2], %s410
        %p412 = pneg %p76
        %p413 = pneg %p73
        %s414 = smul.u32 2, %s21
        %p415 = scmp.lt.s32.totalorder %s414, 3
        %s416 = scalar_select %p415, %s414, 3
        %s417 = scalar_lea.vmem %s2, %s416
        %p418 = pneg %p102
        %p419 = pneg %p99
        %p420 = pneg %p130
        %p421 = pneg %p127
        %s422 = sand.u32 %s117, 1
        %s423 = sand.u32 %s117, 1
        %s424 = smul.addr %s423, 104
        %s425 = scalar_lea.vmem [#allocation3], %s424
        %p426 = pneg %p156
        %p427 = pneg %p153
        %s428 = smul.u32 2, %s21
        %p429 = scmp.lt.s32.totalorder %s428, 3
        %s430 = scalar_select %p429, %s428, 3
        %s431 = scalar_lea.vmem %s4, %s430
        %p432 = pneg %p182
        %p433 = pneg %p179
        %s434 = smul.u32 2, %s21
        %p435 = scmp.lt.s32.totalorder %s434, 3
        %s436 = scalar_select %p435, %s434, 3
        %s437 = scalar_lea.vmem %s5, %s436
        %s438 = smul.u32 13, %s22
        %p439 = scmp.lt.s32.totalorder %s438, 12
        %s440 = scalar_select %p439, %s438, 12
        %s441 = smul.addr %s440, 2
        %s442 = smul.addr %s441, 4
        %s443 = scalar_lea.vmem %s0, %s442
        %s444 = smul.u32 13, %s22
        %s445 = smul.u32 2, %s21
        %s446 = smul.u32 2, %s21
        %p447 = scmp.lt.s32.totalorder %s446, 3
        %s448 = scalar_select %p447, %s446, 3
        %s449 = scalar_lea.vmem %s2, %s448
        %s450 = smul.u32 2, %s21
        %s451 = smul.u32 13, %s22
        %s452 = smul.u32 2, %s21
        %s453 = smul.u32 2, %s21
        %p454 = scmp.lt.s32.totalorder %s453, 3
        %s455 = scalar_select %p454, %s453, 3
        %s456 = scalar_lea.vmem %s4, %s455
        %s457 = smul.u32 2, %s21
        %s458 = smul.u32 2, %s21
        %p459 = scmp.lt.s32.totalorder %s458, 3
        %s460 = scalar_select %p459, %s458, 3
        %s461 = scalar_lea.vmem %s5, %s460
        %s462 = smul.u32 2, %s21
        %v463 = vld [vmem:[%s443] sm:$0xff]
        %v464 = vld [vmem:[%s443 + $0x8] sm:$0xff]
        %v465 = vld [vmem:[%s443 + $0x10] sm:$0xff]
        %v466 = vld [vmem:[%s443 + $0x18] sm:$0xff]
        %v467 = vld [vmem:[%s443 + $0x20] sm:$0xff]
        %v468 = vld [vmem:[%s443 + $0x28] sm:$0xff]
        %v469 = vld [vmem:[%s443 + $0x30] sm:$0xff]
        %v470 = vld [vmem:[%s443 + $0x38] sm:$0xff]
        %v471 = vld [vmem:[%s443 + $0x40] sm:$0xff]
        %v472 = vld [vmem:[%s443 + $0x48] sm:$0xff]
        %v473 = vld [vmem:[%s443 + $0x50] sm:$0xff]
        %v474 = vld [vmem:[%s443 + $0x58] sm:$0xff]
        %v475 = vld [vmem:[%s443 + $0x60] sm:$0x11]
        %v476 = vld [vmem:[%s396] sm:$0xff]
        %v477 = vld [vmem:[%s396 + $0x8] sm:$0xff]
        %v478 = vld [vmem:[%s396 + $0x10] sm:$0xff]
        %v479 = vld [vmem:[%s396 + $0x18] sm:$0xff]
        %v480 = vld [vmem:[%s396 + $0x20] sm:$0xff]
        %v481 = vld [vmem:[%s396 + $0x28] sm:$0xff]
        %v482 = vld [vmem:[%s396 + $0x30] sm:$0xff]
        %v483 = vld [vmem:[%s396 + $0x38] sm:$0xff]
        %v484 = vld [vmem:[%s396 + $0x40] sm:$0xff]
        %v485 = vld [vmem:[%s396 + $0x48] sm:$0xff]
        %v486 = vld [vmem:[%s396 + $0x50] sm:$0xff]
        %v487 = vld [vmem:[%s396 + $0x58] sm:$0xff]
        %v488 = vld [vmem:[%s396 + $0x60] sm:$0xff]
        %v489 = vld [vmem:[%s396 + $0x68] sm:$0xff]
        %v490 = vld [vmem:[%s396 + $0x70] sm:$0xff]
        %v491 = vld [vmem:[%s396 + $0x78] sm:$0xff]
        %v492 = vld [vmem:[%s396 + $0x80] sm:$0xff]
        %v493 = vld [vmem:[%s396 + $0x88] sm:$0xff]
        %v494 = vld [vmem:[%s396 + $0x90] sm:$0xff]
        %v495 = vld [vmem:[%s396 + $0x98] sm:$0xff]
        %v496 = vld [vmem:[%s396 + $0xa0] sm:$0xff]
        %v497 = vld [vmem:[%s396 + $0xa8] sm:$0xff]
        %v498 = vld [vmem:[%s396 + $0xb0] sm:$0xff]
        %v499 = vld [vmem:[%s396 + $0xb8] sm:$0xff]
        %v500 = vld [vmem:[%s396 + $0xc0] sm:$0xff]
        %v501 = vld [vmem:[%s396 + $0xc8] sm:$0xff]
        %v502 = vld [vmem:[%s396 + $0xd0] sm:$0xff]
        %v503 = vld [vmem:[%s396 + $0xd8] sm:$0xff]
        %v504 = vld [vmem:[%s396 + $0xe0] sm:$0xff]
        %v505 = vld [vmem:[%s396 + $0xe8] sm:$0xff]
        %v506 = vld [vmem:[%s396 + $0xf0] sm:$0xff]
        %v507 = vld [vmem:[%s396 + $0xf8] sm:$0xff]
        %v508 = vld [vmem:[%s449] sm:$0x3]
        %v510 = vlaneseq
        %v511 = vshrl.u32 %v510, 7
        %v512 = vsub.s32 0, %v511
        %v513 = vrot.slane %v508, %v512
        %v514 = vlaneseq
        %v515 = vshrl.u32 %v514, 7
        %v516 = vsub.s32 1, %v515
        %v517 = vrot.slane %v508, %v516
        %v533 = vunpack.c.l.b16 %v463
        %v534 = vunpack.c.h.b16 %v463
        %v535 = vunpack.c.l.b16 %v464
        %v536 = vunpack.c.h.b16 %v464
        %v537 = vunpack.c.l.b16 %v465
        %v538 = vunpack.c.h.b16 %v465
        %v539 = vunpack.c.l.b16 %v466
        %v540 = vunpack.c.h.b16 %v466
        %v541 = vunpack.c.l.b16 %v467
        %v542 = vunpack.c.h.b16 %v467
        %v543 = vunpack.c.l.b16 %v468
        %v544 = vunpack.c.h.b16 %v468
        %v545 = vunpack.c.l.b16 %v469
        %v546 = vunpack.c.h.b16 %v469
        %v547 = vunpack.c.l.b16 %v470
        %v548 = vunpack.c.h.b16 %v470
        %v549 = vunpack.c.l.b16 %v471
        %v550 = vunpack.c.h.b16 %v471
        %v551 = vunpack.c.l.b16 %v472
        %v552 = vunpack.c.h.b16 %v472
        %v553 = vunpack.c.l.b16 %v473
        %v554 = vunpack.c.h.b16 %v473
        %v555 = vunpack.c.l.b16 %v474
        %v556 = vunpack.c.h.b16 %v474
        %v557 = vunpack.c.l.b16 %v475
        %v558 = vunpack.c.h.b16 %v475
        %v559 = vpack.c.b16 %v535, %v533
        %v560 = vpack.c.b16 %v536, %v534
        %v561 = vpack.c.b16 %v539, %v537
        %v562 = vpack.c.b16 %v540, %v538
        %v563 = vpack.c.b16 %v543, %v541
        %v564 = vpack.c.b16 %v544, %v542
        %v565 = vpack.c.b16 %v547, %v545
        %v566 = vpack.c.b16 %v548, %v546
        %v567 = vpack.c.b16 %v551, %v549
        %v568 = vpack.c.b16 %v552, %v550
        %v569 = vpack.c.b16 %v555, %v553
        %v570 = vpack.c.b16 %v556, %v554
        %v571 = vpack.c.b16 %v557, %v557
        %v572 = vpack.c.b16 %v558, %v558
        %v619 = vunpack.c.l.b16 %v476
        %v620 = vunpack.c.h.b16 %v476
        %v621 = vunpack.c.l.b16 %v477
        %v622 = vunpack.c.h.b16 %v477
        %v623 = vunpack.c.l.b16 %v478
        %v624 = vunpack.c.h.b16 %v478
        %v625 = vunpack.c.l.b16 %v479
        %v626 = vunpack.c.h.b16 %v479
        %v627 = vunpack.c.l.b16 %v480
        %v628 = vunpack.c.h.b16 %v480
        %v629 = vunpack.c.l.b16 %v481
        %v630 = vunpack.c.h.b16 %v481
        %v631 = vunpack.c.l.b16 %v482
        %v632 = vunpack.c.h.b16 %v482
        %v633 = vunpack.c.l.b16 %v483
        %v634 = vunpack.c.h.b16 %v483
        %v635 = vunpack.c.l.b16 %v484
        %v636 = vunpack.c.h.b16 %v484
        %v637 = vunpack.c.l.b16 %v485
        %v638 = vunpack.c.h.b16 %v485
        %v639 = vunpack.c.l.b16 %v486
        %v640 = vunpack.c.h.b16 %v486
        %v641 = vunpack.c.l.b16 %v487
        %v642 = vunpack.c.h.b16 %v487
        %v643 = vunpack.c.l.b16 %v488
        %v644 = vunpack.c.h.b16 %v488
        %v645 = vunpack.c.l.b16 %v489
        %v646 = vunpack.c.h.b16 %v489
        %v647 = vunpack.c.l.b16 %v490
        %v648 = vunpack.c.h.b16 %v490
        %v649 = vunpack.c.l.b16 %v491
        %v650 = vunpack.c.h.b16 %v491
        %v651 = vunpack.c.l.b16 %v492
        %v652 = vunpack.c.h.b16 %v492
        %v653 = vunpack.c.l.b16 %v493
        %v654 = vunpack.c.h.b16 %v493
        %v655 = vunpack.c.l.b16 %v494
        %v656 = vunpack.c.h.b16 %v494
        %v657 = vunpack.c.l.b16 %v495
        %v658 = vunpack.c.h.b16 %v495
        %v659 = vunpack.c.l.b16 %v496
        %v660 = vunpack.c.h.b16 %v496
        %v661 = vunpack.c.l.b16 %v497
        %v662 = vunpack.c.h.b16 %v497
        %v663 = vunpack.c.l.b16 %v498
        %v664 = vunpack.c.h.b16 %v498
        %v665 = vunpack.c.l.b16 %v499
        %v666 = vunpack.c.h.b16 %v499
        %v667 = vunpack.c.l.b16 %v500
        %v668 = vunpack.c.h.b16 %v500
        %v669 = vunpack.c.l.b16 %v501
        %v670 = vunpack.c.h.b16 %v501
        %v671 = vunpack.c.l.b16 %v502
        %v672 = vunpack.c.h.b16 %v502
        %v673 = vunpack.c.l.b16 %v503
        %v674 = vunpack.c.h.b16 %v503
        %v675 = vunpack.c.l.b16 %v504
        %v676 = vunpack.c.h.b16 %v504
        %v677 = vunpack.c.l.b16 %v505
        %v678 = vunpack.c.h.b16 %v505
        %v679 = vunpack.c.l.b16 %v506
        %v680 = vunpack.c.h.b16 %v506
        %v681 = vunpack.c.l.b16 %v507
        %v682 = vunpack.c.h.b16 %v507
        %v683 = vpack.c.b16 %v621, %v619
        %v684 = vpack.c.b16 %v622, %v620
        %v685 = vpack.c.b16 %v625, %v623
        %v686 = vpack.c.b16 %v626, %v624
        %v687 = vpack.c.b16 %v629, %v627
        %v688 = vpack.c.b16 %v630, %v628
        %v689 = vpack.c.b16 %v633, %v631
        %v690 = vpack.c.b16 %v634, %v632
        %v691 = vpack.c.b16 %v637, %v635
        %v692 = vpack.c.b16 %v638, %v636
        %v693 = vpack.c.b16 %v641, %v639
        %v694 = vpack.c.b16 %v642, %v640
        %v695 = vpack.c.b16 %v645, %v643
        %v696 = vpack.c.b16 %v646, %v644
        %v697 = vpack.c.b16 %v649, %v647
        %v698 = vpack.c.b16 %v650, %v648
        %v699 = vpack.c.b16 %v653, %v651
        %v700 = vpack.c.b16 %v654, %v652
        %v701 = vpack.c.b16 %v657, %v655
        %v702 = vpack.c.b16 %v658, %v656
        %v703 = vpack.c.b16 %v661, %v659
        %v704 = vpack.c.b16 %v662, %v660
        %v705 = vpack.c.b16 %v665, %v663
        %v706 = vpack.c.b16 %v666, %v664
        %v707 = vpack.c.b16 %v669, %v667
        %v708 = vpack.c.b16 %v670, %v668
        %v709 = vpack.c.b16 %v673, %v671
        %v710 = vpack.c.b16 %v674, %v672
        %v711 = vpack.c.b16 %v677, %v675
        %v712 = vpack.c.b16 %v678, %v676
        %v713 = vpack.c.b16 %v681, %v679
        %v714 = vpack.c.b16 %v682, %v680
        %747 = vmatprep.subr.bf16.mxu0 %v698
        %748 = vmatpush1.bf16.msra.mxu0 %v697
        %749 = vmatprep.subr.bf16.mxu0 %v696
        %750 = vmatpush1.bf16.msra.mxu0 %v695
        %751 = vmatprep.subr.bf16.mxu0 %v694
        %752 = vmatpush1.bf16.msra.mxu0 %v693
        %753 = vmatprep.subr.bf16.mxu0 %v692
        %754 = vmatpush1.bf16.msra.mxu0 %v691
        %755 = vmatprep.subr.bf16.mxu0 %v690
        %756 = vmatpush1.bf16.msra.mxu0 %v689
        %757 = vmatprep.subr.bf16.mxu0 %v688
        %758 = vmatpush1.bf16.msra.mxu0 %v687
        %759 = vmatprep.subr.bf16.mxu0 %v686
        %760 = vmatpush1.bf16.msra.mxu0 %v685
        %761 = vmatprep.subr.bf16.mxu0 %v684
        %762 = vmatpush1.bf16.msra.mxu0 %v683
        %763 = vmatprep.subr.bf16.mxu0 %v714
        %764 = vmatpush2.bf16.msra.mxu0 %v713
        %765 = vmatprep.subr.bf16.mxu0 %v712
        %766 = vmatpush2.bf16.msra.mxu0 %v711
        %767 = vmatprep.subr.bf16.mxu0 %v710
        %768 = vmatpush2.bf16.msra.mxu0 %v709
        %769 = vmatprep.subr.bf16.mxu0 %v708
        %770 = vmatpush2.bf16.msra.mxu0 %v707
        %771 = vmatprep.subr.bf16.mxu0 %v706
        %772 = vmatpush2.bf16.msra.mxu0 %v705
        %773 = vmatprep.subr.bf16.mxu0 %v704
        %774 = vmatpush2.bf16.msra.mxu0 %v703
        %775 = vmatprep.subr.bf16.mxu0 %v702
        %776 = vmatpush2.bf16.msra.mxu0 %v701
        %777 = vmatprep.subr.bf16.mxu0 %v700
        %778 = vmatpush2.bf16.msra.mxu0 %v699
        %779 = vmatprep.mubr.bf16.mxu0 %v560
        %780 = vmatmul.mubr.bf16.gmra.mxu0 %v559
        %v781 = vpop.f32.mrf.mxu0
        %v782 = vadd.f32 %v513, %v781
        %v783 = vpop.f32.mrf.mxu0
        %v784 = vadd.f32 %v517, %v783
        %v785 = vpop.f32.mrf.mxu0
        %v786 = vadd.f32 %v513, %v785
        %v787 = vpop.f32.mrf.mxu0
        %v788 = vadd.f32 %v517, %v787
        %789 = vmatprep.mubr.bf16.mxu0 %v562
        %790 = vmatmul.mubr.bf16.gmra.mxu0 %v561
        %v791 = vpop.f32.mrf.mxu0
        %v792 = vadd.f32 %v513, %v791
        %v793 = vpop.f32.mrf.mxu0
        %v794 = vadd.f32 %v517, %v793
        %v795 = vpop.f32.mrf.mxu0
        %v796 = vadd.f32 %v513, %v795
        %v797 = vpop.f32.mrf.mxu0
        %v798 = vadd.f32 %v517, %v797
        %799 = vmatprep.mubr.bf16.mxu0 %v564
        %800 = vmatmul.mubr.bf16.gmra.mxu0 %v563
        %v801 = vpop.f32.mrf.mxu0
        %v802 = vadd.f32 %v513, %v801
        %v803 = vpop.f32.mrf.mxu0
        %v804 = vadd.f32 %v517, %v803
        %v805 = vpop.f32.mrf.mxu0
        %v806 = vadd.f32 %v513, %v805
        %v807 = vpop.f32.mrf.mxu0
        %v808 = vadd.f32 %v517, %v807
        %809 = vmatprep.mubr.bf16.mxu0 %v566
        %810 = vmatmul.mubr.bf16.gmra.mxu0 %v565
        %v811 = vpop.f32.mrf.mxu0
        %v812 = vadd.f32 %v513, %v811
        %v813 = vpop.f32.mrf.mxu0
        %v814 = vadd.f32 %v517, %v813
        %v815 = vpop.f32.mrf.mxu0
        %v816 = vadd.f32 %v513, %v815
        %v817 = vpop.f32.mrf.mxu0
        %v818 = vadd.f32 %v517, %v817
        %819 = vmatprep.mubr.bf16.mxu0 %v568
        %820 = vmatmul.mubr.bf16.gmra.mxu0 %v567
        %v821 = vpop.f32.mrf.mxu0
        %v822 = vadd.f32 %v513, %v821
        %v823 = vpop.f32.mrf.mxu0
        %v824 = vadd.f32 %v517, %v823
        %v825 = vpop.f32.mrf.mxu0
        %v826 = vadd.f32 %v513, %v825
        %v827 = vpop.f32.mrf.mxu0
        %v828 = vadd.f32 %v517, %v827
        %829 = vmatprep.mubr.bf16.mxu0 %v570
        %830 = vmatmul.mubr.bf16.gmra.mxu0 %v569
        %v831 = vpop.f32.mrf.mxu0
        %v832 = vadd.f32 %v513, %v831
        %v833 = vpop.f32.mrf.mxu0
        %v834 = vadd.f32 %v517, %v833
        %v835 = vpop.f32.mrf.mxu0
        %v836 = vadd.f32 %v513, %v835
        %v837 = vpop.f32.mrf.mxu0
        %v838 = vadd.f32 %v517, %v837
        %839 = vmatprep.mubr.bf16.mxu0 %v572
        %840 = vmatmul.mubr.bf16.gmra.mxu0 %v571
        %v841 = vpop.f32.mrf.mxu0
        %v842 = vadd.f32 %v513, %v841
        %v843 = vpop.f32.mrf.mxu0
        %v844 = vadd.f32 %v517, %v843
        %v845 = vpop.f32.mrf.mxu0
        %v846 = vpop.f32.mrf.mxu0
        %847 = vdwg.mxu0
        %v848 = vpack.c.bf16 %v786, %v782
        %v849 = vpack.c.bf16 %v788, %v784
        %v850 = vpack.c.bf16 %v796, %v792
        %v851 = vpack.c.bf16 %v798, %v794
        %v852 = vpack.c.bf16 %v806, %v802
        %v853 = vpack.c.bf16 %v808, %v804
        %v854 = vpack.c.bf16 %v816, %v812
        %v855 = vpack.c.bf16 %v818, %v814
        %v856 = vpack.c.bf16 %v826, %v822
        %v857 = vpack.c.bf16 %v828, %v824
        %v858 = vpack.c.bf16 %v836, %v832
        %v859 = vpack.c.bf16 %v838, %v834
        %v860 = vpack.c.bf16 %v842, %v842
        %v861 = vpack.c.bf16 %v844, %v844
        %v876 = vunpack.c.l.b16 %v848
        %v877 = vunpack.c.l.b16 %v849
        %v878 = vunpack.c.h.b16 %v848
        %v879 = vunpack.c.h.b16 %v849
        %v880 = vunpack.c.l.b16 %v850
        %v881 = vunpack.c.l.b16 %v851
        %v882 = vunpack.c.h.b16 %v850
        %v883 = vunpack.c.h.b16 %v851
        %v884 = vunpack.c.l.b16 %v852
        %v885 = vunpack.c.l.b16 %v853
        %v886 = vunpack.c.h.b16 %v852
        %v887 = vunpack.c.h.b16 %v853
        %v888 = vunpack.c.l.b16 %v854
        %v889 = vunpack.c.l.b16 %v855
        %v890 = vunpack.c.h.b16 %v854
        %v891 = vunpack.c.h.b16 %v855
        %v892 = vunpack.c.l.b16 %v856
        %v893 = vunpack.c.l.b16 %v857
        %v894 = vunpack.c.h.b16 %v856
        %v895 = vunpack.c.h.b16 %v857
        %v896 = vunpack.c.l.b16 %v858
        %v897 = vunpack.c.l.b16 %v859
        %v898 = vunpack.c.h.b16 %v858
        %v899 = vunpack.c.h.b16 %v859
        %v900 = vunpack.c.l.b16 %v860
        %v901 = vunpack.c.l.b16 %v861
        %v902 = vpack.c.b16 %v877, %v876
        %v903 = vpack.c.b16 %v879, %v878
        %v904 = vpack.c.b16 %v881, %v880
        %v905 = vpack.c.b16 %v883, %v882
        %v906 = vpack.c.b16 %v885, %v884
        %v907 = vpack.c.b16 %v887, %v886
        %v908 = vpack.c.b16 %v889, %v888
        %v909 = vpack.c.b16 %v891, %v890
        %v910 = vpack.c.b16 %v893, %v892
        %v911 = vpack.c.b16 %v895, %v894
        %v912 = vpack.c.b16 %v897, %v896
        %v913 = vpack.c.b16 %v899, %v898
        %v914 = vpack.c.b16 %v901, %v900
        %928 = vst [vmem:[%s425] sm:$0xff] %v902
        %929 = vst [vmem:[%s425 + $0x8] sm:$0xff] %v903
        %930 = vst [vmem:[%s425 + $0x10] sm:$0xff] %v904
        %931 = vst [vmem:[%s425 + $0x18] sm:$0xff] %v905
        %932 = vst [vmem:[%s425 + $0x20] sm:$0xff] %v906
        %933 = vst [vmem:[%s425 + $0x28] sm:$0xff] %v907
        %934 = vst [vmem:[%s425 + $0x30] sm:$0xff] %v908
        %935 = vst [vmem:[%s425 + $0x38] sm:$0xff] %v909
        %936 = vst [vmem:[%s425 + $0x40] sm:$0xff] %v910
        %937 = vst [vmem:[%s425 + $0x48] sm:$0xff] %v911
        %938 = vst [vmem:[%s425 + $0x50] sm:$0xff] %v912
        %939 = vst [vmem:[%s425 + $0x58] sm:$0xff] %v913
        %940 = vst [vmem:[%s425 + $0x60] sm:$0x11] %v914
        %p941 = scmp.eq.s32.totalorder %s22, 0
        // Predicated region
        $region71: #{_lambda_.11} parent=65 // pred_check
          %p942 = pneg %p941
        $region72: #{_lambda_.11} parent=65 // pred_check_branch
          %944 = sbr.rel (%p942) target = $region74
        $region73: #{_lambda_.11} parent=65 // pred_region
          %v945 = vlaneseq
          %vm946 = vcmp.ge.s32.totalorder %v945, 0
          %vm947 = vcmp.lt.s32.totalorder %v945, 256
          %vm948 = vmand %vm946, %vm947
          %949 = vst.msk [vmem:[%s456] sm:$0x3] %vm948, 0.0
          %950 = vst.msk [vmem:[%s461] sm:$0x3] %vm948, 0.0
        $region74: #{_lambda_.11} parent=65 // pred_fallthru
          _
        %v951 = vld [vmem:[%s456] sm:$0x3]
        %v952 = vadd.f32 %v782, %v786
        %v953 = vadd.f32 %v952, %v792
        %v954 = vadd.f32 %v953, %v796
        %v955 = vadd.f32 %v954, %v802
        %v956 = vadd.f32 %v955, %v806
        %v957 = vadd.f32 %v956, %v812
        %v958 = vadd.f32 %v957, %v816
        %v959 = vadd.f32 %v958, %v822
        %v960 = vadd.f32 %v959, %v826
        %v961 = vadd.f32 %v960, %v832
        %v962 = vadd.f32 %v961, %v836
        %vm963 = vcmask 1041408
        %v964 = vsel %vm963, %v842, 0.0
        %v965 = vadd.f32 %v962, %v964
        %v966 = vrot.slane %v965, 4
        %v967 = vadd.f32 %v965, %v966
        %v968 = vrot.slane %v967, 2
        %v969 = vadd.f32 %v967, %v968
        %v970 = vrot.slane %v969, 1
        %v971 = vadd.f32 %v969, %v970
        %v972 = vadd.f32 %v784, %v788
        %v973 = vadd.f32 %v972, %v794
        %v974 = vadd.f32 %v973, %v798
        %v975 = vadd.f32 %v974, %v804
        %v976 = vadd.f32 %v975, %v808
        %v977 = vadd.f32 %v976, %v814
        %v978 = vadd.f32 %v977, %v818
        %v979 = vadd.f32 %v978, %v824
        %v980 = vadd.f32 %v979, %v828
        %v981 = vadd.f32 %v980, %v834
        %v982 = vadd.f32 %v981, %v838
        %v983 = vsel %vm963, %v844, 0.0
        %v984 = vadd.f32 %v982, %v983
        %v985 = vrot.slane %v984, 4
        %v986 = vadd.f32 %v984, %v985
        %v987 = vrot.slane %v986, 2
        %v988 = vadd.f32 %v986, %v987
        %v989 = vrot.slane %v988, 1
        %v990 = vadd.f32 %v988, %v989
        %v993 = vcombine.low %v971, %v990
        %v995 = vunpack.c.l.s4 1966171168
        %v996 = vunpack.c.0.s8 %v995
        %v997 = vlaneseq
        %v998 = vshrl.u32 %v997, 7
        %v999 = vsub.s32 %v996, %v998
        %v1000 = vrot.slane %v993, %v999
        %v1002 = vunpack.c.l.s4 1966171168
        %v1003 = vunpack.c.0.s8 %v1002
        %v1004 = vlaneseq
        %v1005 = vshrl.u32 %v1004, 7
        %v1006 = vsub.s32 %v1003, %v1005
        %v1007 = vrot.slane %v1000, %v1006
        %v1009 = vadd.f32 %v951, %v1007
        %v1010 = vlaneseq
        %vm1011 = vcmp.ge.s32.totalorder %v1010, 0
        %vm1012 = vcmp.lt.s32.totalorder %v1010, 256
        %vm1013 = vmand %vm1011, %vm1012
        %1014 = vst.msk [vmem:[%s456] sm:$0x3] %vm1013, %v1009
        %v1015 = vld [vmem:[%s461] sm:$0x3]
        %v1016 = vmul.f32 %v782, %v782
        %v1017 = vmul.f32 %v784, %v784
        %v1018 = vmul.f32 %v786, %v786
        %v1019 = vmul.f32 %v788, %v788
        %v1020 = vmul.f32 %v792, %v792
        %v1021 = vmul.f32 %v794, %v794
        %v1022 = vmul.f32 %v796, %v796
        %v1023 = vmul.f32 %v798, %v798
        %v1024 = vmul.f32 %v802, %v802
        %v1025 = vmul.f32 %v804, %v804
        %v1026 = vmul.f32 %v806, %v806
        %v1027 = vmul.f32 %v808, %v808
        %v1028 = vmul.f32 %v812, %v812
        %v1029 = vmul.f32 %v814, %v814
        %v1030 = vmul.f32 %v816, %v816
        %v1031 = vmul.f32 %v818, %v818
        %v1032 = vmul.f32 %v822, %v822
        %v1033 = vmul.f32 %v824, %v824
        %v1034 = vmul.f32 %v826, %v826
        %v1035 = vmul.f32 %v828, %v828
        %v1036 = vmul.f32 %v832, %v832
        %v1037 = vmul.f32 %v834, %v834
        %v1038 = vmul.f32 %v836, %v836
        %v1039 = vmul.f32 %v838, %v838
        %v1040 = vmul.f32 %v842, %v842
        %v1041 = vmul.f32 %v844, %v844
        %v1042 = vadd.f32 %v1016, %v1018
        %v1043 = vadd.f32 %v1042, %v1020
        %v1044 = vadd.f32 %v1043, %v1022
        %v1045 = vadd.f32 %v1044, %v1024
        %v1046 = vadd.f32 %v1045, %v1026
        %v1047 = vadd.f32 %v1046, %v1028
        %v1048 = vadd.f32 %v1047, %v1030
        %v1049 = vadd.f32 %v1048, %v1032
        %v1050 = vadd.f32 %v1049, %v1034
        %v1051 = vadd.f32 %v1050, %v1036
        %v1052 = vadd.f32 %v1051, %v1038
        %v1053 = vsel %vm963, %v1040, 0.0
        %v1054 = vadd.f32 %v1052, %v1053
        %v1055 = vrot.slane %v1054, 4
        %v1056 = vadd.f32 %v1054, %v1055
        %v1057 = vrot.slane %v1056, 2
        %v1058 = vadd.f32 %v1056, %v1057
        %v1059 = vrot.slane %v1058, 1
        %v1060 = vadd.f32 %v1058, %v1059
        %v1061 = vadd.f32 %v1017, %v1019
        %v1062 = vadd.f32 %v1061, %v1021
        %v1063 = vadd.f32 %v1062, %v1023
        %v1064 = vadd.f32 %v1063, %v1025
        %v1065 = vadd.f32 %v1064, %v1027
        %v1066 = vadd.f32 %v1065, %v1029
        %v1067 = vadd.f32 %v1066, %v1031
        %v1068 = vadd.f32 %v1067, %v1033
        %v1069 = vadd.f32 %v1068, %v1035
        %v1070 = vadd.f32 %v1069, %v1037
        %v1071 = vadd.f32 %v1070, %v1039
        %v1072 = vsel %vm963, %v1041, 0.0
        %v1073 = vadd.f32 %v1071, %v1072
        %v1074 = vrot.slane %v1073, 4
        %v1075 = vadd.f32 %v1073, %v1074
        %v1076 = vrot.slane %v1075, 2
        %v1077 = vadd.f32 %v1075, %v1076
        %v1078 = vrot.slane %v1077, 1
        %v1079 = vadd.f32 %v1077, %v1078
        %v1082 = vcombine.low %v1060, %v1079
        %v1084 = vunpack.c.l.s4 1966171168
        %v1085 = vunpack.c.0.s8 %v1084
        %v1086 = vlaneseq
        %v1087 = vshrl.u32 %v1086, 7
        %v1088 = vsub.s32 %v1085, %v1087
        %v1089 = vrot.slane %v1082, %v1088
        %v1091 = vunpack.c.l.s4 1966171168
        %v1092 = vunpack.c.0.s8 %v1091
        %v1093 = vlaneseq
        %v1094 = vshrl.u32 %v1093, 7
        %v1095 = vsub.s32 %v1092, %v1094
        %v1096 = vrot.slane %v1089, %v1095
        %v1098 = vadd.f32 %v1015, %v1096
        %1099 = vst.msk [vmem:[%s461] sm:$0x3] %vm1013, %v1098
        %s1100 = sand.u32 %s117, 1
        %s1101 = sand.u32 %s117, 1
        %s1102 = smul.addr %s1101, 104
        %s1103 = scalar_lea.vmem [#allocation3], %s1102
        %s1104 = smul.u32 2, %s21
        %p1105 = scmp.lt.s32.totalorder %s1104, 3
        %s1106 = scalar_select %p1105, %s1104, 3
        %s1107 = scalar_lea.vmem %s4, %s1106
        %s1108 = smul.u32 2, %s21
        %p1109 = scmp.lt.s32.totalorder %s1108, 3
        %s1110 = scalar_select %p1109, %s1108, 3
        %s1111 = scalar_lea.vmem %s5, %s1110
        // Predicated region
        $region75: #{_lambda_.11} parent=65 // pred_check
          %p1112 = pneg %p127
        $region76: #{_lambda_.11} parent=65 // pred_check_branch
          %1114 = sbr.rel (%p1112) target = $region78
        $region77: #{_lambda_.11} parent=65 // pred_region
          %s1115 = smul.u32 13, %s22
          %s1116 = smul.u32 2, %s21
          %s1117 = smul.addr %s1115, 4
          %s1118 = sadd.s32 %s1116, %s1117
          %s1119 = smul.addr %s1118, 4
          %s1120 = scalar_lea.vmem %s3, %s1119
          // Predicated region
          $region79: #{_lambda_.11} parent=77 // pred_check
            _
          $region80: #{_lambda_.11} parent=77 // pred_check_branch
            %1122 = sbr.rel (0) target = $region82
          $region81: #{_lambda_.11} parent=77 // pred_region
            // Predicated region
            $region83: #{_lambda_.11} parent=81 // pred_check
              _
            $region84: #{_lambda_.11} parent=81 // pred_check_branch
              %1124 = sbr.rel (0) target = $region86
            $region85: #{_lambda_.11} parent=81 // pred_region
              // Predicated region
              $region98: #{_lambda_.11} parent=85 // pred_check
                _
              $region99: #{_lambda_.11} parent=85 // pred_check_branch
                %1164 = sbr.rel (0) target = $region101
              $region100: #{_lambda_.11} parent=85 // pred_region
                loop: start=0, step=1, limit=1
                $region102: #{_lambda_.11} parent=100 // loop_pre_header
                  _
                $region103: #{_lambda_.11} parent=100 // loop_header
                  %s1166 = sphi 0, %s1170
                  %p1167 = scmp.ge.s32.totalorder %s1166, 1
                  %s1171 = sphi %s1103, %s1103
                  %s1172 = sphi %s1120, %s1120
                $region104: #{_lambda_.11} parent=100 // loop_header_branch
                  %1169 = sbr.rel (%p1167) target = $region108
                $region105: #{_lambda_.11} parent=100 // loop_body
                  %v1173 = vld [vmem:[%s1171] sm:$0xff]
                  %1174 = vst [vmem:[%s1172] sm:$0xff] %v1173
                  %v1175 = vld [vmem:[%s1171 + $0x8] sm:$0xff]
                  %1176 = vst [vmem:[%s1172 + $0x10] sm:$0xff] %v1175
                  %v1177 = vld [vmem:[%s1171 + $0x10] sm:$0xff]
                  %1178 = vst [vmem:[%s1172 + $0x20] sm:$0xff] %v1177
                  %v1179 = vld [vmem:[%s1171 + $0x18] sm:$0xff]
                  %1180 = vst [vmem:[%s1172 + $0x30] sm:$0xff] %v1179
                  %v1181 = vld [vmem:[%s1171 + $0x20] sm:$0xff]
                  %1182 = vst [vmem:[%s1172 + $0x40] sm:$0xff] %v1181
                  %v1183 = vld [vmem:[%s1171 + $0x28] sm:$0xff]
                  %1184 = vst [vmem:[%s1172 + $0x50] sm:$0xff] %v1183
                  %v1185 = vld [vmem:[%s1171 + $0x30] sm:$0xff]
                  %1186 = vst [vmem:[%s1172 + $0x60] sm:$0xff] %v1185
                  %v1187 = vld [vmem:[%s1171 + $0x38] sm:$0xff]
                  %1188 = vst [vmem:[%s1172 + $0x70] sm:$0xff] %v1187
                  %v1189 = vld [vmem:[%s1171 + $0x40] sm:$0xff]
                  %1190 = vst [vmem:[%s1172 + $0x80] sm:$0xff] %v1189
                  %v1191 = vld [vmem:[%s1171 + $0x48] sm:$0xff]
                  %1192 = vst [vmem:[%s1172 + $0x90] sm:$0xff] %v1191
                  %v1193 = vld [vmem:[%s1171 + $0x50] sm:$0xff]
                  %1194 = vst [vmem:[%s1172 + $0xa0] sm:$0xff] %v1193
                  %v1195 = vld [vmem:[%s1171 + $0x58] sm:$0xff]
                  %1196 = vst [vmem:[%s1172 + $0xb0] sm:$0xff] %v1195
                  %v1197 = vld [vmem:[%s1171 + $0x60] sm:$0xff]
                  %1198 = vst [vmem:[%s1172 + $0xc0] sm:$0xff] %v1197
                $region106: #{_lambda_.11} parent=100 // loop_footer
                  %s1170 = sadd.s32 1, %s1166
                $region107: #{_lambda_.11} parent=100 // loop_footer_branch
                  %1165 = sbr.rel target = $region103
                $region108: #{_lambda_.11} parent=100 // loop_exit
                  _
              $region101: #{_lambda_.11} parent=85 // pred_fallthru
                _
              // Predicated region
              $region109: #{_lambda_.11} parent=85 // pred_check
                _
              $region110: #{_lambda_.11} parent=85 // pred_check_branch
                %1200 = sbr.rel target = $region112
              $region111: #{_lambda_.11} parent=85 // pred_region
                _
              $region112: #{_lambda_.11} parent=85 // pred_fallthru
                _
            $region86: #{_lambda_.11} parent=81 // pred_fallthru
              _
            // Predicated region
            $region87: #{_lambda_.11} parent=81 // pred_check
              _
            $region88: #{_lambda_.11} parent=81 // pred_check_branch
              %1126 = sbr.rel target = $region90
            $region89: #{_lambda_.11} parent=81 // pred_region
              %s1128 = ssub.s32 256, 1
              loop: start=0, step=1, limit=1
              $region91: #{_lambda_.11} parent=89 // loop_pre_header
                _
              $region92: #{_lambda_.11} parent=89 // loop_header
                %s1130 = sphi 0, %s1134
                %p1131 = scmp.ge.s32.totalorder %s1130, 1
                %s1135 = sphi %s1103, %s1103
                %s1136 = sphi %s1120, %s1120
              $region93: #{_lambda_.11} parent=89 // loop_header_branch
                %1133 = sbr.rel (%p1131) target = $region97
              $region94: #{_lambda_.11} parent=89 // loop_body
                %v1137 = vld [vmem:[%s1135] sm:%s1128]
                %1138 = vst [vmem:[%s1136] sm:%s1128] %v1137
                %v1139 = vld [vmem:[%s1135 + $0x8] sm:%s1128]
                %1140 = vst [vmem:[%s1136 + $0x10] sm:%s1128] %v1139
                %v1141 = vld [vmem:[%s1135 + $0x10] sm:%s1128]
                %1142 = vst [vmem:[%s1136 + $0x20] sm:%s1128] %v1141
                %v1143 = vld [vmem:[%s1135 + $0x18] sm:%s1128]
                %1144 = vst [vmem:[%s1136 + $0x30] sm:%s1128] %v1143
                %v1145 = vld [vmem:[%s1135 + $0x20] sm:%s1128]
                %1146 = vst [vmem:[%s1136 + $0x40] sm:%s1128] %v1145
                %v1147 = vld [vmem:[%s1135 + $0x28] sm:%s1128]
                %1148 = vst [vmem:[%s1136 + $0x50] sm:%s1128] %v1147
                %v1149 = vld [vmem:[%s1135 + $0x30] sm:%s1128]
                %1150 = vst [vmem:[%s1136 + $0x60] sm:%s1128] %v1149
                %v1151 = vld [vmem:[%s1135 + $0x38] sm:%s1128]
                %1152 = vst [vmem:[%s1136 + $0x70] sm:%s1128] %v1151
                %v1153 = vld [vmem:[%s1135 + $0x40] sm:%s1128]
                %1154 = vst [vmem:[%s1136 + $0x80] sm:%s1128] %v1153
                %v1155 = vld [vmem:[%s1135 + $0x48] sm:%s1128]
                %1156 = vst [vmem:[%s1136 + $0x90] sm:%s1128] %v1155
                %v1157 = vld [vmem:[%s1135 + $0x50] sm:%s1128]
                %1158 = vst [vmem:[%s1136 + $0xa0] sm:%s1128] %v1157
                %v1159 = vld [vmem:[%s1135 + $0x58] sm:%s1128]
                %1160 = vst [vmem:[%s1136 + $0xb0] sm:%s1128] %v1159
                %v1161 = vld [vmem:[%s1135 + $0x60] sm:%s1128]
                %1162 = vst [vmem:[%s1136 + $0xc0] sm:%s1128] %v1161
              $region95: #{_lambda_.11} parent=89 // loop_footer
                %s1134 = sadd.s32 1, %s1130
              $region96: #{_lambda_.11} parent=89 // loop_footer_branch
                %1129 = sbr.rel target = $region92
              $region97: #{_lambda_.11} parent=89 // loop_exit
                _
            $region90: #{_lambda_.11} parent=81 // pred_fallthru
              _
          $region82: #{_lambda_.11} parent=77 // pred_fallthru
            _
          %1201 = vnop
        $region78: #{_lambda_.11} parent=65 // pred_fallthru
          _
        // Predicated region
        $region113: #{_lambda_.11} parent=65 // pred_check
          %p1202 = pneg %p153
        $region114: #{_lambda_.11} parent=65 // pred_check_branch
          %1204 = sbr.rel (%p1202) target = $region116
        $region115: #{_lambda_.11} parent=65 // pred_region
          %s1205 = smul.u32 2, %s21
        $region116: #{_lambda_.11} parent=65 // pred_fallthru
          _
        // Predicated region
        $region117: #{_lambda_.11} parent=65 // pred_check
          %p1206 = pneg %p179
        $region118: #{_lambda_.11} parent=65 // pred_check_branch
          %1208 = sbr.rel (%p1206) target = $region120
        $region119: #{_lambda_.11} parent=65 // pred_region
          %s1209 = smul.u32 2, %s21
        $region120: #{_lambda_.11} parent=65 // pred_fallthru
          _
      $region66: #{_lambda_.11} parent=5 // pred_fallthru
        _
      %p1210 = scmp.le.s32.totalorder 2, %s12
      // Predicated region
      $region121: #{_lambda_.11} parent=5 // pred_check
        %p1211 = pneg %p1210
      $region122: #{_lambda_.11} parent=5 // pred_check_branch
        %1213 = sbr.rel (%p1211) target = $region124
      $region123: #{_lambda_.11} parent=5 // pred_region
        %s1214 = ssub.s32 %s12, 2
        // Predicated region
        $region125: #{_lambda_.11} parent=123 // pred_check
          %p1215 = pneg %p133
        $region126: #{_lambda_.11} parent=123 // pred_check_branch
          %1217 = sbr.rel (%p1215) target = $region128
        $region127: #{_lambda_.11} parent=123 // pred_region
          %s1218 = sand.u32 %s118, 1
          %s1219 = sand.u32 %s118, 1
          %s1220 = smul.addr %s1219, 104
          %s1221 = scalar_lea.vmem [#allocation3], %s1220
        $region128: #{_lambda_.11} parent=123 // pred_fallthru
          _
        // Predicated region
        $region129: #{_lambda_.11} parent=123 // pred_check
          %p1222 = pneg %p159
        $region130: #{_lambda_.11} parent=123 // pred_check_branch
          %1224 = sbr.rel (%p1222) target = $region132
        $region131: #{_lambda_.11} parent=123 // pred_region
          %s1225 = smul.u32 2, %s23
          %p1226 = scmp.lt.s32.totalorder %s1225, 3
          %s1227 = scalar_select %p1226, %s1225, 3
          %s1228 = scalar_lea.vmem %s4, %s1227
        $region132: #{_lambda_.11} parent=123 // pred_fallthru
          _
        // Predicated region
        $region133: #{_lambda_.11} parent=123 // pred_check
          %p1229 = pneg %p185
        $region134: #{_lambda_.11} parent=123 // pred_check_branch
          %1231 = sbr.rel (%p1229) target = $region136
        $region135: #{_lambda_.11} parent=123 // pred_region
          %s1232 = smul.u32 2, %s23
          %p1233 = scmp.lt.s32.totalorder %s1232, 3
          %s1234 = scalar_select %p1233, %s1232, 3
          %s1235 = scalar_lea.vmem %s5, %s1234
        $region136: #{_lambda_.11} parent=123 // pred_fallthru
          _
      $region124: #{_lambda_.11} parent=5 // pred_fallthru
        _
    $region6: #{_lambda_.11} parent=1 // loop_footer
      %s16 = sadd.s32 1, %s12
    $region7: #{_lambda_.11} parent=1 // loop_footer_branch
      %11 = sbr.rel target = $region3
    $region8: #{_lambda_.11} parent=1 // loop_exit
      _

// kernel: _lambda_.12
$region0: #{_lambda_.12}
  #allocation0 [shape = 'u32[]', space=smem, size = 0x4, offset = 0x4, fixed_abs, tag = 'smem constant byte address 0x4 - core index']
  #allocation1 [shape = 'u32[144,128]{1,0:T(1,128)}', space=vmem, size = 0x12000, scoped, tag = 'internal scratch']
  %s0 = inlined_call_operand.vmem [shape: bf16[2,49,512], index: 0, kind: input, shape index: {}]
  %s1 = inlined_call_operand.vmem [shape: f32[1,512], index: 1, kind: input, shape index: {}]
  %s2 = inlined_call_operand.vmem [shape: f32[1,512], index: 2, kind: input, shape index: {}]
  %s3 = inlined_call_operand.vmem [shape: f32[2,512], index: 3, kind: output, shape index: {}]
  %s4 = sld [smem:[#allocation0]]
  $region22: #{_lambda_.12} parent=0
    _
  %s6 = ssub.s32 1, %s4
  %s7 = scalar_select 0, %s6, %s4
  // Predicated region
  $region2: #{_lambda_.12} parent=0 // pred_check
    _
  $region3: #{_lambda_.12} parent=0 // pred_check_branch
    %9 = sbr.rel (0) target = $region5
  $region4: #{_lambda_.12} parent=0 // pred_region
    _
  $region5: #{_lambda_.12} parent=0 // pred_fallthru
    _
  // Predicated region
  $region6: #{_lambda_.12} parent=0 // pred_check
    _
  $region7: #{_lambda_.12} parent=0 // pred_check_branch
    %11 = sbr.rel (0) target = $region9
  $region8: #{_lambda_.12} parent=0 // pred_region
    _
  $region9: #{_lambda_.12} parent=0 // pred_fallthru
    _
  // Predicated region
  $region10: #{_lambda_.12} parent=0 // pred_check
    _
  $region11: #{_lambda_.12} parent=0 // pred_check_branch
    %13 = sbr.rel (0) target = $region13
  $region12: #{_lambda_.12} parent=0 // pred_region
    _
  $region13: #{_lambda_.12} parent=0 // pred_fallthru
    _
  %v14 = vld [vmem:[%s0] sm:$0xff]
  %v15 = vld [vmem:[%s0 + $0x8] sm:$0xff]
  %v16 = vld [vmem:[%s0 + $0x10] sm:$0xff]
  %v17 = vld [vmem:[%s0 + $0x18] sm:$0xff]
  %v18 = vld [vmem:[%s0 + $0x20] sm:$0xff]
  %v19 = vld [vmem:[%s0 + $0x28] sm:$0xff]
  %v20 = vld [vmem:[%s0 + $0x30] sm:$0xff]
  %v21 = vld [vmem:[%s0 + $0x38] sm:$0xff]
  %v22 = vld [vmem:[%s0 + $0x40] sm:$0xff]
  %v23 = vld [vmem:[%s0 + $0x48] sm:$0xff]
  %v24 = vld [vmem:[%s0 + $0x50] sm:$0xff]
  %v25 = vld [vmem:[%s0 + $0x58] sm:$0xff]
  %v26 = vld [vmem:[%s0 + $0x60] sm:$0x11]
  %v27 = vld [vmem:[%s0 + $0x68] sm:$0x11]
  %v28 = vld [vmem:[%s0 + $0x70] sm:$0xff]
  %v29 = vld [vmem:[%s0 + $0x78] sm:$0xff]
  %v30 = vld [vmem:[%s0 + $0x80] sm:$0xff]
  %v31 = vld [vmem:[%s0 + $0x88] sm:$0xff]
  %v32 = vld [vmem:[%s0 + $0x90] sm:$0xff]
  %v33 = vld [vmem:[%s0 + $0x98] sm:$0xff]
  %v34 = vld [vmem:[%s0 + $0xa0] sm:$0xff]
  %v35 = vld [vmem:[%s0 + $0xa8] sm:$0xff]
  %v36 = vld [vmem:[%s0 + $0xb0] sm:$0xff]
  %v37 = vld [vmem:[%s0 + $0xb8] sm:$0xff]
  %v38 = vld [vmem:[%s0 + $0xc0] sm:$0xff]
  %v39 = vld [vmem:[%s0 + $0xc8] sm:$0xff]
  %v40 = vld [vmem:[%s0 + $0xd0] sm:$0x11]
  %v41 = vld [vmem:[%s0 + $0xd8] sm:$0x11]
  %v42 = vunpack.c.l.bf16 %v14
  %v43 = vunpack.c.h.bf16 %v14
  %v44 = vunpack.c.l.bf16 %v15
  %v45 = vunpack.c.h.bf16 %v15
  %v46 = vunpack.c.l.bf16 %v16
  %v47 = vunpack.c.h.bf16 %v16
  %v48 = vunpack.c.l.bf16 %v17
  %v49 = vunpack.c.h.bf16 %v17
  %v50 = vunpack.c.l.bf16 %v18
  %v51 = vunpack.c.h.bf16 %v18
  %v52 = vunpack.c.l.bf16 %v19
  %v53 = vunpack.c.h.bf16 %v19
  %v54 = vunpack.c.l.bf16 %v20
  %v55 = vunpack.c.h.bf16 %v20
  %v56 = vunpack.c.l.bf16 %v21
  %v57 = vunpack.c.h.bf16 %v21
  %v58 = vunpack.c.l.bf16 %v22
  %v59 = vunpack.c.h.bf16 %v22
  %v60 = vunpack.c.l.bf16 %v23
  %v61 = vunpack.c.h.bf16 %v23
  %v62 = vunpack.c.l.bf16 %v24
  %v63 = vunpack.c.h.bf16 %v24
  %v64 = vunpack.c.l.bf16 %v25
  %v65 = vunpack.c.h.bf16 %v25
  %v66 = vunpack.c.l.bf16 %v26
  %v67 = vunpack.c.h.bf16 %v26
  %v68 = vunpack.c.l.bf16 %v27
  %v69 = vunpack.c.h.bf16 %v27
  %v70 = vunpack.c.l.bf16 %v28
  %v71 = vunpack.c.h.bf16 %v28
  %v72 = vunpack.c.l.bf16 %v29
  %v73 = vunpack.c.h.bf16 %v29
  %v74 = vunpack.c.l.bf16 %v30
  %v75 = vunpack.c.h.bf16 %v30
  %v76 = vunpack.c.l.bf16 %v31
  %v77 = vunpack.c.h.bf16 %v31
  %v78 = vunpack.c.l.bf16 %v32
  %v79 = vunpack.c.h.bf16 %v32
  %v80 = vunpack.c.l.bf16 %v33
  %v81 = vunpack.c.h.bf16 %v33
  %v82 = vunpack.c.l.bf16 %v34
  %v83 = vunpack.c.h.bf16 %v34
  %v84 = vunpack.c.l.bf16 %v35
  %v85 = vunpack.c.h.bf16 %v35
  %v86 = vunpack.c.l.bf16 %v36
  %v87 = vunpack.c.h.bf16 %v36
  %v88 = vunpack.c.l.bf16 %v37
  %v89 = vunpack.c.h.bf16 %v37
  %v90 = vunpack.c.l.bf16 %v38
  %v91 = vunpack.c.h.bf16 %v38
  %v92 = vunpack.c.l.bf16 %v39
  %v93 = vunpack.c.h.bf16 %v39
  %v94 = vunpack.c.l.bf16 %v40
  %v95 = vunpack.c.h.bf16 %v40
  %v96 = vunpack.c.l.bf16 %v41
  %v97 = vunpack.c.h.bf16 %v41
  %v98 = vadd.f32 %v42, %v46
  %v99 = vadd.f32 %v98, %v50
  %v100 = vadd.f32 %v99, %v54
  %v101 = vadd.f32 %v100, %v58
  %v102 = vadd.f32 %v101, %v62
  %vm103 = vcmask 1040384
  %v104 = vsel %vm103, %v66, 0.0
  %v105 = vadd.f32 %v102, %v104
  %v106 = vrot.slane %v105, 4
  %v107 = vadd.f32 %v105, %v106
  %v108 = vrot.slane %v107, 2
  %v109 = vadd.f32 %v107, %v108
  %v110 = vrot.slane %v109, 1
  %v111 = vadd.f32 %v109, %v110
  %v112 = vadd.f32 %v43, %v47
  %v113 = vadd.f32 %v112, %v51
  %v114 = vadd.f32 %v113, %v55
  %v115 = vadd.f32 %v114, %v59
  %v116 = vadd.f32 %v115, %v63
  %v117 = vsel %vm103, %v67, 0.0
  %v118 = vadd.f32 %v116, %v117
  %v119 = vrot.slane %v118, 4
  %v120 = vadd.f32 %v118, %v119
  %v121 = vrot.slane %v120, 2
  %v122 = vadd.f32 %v120, %v121
  %v123 = vrot.slane %v122, 1
  %v124 = vadd.f32 %v122, %v123
  %v125 = vadd.f32 %v44, %v48
  %v126 = vadd.f32 %v125, %v52
  %v127 = vadd.f32 %v126, %v56
  %v128 = vadd.f32 %v127, %v60
  %v129 = vadd.f32 %v128, %v64
  %v130 = vsel %vm103, %v68, 0.0
  %v131 = vadd.f32 %v129, %v130
  %v132 = vrot.slane %v131, 4
  %v133 = vadd.f32 %v131, %v132
  %v134 = vrot.slane %v133, 2
  %v135 = vadd.f32 %v133, %v134
  %v136 = vrot.slane %v135, 1
  %v137 = vadd.f32 %v135, %v136
  %v138 = vadd.f32 %v45, %v49
  %v139 = vadd.f32 %v138, %v53
  %v140 = vadd.f32 %v139, %v57
  %v141 = vadd.f32 %v140, %v61
  %v142 = vadd.f32 %v141, %v65
  %v143 = vsel %vm103, %v69, 0.0
  %v144 = vadd.f32 %v142, %v143
  %v145 = vrot.slane %v144, 4
  %v146 = vadd.f32 %v144, %v145
  %v147 = vrot.slane %v146, 2
  %v148 = vadd.f32 %v146, %v147
  %v149 = vrot.slane %v148, 1
  %v150 = vadd.f32 %v148, %v149
  %v151 = vadd.f32 %v70, %v74
  %v152 = vadd.f32 %v151, %v78
  %v153 = vadd.f32 %v152, %v82
  %v154 = vadd.f32 %v153, %v86
  %v155 = vadd.f32 %v154, %v90
  %v156 = vsel %vm103, %v94, 0.0
  %v157 = vadd.f32 %v155, %v156
  %v158 = vrot.slane %v157, 4
  %v159 = vadd.f32 %v157, %v158
  %v160 = vrot.slane %v159, 2
  %v161 = vadd.f32 %v159, %v160
  %v162 = vrot.slane %v161, 1
  %v163 = vadd.f32 %v161, %v162
  %v164 = vadd.f32 %v71, %v75
  %v165 = vadd.f32 %v164, %v79
  %v166 = vadd.f32 %v165, %v83
  %v167 = vadd.f32 %v166, %v87
  %v168 = vadd.f32 %v167, %v91
  %v169 = vsel %vm103, %v95, 0.0
  %v170 = vadd.f32 %v168, %v169
  %v171 = vrot.slane %v170, 4
  %v172 = vadd.f32 %v170, %v171
  %v173 = vrot.slane %v172, 2
  %v174 = vadd.f32 %v172, %v173
  %v175 = vrot.slane %v174, 1
  %v176 = vadd.f32 %v174, %v175
  %v177 = vadd.f32 %v72, %v76
  %v178 = vadd.f32 %v177, %v80
  %v179 = vadd.f32 %v178, %v84
  %v180 = vadd.f32 %v179, %v88
  %v181 = vadd.f32 %v180, %v92
  %v182 = vsel %vm103, %v96, 0.0
  %v183 = vadd.f32 %v181, %v182
  %v184 = vrot.slane %v183, 4
  %v185 = vadd.f32 %v183, %v184
  %v186 = vrot.slane %v185, 2
  %v187 = vadd.f32 %v185, %v186
  %v188 = vrot.slane %v187, 1
  %v189 = vadd.f32 %v187, %v188
  %v190 = vadd.f32 %v73, %v77
  %v191 = vadd.f32 %v190, %v81
  %v192 = vadd.f32 %v191, %v85
  %v193 = vadd.f32 %v192, %v89
  %v194 = vadd.f32 %v193, %v93
  %v195 = vsel %vm103, %v97, 0.0
  %v196 = vadd.f32 %v194, %v195
  %v197 = vrot.slane %v196, 4
  %v198 = vadd.f32 %v196, %v197
  %v199 = vrot.slane %v198, 2
  %v200 = vadd.f32 %v198, %v199
  %v201 = vrot.slane %v200, 1
  %v202 = vadd.f32 %v200, %v201
  %v203 = vmul.f32 %v111, 0.020408163
  %v204 = vmul.f32 %v124, 0.020408163
  %v205 = vmul.f32 %v137, 0.020408163
  %v206 = vmul.f32 %v150, 0.020408163
  %v207 = vmul.f32 %v163, 0.020408163
  %v208 = vmul.f32 %v176, 0.020408163
  %v209 = vmul.f32 %v189, 0.020408163
  %v210 = vmul.f32 %v202, 0.020408163
  %v211 = vld [vmem:[%s1] sm:$0xf]
  %v213 = vlaneseq
  %v214 = vshrl.u32 %v213, 7
  %v215 = vsub.s32 0, %v214
  %v216 = vrot.slane %v211, %v215
  %v217 = vlaneseq
  %v218 = vshrl.u32 %v217, 7
  %v219 = vsub.s32 1, %v218
  %v220 = vrot.slane %v211, %v219
  %v221 = vlaneseq
  %v222 = vshrl.u32 %v221, 7
  %v223 = vsub.s32 2, %v222
  %v224 = vrot.slane %v211, %v223
  %v225 = vlaneseq
  %v226 = vshrl.u32 %v225, 7
  %v227 = vsub.s32 3, %v226
  %v228 = vrot.slane %v211, %v227
  %v233 = vmul.f32 %v203, %v216
  %v234 = vmul.f32 %v204, %v220
  %v235 = vmul.f32 %v205, %v224
  %v236 = vmul.f32 %v206, %v228
  %v237 = vmul.f32 %v207, %v216
  %v238 = vmul.f32 %v208, %v220
  %v239 = vmul.f32 %v209, %v224
  %v240 = vmul.f32 %v210, %v228
  %v241 = vld [vmem:[%s2] sm:$0xf]
  %v243 = vlaneseq
  %v244 = vshrl.u32 %v243, 7
  %v245 = vsub.s32 0, %v244
  %v246 = vrot.slane %v241, %v245
  %v247 = vlaneseq
  %v248 = vshrl.u32 %v247, 7
  %v249 = vsub.s32 1, %v248
  %v250 = vrot.slane %v241, %v249
  %v251 = vlaneseq
  %v252 = vshrl.u32 %v251, 7
  %v253 = vsub.s32 2, %v252
  %v254 = vrot.slane %v241, %v253
  %v255 = vlaneseq
  %v256 = vshrl.u32 %v255, 7
  %v257 = vsub.s32 3, %v256
  %v258 = vrot.slane %v241, %v257
  %v263 = vadd.f32 %v233, %v246
  %v264 = vadd.f32 %v234, %v250
  %v265 = vadd.f32 %v235, %v254
  %v266 = vadd.f32 %v236, %v258
  %v267 = vadd.f32 %v237, %v246
  %v268 = vadd.f32 %v238, %v250
  %v269 = vadd.f32 %v239, %v254
  %v270 = vadd.f32 %v240, %v258
  %v279 = vcombine.low %v263, %v264
  %v280 = vcombine.low %v265, %v266
  %v282 = vunpack.c.l.s4 1983009808
  %v283 = vunpack.c.0.s8 %v282
  %v284 = vlaneseq
  %v285 = vshrl.u32 %v284, 7
  %v286 = vsub.s32 %v283, %v285
  %v287 = vrot.slane %v279, %v286
  %v289 = vunpack.c.l.s4 1983009808
  %v290 = vunpack.c.0.s8 %v289
  %v291 = vlaneseq
  %v292 = vshrl.u32 %v291, 7
  %v293 = vsub.s32 %v290, %v292
  %v294 = vrot.slane %v280, %v293
  %v295 = vcombine.low %v287, %v294
  %v296 = vcombine.low %v267, %v268
  %v297 = vcombine.low %v269, %v270
  %v299 = vunpack.c.l.s4 1983009808
  %v300 = vunpack.c.0.s8 %v299
  %v301 = vlaneseq
  %v302 = vshrl.u32 %v301, 7
  %v303 = vsub.s32 %v300, %v302
  %v304 = vrot.slane %v296, %v303
  %v306 = vunpack.c.l.s4 1983009808
  %v307 = vunpack.c.0.s8 %v306
  %v308 = vlaneseq
  %v309 = vshrl.u32 %v308, 7
  %v310 = vsub.s32 %v307, %v309
  %v311 = vrot.slane %v297, %v310
  %v312 = vcombine.low %v304, %v311
  %vm313 = vcmask 1044484
  %v314 = vsel %vm313, %v295, %v295
  %vm315 = vcmask 1046534
  %v316 = vsel %vm315, %v295, %v314
  %v317 = vrot.slane %v312, 7
  %vm318 = vcmask 1041409
  %v319 = vsel %vm318, %v317, %v316
  %vm320 = vcmask 1043459
  %v321 = vsel %vm320, %v317, %v319
  %vm322 = vcmask 1045509
  %v323 = vsel %vm322, %v317, %v321
  %vm324 = vcmask 1047559
  %v325 = vsel %vm324, %v317, %v323
  %327 = vst [vmem:[%s3] sm:$0xff] %v325
  // Predicated region
  $region14: #{_lambda_.12} parent=0 // pred_check
    _
  $region15: #{_lambda_.12} parent=0 // pred_check_branch
    %329 = sbr.rel (0) target = $region17
  $region16: #{_lambda_.12} parent=0 // pred_region
    _
  $region17: #{_lambda_.12} parent=0 // pred_fallthru
    _
  // Predicated region
  $region18: #{_lambda_.12} parent=0 // pred_check
    _
  $region19: #{_lambda_.12} parent=0 // pred_check_branch
    %331 = sbr.rel (0) target = $region21
  $region20: #{_lambda_.12} parent=0 // pred_region
    _
  $region21: #{_lambda_.12} parent=0 // pred_fallthru
    _

// kernel: _lambda_.13
$region0: #{_lambda_.13}
  #allocation0 [shape = 'u32[]', space=smem, size = 0x4, offset = 0x4, fixed_abs, tag = 'smem constant byte address 0x4 - core index']
  #allocation1 [shape = 'u32[144,128]{1,0:T(1,128)}', space=vmem, size = 0x12000, scoped, tag = 'internal scratch']
  %s0 = inlined_call_operand.vmem [shape: bf16[2,512], index: 0, kind: input, shape index: {}]
  %s1 = inlined_call_operand.vmem [shape: bf16[512,10], index: 1, kind: input, shape index: {}]
  %s2 = inlined_call_operand.vmem [shape: f32[1,10], index: 2, kind: input, shape index: {}]
  %s3 = inlined_call_operand.hbm [shape: f32[2,10], index: 3, kind: output, shape index: {}]
  %s4 = sld [smem:[#allocation0]]
  $region22: #{_lambda_.13} parent=0
    _
  %s6 = ssub.s32 1, %s4
  %s7 = scalar_select 0, %s6, %s4
  $region1: #{_lambda_.13} parent=0
    #allocation2 [shape = 'u8[1024]{0}', space=vmem, size = 0x400, scoped, tag = 'output window, operand 0, single buffered']
    #allocation3 [shape = 's32[1]{0}', space=sflag, size = 0x4, scoped, tag = 'scoped memory for _lambda_.13']
    %8 = vsyncpa [#allocation3], 0
    // Predicated region
    $region2: #{_lambda_.13} parent=1 // pred_check
      _
    $region3: #{_lambda_.13} parent=1 // pred_check_branch
      %10 = sbr.rel (0) target = $region5
    $region4: #{_lambda_.13} parent=1 // pred_region
      _
    $region5: #{_lambda_.13} parent=1 // pred_fallthru
      _
    // Predicated region
    $region6: #{_lambda_.13} parent=1 // pred_check
      _
    $region7: #{_lambda_.13} parent=1 // pred_check_branch
      %12 = sbr.rel (0) target = $region9
    $region8: #{_lambda_.13} parent=1 // pred_region
      _
    $region9: #{_lambda_.13} parent=1 // pred_fallthru
      _
    // Predicated region
    $region10: #{_lambda_.13} parent=1 // pred_check
      _
    $region11: #{_lambda_.13} parent=1 // pred_check_branch
      %14 = sbr.rel (0) target = $region13
    $region12: #{_lambda_.13} parent=1 // pred_region
      _
    $region13: #{_lambda_.13} parent=1 // pred_fallthru
      _
    %v16 = vld [vmem:[%s0] sm:$0xf]
    %v17 = vld [vmem:[%s1] sm:$0xf]
    %v18 = vld [vmem:[%s1 + $0x4] sm:$0xf]
    %v19 = vld [vmem:[%s1 + $0x8] sm:$0xf]
    %v20 = vld [vmem:[%s1 + $0xc] sm:$0xf]
    %v21 = vld [vmem:[%s1 + $0x10] sm:$0xf]
    %v22 = vld [vmem:[%s1 + $0x14] sm:$0xf]
    %v23 = vld [vmem:[%s1 + $0x18] sm:$0xf]
    %v24 = vld [vmem:[%s1 + $0x1c] sm:$0xf]
    %v25 = vld [vmem:[%s1 + $0x20] sm:$0xf]
    %v26 = vld [vmem:[%s1 + $0x24] sm:$0xf]
    %v27 = vld [vmem:[%s1 + $0x28] sm:$0xf]
    %v28 = vld [vmem:[%s1 + $0x2c] sm:$0xf]
    %v29 = vld [vmem:[%s1 + $0x30] sm:$0xf]
    %v30 = vld [vmem:[%s1 + $0x34] sm:$0xf]
    %v31 = vld [vmem:[%s1 + $0x38] sm:$0xf]
    %v32 = vld [vmem:[%s1 + $0x3c] sm:$0xf]
    %v33 = vld [vmem:[%s1 + $0x40] sm:$0xf]
    %v34 = vld [vmem:[%s1 + $0x44] sm:$0xf]
    %v35 = vld [vmem:[%s1 + $0x48] sm:$0xf]
    %v36 = vld [vmem:[%s1 + $0x4c] sm:$0xf]
    %v37 = vld [vmem:[%s1 + $0x50] sm:$0xf]
    %v38 = vld [vmem:[%s1 + $0x54] sm:$0xf]
    %v39 = vld [vmem:[%s1 + $0x58] sm:$0xf]
    %v40 = vld [vmem:[%s1 + $0x5c] sm:$0xf]
    %v41 = vld [vmem:[%s1 + $0x60] sm:$0xf]
    %v42 = vld [vmem:[%s1 + $0x64] sm:$0xf]
    %v43 = vld [vmem:[%s1 + $0x68] sm:$0xf]
    %v44 = vld [vmem:[%s1 + $0x6c] sm:$0xf]
    %v45 = vld [vmem:[%s1 + $0x70] sm:$0xf]
    %v46 = vld [vmem:[%s1 + $0x74] sm:$0xf]
    %v47 = vld [vmem:[%s1 + $0x78] sm:$0xf]
    %v48 = vld [vmem:[%s1 + $0x7c] sm:$0xf]
    %v49 = vld [vmem:[%s1 + $0x80] sm:$0xf]
    %v50 = vld [vmem:[%s1 + $0x84] sm:$0xf]
    %v51 = vld [vmem:[%s1 + $0x88] sm:$0xf]
    %v52 = vld [vmem:[%s1 + $0x8c] sm:$0xf]
    %v53 = vld [vmem:[%s1 + $0x90] sm:$0xf]
    %v54 = vld [vmem:[%s1 + $0x94] sm:$0xf]
    %v55 = vld [vmem:[%s1 + $0x98] sm:$0xf]
    %v56 = vld [vmem:[%s1 + $0x9c] sm:$0xf]
    %v57 = vld [vmem:[%s1 + $0xa0] sm:$0xf]
    %v58 = vld [vmem:[%s1 + $0xa4] sm:$0xf]
    %v59 = vld [vmem:[%s1 + $0xa8] sm:$0xf]
    %v60 = vld [vmem:[%s1 + $0xac] sm:$0xf]
    %v61 = vld [vmem:[%s1 + $0xb0] sm:$0xf]
    %v62 = vld [vmem:[%s1 + $0xb4] sm:$0xf]
    %v63 = vld [vmem:[%s1 + $0xb8] sm:$0xf]
    %v64 = vld [vmem:[%s1 + $0xbc] sm:$0xf]
    %v65 = vld [vmem:[%s1 + $0xc0] sm:$0xf]
    %v66 = vld [vmem:[%s1 + $0xc4] sm:$0xf]
    %v67 = vld [vmem:[%s1 + $0xc8] sm:$0xf]
    %v68 = vld [vmem:[%s1 + $0xcc] sm:$0xf]
    %v69 = vld [vmem:[%s1 + $0xd0] sm:$0xf]
    %v70 = vld [vmem:[%s1 + $0xd4] sm:$0xf]
    %v71 = vld [vmem:[%s1 + $0xd8] sm:$0xf]
    %v72 = vld [vmem:[%s1 + $0xdc] sm:$0xf]
    %v73 = vld [vmem:[%s1 + $0xe0] sm:$0xf]
    %v74 = vld [vmem:[%s1 + $0xe4] sm:$0xf]
    %v75 = vld [vmem:[%s1 + $0xe8] sm:$0xf]
    %v76 = vld [vmem:[%s1 + $0xec] sm:$0xf]
    %v77 = vld [vmem:[%s1 + $0xf0] sm:$0xf]
    %v78 = vld [vmem:[%s1 + $0xf4] sm:$0xf]
    %v79 = vld [vmem:[%s1 + $0xf8] sm:$0xf]
    %v80 = vld [vmem:[%s1 + $0xfc] sm:$0xf]
    %v81 = vld [vmem:[%s2] sm:$0x1]
    %v83 = vlaneseq
    %v84 = vshrl.u32 %v83, 7
    %v85 = vsub.s32 0, %v84
    %v86 = vrot.slane %v81, %v85
    %v90 = vunpack.c.l.s4 1966171168
    %v91 = vunpack.c.0.s8 %v90
    %v92 = vlaneseq
    %v93 = vshrl.u32 %v92, 7
    %v94 = vsub.s32 %v91, %v93
    %v95 = vrot.slane %v16, %v94
    %v96 = vcombine.high %v95, %v95
    %v98 = vunpack.c.l.s4 1966171168
    %v99 = vunpack.c.0.s8 %v98
    %v100 = vlaneseq
    %v101 = vshrl.u32 %v100, 7
    %v102 = vsub.s32 %v99, %v101
    %v103 = vrot.slane %v95, %v102
    %v105 = vunpack.c.l.s4 1966171168
    %v106 = vunpack.c.0.s8 %v105
    %v107 = vlaneseq
    %v108 = vshrl.u32 %v107, 7
    %v109 = vsub.s32 %v106, %v108
    %v110 = vrot.slane %v96, %v109
    %v111 = vcombine.high %v103, %v103
    %v112 = vcombine.high %v110, %v110
    %v181 = vunpack.c.l.b16 %v17
    %v182 = vunpack.c.l.b16 %v18
    %v183 = vunpack.c.l.b16 %v19
    %v184 = vunpack.c.l.b16 %v20
    %v185 = vunpack.c.l.b16 %v21
    %v186 = vunpack.c.l.b16 %v22
    %v187 = vunpack.c.l.b16 %v23
    %v188 = vunpack.c.l.b16 %v24
    %v189 = vunpack.c.l.b16 %v25
    %v190 = vunpack.c.l.b16 %v26
    %v191 = vunpack.c.l.b16 %v27
    %v192 = vunpack.c.l.b16 %v28
    %v193 = vunpack.c.l.b16 %v29
    %v194 = vunpack.c.l.b16 %v30
    %v195 = vunpack.c.l.b16 %v31
    %v196 = vunpack.c.l.b16 %v32
    %v197 = vunpack.c.l.b16 %v33
    %v198 = vunpack.c.l.b16 %v34
    %v199 = vunpack.c.l.b16 %v35
    %v200 = vunpack.c.l.b16 %v36
    %v201 = vunpack.c.l.b16 %v37
    %v202 = vunpack.c.l.b16 %v38
    %v203 = vunpack.c.l.b16 %v39
    %v204 = vunpack.c.l.b16 %v40
    %v205 = vunpack.c.l.b16 %v41
    %v206 = vunpack.c.l.b16 %v42
    %v207 = vunpack.c.l.b16 %v43
    %v208 = vunpack.c.l.b16 %v44
    %v209 = vunpack.c.l.b16 %v45
    %v210 = vunpack.c.l.b16 %v46
    %v211 = vunpack.c.l.b16 %v47
    %v212 = vunpack.c.l.b16 %v48
    %v213 = vunpack.c.l.b16 %v49
    %v214 = vunpack.c.l.b16 %v50
    %v215 = vunpack.c.l.b16 %v51
    %v216 = vunpack.c.l.b16 %v52
    %v217 = vunpack.c.l.b16 %v53
    %v218 = vunpack.c.l.b16 %v54
    %v219 = vunpack.c.l.b16 %v55
    %v220 = vunpack.c.l.b16 %v56
    %v221 = vunpack.c.l.b16 %v57
    %v222 = vunpack.c.l.b16 %v58
    %v223 = vunpack.c.l.b16 %v59
    %v224 = vunpack.c.l.b16 %v60
    %v225 = vunpack.c.l.b16 %v61
    %v226 = vunpack.c.l.b16 %v62
    %v227 = vunpack.c.l.b16 %v63
    %v228 = vunpack.c.l.b16 %v64
    %v229 = vunpack.c.l.b16 %v65
    %v230 = vunpack.c.l.b16 %v66
    %v231 = vunpack.c.l.b16 %v67
    %v232 = vunpack.c.l.b16 %v68
    %v233 = vunpack.c.l.b16 %v69
    %v234 = vunpack.c.l.b16 %v70
    %v235 = vunpack.c.l.b16 %v71
    %v236 = vunpack.c.l.b16 %v72
    %v237 = vunpack.c.l.b16 %v73
    %v238 = vunpack.c.l.b16 %v74
    %v239 = vunpack.c.l.b16 %v75
    %v240 = vunpack.c.l.b16 %v76
    %v241 = vunpack.c.l.b16 %v77
    %v242 = vunpack.c.l.b16 %v78
    %v243 = vunpack.c.l.b16 %v79
    %v244 = vunpack.c.l.b16 %v80
    %v245 = vpack.c.b16 %v182, %v181
    %v246 = vpack.c.b16 %v184, %v183
    %v247 = vpack.c.b16 %v186, %v185
    %v248 = vpack.c.b16 %v188, %v187
    %v249 = vpack.c.b16 %v190, %v189
    %v250 = vpack.c.b16 %v192, %v191
    %v251 = vpack.c.b16 %v194, %v193
    %v252 = vpack.c.b16 %v196, %v195
    %v253 = vpack.c.b16 %v198, %v197
    %v254 = vpack.c.b16 %v200, %v199
    %v255 = vpack.c.b16 %v202, %v201
    %v256 = vpack.c.b16 %v204, %v203
    %v257 = vpack.c.b16 %v206, %v205
    %v258 = vpack.c.b16 %v208, %v207
    %v259 = vpack.c.b16 %v210, %v209
    %v260 = vpack.c.b16 %v212, %v211
    %v261 = vpack.c.b16 %v214, %v213
    %v262 = vpack.c.b16 %v216, %v215
    %v263 = vpack.c.b16 %v218, %v217
    %v264 = vpack.c.b16 %v220, %v219
    %v265 = vpack.c.b16 %v222, %v221
    %v266 = vpack.c.b16 %v224, %v223
    %v267 = vpack.c.b16 %v226, %v225
    %v268 = vpack.c.b16 %v228, %v227
    %v269 = vpack.c.b16 %v230, %v229
    %v270 = vpack.c.b16 %v232, %v231
    %v271 = vpack.c.b16 %v234, %v233
    %v272 = vpack.c.b16 %v236, %v235
    %v273 = vpack.c.b16 %v238, %v237
    %v274 = vpack.c.b16 %v240, %v239
    %v275 = vpack.c.b16 %v242, %v241
    %v276 = vpack.c.b16 %v244, %v243
    %309 = vmatprep.subr.bf16.mxu0 0
    %310 = vmatpush1.bf16.msra.mxu0 %v252
    %311 = vmatprep.subr.bf16.mxu0 0
    %312 = vmatpush1.bf16.msra.mxu0 %v251
    %313 = vmatprep.subr.bf16.mxu0 0
    %314 = vmatpush1.bf16.msra.mxu0 %v250
    %315 = vmatprep.subr.bf16.mxu0 0
    %316 = vmatpush1.bf16.msra.mxu0 %v249
    %317 = vmatprep.subr.bf16.mxu0 0
    %318 = vmatpush1.bf16.msra.mxu0 %v248
    %319 = vmatprep.subr.bf16.mxu0 0
    %320 = vmatpush1.bf16.msra.mxu0 %v247
    %321 = vmatprep.subr.bf16.mxu0 0
    %322 = vmatpush1.bf16.msra.mxu0 %v246
    %323 = vmatprep.subr.bf16.mxu0 0
    %324 = vmatpush1.bf16.msra.mxu0 %v245
    %325 = vmatprep.subr.bf16.mxu0 0
    %326 = vmatpush2.bf16.msra.mxu0 %v260
    %327 = vmatprep.subr.bf16.mxu0 0
    %328 = vmatpush2.bf16.msra.mxu0 %v259
    %329 = vmatprep.subr.bf16.mxu0 0
    %330 = vmatpush2.bf16.msra.mxu0 %v258
    %331 = vmatprep.subr.bf16.mxu0 0
    %332 = vmatpush2.bf16.msra.mxu0 %v257
    %333 = vmatprep.subr.bf16.mxu0 0
    %334 = vmatpush2.bf16.msra.mxu0 %v256
    %335 = vmatprep.subr.bf16.mxu0 0
    %336 = vmatpush2.bf16.msra.mxu0 %v255
    %337 = vmatprep.subr.bf16.mxu0 0
    %338 = vmatpush2.bf16.msra.mxu0 %v254
    %339 = vmatprep.subr.bf16.mxu0 0
    %340 = vmatpush2.bf16.msra.mxu0 %v253
    %341 = vmatprep.mubr.bf16.mxu0 %v110
    %342 = vmatmul.mubr.bf16.gmra.mxu0 %v103
    %v343 = vpop.f32.mrf.mxu0
    %v344 = vadd.f32 %v86, %v343
    %v345 = vpop.f32.mrf.mxu0
    %v346 = vpop.f32.mrf.mxu0
    %v347 = vpop.f32.mrf.mxu0
    %348 = vdwg.mxu0
    %349 = vmatprep.subr.bf16.mxu0 0
    %350 = vmatpush1.bf16.msra.mxu0 %v268
    %351 = vmatprep.subr.bf16.mxu0 0
    %352 = vmatpush1.bf16.msra.mxu0 %v267
    %353 = vmatprep.subr.bf16.mxu0 0
    %354 = vmatpush1.bf16.msra.mxu0 %v266
    %355 = vmatprep.subr.bf16.mxu0 0
    %356 = vmatpush1.bf16.msra.mxu0 %v265
    %357 = vmatprep.subr.bf16.mxu0 0
    %358 = vmatpush1.bf16.msra.mxu0 %v264
    %359 = vmatprep.subr.bf16.mxu0 0
    %360 = vmatpush1.bf16.msra.mxu0 %v263
    %361 = vmatprep.subr.bf16.mxu0 0
    %362 = vmatpush1.bf16.msra.mxu0 %v262
    %363 = vmatprep.subr.bf16.mxu0 0
    %364 = vmatpush1.bf16.msra.mxu0 %v261
    %365 = vmatprep.subr.bf16.mxu0 0
    %366 = vmatpush2.bf16.msra.mxu0 %v276
    %367 = vmatprep.subr.bf16.mxu0 0
    %368 = vmatpush2.bf16.msra.mxu0 %v275
    %369 = vmatprep.subr.bf16.mxu0 0
    %370 = vmatpush2.bf16.msra.mxu0 %v274
    %371 = vmatprep.subr.bf16.mxu0 0
    %372 = vmatpush2.bf16.msra.mxu0 %v273
    %373 = vmatprep.subr.bf16.mxu0 0
    %374 = vmatpush2.bf16.msra.mxu0 %v272
    %375 = vmatprep.subr.bf16.mxu0 0
    %376 = vmatpush2.bf16.msra.mxu0 %v271
    %377 = vmatprep.subr.bf16.mxu0 0
    %378 = vmatpush2.bf16.msra.mxu0 %v270
    %379 = vmatprep.subr.bf16.mxu0 0
    %380 = vmatpush2.bf16.msra.mxu0 %v269
    %381 = vmatprep.mubr.bf16.mxu0 %v112
    %382 = vmatmul.mubr.bf16.gmra.mxu0 %v111
    %v383 = vpop.f32.mrf.mxu0
    %v384 = vadd.f32 %v344, %v383
    %v385 = vpop.f32.mrf.mxu0
    %v386 = vpop.f32.mrf.mxu0
    %v387 = vpop.f32.mrf.mxu0
    %388 = vdwg.mxu0
    %vm389 = vcmask 74752
    %390 = vst.msk [vmem:[#allocation2] sm:$0x3] %vm389, %v384
    // Predicated region
    $region14: #{_lambda_.13} parent=1 // pred_check
      _
    $region15: #{_lambda_.13} parent=1 // pred_check_branch
      %392 = sbr.rel (0) target = $region17
    $region16: #{_lambda_.13} parent=1 // pred_region
      %s394 = ssub.s32 32, 32
      %395 = vsyncadd [#allocation3], %s394
      %s397 = sshll.u32 [#allocation2], 4
      %s398 = int_to_ptr.vmem [resolvable:$true] %s397
      %400 = dma.vmem_to_hbm [thread:$0]  %s398, 32, %s3, [#allocation3]
    $region17: #{_lambda_.13} parent=1 // pred_fallthru
      _
    // Predicated region
    $region18: #{_lambda_.13} parent=1 // pred_check
      _
    $region19: #{_lambda_.13} parent=1 // pred_check_branch
      %402 = sbr.rel (0) target = $region21
    $region20: #{_lambda_.13} parent=1 // pred_region
      %403 = dma.done [#allocation3], 32
    $region21: #{_lambda_.13} parent=1 // pred_fallthru
      _
    %404 = vsyncpa [#allocation3], 1

</llo_original>
